<compile_context>
chip_gen: v7x
topology: tpu7x:2x2x1
jax: 0.10.0
libtpu: 0.0.40
codegen_flags: <defaults>
</compile_context>

<pallas_src>
import functools

import jax
import jax.numpy as jnp
import numpy as np
from jax.experimental import pallas as pl
from jax.experimental.pallas import tpu as pltpu


# ---------------------------------------------------------------------------
# Pallas kernel: fused matmul + bias + ReLU  (bf16 in, f32 accumulate)
# ---------------------------------------------------------------------------

def _mm_bias_relu_kernel(x_ref, w_ref, b_ref, o_ref):
    acc = jnp.dot(x_ref[...], w_ref[...], preferred_element_type=jnp.float32)
    o_ref[...] = jnp.maximum(acc + b_ref[...], 0.0).astype(o_ref.dtype)


def _round_up(v, m):
    return (v + m - 1) // m * m


def matmul_bias_relu(x, w, b, *, out_dtype=jnp.bfloat16, tn=256):
    """relu(x @ w + b).

    x: (M, K) float (cast to bf16 here; M-padded only when needed)
    w: (K, Np) pre-packed bf16, Np a multiple of 128 (packed once at init)
    b: (1, Np) float32, pre-packed
    Returns the full (Mp, Np) padded result; caller slices the valid region.
    """
    M, K = x.shape
    Kw, Np = w.shape
    assert K == Kw and Np % 128 == 0

    tn = min(tn, Np)
    tm = min(128, _round_up(M, 8))
    # If the layer would otherwise be a single grid point, split M so v7x's
    # two TensorCores both get a "parallel" tile (e.g. conv3).
    if Np == tn and tm >= M and M > 8:
        tm = _round_up(-(-M // 2), 8)
    Mp = _round_up(M, tm)

    x = x.astype(jnp.bfloat16)
    if Mp != M:  # pad only when actually required (cheap, activations only)
        x = jnp.zeros((Mp, K), jnp.bfloat16).at[:M, :].set(x)

    return pl.pallas_call(
        _mm_bias_relu_kernel,
        out_shape=jax.ShapeDtypeStruct((Mp, Np), out_dtype),
        grid_spec=pltpu.PrefetchScalarGridSpec(
            num_scalar_prefetch=0,
            grid=(Mp // tm, Np // tn),
            in_specs=[
                pl.BlockSpec((tm, K), lambda i, j: (i, 0)),   # activations
                pl.BlockSpec((K, tn), lambda i, j: (0, j)),   # weights
                pl.BlockSpec((1, tn), lambda i, j: (0, j)),   # bias
            ],
            out_specs=pl.BlockSpec((tm, tn), lambda i, j: (i, j)),
        ),
        compiler_params=pltpu.CompilerParams(
            dimension_semantics=("parallel", "parallel")),
    )(x, w, b)


# ---------------------------------------------------------------------------
# Conv via NHWC im2col (strided-slice gather is plain-JAX data movement;
# all MACs happen in the Pallas kernel above)
# ---------------------------------------------------------------------------

def conv2d_relu_nhwc(x, w_packed, b_packed, *, kh, kw, stride, out_channels):
    """x: (N, H, W, C) bf16 -> relu(conv2d(x)) as (N, oh, ow, out_channels)."""
    N, H, W, C = x.shape
    oh = (H - kh) // stride + 1
    ow = (W - kw) // stride + 1
    cols = []
    for i in range(kh):
        for j in range(kw):
            cols.append(
                x[:, i:i + stride * oh:stride, j:j + stride * ow:stride, :])
    # (N, oh, ow, kh*kw, C) -> (N*oh*ow, kh*kw*C); C stays on the lane axis.
    patches = jnp.stack(cols, axis=3).reshape(N * oh * ow, kh * kw * C)
    y = matmul_bias_relu(patches, w_packed, b_packed, out_dtype=jnp.bfloat16)
    return y[:N * oh * ow, :out_channels].reshape(N, oh, ow, out_channels)


# ---------------------------------------------------------------------------
# Parameters: PyTorch-layout init + one-time packing for the TPU kernels
# ---------------------------------------------------------------------------

def init_params(key, in_channels, num_moves):
    """PyTorch-layout parameters (Conv2d (O,C,kh,kw), Linear (out,in))."""
    def u(k, shape, fan_in):
        lim = 1.0 / np.sqrt(fan_in)
        return jax.random.uniform(k, shape, jnp.float32, -lim, lim)

    ks = jax.random.split(key, 14)
    feat = 7 * 7 * 64
    return {
        "conv1_w": u(ks[0], (32, in_channels, 8, 8), in_channels * 64),
        "conv1_b": u(ks[1], (32,), in_channels * 64),
        "conv2_w": u(ks[2], (64, 32, 4, 4), 32 * 16),
        "conv2_b": u(ks[3], (64,), 32 * 16),
        "conv3_w": u(ks[4], (64, 64, 3, 3), 64 * 9),
        "conv3_b": u(ks[5], (64,), 64 * 9),
        "adv_fc1_w": u(ks[6], (512, feat), feat),
        "adv_fc1_b": u(ks[7], (512,), feat),
        "adv_fc2_w": u(ks[8], (num_moves, 512), 512),
        "adv_fc2_b": u(ks[9], (num_moves,), 512),
        "val_fc1_w": u(ks[10], (512, feat), feat),
        "val_fc1_b": u(ks[11], (512,), feat),
        "val_fc2_w": u(ks[12], (1, 512), 512),
        "val_fc2_b": u(ks[13], (1,), 512),
    }


def _pack_conv(w, b):
    """(O,C,kh,kw) PyTorch conv weight -> (kh*kw*C, Np) bf16, bias (1, Np) f32."""
    O, C, kh, kw = w.shape
    K = kh * kw * C
    Np = _round_up(O, 128)
    w2 = jnp.transpose(w, (2, 3, 1, 0)).reshape(K, O)          # (kh,kw,C,O)
    w2 = jnp.zeros((K, Np), jnp.float32).at[:, :O].set(w2).astype(jnp.bfloat16)
    b2 = jnp.zeros((1, Np), jnp.float32).at[0, :O].set(b)
    return w2, b2


def prepare_params(p, num_moves):
    """One-time packing: transpose/pad/cast weights OUTSIDE the jitted forward."""
    A = num_moves
    feat = 7 * 7 * 64
    # PyTorch flattens NCHW -> feature order (C,H,W); we flatten NHWC -> (H,W,C).
    # Permute fc1 weight rows once so both flattens give identical results.
    perm = np.arange(feat).reshape(64, 7, 7).transpose(1, 2, 0).reshape(-1)

    c1w, c1b = _pack_conv(p["conv1_w"], p["conv1_b"])
    c2w, c2b = _pack_conv(p["conv2_w"], p["conv2_b"])
    c3w, c3b = _pack_conv(p["conv3_w"], p["conv3_b"])

    # fc1: fuse adv/val heads into one (3136, 1024) bf16 weight.
    fc1_w = jnp.concatenate(
        [p["adv_fc1_w"][:, perm].T, p["val_fc1_w"][:, perm].T], axis=1
    ).astype(jnp.bfloat16)
    fc1_b = jnp.concatenate([p["adv_fc1_b"], p["val_fc1_b"]])[None, :]  # (1,1024) f32

    # fc2: block-diagonal fusion -> one (1024, 128) bf16 weight.
    #   columns [0, A)  : adv_fc2 applied to the adv half of fc1's output
    #   column  A       : val_fc2 applied to the val half of fc1's output
    Np2 = _round_up(A + 1, 128)
    fc2_w = jnp.zeros((1024, Np2), jnp.float32)
    fc2_w = fc2_w.at[:512, :A].set(p["adv_fc2_w"].T)
    fc2_w = fc2_w.at[512:, A].set(p["val_fc2_w"][0])
    fc2_w = fc2_w.astype(jnp.bfloat16)
    fc2_b = jnp.zeros((1, Np2), jnp.float32)
    fc2_b = fc2_b.at[0, :A].set(p["adv_fc2_b"]).at[0, A].set(p["val_fc2_b"][0])

    return {"c1w": c1w, "c1b": c1b, "c2w": c2w, "c2b": c2b,
            "c3w": c3w, "c3b": c3b,
            "fc1_w": fc1_w, "fc1_b": fc1_b,
            "fc2_w": fc2_w, "fc2_b": fc2_b}


# ---------------------------------------------------------------------------
# Forward
# ---------------------------------------------------------------------------

def dueling_dqn_forward(packed, x, num_moves):
    A = num_moves
    # x.view(-1, 2, 84, 84) as in the PyTorch forward; switch to NHWC once.
    x = x.reshape(-1, 2, 84, 84).astype(jnp.bfloat16)
    x = jnp.transpose(x, (0, 2, 3, 1))                              # (B,84,84,2)

    x = conv2d_relu_nhwc(x, packed["c1w"], packed["c1b"],
                         kh=8, kw=8, stride=4, out_channels=32)     # (B,20,20,32)
    x = conv2d_relu_nhwc(x, packed["c2w"], packed["c2b"],
                         kh=4, kw=4, stride=2, out_channels=64)     # (B, 9, 9,64)
    x = conv2d_relu_nhwc(x, packed["c3w"], packed["c3b"],
                         kh=3, kw=3, stride=1, out_channels=64)     # (B, 7, 7,64)

    B = x.shape[0]
    x = x.reshape(B, 7 * 7 * 64)        # NHWC flatten; fc1 rows pre-permuted

    # Fused adv/val fc1 (one matmul), keep padded rows flowing into fc2.
    h = matmul_bias_relu(x, packed["fc1_w"], packed["fc1_b"],
                         out_dtype=jnp.bfloat16)                    # (Mp, 1024)
    # Fused block-diagonal adv/val fc2 (ReLU kept: the reference module applies
    # F.relu to both head outputs).
    y = matmul_bias_relu(h, packed["fc2_w"], packed["fc2_b"],
                         out_dtype=jnp.float32)                     # (Mp, 128)

    adv = y[:B, :A]
    val = y[:B, A:A + 1]
    # Dueling combine: tiny (B, A) epilogue -> plain JAX, no kernel launch.
    return val + (adv - jnp.mean(adv, axis=1, keepdims=True))


if __name__ == "__main__":
    key = jax.random.PRNGKey(0)
    kx, kp = jax.random.split(key)

    in_channels, num_moves, batch = 2, 6, 2
    params = init_params(kp, in_channels, num_moves)
    packed = prepare_params(params, num_moves)      # one-time packing (not jitted)

    x = jax.random.uniform(kx, (batch, in_channels, 84, 84), jnp.float32)

    fwd = jax.jit(functools.partial(dueling_dqn_forward, num_moves=num_moves))
    out = jax.block_until_ready(fwd(packed, x))

    assert out.shape == (batch, num_moves), out.shape
    assert bool(jnp.all(jnp.isfinite(out)))
    print("KERNEL_OK")
</pallas_src>

<mosaic_0001>
module attributes {stable_mosaic.version = 11 : i64} {
  func.func @_mm_bias_relu_kernel(%arg0: i32, %arg1: i32, %arg2: memref<128x128xbf16, #tpu.memory_space<vmem>>, %arg3: memref<128x128xbf16, #tpu.memory_space<vmem>>, %arg4: memref<1x128xf32, #tpu.memory_space<vmem>>, %arg5: memref<128x128xbf16, #tpu.memory_space<vmem>>) attributes {dimension_semantics = [#tpu.dimension_semantics<parallel>, #tpu.dimension_semantics<parallel>], iteration_bounds = array<i64: 7, 1>, scalar_prefetch = 0 : i64, scratch_operands = 0 : i64, tpu.core_type = #tpu.core_type<tc>, window_params = [{transform_indices = @transform_0, window_bounds = array<i64: 128, 128>}, {transform_indices = @transform_1, window_bounds = array<i64: 128, 128>}, {transform_indices = @transform_2, window_bounds = array<i64: 1, 128>}, {transform_indices = @transform_3, window_bounds = array<i64: 128, 128>}]} {
    %c0 = arith.constant 0 : index
    %c0_0 = arith.constant 0 : index
    %0 = vector.load %arg2[%c0, %c0_0] : memref<128x128xbf16, #tpu.memory_space<vmem>>, vector<128x128xbf16>
    %c0_1 = arith.constant 0 : index
    %c0_2 = arith.constant 0 : index
    %1 = vector.load %arg3[%c0_1, %c0_2] : memref<128x128xbf16, #tpu.memory_space<vmem>>, vector<128x128xbf16>
    %cst = arith.constant dense<0.000000e+00> : vector<128x128xf32>
    %2 = tpu.matmul %0, %1, %cst {dimension_numbers = #tpu.dot_dimension_numbers<[1], [0], [0], [1], [0, 0, 1, 1], [], []>} : vector<128x128xbf16>, vector<128x128xbf16>, vector<128x128xf32> -> vector<128x128xf32>
    %c0_3 = arith.constant 0 : index
    %c0_4 = arith.constant 0 : index
    %3 = vector.load %arg4[%c0_3, %c0_4] : memref<1x128xf32, #tpu.memory_space<vmem>>, vector<1x128xf32>
    %4 = vector.broadcast %3 : vector<1x128xf32> to vector<128x128xf32>
    %5 = arith.addf %2, %4 : vector<128x128xf32>
    %cst_5 = arith.constant 0.000000e+00 : f32
    %6 = vector.broadcast %cst_5 : f32 to vector<128x128xf32>
    %7 = arith.maximumf %5, %6 : vector<128x128xf32>
    %8 = arith.truncf %7 : vector<128x128xf32> to vector<128x128xbf16>
    %c0_6 = arith.constant 0 : index
    %c0_7 = arith.constant 0 : index
    %9 = vector.load %arg5[%c0_6, %c0_7] : memref<128x128xbf16, #tpu.memory_space<vmem>>, vector<128x128xbf16>
    tpu.vector_store %arg5[%c0_6, %c0_7], %8 {strides = array<i32>} : memref<128x128xbf16, #tpu.memory_space<vmem>>, vector<128x128xbf16>,
    return
  }
  func.func @transform_0(%arg0: i32, %arg1: i32) -> (i32, i32) {
    %c0_i32 = arith.constant 0 : i32
    %c0_i32_0 = arith.constant 0 : i32
    return %arg0, %c0_i32 : i32, i32
  }
  func.func @transform_1(%arg0: i32, %arg1: i32) -> (i32, i32) {
    %c0_i32 = arith.constant 0 : i32
    %c0_i32_0 = arith.constant 0 : i32
    return %c0_i32, %arg1 : i32, i32
  }
  func.func @transform_2(%arg0: i32, %arg1: i32) -> (i32, i32) {
    %c0_i32 = arith.constant 0 : i32
    %c0_i32_0 = arith.constant 0 : i32
    return %c0_i32, %arg1 : i32, i32
  }
  func.func @transform_3(%arg0: i32, %arg1: i32) -> (i32, i32) {
    %c0_i32 = arith.constant 0 : i32
    return %arg0, %arg1 : i32, i32
  }
}

module attributes {stable_mosaic.version = 11 : i64} {
  func.func @_mm_bias_relu_kernel(%arg0: i32, %arg1: i32, %arg2: memref<128x512xbf16, #tpu.memory_space<vmem>>, %arg3: memref<512x128xbf16, #tpu.memory_space<vmem>>, %arg4: memref<1x128xf32, #tpu.memory_space<vmem>>, %arg5: memref<128x128xbf16, #tpu.memory_space<vmem>>) attributes {dimension_semantics = [#tpu.dimension_semantics<parallel>, #tpu.dimension_semantics<parallel>], iteration_bounds = array<i64: 2, 1>, scalar_prefetch = 0 : i64, scratch_operands = 0 : i64, tpu.core_type = #tpu.core_type<tc>, window_params = [{transform_indices = @transform_0, window_bounds = array<i64: 128, 512>}, {transform_indices = @transform_1, window_bounds = array<i64: 512, 128>}, {transform_indices = @transform_2, window_bounds = array<i64: 1, 128>}, {transform_indices = @transform_3, window_bounds = array<i64: 128, 128>}]} {
    %c0 = arith.constant 0 : index
    %c0_0 = arith.constant 0 : index
    %0 = vector.load %arg2[%c0, %c0_0] : memref<128x512xbf16, #tpu.memory_space<vmem>>, vector<128x512xbf16>
    %c0_1 = arith.constant 0 : index
    %c0_2 = arith.constant 0 : index
    %1 = vector.load %arg3[%c0_1, %c0_2] : memref<512x128xbf16, #tpu.memory_space<vmem>>, vector<512x128xbf16>
    %cst = arith.constant dense<0.000000e+00> : vector<128x128xf32>
    %2 = tpu.matmul %0, %1, %cst {dimension_numbers = #tpu.dot_dimension_numbers<[1], [0], [0], [1], [0, 0, 1, 1], [], []>} : vector<128x512xbf16>, vector<512x128xbf16>, vector<128x128xf32> -> vector<128x128xf32>
    %c0_3 = arith.constant 0 : index
    %c0_4 = arith.constant 0 : index
    %3 = vector.load %arg4[%c0_3, %c0_4] : memref<1x128xf32, #tpu.memory_space<vmem>>, vector<1x128xf32>
    %4 = vector.broadcast %3 : vector<1x128xf32> to vector<128x128xf32>
    %5 = arith.addf %2, %4 : vector<128x128xf32>
    %cst_5 = arith.constant 0.000000e+00 : f32
    %6 = vector.broadcast %cst_5 : f32 to vector<128x128xf32>
    %7 = arith.maximumf %5, %6 : vector<128x128xf32>
    %8 = arith.truncf %7 : vector<128x128xf32> to vector<128x128xbf16>
    %c0_6 = arith.constant 0 : index
    %c0_7 = arith.constant 0 : index
    %9 = vector.load %arg5[%c0_6, %c0_7] : memref<128x128xbf16, #tpu.memory_space<vmem>>, vector<128x128xbf16>
    tpu.vector_store %arg5[%c0_6, %c0_7], %8 {strides = array<i32>} : memref<128x128xbf16, #tpu.memory_space<vmem>>, vector<128x128xbf16>,
    return
  }
  func.func @transform_0(%arg0: i32, %arg1: i32) -> (i32, i32) {
    %c0_i32 = arith.constant 0 : i32
    %c0_i32_0 = arith.constant 0 : i32
    return %arg0, %c0_i32 : i32, i32
  }
  func.func @transform_1(%arg0: i32, %arg1: i32) -> (i32, i32) {
    %c0_i32 = arith.constant 0 : i32
    %c0_i32_0 = arith.constant 0 : i32
    return %c0_i32, %arg1 : i32, i32
  }
  func.func @transform_2(%arg0: i32, %arg1: i32) -> (i32, i32) {
    %c0_i32 = arith.constant 0 : i32
    %c0_i32_0 = arith.constant 0 : i32
    return %c0_i32, %arg1 : i32, i32
  }
  func.func @transform_3(%arg0: i32, %arg1: i32) -> (i32, i32) {
    %c0_i32 = arith.constant 0 : i32
    return %arg0, %arg1 : i32, i32
  }
}

module attributes {stable_mosaic.version = 11 : i64} {
  func.func @_mm_bias_relu_kernel(%arg0: i32, %arg1: i32, %arg2: memref<56x576xbf16, #tpu.memory_space<vmem>>, %arg3: memref<576x128xbf16, #tpu.memory_space<vmem>>, %arg4: memref<1x128xf32, #tpu.memory_space<vmem>>, %arg5: memref<56x128xbf16, #tpu.memory_space<vmem>>) attributes {dimension_semantics = [#tpu.dimension_semantics<parallel>, #tpu.dimension_semantics<parallel>], iteration_bounds = array<i64: 2, 1>, scalar_prefetch = 0 : i64, scratch_operands = 0 : i64, tpu.core_type = #tpu.core_type<tc>, window_params = [{transform_indices = @transform_0, window_bounds = array<i64: 56, 576>}, {transform_indices = @transform_1, window_bounds = array<i64: 576, 128>}, {transform_indices = @transform_2, window_bounds = array<i64: 1, 128>}, {transform_indices = @transform_3, window_bounds = array<i64: 56, 128>}]} {
    %c0 = arith.constant 0 : index
    %c0_0 = arith.constant 0 : index
    %0 = vector.load %arg2[%c0, %c0_0] : memref<56x576xbf16, #tpu.memory_space<vmem>>, vector<56x576xbf16>
    %c0_1 = arith.constant 0 : index
    %c0_2 = arith.constant 0 : index
    %1 = vector.load %arg3[%c0_1, %c0_2] : memref<576x128xbf16, #tpu.memory_space<vmem>>, vector<576x128xbf16>
    %cst = arith.constant dense<0.000000e+00> : vector<56x128xf32>
    %2 = tpu.matmul %0, %1, %cst {dimension_numbers = #tpu.dot_dimension_numbers<[1], [0], [0], [1], [0, 0, 1, 1], [], []>} : vector<56x576xbf16>, vector<576x128xbf16>, vector<56x128xf32> -> vector<56x128xf32>
    %c0_3 = arith.constant 0 : index
    %c0_4 = arith.constant 0 : index
    %3 = vector.load %arg4[%c0_3, %c0_4] : memref<1x128xf32, #tpu.memory_space<vmem>>, vector<1x128xf32>
    %4 = vector.broadcast %3 : vector<1x128xf32> to vector<56x128xf32>
    %5 = arith.addf %2, %4 : vector<56x128xf32>
    %cst_5 = arith.constant 0.000000e+00 : f32
    %6 = vector.broadcast %cst_5 : f32 to vector<56x128xf32>
    %7 = arith.maximumf %5, %6 : vector<56x128xf32>
    %8 = arith.truncf %7 : vector<56x128xf32> to vector<56x128xbf16>
    %c0_6 = arith.constant 0 : index
    %c0_7 = arith.constant 0 : index
    %9 = vector.load %arg5[%c0_6, %c0_7] : memref<56x128xbf16, #tpu.memory_space<vmem>>, vector<56x128xbf16>
    tpu.vector_store %arg5[%c0_6, %c0_7], %8 {strides = array<i32>} : memref<56x128xbf16, #tpu.memory_space<vmem>>, vector<56x128xbf16>,
    return
  }
  func.func @transform_0(%arg0: i32, %arg1: i32) -> (i32, i32) {
    %c0_i32 = arith.constant 0 : i32
    %c0_i32_0 = arith.constant 0 : i32
    return %arg0, %c0_i32 : i32, i32
  }
  func.func @transform_1(%arg0: i32, %arg1: i32) -> (i32, i32) {
    %c0_i32 = arith.constant 0 : i32
    %c0_i32_0 = arith.constant 0 : i32
    return %c0_i32, %arg1 : i32, i32
  }
  func.func @transform_2(%arg0: i32, %arg1: i32) -> (i32, i32) {
    %c0_i32 = arith.constant 0 : i32
    %c0_i32_0 = arith.constant 0 : i32
    return %c0_i32, %arg1 : i32, i32
  }
  func.func @transform_3(%arg0: i32, %arg1: i32) -> (i32, i32) {
    %c0_i32 = arith.constant 0 : i32
    return %arg0, %arg1 : i32, i32
  }
}

module attributes {stable_mosaic.version = 11 : i64} {
  func.func @_mm_bias_relu_kernel(%arg0: i32, %arg1: i32, %arg2: memref<8x3136xbf16, #tpu.memory_space<vmem>>, %arg3: memref<3136x256xbf16, #tpu.memory_space<vmem>>, %arg4: memref<1x256xf32, #tpu.memory_space<vmem>>, %arg5: memref<8x256xbf16, #tpu.memory_space<vmem>>) attributes {dimension_semantics = [#tpu.dimension_semantics<parallel>, #tpu.dimension_semantics<parallel>], iteration_bounds = array<i64: 1, 4>, scalar_prefetch = 0 : i64, scratch_operands = 0 : i64, tpu.core_type = #tpu.core_type<tc>, window_params = [{transform_indices = @transform_0, window_bounds = array<i64: 8, 3136>}, {transform_indices = @transform_1, window_bounds = array<i64: 3136, 256>}, {transform_indices = @transform_2, window_bounds = array<i64: 1, 256>}, {transform_indices = @transform_3, window_bounds = array<i64: 8, 256>}]} {
    %c0 = arith.constant 0 : index
    %c0_0 = arith.constant 0 : index
    %0 = vector.load %arg2[%c0, %c0_0] : memref<8x3136xbf16, #tpu.memory_space<vmem>>, vector<8x3136xbf16>
    %c0_1 = arith.constant 0 : index
    %c0_2 = arith.constant 0 : index
    %1 = vector.load %arg3[%c0_1, %c0_2] : memref<3136x256xbf16, #tpu.memory_space<vmem>>, vector<3136x256xbf16>
    %cst = arith.constant dense<0.000000e+00> : vector<8x256xf32>
    %2 = tpu.matmul %0, %1, %cst {dimension_numbers = #tpu.dot_dimension_numbers<[1], [0], [0], [1], [0, 0, 1, 1], [], []>} : vector<8x3136xbf16>, vector<3136x256xbf16>, vector<8x256xf32> -> vector<8x256xf32>
    %c0_3 = arith.constant 0 : index
    %c0_4 = arith.constant 0 : index
    %3 = vector.load %arg4[%c0_3, %c0_4] : memref<1x256xf32, #tpu.memory_space<vmem>>, vector<1x256xf32>
    %4 = vector.broadcast %3 : vector<1x256xf32> to vector<8x256xf32>
    %5 = arith.addf %2, %4 : vector<8x256xf32>
    %cst_5 = arith.constant 0.000000e+00 : f32
    %6 = vector.broadcast %cst_5 : f32 to vector<8x256xf32>
    %7 = arith.maximumf %5, %6 : vector<8x256xf32>
    %8 = arith.truncf %7 : vector<8x256xf32> to vector<8x256xbf16>
    %c0_6 = arith.constant 0 : index
    %c0_7 = arith.constant 0 : index
    %9 = vector.load %arg5[%c0_6, %c0_7] : memref<8x256xbf16, #tpu.memory_space<vmem>>, vector<8x256xbf16>
    tpu.vector_store %arg5[%c0_6, %c0_7], %8 {strides = array<i32>} : memref<8x256xbf16, #tpu.memory_space<vmem>>, vector<8x256xbf16>,
    return
  }
  func.func @transform_0(%arg0: i32, %arg1: i32) -> (i32, i32) {
    %c0_i32 = arith.constant 0 : i32
    %c0_i32_0 = arith.constant 0 : i32
    return %arg0, %c0_i32 : i32, i32
  }
  func.func @transform_1(%arg0: i32, %arg1: i32) -> (i32, i32) {
    %c0_i32 = arith.constant 0 : i32
    %c0_i32_0 = arith.constant 0 : i32
    return %c0_i32, %arg1 : i32, i32
  }
  func.func @transform_2(%arg0: i32, %arg1: i32) -> (i32, i32) {
    %c0_i32 = arith.constant 0 : i32
    %c0_i32_0 = arith.constant 0 : i32
    return %c0_i32, %arg1 : i32, i32
  }
  func.func @transform_3(%arg0: i32, %arg1: i32) -> (i32, i32) {
    %c0_i32 = arith.constant 0 : i32
    return %arg0, %arg1 : i32, i32
  }
}

module attributes {stable_mosaic.version = 11 : i64} {
  func.func @_mm_bias_relu_kernel(%arg0: i32, %arg1: i32, %arg2: memref<8x1024xbf16, #tpu.memory_space<vmem>>, %arg3: memref<1024x128xbf16, #tpu.memory_space<vmem>>, %arg4: memref<1x128xf32, #tpu.memory_space<vmem>>, %arg5: memref<8x128xf32, #tpu.memory_space<vmem>>) attributes {dimension_semantics = [#tpu.dimension_semantics<parallel>, #tpu.dimension_semantics<parallel>], iteration_bounds = array<i64: 1, 1>, scalar_prefetch = 0 : i64, scratch_operands = 0 : i64, tpu.core_type = #tpu.core_type<tc>, window_params = [{transform_indices = @transform_0, window_bounds = array<i64: 8, 1024>}, {transform_indices = @transform_1, window_bounds = array<i64: 1024, 128>}, {transform_indices = @transform_2, window_bounds = array<i64: 1, 128>}, {transform_indices = @transform_3, window_bounds = array<i64: 8, 128>}]} {
    %c0 = arith.constant 0 : index
    %c0_0 = arith.constant 0 : index
    %0 = vector.load %arg2[%c0, %c0_0] : memref<8x1024xbf16, #tpu.memory_space<vmem>>, vector<8x1024xbf16>
    %c0_1 = arith.constant 0 : index
    %c0_2 = arith.constant 0 : index
    %1 = vector.load %arg3[%c0_1, %c0_2] : memref<1024x128xbf16, #tpu.memory_space<vmem>>, vector<1024x128xbf16>
    %cst = arith.constant dense<0.000000e+00> : vector<8x128xf32>
    %2 = tpu.matmul %0, %1, %cst {dimension_numbers = #tpu.dot_dimension_numbers<[1], [0], [0], [1], [0, 0, 1, 1], [], []>} : vector<8x1024xbf16>, vector<1024x128xbf16>, vector<8x128xf32> -> vector<8x128xf32>
    %c0_3 = arith.constant 0 : index
    %c0_4 = arith.constant 0 : index
    %3 = vector.load %arg4[%c0_3, %c0_4] : memref<1x128xf32, #tpu.memory_space<vmem>>, vector<1x128xf32>
    %4 = vector.broadcast %3 : vector<1x128xf32> to vector<8x128xf32>
    %5 = arith.addf %2, %4 : vector<8x128xf32>
    %cst_5 = arith.constant 0.000000e+00 : f32
    %6 = vector.broadcast %cst_5 : f32 to vector<8x128xf32>
    %7 = arith.maximumf %5, %6 : vector<8x128xf32>
    %c0_6 = arith.constant 0 : index
    %c0_7 = arith.constant 0 : index
    %8 = vector.load %arg5[%c0_6, %c0_7] : memref<8x128xf32, #tpu.memory_space<vmem>>, vector<8x128xf32>
    tpu.vector_store %arg5[%c0_6, %c0_7], %7 {strides = array<i32>} : memref<8x128xf32, #tpu.memory_space<vmem>>, vector<8x128xf32>,
    return
  }
  func.func @transform_0(%arg0: i32, %arg1: i32) -> (i32, i32) {
    %c0_i32 = arith.constant 0 : i32
    %c0_i32_0 = arith.constant 0 : i32
    return %arg0, %c0_i32 : i32, i32
  }
  func.func @transform_1(%arg0: i32, %arg1: i32) -> (i32, i32) {
    %c0_i32 = arith.constant 0 : i32
    %c0_i32_0 = arith.constant 0 : i32
    return %c0_i32, %arg1 : i32, i32
  }
  func.func @transform_2(%arg0: i32, %arg1: i32) -> (i32, i32) {
    %c0_i32 = arith.constant 0 : i32
    %c0_i32_0 = arith.constant 0 : i32
    return %c0_i32, %arg1 : i32, i32
  }
  func.func @transform_3(%arg0: i32, %arg1: i32) -> (i32, i32) {
    %c0_i32 = arith.constant 0 : i32
    return %arg0, %arg1 : i32, i32
  }
}

</mosaic_0001>

<llo_original>
// kernel: dueling_dqn_forward.5
$region0: #{dueling_dqn_forward.5}
  #allocation0 [shape = 'u32[]', space=smem, size = 0x4, offset = 0x4, fixed_abs, tag = 'smem constant byte address 0x4 - core index']
  #allocation1 [shape = 'u32[144,128]{1,0:T(1,128)}', space=vmem, size = 0x12000, scoped, tag = 'internal scratch']
  %s0 = inlined_call_operand.vmem [shape: bf16[896,128], index: 0, kind: input, shape index: {}]
  %s1 = inlined_call_operand.vmem [shape: bf16[128,128], index: 1, kind: input, shape index: {}]
  %s2 = inlined_call_operand.vmem [shape: f32[1,128], index: 2, kind: input, shape index: {}]
  %s3 = inlined_call_operand.vmem [shape: bf16[896,128], index: 3, kind: output, shape index: {}]
  %s4 = sld [smem:[#allocation0]]
  $region45: #{dueling_dqn_forward.5} parent=0
    _
  %s6 = ssub.s32 1, %s4
  %s7 = scalar_select 0, %s6, %s4
  loop: start=0, step=1, limit=9
  $region2: #{dueling_dqn_forward.5} parent=0 // loop_pre_header
    _
  $region3: #{dueling_dqn_forward.5} parent=0 // loop_header
    %s9 = sphi 0, %s13
    %p10 = scmp.ge.s32.totalorder %s9, 9
    %s16 = sphi 0, %s28
    %s17 = sphi 0, %s24
    %s18 = sphi 0, %s16
    %s19 = sphi 0, %s17
    %s20 = sphi 0, %s18
    %s21 = sphi 0, %s19
    %s31 = sphi 0, %s33
    %s34 = sphi 0, %s31
    %s35 = sphi 0, %s34
    %s51 = sphi 0, %s35
    %s57 = sphi 0, %s59
    %s60 = sphi 0, %s57
    %s61 = sphi 0, %s60
    %s77 = sphi 0, %s61
    %s83 = sphi 0, %s85
    %s86 = sphi 0, %s83
    %s87 = sphi 0, %s86
    %s103 = sphi 0, %s87
    %s111 = sphi 0, %s113
    %s114 = sphi 0, %s111
    %s115 = sphi 0, %s114
    %s131 = sphi 0, %s115
  $region4: #{dueling_dqn_forward.5} parent=0 // loop_header_branch
    %12 = sbr.rel (%p10) target = $region8
  $region5: #{dueling_dqn_forward.5} parent=0 // loop_body
    %s14 = ssub.s32 %s9, 1
    %s15 = ssub.s32 %s9, 2
    %s22 = sadd.s32 1, %s17
    %p23 = scmp.ge.s32.totalorder %s22, 1
    %s24 = scalar_select %p23, 0, %s22
    %s25 = sadd.s32 1, %s16
    %s26 = scalar_select %p23, %s25, %s16
    %p27 = scmp.ge.s32.totalorder %s26, 7
    %s28 = scalar_select %p27, 0, %s26
    %s29 = ssub.s32 %s16, %s28
    %p30 = scmp.eq.s32.totalorder %s29, 0
    %s32 = sadd.s32 %s31, 1
    %s33 = scalar_select %p30, %s31, %s32
    %p36 = pneg %p30
    %p37 = scmp.eq.s32.totalorder %s9, 6
    %p38 = por %p36, %p37
    %p39 = scmp.ne.s32.totalorder %s31, %s34
    %p40 = scmp.eq.s32.totalorder %s9, 0
    %p41 = por %p39, %p40
    %p42 = scmp.ne.s32.totalorder %s31, %s34
    %p43 = scmp.eq.s32.totalorder %s14, 6
    %p44 = por %p42, %p43
    %p45 = scmp.ne.s32.totalorder %s34, %s35
    %p46 = scmp.eq.s32.totalorder %s14, 0
    %p47 = por %p45, %p46
    %p48 = scmp.ne.s32.totalorder %s34, %s35
    %p49 = scmp.eq.s32.totalorder %s15, 6
    %p50 = por %p48, %p49
    %p52 = scmp.ne.s32.totalorder %s35, %s51
    %p53 = scmp.eq.s32.totalorder %s15, 0
    %p54 = por %p52, %p53
    %s55 = ssub.s32 %s17, %s24
    %p56 = scmp.eq.s32.totalorder %s55, 0
    %s58 = sadd.s32 %s57, 1
    %s59 = scalar_select %p56, %s57, %s58
    %p62 = pneg %p56
    %p63 = scmp.eq.s32.totalorder %s9, 6
    %p64 = por %p62, %p63
    %p65 = scmp.ne.s32.totalorder %s57, %s60
    %p66 = scmp.eq.s32.totalorder %s9, 0
    %p67 = por %p65, %p66
    %p68 = scmp.ne.s32.totalorder %s57, %s60
    %p69 = scmp.eq.s32.totalorder %s14, 6
    %p70 = por %p68, %p69
    %p71 = scmp.ne.s32.totalorder %s60, %s61
    %p72 = scmp.eq.s32.totalorder %s14, 0
    %p73 = por %p71, %p72
    %p74 = scmp.ne.s32.totalorder %s60, %s61
    %p75 = scmp.eq.s32.totalorder %s15, 6
    %p76 = por %p74, %p75
    %p78 = scmp.ne.s32.totalorder %s61, %s77
    %p79 = scmp.eq.s32.totalorder %s15, 0
    %p80 = por %p78, %p79
    %s81 = ssub.s32 %s17, %s24
    %p82 = scmp.eq.s32.totalorder %s81, 0
    %s84 = sadd.s32 %s83, 1
    %s85 = scalar_select %p82, %s83, %s84
    %p88 = pneg %p82
    %p89 = scmp.eq.s32.totalorder %s9, 6
    %p90 = por %p88, %p89
    %p91 = scmp.ne.s32.totalorder %s83, %s86
    %p92 = scmp.eq.s32.totalorder %s9, 0
    %p93 = por %p91, %p92
    %p94 = scmp.ne.s32.totalorder %s83, %s86
    %p95 = scmp.eq.s32.totalorder %s14, 6
    %p96 = por %p94, %p95
    %p97 = scmp.ne.s32.totalorder %s86, %s87
    %p98 = scmp.eq.s32.totalorder %s14, 0
    %p99 = por %p97, %p98
    %p100 = scmp.ne.s32.totalorder %s86, %s87
    %p101 = scmp.eq.s32.totalorder %s15, 6
    %p102 = por %p100, %p101
    %p104 = scmp.ne.s32.totalorder %s87, %s103
    %p105 = scmp.eq.s32.totalorder %s15, 0
    %p106 = por %p104, %p105
    %s107 = ssub.s32 %s16, %s28
    %s108 = ssub.s32 %s17, %s24
    %s109 = sor.u32 %s107, %s108
    %p110 = scmp.eq.s32.totalorder %s109, 0
    %s112 = sadd.s32 %s111, 1
    %s113 = scalar_select %p110, %s111, %s112
    %p116 = pneg %p110
    %p117 = scmp.eq.s32.totalorder %s9, 6
    %p118 = por %p116, %p117
    %p119 = scmp.ne.s32.totalorder %s111, %s114
    %p120 = scmp.eq.s32.totalorder %s9, 0
    %p121 = por %p119, %p120
    %p122 = scmp.ne.s32.totalorder %s111, %s114
    %p123 = scmp.eq.s32.totalorder %s14, 6
    %p124 = por %p122, %p123
    %p125 = scmp.ne.s32.totalorder %s114, %s115
    %p126 = scmp.eq.s32.totalorder %s14, 0
    %p127 = por %p125, %p126
    %p128 = scmp.ne.s32.totalorder %s114, %s115
    %p129 = scmp.eq.s32.totalorder %s15, 6
    %p130 = por %p128, %p129
    %p132 = scmp.ne.s32.totalorder %s115, %s131
    %p133 = scmp.eq.s32.totalorder %s15, 0
    %p134 = por %p132, %p133
    %p135 = scmp.le.s32.totalorder 1, %s9
    %p136 = scmp.lt.s32.totalorder %s9, 8
    %p137 = pnand %p135, %p136
    %p138 = pneg %p137
    // Predicated region
    $region9: #{dueling_dqn_forward.5} parent=5 // pred_check
      _
    $region10: #{dueling_dqn_forward.5} parent=5 // pred_check_branch
      %140 = sbr.rel (%p137) target = $region12
    $region11: #{dueling_dqn_forward.5} parent=5 // pred_region
      %s141 = ssub.s32 %s9, 1
      // Predicated region
      $region13: #{dueling_dqn_forward.5} parent=11 // pred_check
        %p142 = pneg %p73
      $region14: #{dueling_dqn_forward.5} parent=11 // pred_check_branch
        %144 = sbr.rel (%p142) target = $region16
      $region15: #{dueling_dqn_forward.5} parent=11 // pred_region
        %p145 = scmp.lt.s32.totalorder %s19, 0
        %s146 = scalar_select %p145, %s19, 0
        %s147 = smul.addr %s146, 4
        %s148 = scalar_lea.vmem %s1, %s147
      $region16: #{dueling_dqn_forward.5} parent=11 // pred_fallthru
        _
      // Predicated region
      $region17: #{dueling_dqn_forward.5} parent=11 // pred_check
        %p149 = pneg %p99
      $region18: #{dueling_dqn_forward.5} parent=11 // pred_check_branch
        %151 = sbr.rel (%p149) target = $region20
      $region19: #{dueling_dqn_forward.5} parent=11 // pred_region
        %p152 = scmp.lt.s32.totalorder %s19, 0
        %s153 = scalar_select %p152, %s19, 0
        %s154 = scalar_lea.vmem %s2, %s153
      $region20: #{dueling_dqn_forward.5} parent=11 // pred_fallthru
        _
    $region12: #{dueling_dqn_forward.5} parent=5 // pred_fallthru
      _
    %p155 = scmp.lt.s32.totalorder %s9, 7
    // Predicated region
    $region21: #{dueling_dqn_forward.5} parent=5 // pred_check
      %p156 = pneg %p155
    $region22: #{dueling_dqn_forward.5} parent=5 // pred_check_branch
      %158 = sbr.rel (%p156) target = $region24
    $region23: #{dueling_dqn_forward.5} parent=5 // pred_region
      // Predicated region
      $region25: #{dueling_dqn_forward.5} parent=23 // pred_check
        %p159 = pneg %p41
      $region26: #{dueling_dqn_forward.5} parent=23 // pred_check_branch
        %161 = sbr.rel (%p159) target = $region28
      $region27: #{dueling_dqn_forward.5} parent=23 // pred_region
        %s162 = smul.u32 16, %s16
        %p163 = scmp.lt.s32.totalorder %s162, 111
        %s164 = scalar_select %p163, %s162, 111
        %s165 = smul.addr %s164, 4
        %s166 = scalar_lea.vmem %s0, %s165
        %s167 = smul.u32 16, %s16
      $region28: #{dueling_dqn_forward.5} parent=23 // pred_fallthru
        _
    $region24: #{dueling_dqn_forward.5} parent=5 // pred_fallthru
      _
    %p168 = scmp.le.s32.totalorder 1, %s9
    %p169 = scmp.lt.s32.totalorder %s9, 8
    %p170 = pnand %p168, %p169
    %p171 = pneg %p170
    // Predicated region
    $region29: #{dueling_dqn_forward.5} parent=5 // pred_check
      _
    $region30: #{dueling_dqn_forward.5} parent=5 // pred_check_branch
      %173 = sbr.rel (%p170) target = $region32
    $region31: #{dueling_dqn_forward.5} parent=5 // pred_region
      %s174 = ssub.s32 %s9, 1
      %s175 = smul.u32 16, %s18
      %p176 = scmp.lt.s32.totalorder %s175, 111
      %s177 = scalar_select %p176, %s175, 111
      %s178 = smul.addr %s177, 4
      %s179 = scalar_lea.vmem %s0, %s178
      %p180 = pneg %p47
      %p181 = pneg %p44
      %p182 = scmp.lt.s32.totalorder %s19, 0
      %s183 = scalar_select %p182, %s19, 0
      %s184 = smul.addr %s183, 4
      %s185 = scalar_lea.vmem %s1, %s184
      %p186 = pneg %p73
      %p187 = pneg %p70
      %p188 = scmp.lt.s32.totalorder %s19, 0
      %s189 = scalar_select %p188, %s19, 0
      %s190 = scalar_lea.vmem %s2, %s189
      %p191 = pneg %p99
      %p192 = pneg %p96
      %p193 = pneg %p127
      %p194 = pneg %p124
      %s195 = smul.u32 16, %s18
      %p196 = scmp.lt.s32.totalorder %s195, 111
      %s197 = scalar_select %p196, %s195, 111
      %p198 = scmp.lt.s32.totalorder %s19, 0
      %s199 = scalar_select %p198, %s19, 0
      %s200 = sadd.s32 %s199, %s197
      %s201 = smul.addr %s200, 4
      %s202 = scalar_lea.vmem %s3, %s201
      %s203 = smul.u32 16, %s18
      %p204 = scmp.lt.s32.totalorder %s203, 111
      %s205 = scalar_select %p204, %s203, 111
      %s206 = smul.addr %s205, 4
      %s207 = scalar_lea.vmem %s0, %s206
      %s208 = smul.u32 16, %s18
      %p209 = scmp.lt.s32.totalorder %s19, 0
      %s210 = scalar_select %p209, %s19, 0
      %s211 = smul.addr %s210, 4
      %s212 = scalar_lea.vmem %s1, %s211
      %p213 = scmp.lt.s32.totalorder %s19, 0
      %s214 = scalar_select %p213, %s19, 0
      %s215 = scalar_lea.vmem %s2, %s214
      %s216 = smul.u32 16, %s18
      %p217 = scmp.lt.s32.totalorder %s216, 111
      %s218 = scalar_select %p217, %s216, 111
      %p219 = scmp.lt.s32.totalorder %s19, 0
      %s220 = scalar_select %p219, %s19, 0
      %s221 = sadd.s32 %s220, %s218
      %s222 = smul.addr %s221, 4
      %s223 = scalar_lea.vmem %s3, %s222
      %s224 = smul.u32 16, %s18
      %v226 = vld [vmem:[%s207] sm:$0xf]
      %v227 = vld [vmem:[%s207 + $0x4] sm:$0xf]
      %v228 = vld [vmem:[%s207 + $0x8] sm:$0xf]
      %v229 = vld [vmem:[%s207 + $0xc] sm:$0xf]
      %v230 = vld [vmem:[%s207 + $0x10] sm:$0xf]
      %v231 = vld [vmem:[%s207 + $0x14] sm:$0xf]
      %v232 = vld [vmem:[%s207 + $0x18] sm:$0xf]
      %v233 = vld [vmem:[%s207 + $0x1c] sm:$0xf]
      %v234 = vld [vmem:[%s207 + $0x20] sm:$0xf]
      %v235 = vld [vmem:[%s207 + $0x24] sm:$0xf]
      %v236 = vld [vmem:[%s207 + $0x28] sm:$0xf]
      %v237 = vld [vmem:[%s207 + $0x2c] sm:$0xf]
      %v238 = vld [vmem:[%s207 + $0x30] sm:$0xf]
      %v239 = vld [vmem:[%s207 + $0x34] sm:$0xf]
      %v240 = vld [vmem:[%s207 + $0x38] sm:$0xf]
      %v241 = vld [vmem:[%s207 + $0x3c] sm:$0xf]
      %v242 = vld [vmem:[%s212] sm:$0xf]
      %v243 = vld [vmem:[%s212 + $0x4] sm:$0xf]
      %v244 = vld [vmem:[%s212 + $0x8] sm:$0xf]
      %v245 = vld [vmem:[%s212 + $0xc] sm:$0xf]
      %v246 = vld [vmem:[%s212 + $0x10] sm:$0xf]
      %v247 = vld [vmem:[%s212 + $0x14] sm:$0xf]
      %v248 = vld [vmem:[%s212 + $0x18] sm:$0xf]
      %v249 = vld [vmem:[%s212 + $0x1c] sm:$0xf]
      %v250 = vld [vmem:[%s212 + $0x20] sm:$0xf]
      %v251 = vld [vmem:[%s212 + $0x24] sm:$0xf]
      %v252 = vld [vmem:[%s212 + $0x28] sm:$0xf]
      %v253 = vld [vmem:[%s212 + $0x2c] sm:$0xf]
      %v254 = vld [vmem:[%s212 + $0x30] sm:$0xf]
      %v255 = vld [vmem:[%s212 + $0x34] sm:$0xf]
      %v256 = vld [vmem:[%s212 + $0x38] sm:$0xf]
      %v257 = vld [vmem:[%s212 + $0x3c] sm:$0xf]
      %v258 = vld [vmem:[%s215] sm:$0x1]
      %v260 = vlaneseq
      %v261 = vshrl.u32 %v260, 7
      %v262 = vsub.s32 0, %v261
      %v263 = vrot.slane %v258, %v262
      %v281 = vunpack.c.l.b16 %v226
      %v282 = vunpack.c.l.b16 %v227
      %v283 = vunpack.c.l.b16 %v228
      %v284 = vunpack.c.l.b16 %v229
      %v285 = vunpack.c.l.b16 %v230
      %v286 = vunpack.c.l.b16 %v231
      %v287 = vunpack.c.l.b16 %v232
      %v288 = vunpack.c.l.b16 %v233
      %v289 = vunpack.c.l.b16 %v234
      %v290 = vunpack.c.l.b16 %v235
      %v291 = vunpack.c.l.b16 %v236
      %v292 = vunpack.c.l.b16 %v237
      %v293 = vunpack.c.l.b16 %v238
      %v294 = vunpack.c.l.b16 %v239
      %v295 = vunpack.c.l.b16 %v240
      %v296 = vunpack.c.l.b16 %v241
      %v297 = vpack.c.b16 %v282, %v281
      %v298 = vpack.c.b16 %v284, %v283
      %v299 = vpack.c.b16 %v286, %v285
      %v300 = vpack.c.b16 %v288, %v287
      %v301 = vpack.c.b16 %v290, %v289
      %v302 = vpack.c.b16 %v292, %v291
      %v303 = vpack.c.b16 %v294, %v293
      %v304 = vpack.c.b16 %v296, %v295
      %v329 = vunpack.c.l.b16 %v242
      %v330 = vunpack.c.l.b16 %v243
      %v331 = vunpack.c.l.b16 %v244
      %v332 = vunpack.c.l.b16 %v245
      %v333 = vunpack.c.l.b16 %v246
      %v334 = vunpack.c.l.b16 %v247
      %v335 = vunpack.c.l.b16 %v248
      %v336 = vunpack.c.l.b16 %v249
      %v337 = vunpack.c.l.b16 %v250
      %v338 = vunpack.c.l.b16 %v251
      %v339 = vunpack.c.l.b16 %v252
      %v340 = vunpack.c.l.b16 %v253
      %v341 = vunpack.c.l.b16 %v254
      %v342 = vunpack.c.l.b16 %v255
      %v343 = vunpack.c.l.b16 %v256
      %v344 = vunpack.c.l.b16 %v257
      %v345 = vpack.c.b16 %v330, %v329
      %v346 = vpack.c.b16 %v332, %v331
      %v347 = vpack.c.b16 %v334, %v333
      %v348 = vpack.c.b16 %v336, %v335
      %v349 = vpack.c.b16 %v338, %v337
      %v350 = vpack.c.b16 %v340, %v339
      %v351 = vpack.c.b16 %v342, %v341
      %v352 = vpack.c.b16 %v344, %v343
      %361 = vmatprep.subr.bf16.mxu0 0
      %362 = vmatpush1.bf16.msra.mxu0 %v345
      %363 = vmatprep.subr.bf16.mxu0 0
      %364 = vmatpush1.bf16.msra.mxu0 %v346
      %365 = vmatprep.subr.bf16.mxu0 0
      %366 = vmatpush1.bf16.msra.mxu0 %v347
      %367 = vmatprep.subr.bf16.mxu0 0
      %368 = vmatpush1.bf16.msra.mxu0 %v348
      %369 = vmatprep.subr.bf16.mxu0 0
      %370 = vmatpush1.bf16.msra.mxu0 %v349
      %371 = vmatprep.subr.bf16.mxu0 0
      %372 = vmatpush1.bf16.msra.mxu0 %v350
      %373 = vmatprep.subr.bf16.mxu0 0
      %374 = vmatpush1.bf16.msra.mxu0 %v351
      %375 = vmatprep.subr.bf16.mxu0 0
      %376 = vmatpush1.bf16.msra.mxu0 %v352
      %377 = vmatprep.subr.bf16.mxu0 0
      %378 = vmatpush1.bf16.msra.mxu0 0
      %379 = vmatprep.subr.bf16.mxu0 0
      %380 = vmatpush1.bf16.msra.mxu0 0
      %381 = vmatprep.subr.bf16.mxu0 0
      %382 = vmatpush1.bf16.msra.mxu0 0
      %383 = vmatprep.subr.bf16.mxu0 0
      %384 = vmatpush1.bf16.msra.mxu0 0
      %385 = vmatprep.subr.bf16.mxu0 0
      %386 = vmatpush1.bf16.msra.mxu0 0
      %387 = vmatprep.subr.bf16.mxu0 0
      %388 = vmatpush1.bf16.msra.mxu0 0
      %389 = vmatprep.subr.bf16.mxu0 0
      %390 = vmatpush1.bf16.msra.mxu0 0
      %391 = vmatprep.subr.bf16.mxu0 0
      %392 = vmatpush1.bf16.msra.mxu0 0
      %393 = vmatprep.mubr.bf16.mxu0 0
      %394 = vmatmul.mubr.bf16.gmra.mrb[0].mxu0 %v297
      %v395 = vpop.f32.mrb[0].mxu0
      %v396 = vadd.f32 %v263, %v395
      %v397 = vpop.f32.mrb[0].mxu0
      %v398 = vpop.f32.mrb[0].mxu0
      %v399 = vadd.f32 %v263, %v398
      %v400 = vpop.f32.mrb[0].mxu0
      %401 = vmatprep.mubr.bf16.mxu0 0
      %402 = vmatmul.mubr.bf16.gmra.mrb[0].mxu0 %v298
      %v403 = vpop.f32.mrb[0].mxu0
      %v404 = vadd.f32 %v263, %v403
      %v405 = vpop.f32.mrb[0].mxu0
      %v406 = vpop.f32.mrb[0].mxu0
      %v407 = vadd.f32 %v263, %v406
      %v408 = vpop.f32.mrb[0].mxu0
      %409 = vmatprep.mubr.bf16.mxu0 0
      %410 = vmatmul.mubr.bf16.gmra.mrb[0].mxu0 %v299
      %v411 = vpop.f32.mrb[0].mxu0
      %v412 = vadd.f32 %v263, %v411
      %v413 = vpop.f32.mrb[0].mxu0
      %v414 = vpop.f32.mrb[0].mxu0
      %v415 = vadd.f32 %v263, %v414
      %v416 = vpop.f32.mrb[0].mxu0
      %417 = vmatprep.mubr.bf16.mxu0 0
      %418 = vmatmul.mubr.bf16.gmra.mrb[0].mxu0 %v300
      %v419 = vpop.f32.mrb[0].mxu0
      %v420 = vadd.f32 %v263, %v419
      %v421 = vpop.f32.mrb[0].mxu0
      %v422 = vpop.f32.mrb[0].mxu0
      %v423 = vadd.f32 %v263, %v422
      %v424 = vpop.f32.mrb[0].mxu0
      %425 = vmatprep.mubr.bf16.mxu0 0
      %426 = vmatmul.mubr.bf16.gmra.mrb[0].mxu0 %v301
      %v427 = vpop.f32.mrb[0].mxu0
      %v428 = vadd.f32 %v263, %v427
      %v429 = vpop.f32.mrb[0].mxu0
      %v430 = vpop.f32.mrb[0].mxu0
      %v431 = vadd.f32 %v263, %v430
      %v432 = vpop.f32.mrb[0].mxu0
      %433 = vmatprep.mubr.bf16.mxu0 0
      %434 = vmatmul.mubr.bf16.gmra.mrb[0].mxu0 %v302
      %v435 = vpop.f32.mrb[0].mxu0
      %v436 = vadd.f32 %v263, %v435
      %v437 = vpop.f32.mrb[0].mxu0
      %v438 = vpop.f32.mrb[0].mxu0
      %v439 = vadd.f32 %v263, %v438
      %v440 = vpop.f32.mrb[0].mxu0
      %441 = vmatprep.mubr.bf16.mxu0 0
      %442 = vmatmul.mubr.bf16.gmra.mrb[0].mxu0 %v303
      %v443 = vpop.f32.mrb[0].mxu0
      %v444 = vadd.f32 %v263, %v443
      %v445 = vpop.f32.mrb[0].mxu0
      %v446 = vpop.f32.mrb[0].mxu0
      %v447 = vadd.f32 %v263, %v446
      %v448 = vpop.f32.mrb[0].mxu0
      %449 = vmatprep.mubr.bf16.mxu0 0
      %450 = vmatmul.mubr.bf16.gmra.mrb[0].mxu0 %v304
      %v451 = vpop.f32.mrb[0].mxu0
      %v452 = vadd.f32 %v263, %v451
      %v453 = vpop.f32.mrb[0].mxu0
      %v454 = vpop.f32.mrb[0].mxu0
      %v455 = vadd.f32 %v263, %v454
      %v456 = vpop.f32.mrb[0].mxu0
      %457 = vdwg.mxu0
      %v458 = vmax.f32 %v396, 0.0
      %v459 = vmax.f32 %v399, 0.0
      %v460 = vmax.f32 %v404, 0.0
      %v461 = vmax.f32 %v407, 0.0
      %v462 = vmax.f32 %v412, 0.0
      %v463 = vmax.f32 %v415, 0.0
      %v464 = vmax.f32 %v420, 0.0
      %v465 = vmax.f32 %v423, 0.0
      %v466 = vmax.f32 %v428, 0.0
      %v467 = vmax.f32 %v431, 0.0
      %v468 = vmax.f32 %v436, 0.0
      %v469 = vmax.f32 %v439, 0.0
      %v470 = vmax.f32 %v444, 0.0
      %v471 = vmax.f32 %v447, 0.0
      %v472 = vmax.f32 %v452, 0.0
      %v473 = vmax.f32 %v455, 0.0
      %v474 = vpack.c.bf16 %v459, %v458
      %v475 = vpack.c.bf16 %v461, %v460
      %v476 = vpack.c.bf16 %v463, %v462
      %v477 = vpack.c.bf16 %v465, %v464
      %v478 = vpack.c.bf16 %v467, %v466
      %v479 = vpack.c.bf16 %v469, %v468
      %v480 = vpack.c.bf16 %v471, %v470
      %v481 = vpack.c.bf16 %v473, %v472
      %v490 = vunpack.c.l.b16 %v474
      %v491 = vunpack.c.h.b16 %v474
      %v492 = vunpack.c.l.b16 %v475
      %v493 = vunpack.c.h.b16 %v475
      %v494 = vunpack.c.l.b16 %v476
      %v495 = vunpack.c.h.b16 %v476
      %v496 = vunpack.c.l.b16 %v477
      %v497 = vunpack.c.h.b16 %v477
      %v498 = vunpack.c.l.b16 %v478
      %v499 = vunpack.c.h.b16 %v478
      %v500 = vunpack.c.l.b16 %v479
      %v501 = vunpack.c.h.b16 %v479
      %v502 = vunpack.c.l.b16 %v480
      %v503 = vunpack.c.h.b16 %v480
      %v504 = vunpack.c.l.b16 %v481
      %v505 = vunpack.c.h.b16 %v481
      %v506 = vpack.c.b16 %v490, %v490
      %v507 = vpack.c.b16 %v491, %v491
      %v508 = vpack.c.b16 %v492, %v492
      %v509 = vpack.c.b16 %v493, %v493
      %v510 = vpack.c.b16 %v494, %v494
      %v511 = vpack.c.b16 %v495, %v495
      %v512 = vpack.c.b16 %v496, %v496
      %v513 = vpack.c.b16 %v497, %v497
      %v514 = vpack.c.b16 %v498, %v498
      %v515 = vpack.c.b16 %v499, %v499
      %v516 = vpack.c.b16 %v500, %v500
      %v517 = vpack.c.b16 %v501, %v501
      %v518 = vpack.c.b16 %v502, %v502
      %v519 = vpack.c.b16 %v503, %v503
      %v520 = vpack.c.b16 %v504, %v504
      %v521 = vpack.c.b16 %v505, %v505
      %538 = vst [vmem:[%s223] sm:$0xf] %v506
      %539 = vst [vmem:[%s223 + $0x4] sm:$0xf] %v507
      %540 = vst [vmem:[%s223 + $0x8] sm:$0xf] %v508
      %541 = vst [vmem:[%s223 + $0xc] sm:$0xf] %v509
      %542 = vst [vmem:[%s223 + $0x10] sm:$0xf] %v510
      %543 = vst [vmem:[%s223 + $0x14] sm:$0xf] %v511
      %544 = vst [vmem:[%s223 + $0x18] sm:$0xf] %v512
      %545 = vst [vmem:[%s223 + $0x1c] sm:$0xf] %v513
      %546 = vst [vmem:[%s223 + $0x20] sm:$0xf] %v514
      %547 = vst [vmem:[%s223 + $0x24] sm:$0xf] %v515
      %548 = vst [vmem:[%s223 + $0x28] sm:$0xf] %v516
      %549 = vst [vmem:[%s223 + $0x2c] sm:$0xf] %v517
      %550 = vst [vmem:[%s223 + $0x30] sm:$0xf] %v518
      %551 = vst [vmem:[%s223 + $0x34] sm:$0xf] %v519
      %552 = vst [vmem:[%s223 + $0x38] sm:$0xf] %v520
      %553 = vst [vmem:[%s223 + $0x3c] sm:$0xf] %v521
      %s554 = smul.u32 16, %s18
      %p555 = scmp.lt.s32.totalorder %s554, 111
      %s556 = scalar_select %p555, %s554, 111
      %p557 = scmp.lt.s32.totalorder %s19, 0
      %s558 = scalar_select %p557, %s19, 0
      %s559 = sadd.s32 %s558, %s556
      %s560 = smul.addr %s559, 4
      %s561 = scalar_lea.vmem %s3, %s560
      // Predicated region
      $region33: #{dueling_dqn_forward.5} parent=31 // pred_check
        %p562 = pneg %p124
      $region34: #{dueling_dqn_forward.5} parent=31 // pred_check_branch
        %564 = sbr.rel (%p562) target = $region36
      $region35: #{dueling_dqn_forward.5} parent=31 // pred_region
        %s565 = smul.u32 16, %s18
      $region36: #{dueling_dqn_forward.5} parent=31 // pred_fallthru
        _
    $region32: #{dueling_dqn_forward.5} parent=5 // pred_fallthru
      _
    %p566 = scmp.le.s32.totalorder 2, %s9
    // Predicated region
    $region37: #{dueling_dqn_forward.5} parent=5 // pred_check
      %p567 = pneg %p566
    $region38: #{dueling_dqn_forward.5} parent=5 // pred_check_branch
      %569 = sbr.rel (%p567) target = $region40
    $region39: #{dueling_dqn_forward.5} parent=5 // pred_region
      %s570 = ssub.s32 %s9, 2
      // Predicated region
      $region41: #{dueling_dqn_forward.5} parent=39 // pred_check
        %p571 = pneg %p130
      $region42: #{dueling_dqn_forward.5} parent=39 // pred_check_branch
        %573 = sbr.rel (%p571) target = $region44
      $region43: #{dueling_dqn_forward.5} parent=39 // pred_region
        %s574 = smul.u32 16, %s20
        %p575 = scmp.lt.s32.totalorder %s574, 111
        %s576 = scalar_select %p575, %s574, 111
        %p577 = scmp.lt.s32.totalorder %s21, 0
        %s578 = scalar_select %p577, %s21, 0
        %s579 = sadd.s32 %s578, %s576
        %s580 = smul.addr %s579, 4
        %s581 = scalar_lea.vmem %s3, %s580
      $region44: #{dueling_dqn_forward.5} parent=39 // pred_fallthru
        _
    $region40: #{dueling_dqn_forward.5} parent=5 // pred_fallthru
      _
  $region6: #{dueling_dqn_forward.5} parent=0 // loop_footer
    %s13 = sadd.s32 1, %s9
  $region7: #{dueling_dqn_forward.5} parent=0 // loop_footer_branch
    %8 = sbr.rel target = $region3
  $region8: #{dueling_dqn_forward.5} parent=0 // loop_exit
    _

// kernel: dueling_dqn_forward.6
$region0: #{dueling_dqn_forward.6}
  #allocation0 [shape = 'u32[]', space=smem, size = 0x4, offset = 0x4, fixed_abs, tag = 'smem constant byte address 0x4 - core index']
  #allocation1 [shape = 'u32[144,128]{1,0:T(1,128)}', space=vmem, size = 0x12000, scoped, tag = 'internal scratch']
  %s0 = inlined_call_operand.vmem [shape: bf16[256,512], index: 0, kind: input, shape index: {}]
  %s1 = inlined_call_operand.vmem [shape: bf16[512,128], index: 1, kind: input, shape index: {}]
  %s2 = inlined_call_operand.vmem [shape: f32[1,128], index: 2, kind: input, shape index: {}]
  %s3 = inlined_call_operand.vmem [shape: bf16[256,128], index: 3, kind: output, shape index: {}]
  %s4 = sld [smem:[#allocation0]]
  $region45: #{dueling_dqn_forward.6} parent=0
    _
  %s6 = ssub.s32 1, %s4
  %s7 = scalar_select 0, %s6, %s4
  loop: start=0, step=1, limit=4
  $region2: #{dueling_dqn_forward.6} parent=0 // loop_pre_header
    _
  $region3: #{dueling_dqn_forward.6} parent=0 // loop_header
    %s9 = sphi 0, %s13
    %p10 = scmp.ge.s32.totalorder %s9, 4
    %s16 = sphi 0, %s28
    %s17 = sphi 0, %s24
    %s18 = sphi 0, %s16
    %s19 = sphi 0, %s17
    %s20 = sphi 0, %s18
    %s21 = sphi 0, %s19
    %s31 = sphi 0, %s33
    %s34 = sphi 0, %s31
    %s35 = sphi 0, %s34
    %s51 = sphi 0, %s35
    %s57 = sphi 0, %s59
    %s60 = sphi 0, %s57
    %s61 = sphi 0, %s60
    %s77 = sphi 0, %s61
    %s83 = sphi 0, %s85
    %s86 = sphi 0, %s83
    %s87 = sphi 0, %s86
    %s103 = sphi 0, %s87
    %s111 = sphi 0, %s113
    %s114 = sphi 0, %s111
    %s115 = sphi 0, %s114
    %s131 = sphi 0, %s115
  $region4: #{dueling_dqn_forward.6} parent=0 // loop_header_branch
    %12 = sbr.rel (%p10) target = $region8
  $region5: #{dueling_dqn_forward.6} parent=0 // loop_body
    %s14 = ssub.s32 %s9, 1
    %s15 = ssub.s32 %s9, 2
    %s22 = sadd.s32 1, %s17
    %p23 = scmp.ge.s32.totalorder %s22, 1
    %s24 = scalar_select %p23, 0, %s22
    %s25 = sadd.s32 1, %s16
    %s26 = scalar_select %p23, %s25, %s16
    %p27 = scmp.ge.s32.totalorder %s26, 2
    %s28 = scalar_select %p27, 0, %s26
    %s29 = ssub.s32 %s16, %s28
    %p30 = scmp.eq.s32.totalorder %s29, 0
    %s32 = sadd.s32 %s31, 1
    %s33 = scalar_select %p30, %s31, %s32
    %p36 = pneg %p30
    %p37 = scmp.eq.s32.totalorder %s9, 1
    %p38 = por %p36, %p37
    %p39 = scmp.ne.s32.totalorder %s31, %s34
    %p40 = scmp.eq.s32.totalorder %s9, 0
    %p41 = por %p39, %p40
    %p42 = scmp.ne.s32.totalorder %s31, %s34
    %p43 = scmp.eq.s32.totalorder %s14, 1
    %p44 = por %p42, %p43
    %p45 = scmp.ne.s32.totalorder %s34, %s35
    %p46 = scmp.eq.s32.totalorder %s14, 0
    %p47 = por %p45, %p46
    %p48 = scmp.ne.s32.totalorder %s34, %s35
    %p49 = scmp.eq.s32.totalorder %s15, 1
    %p50 = por %p48, %p49
    %p52 = scmp.ne.s32.totalorder %s35, %s51
    %p53 = scmp.eq.s32.totalorder %s15, 0
    %p54 = por %p52, %p53
    %s55 = ssub.s32 %s17, %s24
    %p56 = scmp.eq.s32.totalorder %s55, 0
    %s58 = sadd.s32 %s57, 1
    %s59 = scalar_select %p56, %s57, %s58
    %p62 = pneg %p56
    %p63 = scmp.eq.s32.totalorder %s9, 1
    %p64 = por %p62, %p63
    %p65 = scmp.ne.s32.totalorder %s57, %s60
    %p66 = scmp.eq.s32.totalorder %s9, 0
    %p67 = por %p65, %p66
    %p68 = scmp.ne.s32.totalorder %s57, %s60
    %p69 = scmp.eq.s32.totalorder %s14, 1
    %p70 = por %p68, %p69
    %p71 = scmp.ne.s32.totalorder %s60, %s61
    %p72 = scmp.eq.s32.totalorder %s14, 0
    %p73 = por %p71, %p72
    %p74 = scmp.ne.s32.totalorder %s60, %s61
    %p75 = scmp.eq.s32.totalorder %s15, 1
    %p76 = por %p74, %p75
    %p78 = scmp.ne.s32.totalorder %s61, %s77
    %p79 = scmp.eq.s32.totalorder %s15, 0
    %p80 = por %p78, %p79
    %s81 = ssub.s32 %s17, %s24
    %p82 = scmp.eq.s32.totalorder %s81, 0
    %s84 = sadd.s32 %s83, 1
    %s85 = scalar_select %p82, %s83, %s84
    %p88 = pneg %p82
    %p89 = scmp.eq.s32.totalorder %s9, 1
    %p90 = por %p88, %p89
    %p91 = scmp.ne.s32.totalorder %s83, %s86
    %p92 = scmp.eq.s32.totalorder %s9, 0
    %p93 = por %p91, %p92
    %p94 = scmp.ne.s32.totalorder %s83, %s86
    %p95 = scmp.eq.s32.totalorder %s14, 1
    %p96 = por %p94, %p95
    %p97 = scmp.ne.s32.totalorder %s86, %s87
    %p98 = scmp.eq.s32.totalorder %s14, 0
    %p99 = por %p97, %p98
    %p100 = scmp.ne.s32.totalorder %s86, %s87
    %p101 = scmp.eq.s32.totalorder %s15, 1
    %p102 = por %p100, %p101
    %p104 = scmp.ne.s32.totalorder %s87, %s103
    %p105 = scmp.eq.s32.totalorder %s15, 0
    %p106 = por %p104, %p105
    %s107 = ssub.s32 %s16, %s28
    %s108 = ssub.s32 %s17, %s24
    %s109 = sor.u32 %s107, %s108
    %p110 = scmp.eq.s32.totalorder %s109, 0
    %s112 = sadd.s32 %s111, 1
    %s113 = scalar_select %p110, %s111, %s112
    %p116 = pneg %p110
    %p117 = scmp.eq.s32.totalorder %s9, 1
    %p118 = por %p116, %p117
    %p119 = scmp.ne.s32.totalorder %s111, %s114
    %p120 = scmp.eq.s32.totalorder %s9, 0
    %p121 = por %p119, %p120
    %p122 = scmp.ne.s32.totalorder %s111, %s114
    %p123 = scmp.eq.s32.totalorder %s14, 1
    %p124 = por %p122, %p123
    %p125 = scmp.ne.s32.totalorder %s114, %s115
    %p126 = scmp.eq.s32.totalorder %s14, 0
    %p127 = por %p125, %p126
    %p128 = scmp.ne.s32.totalorder %s114, %s115
    %p129 = scmp.eq.s32.totalorder %s15, 1
    %p130 = por %p128, %p129
    %p132 = scmp.ne.s32.totalorder %s115, %s131
    %p133 = scmp.eq.s32.totalorder %s15, 0
    %p134 = por %p132, %p133
    %p135 = scmp.le.s32.totalorder 1, %s9
    %p136 = scmp.lt.s32.totalorder %s9, 3
    %p137 = pnand %p135, %p136
    %p138 = pneg %p137
    // Predicated region
    $region9: #{dueling_dqn_forward.6} parent=5 // pred_check
      _
    $region10: #{dueling_dqn_forward.6} parent=5 // pred_check_branch
      %140 = sbr.rel (%p137) target = $region12
    $region11: #{dueling_dqn_forward.6} parent=5 // pred_region
      %s141 = ssub.s32 %s9, 1
      // Predicated region
      $region13: #{dueling_dqn_forward.6} parent=11 // pred_check
        %p142 = pneg %p73
      $region14: #{dueling_dqn_forward.6} parent=11 // pred_check_branch
        %144 = sbr.rel (%p142) target = $region16
      $region15: #{dueling_dqn_forward.6} parent=11 // pred_region
        %p145 = scmp.lt.s32.totalorder %s19, 0
        %s146 = scalar_select %p145, %s19, 0
        %s147 = smul.addr %s146, 4
        %s148 = scalar_lea.vmem %s1, %s147
      $region16: #{dueling_dqn_forward.6} parent=11 // pred_fallthru
        _
      // Predicated region
      $region17: #{dueling_dqn_forward.6} parent=11 // pred_check
        %p149 = pneg %p99
      $region18: #{dueling_dqn_forward.6} parent=11 // pred_check_branch
        %151 = sbr.rel (%p149) target = $region20
      $region19: #{dueling_dqn_forward.6} parent=11 // pred_region
        %p152 = scmp.lt.s32.totalorder %s19, 0
        %s153 = scalar_select %p152, %s19, 0
        %s154 = scalar_lea.vmem %s2, %s153
      $region20: #{dueling_dqn_forward.6} parent=11 // pred_fallthru
        _
    $region12: #{dueling_dqn_forward.6} parent=5 // pred_fallthru
      _
    %p155 = scmp.lt.s32.totalorder %s9, 2
    // Predicated region
    $region21: #{dueling_dqn_forward.6} parent=5 // pred_check
      %p156 = pneg %p155
    $region22: #{dueling_dqn_forward.6} parent=5 // pred_check_branch
      %158 = sbr.rel (%p156) target = $region24
    $region23: #{dueling_dqn_forward.6} parent=5 // pred_region
      // Predicated region
      $region25: #{dueling_dqn_forward.6} parent=23 // pred_check
        %p159 = pneg %p41
      $region26: #{dueling_dqn_forward.6} parent=23 // pred_check_branch
        %161 = sbr.rel (%p159) target = $region28
      $region27: #{dueling_dqn_forward.6} parent=23 // pred_region
        %s162 = smul.u32 16, %s16
        %p163 = scmp.lt.s32.totalorder %s162, 31
        %s164 = scalar_select %p163, %s162, 31
        %s165 = smul.addr %s164, 4
        %s166 = smul.addr %s165, 4
        %s167 = scalar_lea.vmem %s0, %s166
        %s168 = smul.u32 16, %s16
      $region28: #{dueling_dqn_forward.6} parent=23 // pred_fallthru
        _
    $region24: #{dueling_dqn_forward.6} parent=5 // pred_fallthru
      _
    %p169 = scmp.le.s32.totalorder 1, %s9
    %p170 = scmp.lt.s32.totalorder %s9, 3
    %p171 = pnand %p169, %p170
    %p172 = pneg %p171
    // Predicated region
    $region29: #{dueling_dqn_forward.6} parent=5 // pred_check
      _
    $region30: #{dueling_dqn_forward.6} parent=5 // pred_check_branch
      %174 = sbr.rel (%p171) target = $region32
    $region31: #{dueling_dqn_forward.6} parent=5 // pred_region
      %s175 = ssub.s32 %s9, 1
      %s176 = smul.u32 16, %s18
      %p177 = scmp.lt.s32.totalorder %s176, 31
      %s178 = scalar_select %p177, %s176, 31
      %s179 = smul.addr %s178, 4
      %s180 = smul.addr %s179, 4
      %s181 = scalar_lea.vmem %s0, %s180
      %p182 = pneg %p47
      %p183 = pneg %p44
      %p184 = scmp.lt.s32.totalorder %s19, 0
      %s185 = scalar_select %p184, %s19, 0
      %s186 = smul.addr %s185, 4
      %s187 = scalar_lea.vmem %s1, %s186
      %p188 = pneg %p73
      %p189 = pneg %p70
      %p190 = scmp.lt.s32.totalorder %s19, 0
      %s191 = scalar_select %p190, %s19, 0
      %s192 = scalar_lea.vmem %s2, %s191
      %p193 = pneg %p99
      %p194 = pneg %p96
      %p195 = pneg %p127
      %p196 = pneg %p124
      %s197 = smul.u32 16, %s18
      %p198 = scmp.lt.s32.totalorder %s197, 31
      %s199 = scalar_select %p198, %s197, 31
      %p200 = scmp.lt.s32.totalorder %s19, 0
      %s201 = scalar_select %p200, %s19, 0
      %s202 = sadd.s32 %s201, %s199
      %s203 = smul.addr %s202, 4
      %s204 = scalar_lea.vmem %s3, %s203
      %s205 = smul.u32 16, %s18
      %p206 = scmp.lt.s32.totalorder %s205, 31
      %s207 = scalar_select %p206, %s205, 31
      %s208 = smul.addr %s207, 4
      %s209 = smul.addr %s208, 4
      %s210 = scalar_lea.vmem %s0, %s209
      %s211 = smul.u32 16, %s18
      %p212 = scmp.lt.s32.totalorder %s19, 0
      %s213 = scalar_select %p212, %s19, 0
      %s214 = smul.addr %s213, 4
      %s215 = scalar_lea.vmem %s1, %s214
      %p216 = scmp.lt.s32.totalorder %s19, 0
      %s217 = scalar_select %p216, %s19, 0
      %s218 = scalar_lea.vmem %s2, %s217
      %s219 = smul.u32 16, %s18
      %p220 = scmp.lt.s32.totalorder %s219, 31
      %s221 = scalar_select %p220, %s219, 31
      %p222 = scmp.lt.s32.totalorder %s19, 0
      %s223 = scalar_select %p222, %s19, 0
      %s224 = sadd.s32 %s223, %s221
      %s225 = smul.addr %s224, 4
      %s226 = scalar_lea.vmem %s3, %s225
      %s227 = smul.u32 16, %s18
      %v229 = vld [vmem:[%s210] sm:$0xff]
      %v230 = vld [vmem:[%s210 + $0x8] sm:$0xff]
      %v231 = vld [vmem:[%s210 + $0x10] sm:$0xff]
      %v232 = vld [vmem:[%s210 + $0x18] sm:$0xff]
      %v233 = vld [vmem:[%s210 + $0x20] sm:$0xff]
      %v234 = vld [vmem:[%s210 + $0x28] sm:$0xff]
      %v235 = vld [vmem:[%s210 + $0x30] sm:$0xff]
      %v236 = vld [vmem:[%s210 + $0x38] sm:$0xff]
      %v237 = vld [vmem:[%s210 + $0x40] sm:$0xff]
      %v238 = vld [vmem:[%s210 + $0x48] sm:$0xff]
      %v239 = vld [vmem:[%s210 + $0x50] sm:$0xff]
      %v240 = vld [vmem:[%s210 + $0x58] sm:$0xff]
      %v241 = vld [vmem:[%s210 + $0x60] sm:$0xff]
      %v242 = vld [vmem:[%s210 + $0x68] sm:$0xff]
      %v243 = vld [vmem:[%s210 + $0x70] sm:$0xff]
      %v244 = vld [vmem:[%s210 + $0x78] sm:$0xff]
      %v245 = vld [vmem:[%s210 + $0x80] sm:$0xff]
      %v246 = vld [vmem:[%s210 + $0x88] sm:$0xff]
      %v247 = vld [vmem:[%s210 + $0x90] sm:$0xff]
      %v248 = vld [vmem:[%s210 + $0x98] sm:$0xff]
      %v249 = vld [vmem:[%s210 + $0xa0] sm:$0xff]
      %v250 = vld [vmem:[%s210 + $0xa8] sm:$0xff]
      %v251 = vld [vmem:[%s210 + $0xb0] sm:$0xff]
      %v252 = vld [vmem:[%s210 + $0xb8] sm:$0xff]
      %v253 = vld [vmem:[%s210 + $0xc0] sm:$0xff]
      %v254 = vld [vmem:[%s210 + $0xc8] sm:$0xff]
      %v255 = vld [vmem:[%s210 + $0xd0] sm:$0xff]
      %v256 = vld [vmem:[%s210 + $0xd8] sm:$0xff]
      %v257 = vld [vmem:[%s210 + $0xe0] sm:$0xff]
      %v258 = vld [vmem:[%s210 + $0xe8] sm:$0xff]
      %v259 = vld [vmem:[%s210 + $0xf0] sm:$0xff]
      %v260 = vld [vmem:[%s210 + $0xf8] sm:$0xff]
      %v261 = vld [vmem:[%s215] sm:$0xf]
      %v262 = vld [vmem:[%s215 + $0x4] sm:$0xf]
      %v263 = vld [vmem:[%s215 + $0x8] sm:$0xf]
      %v264 = vld [vmem:[%s215 + $0xc] sm:$0xf]
      %v265 = vld [vmem:[%s215 + $0x10] sm:$0xf]
      %v266 = vld [vmem:[%s215 + $0x14] sm:$0xf]
      %v267 = vld [vmem:[%s215 + $0x18] sm:$0xf]
      %v268 = vld [vmem:[%s215 + $0x1c] sm:$0xf]
      %v269 = vld [vmem:[%s215 + $0x20] sm:$0xf]
      %v270 = vld [vmem:[%s215 + $0x24] sm:$0xf]
      %v271 = vld [vmem:[%s215 + $0x28] sm:$0xf]
      %v272 = vld [vmem:[%s215 + $0x2c] sm:$0xf]
      %v273 = vld [vmem:[%s215 + $0x30] sm:$0xf]
      %v274 = vld [vmem:[%s215 + $0x34] sm:$0xf]
      %v275 = vld [vmem:[%s215 + $0x38] sm:$0xf]
      %v276 = vld [vmem:[%s215 + $0x3c] sm:$0xf]
      %v277 = vld [vmem:[%s215 + $0x40] sm:$0xf]
      %v278 = vld [vmem:[%s215 + $0x44] sm:$0xf]
      %v279 = vld [vmem:[%s215 + $0x48] sm:$0xf]
      %v280 = vld [vmem:[%s215 + $0x4c] sm:$0xf]
      %v281 = vld [vmem:[%s215 + $0x50] sm:$0xf]
      %v282 = vld [vmem:[%s215 + $0x54] sm:$0xf]
      %v283 = vld [vmem:[%s215 + $0x58] sm:$0xf]
      %v284 = vld [vmem:[%s215 + $0x5c] sm:$0xf]
      %v285 = vld [vmem:[%s215 + $0x60] sm:$0xf]
      %v286 = vld [vmem:[%s215 + $0x64] sm:$0xf]
      %v287 = vld [vmem:[%s215 + $0x68] sm:$0xf]
      %v288 = vld [vmem:[%s215 + $0x6c] sm:$0xf]
      %v289 = vld [vmem:[%s215 + $0x70] sm:$0xf]
      %v290 = vld [vmem:[%s215 + $0x74] sm:$0xf]
      %v291 = vld [vmem:[%s215 + $0x78] sm:$0xf]
      %v292 = vld [vmem:[%s215 + $0x7c] sm:$0xf]
      %v293 = vld [vmem:[%s215 + $0x80] sm:$0xf]
      %v294 = vld [vmem:[%s215 + $0x84] sm:$0xf]
      %v295 = vld [vmem:[%s215 + $0x88] sm:$0xf]
      %v296 = vld [vmem:[%s215 + $0x8c] sm:$0xf]
      %v297 = vld [vmem:[%s215 + $0x90] sm:$0xf]
      %v298 = vld [vmem:[%s215 + $0x94] sm:$0xf]
      %v299 = vld [vmem:[%s215 + $0x98] sm:$0xf]
      %v300 = vld [vmem:[%s215 + $0x9c] sm:$0xf]
      %v301 = vld [vmem:[%s215 + $0xa0] sm:$0xf]
      %v302 = vld [vmem:[%s215 + $0xa4] sm:$0xf]
      %v303 = vld [vmem:[%s215 + $0xa8] sm:$0xf]
      %v304 = vld [vmem:[%s215 + $0xac] sm:$0xf]
      %v305 = vld [vmem:[%s215 + $0xb0] sm:$0xf]
      %v306 = vld [vmem:[%s215 + $0xb4] sm:$0xf]
      %v307 = vld [vmem:[%s215 + $0xb8] sm:$0xf]
      %v308 = vld [vmem:[%s215 + $0xbc] sm:$0xf]
      %v309 = vld [vmem:[%s215 + $0xc0] sm:$0xf]
      %v310 = vld [vmem:[%s215 + $0xc4] sm:$0xf]
      %v311 = vld [vmem:[%s215 + $0xc8] sm:$0xf]
      %v312 = vld [vmem:[%s215 + $0xcc] sm:$0xf]
      %v313 = vld [vmem:[%s215 + $0xd0] sm:$0xf]
      %v314 = vld [vmem:[%s215 + $0xd4] sm:$0xf]
      %v315 = vld [vmem:[%s215 + $0xd8] sm:$0xf]
      %v316 = vld [vmem:[%s215 + $0xdc] sm:$0xf]
      %v317 = vld [vmem:[%s215 + $0xe0] sm:$0xf]
      %v318 = vld [vmem:[%s215 + $0xe4] sm:$0xf]
      %v319 = vld [vmem:[%s215 + $0xe8] sm:$0xf]
      %v320 = vld [vmem:[%s215 + $0xec] sm:$0xf]
      %v321 = vld [vmem:[%s215 + $0xf0] sm:$0xf]
      %v322 = vld [vmem:[%s215 + $0xf4] sm:$0xf]
      %v323 = vld [vmem:[%s215 + $0xf8] sm:$0xf]
      %v324 = vld [vmem:[%s215 + $0xfc] sm:$0xf]
      %v325 = vld [vmem:[%s218] sm:$0x1]
      %v327 = vlaneseq
      %v328 = vshrl.u32 %v327, 7
      %v329 = vsub.s32 0, %v328
      %v330 = vrot.slane %v325, %v329
      %v364 = vunpack.c.l.b16 %v229
      %v365 = vunpack.c.h.b16 %v229
      %v366 = vunpack.c.l.b16 %v230
      %v367 = vunpack.c.h.b16 %v230
      %v368 = vunpack.c.l.b16 %v231
      %v369 = vunpack.c.h.b16 %v231
      %v370 = vunpack.c.l.b16 %v232
      %v371 = vunpack.c.h.b16 %v232
      %v372 = vunpack.c.l.b16 %v233
      %v373 = vunpack.c.h.b16 %v233
      %v374 = vunpack.c.l.b16 %v234
      %v375 = vunpack.c.h.b16 %v234
      %v376 = vunpack.c.l.b16 %v235
      %v377 = vunpack.c.h.b16 %v235
      %v378 = vunpack.c.l.b16 %v236
      %v379 = vunpack.c.h.b16 %v236
      %v380 = vunpack.c.l.b16 %v237
      %v381 = vunpack.c.h.b16 %v237
      %v382 = vunpack.c.l.b16 %v238
      %v383 = vunpack.c.h.b16 %v238
      %v384 = vunpack.c.l.b16 %v239
      %v385 = vunpack.c.h.b16 %v239
      %v386 = vunpack.c.l.b16 %v240
      %v387 = vunpack.c.h.b16 %v240
      %v388 = vunpack.c.l.b16 %v241
      %v389 = vunpack.c.h.b16 %v241
      %v390 = vunpack.c.l.b16 %v242
      %v391 = vunpack.c.h.b16 %v242
      %v392 = vunpack.c.l.b16 %v243
      %v393 = vunpack.c.h.b16 %v243
      %v394 = vunpack.c.l.b16 %v244
      %v395 = vunpack.c.h.b16 %v244
      %v396 = vunpack.c.l.b16 %v245
      %v397 = vunpack.c.h.b16 %v245
      %v398 = vunpack.c.l.b16 %v246
      %v399 = vunpack.c.h.b16 %v246
      %v400 = vunpack.c.l.b16 %v247
      %v401 = vunpack.c.h.b16 %v247
      %v402 = vunpack.c.l.b16 %v248
      %v403 = vunpack.c.h.b16 %v248
      %v404 = vunpack.c.l.b16 %v249
      %v405 = vunpack.c.h.b16 %v249
      %v406 = vunpack.c.l.b16 %v250
      %v407 = vunpack.c.h.b16 %v250
      %v408 = vunpack.c.l.b16 %v251
      %v409 = vunpack.c.h.b16 %v251
      %v410 = vunpack.c.l.b16 %v252
      %v411 = vunpack.c.h.b16 %v252
      %v412 = vunpack.c.l.b16 %v253
      %v413 = vunpack.c.h.b16 %v253
      %v414 = vunpack.c.l.b16 %v254
      %v415 = vunpack.c.h.b16 %v254
      %v416 = vunpack.c.l.b16 %v255
      %v417 = vunpack.c.h.b16 %v255
      %v418 = vunpack.c.l.b16 %v256
      %v419 = vunpack.c.h.b16 %v256
      %v420 = vunpack.c.l.b16 %v257
      %v421 = vunpack.c.h.b16 %v257
      %v422 = vunpack.c.l.b16 %v258
      %v423 = vunpack.c.h.b16 %v258
      %v424 = vunpack.c.l.b16 %v259
      %v425 = vunpack.c.h.b16 %v259
      %v426 = vunpack.c.l.b16 %v260
      %v427 = vunpack.c.h.b16 %v260
      %v428 = vpack.c.b16 %v368, %v364
      %v429 = vpack.c.b16 %v369, %v365
      %v430 = vpack.c.b16 %v370, %v366
      %v431 = vpack.c.b16 %v371, %v367
      %v432 = vpack.c.b16 %v376, %v372
      %v433 = vpack.c.b16 %v377, %v373
      %v434 = vpack.c.b16 %v378, %v374
      %v435 = vpack.c.b16 %v379, %v375
      %v436 = vpack.c.b16 %v384, %v380
      %v437 = vpack.c.b16 %v385, %v381
      %v438 = vpack.c.b16 %v386, %v382
      %v439 = vpack.c.b16 %v387, %v383
      %v440 = vpack.c.b16 %v392, %v388
      %v441 = vpack.c.b16 %v393, %v389
      %v442 = vpack.c.b16 %v394, %v390
      %v443 = vpack.c.b16 %v395, %v391
      %v444 = vpack.c.b16 %v400, %v396
      %v445 = vpack.c.b16 %v401, %v397
      %v446 = vpack.c.b16 %v402, %v398
      %v447 = vpack.c.b16 %v403, %v399
      %v448 = vpack.c.b16 %v408, %v404
      %v449 = vpack.c.b16 %v409, %v405
      %v450 = vpack.c.b16 %v410, %v406
      %v451 = vpack.c.b16 %v411, %v407
      %v452 = vpack.c.b16 %v416, %v412
      %v453 = vpack.c.b16 %v417, %v413
      %v454 = vpack.c.b16 %v418, %v414
      %v455 = vpack.c.b16 %v419, %v415
      %v456 = vpack.c.b16 %v424, %v420
      %v457 = vpack.c.b16 %v425, %v421
      %v458 = vpack.c.b16 %v426, %v422
      %v459 = vpack.c.b16 %v427, %v423
      %v556 = vunpack.c.l.b16 %v261
      %v557 = vunpack.c.l.b16 %v262
      %v558 = vunpack.c.l.b16 %v263
      %v559 = vunpack.c.l.b16 %v264
      %v560 = vunpack.c.l.b16 %v265
      %v561 = vunpack.c.l.b16 %v266
      %v562 = vunpack.c.l.b16 %v267
      %v563 = vunpack.c.l.b16 %v268
      %v564 = vunpack.c.l.b16 %v269
      %v565 = vunpack.c.l.b16 %v270
      %v566 = vunpack.c.l.b16 %v271
      %v567 = vunpack.c.l.b16 %v272
      %v568 = vunpack.c.l.b16 %v273
      %v569 = vunpack.c.l.b16 %v274
      %v570 = vunpack.c.l.b16 %v275
      %v571 = vunpack.c.l.b16 %v276
      %v572 = vunpack.c.l.b16 %v277
      %v573 = vunpack.c.l.b16 %v278
      %v574 = vunpack.c.l.b16 %v279
      %v575 = vunpack.c.l.b16 %v280
      %v576 = vunpack.c.l.b16 %v281
      %v577 = vunpack.c.l.b16 %v282
      %v578 = vunpack.c.l.b16 %v283
      %v579 = vunpack.c.l.b16 %v284
      %v580 = vunpack.c.l.b16 %v285
      %v581 = vunpack.c.l.b16 %v286
      %v582 = vunpack.c.l.b16 %v287
      %v583 = vunpack.c.l.b16 %v288
      %v584 = vunpack.c.l.b16 %v289
      %v585 = vunpack.c.l.b16 %v290
      %v586 = vunpack.c.l.b16 %v291
      %v587 = vunpack.c.l.b16 %v292
      %v588 = vunpack.c.l.b16 %v293
      %v589 = vunpack.c.l.b16 %v294
      %v590 = vunpack.c.l.b16 %v295
      %v591 = vunpack.c.l.b16 %v296
      %v592 = vunpack.c.l.b16 %v297
      %v593 = vunpack.c.l.b16 %v298
      %v594 = vunpack.c.l.b16 %v299
      %v595 = vunpack.c.l.b16 %v300
      %v596 = vunpack.c.l.b16 %v301
      %v597 = vunpack.c.l.b16 %v302
      %v598 = vunpack.c.l.b16 %v303
      %v599 = vunpack.c.l.b16 %v304
      %v600 = vunpack.c.l.b16 %v305
      %v601 = vunpack.c.l.b16 %v306
      %v602 = vunpack.c.l.b16 %v307
      %v603 = vunpack.c.l.b16 %v308
      %v604 = vunpack.c.l.b16 %v309
      %v605 = vunpack.c.l.b16 %v310
      %v606 = vunpack.c.l.b16 %v311
      %v607 = vunpack.c.l.b16 %v312
      %v608 = vunpack.c.l.b16 %v313
      %v609 = vunpack.c.l.b16 %v314
      %v610 = vunpack.c.l.b16 %v315
      %v611 = vunpack.c.l.b16 %v316
      %v612 = vunpack.c.l.b16 %v317
      %v613 = vunpack.c.l.b16 %v318
      %v614 = vunpack.c.l.b16 %v319
      %v615 = vunpack.c.l.b16 %v320
      %v616 = vunpack.c.l.b16 %v321
      %v617 = vunpack.c.l.b16 %v322
      %v618 = vunpack.c.l.b16 %v323
      %v619 = vunpack.c.l.b16 %v324
      %v620 = vpack.c.b16 %v557, %v556
      %v621 = vpack.c.b16 %v559, %v558
      %v622 = vpack.c.b16 %v561, %v560
      %v623 = vpack.c.b16 %v563, %v562
      %v624 = vpack.c.b16 %v565, %v564
      %v625 = vpack.c.b16 %v567, %v566
      %v626 = vpack.c.b16 %v569, %v568
      %v627 = vpack.c.b16 %v571, %v570
      %v628 = vpack.c.b16 %v573, %v572
      %v629 = vpack.c.b16 %v575, %v574
      %v630 = vpack.c.b16 %v577, %v576
      %v631 = vpack.c.b16 %v579, %v578
      %v632 = vpack.c.b16 %v581, %v580
      %v633 = vpack.c.b16 %v583, %v582
      %v634 = vpack.c.b16 %v585, %v584
      %v635 = vpack.c.b16 %v587, %v586
      %v636 = vpack.c.b16 %v589, %v588
      %v637 = vpack.c.b16 %v591, %v590
      %v638 = vpack.c.b16 %v593, %v592
      %v639 = vpack.c.b16 %v595, %v594
      %v640 = vpack.c.b16 %v597, %v596
      %v641 = vpack.c.b16 %v599, %v598
      %v642 = vpack.c.b16 %v601, %v600
      %v643 = vpack.c.b16 %v603, %v602
      %v644 = vpack.c.b16 %v605, %v604
      %v645 = vpack.c.b16 %v607, %v606
      %v646 = vpack.c.b16 %v609, %v608
      %v647 = vpack.c.b16 %v611, %v610
      %v648 = vpack.c.b16 %v613, %v612
      %v649 = vpack.c.b16 %v615, %v614
      %v650 = vpack.c.b16 %v617, %v616
      %v651 = vpack.c.b16 %v619, %v618
      %684 = vmatprep.subr.bf16.mxu0 0
      %685 = vmatpush1.bf16.msra.mxu0 %v620
      %686 = vmatprep.subr.bf16.mxu0 0
      %687 = vmatpush1.bf16.msra.mxu0 %v621
      %688 = vmatprep.subr.bf16.mxu0 0
      %689 = vmatpush1.bf16.msra.mxu0 %v622
      %690 = vmatprep.subr.bf16.mxu0 0
      %691 = vmatpush1.bf16.msra.mxu0 %v623
      %692 = vmatprep.subr.bf16.mxu0 0
      %693 = vmatpush1.bf16.msra.mxu0 %v624
      %694 = vmatprep.subr.bf16.mxu0 0
      %695 = vmatpush1.bf16.msra.mxu0 %v625
      %696 = vmatprep.subr.bf16.mxu0 0
      %697 = vmatpush1.bf16.msra.mxu0 %v626
      %698 = vmatprep.subr.bf16.mxu0 0
      %699 = vmatpush1.bf16.msra.mxu0 %v627
      %700 = vmatprep.subr.bf16.mxu0 0
      %701 = vmatpush1.bf16.msra.mxu0 %v628
      %702 = vmatprep.subr.bf16.mxu0 0
      %703 = vmatpush1.bf16.msra.mxu0 %v629
      %704 = vmatprep.subr.bf16.mxu0 0
      %705 = vmatpush1.bf16.msra.mxu0 %v630
      %706 = vmatprep.subr.bf16.mxu0 0
      %707 = vmatpush1.bf16.msra.mxu0 %v631
      %708 = vmatprep.subr.bf16.mxu0 0
      %709 = vmatpush1.bf16.msra.mxu0 %v632
      %710 = vmatprep.subr.bf16.mxu0 0
      %711 = vmatpush1.bf16.msra.mxu0 %v633
      %712 = vmatprep.subr.bf16.mxu0 0
      %713 = vmatpush1.bf16.msra.mxu0 %v634
      %714 = vmatprep.subr.bf16.mxu0 0
      %715 = vmatpush1.bf16.msra.mxu0 %v635
      %716 = vmatprep.mubr.bf16.mxu0 %v429
      %717 = vmatmul.mubr.bf16.gmra.mrb[0].mxu0 %v428
      %v718 = vpop.f32.mrb[0].mxu0
      %v719 = vadd.f32 %v330, %v718
      %v720 = vpop.f32.mrb[0].mxu0
      %v721 = vpop.f32.mrb[0].mxu0
      %v722 = vadd.f32 %v330, %v721
      %v723 = vpop.f32.mrb[0].mxu0
      %724 = vmatprep.mubr.bf16.mxu0 %v433
      %725 = vmatmul.mubr.bf16.gmra.mrb[0].mxu0 %v432
      %v726 = vpop.f32.mrb[0].mxu0
      %v727 = vadd.f32 %v330, %v726
      %v728 = vpop.f32.mrb[0].mxu0
      %v729 = vpop.f32.mrb[0].mxu0
      %v730 = vadd.f32 %v330, %v729
      %v731 = vpop.f32.mrb[0].mxu0
      %732 = vmatprep.mubr.bf16.mxu0 %v437
      %733 = vmatmul.mubr.bf16.gmra.mrb[0].mxu0 %v436
      %v734 = vpop.f32.mrb[0].mxu0
      %v735 = vadd.f32 %v330, %v734
      %v736 = vpop.f32.mrb[0].mxu0
      %v737 = vpop.f32.mrb[0].mxu0
      %v738 = vadd.f32 %v330, %v737
      %v739 = vpop.f32.mrb[0].mxu0
      %740 = vmatprep.mubr.bf16.mxu0 %v441
      %741 = vmatmul.mubr.bf16.gmra.mrb[0].mxu0 %v440
      %v742 = vpop.f32.mrb[0].mxu0
      %v743 = vadd.f32 %v330, %v742
      %v744 = vpop.f32.mrb[0].mxu0
      %v745 = vpop.f32.mrb[0].mxu0
      %v746 = vadd.f32 %v330, %v745
      %v747 = vpop.f32.mrb[0].mxu0
      %748 = vmatprep.mubr.bf16.mxu0 %v445
      %749 = vmatmul.mubr.bf16.gmra.mrb[0].mxu0 %v444
      %v750 = vpop.f32.mrb[0].mxu0
      %v751 = vadd.f32 %v330, %v750
      %v752 = vpop.f32.mrb[0].mxu0
      %v753 = vpop.f32.mrb[0].mxu0
      %v754 = vadd.f32 %v330, %v753
      %v755 = vpop.f32.mrb[0].mxu0
      %756 = vmatprep.mubr.bf16.mxu0 %v449
      %757 = vmatmul.mubr.bf16.gmra.mrb[0].mxu0 %v448
      %v758 = vpop.f32.mrb[0].mxu0
      %v759 = vadd.f32 %v330, %v758
      %v760 = vpop.f32.mrb[0].mxu0
      %v761 = vpop.f32.mrb[0].mxu0
      %v762 = vadd.f32 %v330, %v761
      %v763 = vpop.f32.mrb[0].mxu0
      %764 = vmatprep.mubr.bf16.mxu0 %v453
      %765 = vmatmul.mubr.bf16.gmra.mrb[0].mxu0 %v452
      %v766 = vpop.f32.mrb[0].mxu0
      %v767 = vadd.f32 %v330, %v766
      %v768 = vpop.f32.mrb[0].mxu0
      %v769 = vpop.f32.mrb[0].mxu0
      %v770 = vadd.f32 %v330, %v769
      %v771 = vpop.f32.mrb[0].mxu0
      %772 = vmatprep.mubr.bf16.mxu0 %v457
      %773 = vmatmul.mubr.bf16.gmra.mrb[0].mxu0 %v456
      %v774 = vpop.f32.mrb[0].mxu0
      %v775 = vadd.f32 %v330, %v774
      %v776 = vpop.f32.mrb[0].mxu0
      %v777 = vpop.f32.mrb[0].mxu0
      %v778 = vadd.f32 %v330, %v777
      %v779 = vpop.f32.mrb[0].mxu0
      %780 = vdwg.mxu0
      %781 = vmatprep.subr.bf16.mxu0 0
      %782 = vmatpush1.bf16.msra.mxu0 %v636
      %783 = vmatprep.subr.bf16.mxu0 0
      %784 = vmatpush1.bf16.msra.mxu0 %v637
      %785 = vmatprep.subr.bf16.mxu0 0
      %786 = vmatpush1.bf16.msra.mxu0 %v638
      %787 = vmatprep.subr.bf16.mxu0 0
      %788 = vmatpush1.bf16.msra.mxu0 %v639
      %789 = vmatprep.subr.bf16.mxu0 0
      %790 = vmatpush1.bf16.msra.mxu0 %v640
      %791 = vmatprep.subr.bf16.mxu0 0
      %792 = vmatpush1.bf16.msra.mxu0 %v641
      %793 = vmatprep.subr.bf16.mxu0 0
      %794 = vmatpush1.bf16.msra.mxu0 %v642
      %795 = vmatprep.subr.bf16.mxu0 0
      %796 = vmatpush1.bf16.msra.mxu0 %v643
      %797 = vmatprep.subr.bf16.mxu0 0
      %798 = vmatpush1.bf16.msra.mxu0 %v644
      %799 = vmatprep.subr.bf16.mxu0 0
      %800 = vmatpush1.bf16.msra.mxu0 %v645
      %801 = vmatprep.subr.bf16.mxu0 0
      %802 = vmatpush1.bf16.msra.mxu0 %v646
      %803 = vmatprep.subr.bf16.mxu0 0
      %804 = vmatpush1.bf16.msra.mxu0 %v647
      %805 = vmatprep.subr.bf16.mxu0 0
      %806 = vmatpush1.bf16.msra.mxu0 %v648
      %807 = vmatprep.subr.bf16.mxu0 0
      %808 = vmatpush1.bf16.msra.mxu0 %v649
      %809 = vmatprep.subr.bf16.mxu0 0
      %810 = vmatpush1.bf16.msra.mxu0 %v650
      %811 = vmatprep.subr.bf16.mxu0 0
      %812 = vmatpush1.bf16.msra.mxu0 %v651
      %813 = vmatprep.mubr.bf16.mxu0 %v431
      %814 = vmatmul.mubr.bf16.gmra.mrb[0].mxu0 %v430
      %v815 = vpop.f32.mrb[0].mxu0
      %v816 = vadd.f32 %v719, %v815
      %v817 = vpop.f32.mrb[0].mxu0
      %v818 = vpop.f32.mrb[0].mxu0
      %v819 = vadd.f32 %v722, %v818
      %v820 = vpop.f32.mrb[0].mxu0
      %821 = vmatprep.mubr.bf16.mxu0 %v435
      %822 = vmatmul.mubr.bf16.gmra.mrb[0].mxu0 %v434
      %v823 = vpop.f32.mrb[0].mxu0
      %v824 = vadd.f32 %v727, %v823
      %v825 = vpop.f32.mrb[0].mxu0
      %v826 = vpop.f32.mrb[0].mxu0
      %v827 = vadd.f32 %v730, %v826
      %v828 = vpop.f32.mrb[0].mxu0
      %829 = vmatprep.mubr.bf16.mxu0 %v439
      %830 = vmatmul.mubr.bf16.gmra.mrb[0].mxu0 %v438
      %v831 = vpop.f32.mrb[0].mxu0
      %v832 = vadd.f32 %v735, %v831
      %v833 = vpop.f32.mrb[0].mxu0
      %v834 = vpop.f32.mrb[0].mxu0
      %v835 = vadd.f32 %v738, %v834
      %v836 = vpop.f32.mrb[0].mxu0
      %837 = vmatprep.mubr.bf16.mxu0 %v443
      %838 = vmatmul.mubr.bf16.gmra.mrb[0].mxu0 %v442
      %v839 = vpop.f32.mrb[0].mxu0
      %v840 = vadd.f32 %v743, %v839
      %v841 = vpop.f32.mrb[0].mxu0
      %v842 = vpop.f32.mrb[0].mxu0
      %v843 = vadd.f32 %v746, %v842
      %v844 = vpop.f32.mrb[0].mxu0
      %845 = vmatprep.mubr.bf16.mxu0 %v447
      %846 = vmatmul.mubr.bf16.gmra.mrb[0].mxu0 %v446
      %v847 = vpop.f32.mrb[0].mxu0
      %v848 = vadd.f32 %v751, %v847
      %v849 = vpop.f32.mrb[0].mxu0
      %v850 = vpop.f32.mrb[0].mxu0
      %v851 = vadd.f32 %v754, %v850
      %v852 = vpop.f32.mrb[0].mxu0
      %853 = vmatprep.mubr.bf16.mxu0 %v451
      %854 = vmatmul.mubr.bf16.gmra.mrb[0].mxu0 %v450
      %v855 = vpop.f32.mrb[0].mxu0
      %v856 = vadd.f32 %v759, %v855
      %v857 = vpop.f32.mrb[0].mxu0
      %v858 = vpop.f32.mrb[0].mxu0
      %v859 = vadd.f32 %v762, %v858
      %v860 = vpop.f32.mrb[0].mxu0
      %861 = vmatprep.mubr.bf16.mxu0 %v455
      %862 = vmatmul.mubr.bf16.gmra.mrb[0].mxu0 %v454
      %v863 = vpop.f32.mrb[0].mxu0
      %v864 = vadd.f32 %v767, %v863
      %v865 = vpop.f32.mrb[0].mxu0
      %v866 = vpop.f32.mrb[0].mxu0
      %v867 = vadd.f32 %v770, %v866
      %v868 = vpop.f32.mrb[0].mxu0
      %869 = vmatprep.mubr.bf16.mxu0 %v459
      %870 = vmatmul.mubr.bf16.gmra.mrb[0].mxu0 %v458
      %v871 = vpop.f32.mrb[0].mxu0
      %v872 = vadd.f32 %v775, %v871
      %v873 = vpop.f32.mrb[0].mxu0
      %v874 = vpop.f32.mrb[0].mxu0
      %v875 = vadd.f32 %v778, %v874
      %v876 = vpop.f32.mrb[0].mxu0
      %877 = vdwg.mxu0
      %v878 = vmax.f32 %v816, 0.0
      %v879 = vmax.f32 %v819, 0.0
      %v880 = vmax.f32 %v824, 0.0
      %v881 = vmax.f32 %v827, 0.0
      %v882 = vmax.f32 %v832, 0.0
      %v883 = vmax.f32 %v835, 0.0
      %v884 = vmax.f32 %v840, 0.0
      %v885 = vmax.f32 %v843, 0.0
      %v886 = vmax.f32 %v848, 0.0
      %v887 = vmax.f32 %v851, 0.0
      %v888 = vmax.f32 %v856, 0.0
      %v889 = vmax.f32 %v859, 0.0
      %v890 = vmax.f32 %v864, 0.0
      %v891 = vmax.f32 %v867, 0.0
      %v892 = vmax.f32 %v872, 0.0
      %v893 = vmax.f32 %v875, 0.0
      %v894 = vpack.c.bf16 %v879, %v878
      %v895 = vpack.c.bf16 %v881, %v880
      %v896 = vpack.c.bf16 %v883, %v882
      %v897 = vpack.c.bf16 %v885, %v884
      %v898 = vpack.c.bf16 %v887, %v886
      %v899 = vpack.c.bf16 %v889, %v888
      %v900 = vpack.c.bf16 %v891, %v890
      %v901 = vpack.c.bf16 %v893, %v892
      %v910 = vunpack.c.l.b16 %v894
      %v911 = vunpack.c.h.b16 %v894
      %v912 = vunpack.c.l.b16 %v895
      %v913 = vunpack.c.h.b16 %v895
      %v914 = vunpack.c.l.b16 %v896
      %v915 = vunpack.c.h.b16 %v896
      %v916 = vunpack.c.l.b16 %v897
      %v917 = vunpack.c.h.b16 %v897
      %v918 = vunpack.c.l.b16 %v898
      %v919 = vunpack.c.h.b16 %v898
      %v920 = vunpack.c.l.b16 %v899
      %v921 = vunpack.c.h.b16 %v899
      %v922 = vunpack.c.l.b16 %v900
      %v923 = vunpack.c.h.b16 %v900
      %v924 = vunpack.c.l.b16 %v901
      %v925 = vunpack.c.h.b16 %v901
      %v926 = vpack.c.b16 %v910, %v910
      %v927 = vpack.c.b16 %v911, %v911
      %v928 = vpack.c.b16 %v912, %v912
      %v929 = vpack.c.b16 %v913, %v913
      %v930 = vpack.c.b16 %v914, %v914
      %v931 = vpack.c.b16 %v915, %v915
      %v932 = vpack.c.b16 %v916, %v916
      %v933 = vpack.c.b16 %v917, %v917
      %v934 = vpack.c.b16 %v918, %v918
      %v935 = vpack.c.b16 %v919, %v919
      %v936 = vpack.c.b16 %v920, %v920
      %v937 = vpack.c.b16 %v921, %v921
      %v938 = vpack.c.b16 %v922, %v922
      %v939 = vpack.c.b16 %v923, %v923
      %v940 = vpack.c.b16 %v924, %v924
      %v941 = vpack.c.b16 %v925, %v925
      %958 = vst [vmem:[%s226] sm:$0xf] %v926
      %959 = vst [vmem:[%s226 + $0x4] sm:$0xf] %v927
      %960 = vst [vmem:[%s226 + $0x8] sm:$0xf] %v928
      %961 = vst [vmem:[%s226 + $0xc] sm:$0xf] %v929
      %962 = vst [vmem:[%s226 + $0x10] sm:$0xf] %v930
      %963 = vst [vmem:[%s226 + $0x14] sm:$0xf] %v931
      %964 = vst [vmem:[%s226 + $0x18] sm:$0xf] %v932
      %965 = vst [vmem:[%s226 + $0x1c] sm:$0xf] %v933
      %966 = vst [vmem:[%s226 + $0x20] sm:$0xf] %v934
      %967 = vst [vmem:[%s226 + $0x24] sm:$0xf] %v935
      %968 = vst [vmem:[%s226 + $0x28] sm:$0xf] %v936
      %969 = vst [vmem:[%s226 + $0x2c] sm:$0xf] %v937
      %970 = vst [vmem:[%s226 + $0x30] sm:$0xf] %v938
      %971 = vst [vmem:[%s226 + $0x34] sm:$0xf] %v939
      %972 = vst [vmem:[%s226 + $0x38] sm:$0xf] %v940
      %973 = vst [vmem:[%s226 + $0x3c] sm:$0xf] %v941
      %s974 = smul.u32 16, %s18
      %p975 = scmp.lt.s32.totalorder %s974, 31
      %s976 = scalar_select %p975, %s974, 31
      %p977 = scmp.lt.s32.totalorder %s19, 0
      %s978 = scalar_select %p977, %s19, 0
      %s979 = sadd.s32 %s978, %s976
      %s980 = smul.addr %s979, 4
      %s981 = scalar_lea.vmem %s3, %s980
      // Predicated region
      $region33: #{dueling_dqn_forward.6} parent=31 // pred_check
        %p982 = pneg %p124
      $region34: #{dueling_dqn_forward.6} parent=31 // pred_check_branch
        %984 = sbr.rel (%p982) target = $region36
      $region35: #{dueling_dqn_forward.6} parent=31 // pred_region
        %s985 = smul.u32 16, %s18
      $region36: #{dueling_dqn_forward.6} parent=31 // pred_fallthru
        _
    $region32: #{dueling_dqn_forward.6} parent=5 // pred_fallthru
      _
    %p986 = scmp.le.s32.totalorder 2, %s9
    // Predicated region
    $region37: #{dueling_dqn_forward.6} parent=5 // pred_check
      %p987 = pneg %p986
    $region38: #{dueling_dqn_forward.6} parent=5 // pred_check_branch
      %989 = sbr.rel (%p987) target = $region40
    $region39: #{dueling_dqn_forward.6} parent=5 // pred_region
      %s990 = ssub.s32 %s9, 2
      // Predicated region
      $region41: #{dueling_dqn_forward.6} parent=39 // pred_check
        %p991 = pneg %p130
      $region42: #{dueling_dqn_forward.6} parent=39 // pred_check_branch
        %993 = sbr.rel (%p991) target = $region44
      $region43: #{dueling_dqn_forward.6} parent=39 // pred_region
        %s994 = smul.u32 16, %s20
        %p995 = scmp.lt.s32.totalorder %s994, 31
        %s996 = scalar_select %p995, %s994, 31
        %p997 = scmp.lt.s32.totalorder %s21, 0
        %s998 = scalar_select %p997, %s21, 0
        %s999 = sadd.s32 %s998, %s996
        %s1000 = smul.addr %s999, 4
        %s1001 = scalar_lea.vmem %s3, %s1000
      $region44: #{dueling_dqn_forward.6} parent=39 // pred_fallthru
        _
    $region40: #{dueling_dqn_forward.6} parent=5 // pred_fallthru
      _
  $region6: #{dueling_dqn_forward.6} parent=0 // loop_footer
    %s13 = sadd.s32 1, %s9
  $region7: #{dueling_dqn_forward.6} parent=0 // loop_footer_branch
    %8 = sbr.rel target = $region3
  $region8: #{dueling_dqn_forward.6} parent=0 // loop_exit
    _

// kernel: dueling_dqn_forward.7
$region0: #{dueling_dqn_forward.7}
  #allocation0 [shape = 'u32[]', space=smem, size = 0x4, offset = 0x4, fixed_abs, tag = 'smem constant byte address 0x4 - core index']
  #allocation1 [shape = 'u32[144,128]{1,0:T(1,128)}', space=vmem, size = 0x12000, scoped, tag = 'internal scratch']
  %s0 = inlined_call_operand.vmem [shape: bf16[112,576], index: 0, kind: input, shape index: {}]
  %s1 = inlined_call_operand.vmem [shape: bf16[576,128], index: 1, kind: input, shape index: {}]
  %s2 = inlined_call_operand.vmem [shape: f32[1,128], index: 2, kind: input, shape index: {}]
  %s3 = inlined_call_operand.vmem [shape: bf16[112,128], index: 3, kind: output, shape index: {}]
  %s4 = sld [smem:[#allocation0]]
  $region45: #{dueling_dqn_forward.7} parent=0
    _
  %s6 = ssub.s32 1, %s4
  %s7 = scalar_select 0, %s6, %s4
  loop: start=0, step=1, limit=4
  $region2: #{dueling_dqn_forward.7} parent=0 // loop_pre_header
    _
  $region3: #{dueling_dqn_forward.7} parent=0 // loop_header
    %s9 = sphi 0, %s13
    %p10 = scmp.ge.s32.totalorder %s9, 4
    %s16 = sphi 0, %s28
    %s17 = sphi 0, %s24
    %s18 = sphi 0, %s16
    %s19 = sphi 0, %s17
    %s20 = sphi 0, %s18
    %s21 = sphi 0, %s19
    %s31 = sphi 0, %s33
    %s34 = sphi 0, %s31
    %s35 = sphi 0, %s34
    %s51 = sphi 0, %s35
    %s57 = sphi 0, %s59
    %s60 = sphi 0, %s57
    %s61 = sphi 0, %s60
    %s77 = sphi 0, %s61
    %s83 = sphi 0, %s85
    %s86 = sphi 0, %s83
    %s87 = sphi 0, %s86
    %s103 = sphi 0, %s87
    %s111 = sphi 0, %s113
    %s114 = sphi 0, %s111
    %s115 = sphi 0, %s114
    %s131 = sphi 0, %s115
  $region4: #{dueling_dqn_forward.7} parent=0 // loop_header_branch
    %12 = sbr.rel (%p10) target = $region8
  $region5: #{dueling_dqn_forward.7} parent=0 // loop_body
    %s14 = ssub.s32 %s9, 1
    %s15 = ssub.s32 %s9, 2
    %s22 = sadd.s32 1, %s17
    %p23 = scmp.ge.s32.totalorder %s22, 1
    %s24 = scalar_select %p23, 0, %s22
    %s25 = sadd.s32 1, %s16
    %s26 = scalar_select %p23, %s25, %s16
    %p27 = scmp.ge.s32.totalorder %s26, 2
    %s28 = scalar_select %p27, 0, %s26
    %s29 = ssub.s32 %s16, %s28
    %p30 = scmp.eq.s32.totalorder %s29, 0
    %s32 = sadd.s32 %s31, 1
    %s33 = scalar_select %p30, %s31, %s32
    %p36 = pneg %p30
    %p37 = scmp.eq.s32.totalorder %s9, 1
    %p38 = por %p36, %p37
    %p39 = scmp.ne.s32.totalorder %s31, %s34
    %p40 = scmp.eq.s32.totalorder %s9, 0
    %p41 = por %p39, %p40
    %p42 = scmp.ne.s32.totalorder %s31, %s34
    %p43 = scmp.eq.s32.totalorder %s14, 1
    %p44 = por %p42, %p43
    %p45 = scmp.ne.s32.totalorder %s34, %s35
    %p46 = scmp.eq.s32.totalorder %s14, 0
    %p47 = por %p45, %p46
    %p48 = scmp.ne.s32.totalorder %s34, %s35
    %p49 = scmp.eq.s32.totalorder %s15, 1
    %p50 = por %p48, %p49
    %p52 = scmp.ne.s32.totalorder %s35, %s51
    %p53 = scmp.eq.s32.totalorder %s15, 0
    %p54 = por %p52, %p53
    %s55 = ssub.s32 %s17, %s24
    %p56 = scmp.eq.s32.totalorder %s55, 0
    %s58 = sadd.s32 %s57, 1
    %s59 = scalar_select %p56, %s57, %s58
    %p62 = pneg %p56
    %p63 = scmp.eq.s32.totalorder %s9, 1
    %p64 = por %p62, %p63
    %p65 = scmp.ne.s32.totalorder %s57, %s60
    %p66 = scmp.eq.s32.totalorder %s9, 0
    %p67 = por %p65, %p66
    %p68 = scmp.ne.s32.totalorder %s57, %s60
    %p69 = scmp.eq.s32.totalorder %s14, 1
    %p70 = por %p68, %p69
    %p71 = scmp.ne.s32.totalorder %s60, %s61
    %p72 = scmp.eq.s32.totalorder %s14, 0
    %p73 = por %p71, %p72
    %p74 = scmp.ne.s32.totalorder %s60, %s61
    %p75 = scmp.eq.s32.totalorder %s15, 1
    %p76 = por %p74, %p75
    %p78 = scmp.ne.s32.totalorder %s61, %s77
    %p79 = scmp.eq.s32.totalorder %s15, 0
    %p80 = por %p78, %p79
    %s81 = ssub.s32 %s17, %s24
    %p82 = scmp.eq.s32.totalorder %s81, 0
    %s84 = sadd.s32 %s83, 1
    %s85 = scalar_select %p82, %s83, %s84
    %p88 = pneg %p82
    %p89 = scmp.eq.s32.totalorder %s9, 1
    %p90 = por %p88, %p89
    %p91 = scmp.ne.s32.totalorder %s83, %s86
    %p92 = scmp.eq.s32.totalorder %s9, 0
    %p93 = por %p91, %p92
    %p94 = scmp.ne.s32.totalorder %s83, %s86
    %p95 = scmp.eq.s32.totalorder %s14, 1
    %p96 = por %p94, %p95
    %p97 = scmp.ne.s32.totalorder %s86, %s87
    %p98 = scmp.eq.s32.totalorder %s14, 0
    %p99 = por %p97, %p98
    %p100 = scmp.ne.s32.totalorder %s86, %s87
    %p101 = scmp.eq.s32.totalorder %s15, 1
    %p102 = por %p100, %p101
    %p104 = scmp.ne.s32.totalorder %s87, %s103
    %p105 = scmp.eq.s32.totalorder %s15, 0
    %p106 = por %p104, %p105
    %s107 = ssub.s32 %s16, %s28
    %s108 = ssub.s32 %s17, %s24
    %s109 = sor.u32 %s107, %s108
    %p110 = scmp.eq.s32.totalorder %s109, 0
    %s112 = sadd.s32 %s111, 1
    %s113 = scalar_select %p110, %s111, %s112
    %p116 = pneg %p110
    %p117 = scmp.eq.s32.totalorder %s9, 1
    %p118 = por %p116, %p117
    %p119 = scmp.ne.s32.totalorder %s111, %s114
    %p120 = scmp.eq.s32.totalorder %s9, 0
    %p121 = por %p119, %p120
    %p122 = scmp.ne.s32.totalorder %s111, %s114
    %p123 = scmp.eq.s32.totalorder %s14, 1
    %p124 = por %p122, %p123
    %p125 = scmp.ne.s32.totalorder %s114, %s115
    %p126 = scmp.eq.s32.totalorder %s14, 0
    %p127 = por %p125, %p126
    %p128 = scmp.ne.s32.totalorder %s114, %s115
    %p129 = scmp.eq.s32.totalorder %s15, 1
    %p130 = por %p128, %p129
    %p132 = scmp.ne.s32.totalorder %s115, %s131
    %p133 = scmp.eq.s32.totalorder %s15, 0
    %p134 = por %p132, %p133
    %p135 = scmp.le.s32.totalorder 1, %s9
    %p136 = scmp.lt.s32.totalorder %s9, 3
    %p137 = pnand %p135, %p136
    %p138 = pneg %p137
    // Predicated region
    $region9: #{dueling_dqn_forward.7} parent=5 // pred_check
      _
    $region10: #{dueling_dqn_forward.7} parent=5 // pred_check_branch
      %140 = sbr.rel (%p137) target = $region12
    $region11: #{dueling_dqn_forward.7} parent=5 // pred_region
      %s141 = ssub.s32 %s9, 1
      // Predicated region
      $region13: #{dueling_dqn_forward.7} parent=11 // pred_check
        %p142 = pneg %p73
      $region14: #{dueling_dqn_forward.7} parent=11 // pred_check_branch
        %144 = sbr.rel (%p142) target = $region16
      $region15: #{dueling_dqn_forward.7} parent=11 // pred_region
        %p145 = scmp.lt.s32.totalorder %s19, 0
        %s146 = scalar_select %p145, %s19, 0
        %s147 = smul.addr %s146, 4
        %s148 = scalar_lea.vmem %s1, %s147
      $region16: #{dueling_dqn_forward.7} parent=11 // pred_fallthru
        _
      // Predicated region
      $region17: #{dueling_dqn_forward.7} parent=11 // pred_check
        %p149 = pneg %p99
      $region18: #{dueling_dqn_forward.7} parent=11 // pred_check_branch
        %151 = sbr.rel (%p149) target = $region20
      $region19: #{dueling_dqn_forward.7} parent=11 // pred_region
        %p152 = scmp.lt.s32.totalorder %s19, 0
        %s153 = scalar_select %p152, %s19, 0
        %s154 = scalar_lea.vmem %s2, %s153
      $region20: #{dueling_dqn_forward.7} parent=11 // pred_fallthru
        _
    $region12: #{dueling_dqn_forward.7} parent=5 // pred_fallthru
      _
    %p155 = scmp.lt.s32.totalorder %s9, 2
    // Predicated region
    $region21: #{dueling_dqn_forward.7} parent=5 // pred_check
      %p156 = pneg %p155
    $region22: #{dueling_dqn_forward.7} parent=5 // pred_check_branch
      %158 = sbr.rel (%p156) target = $region24
    $region23: #{dueling_dqn_forward.7} parent=5 // pred_region
      // Predicated region
      $region25: #{dueling_dqn_forward.7} parent=23 // pred_check
        %p159 = pneg %p41
      $region26: #{dueling_dqn_forward.7} parent=23 // pred_check_branch
        %161 = sbr.rel (%p159) target = $region28
      $region27: #{dueling_dqn_forward.7} parent=23 // pred_region
        %s162 = smul.u32 7, %s16
        %p163 = scmp.lt.s32.totalorder %s162, 13
        %s164 = scalar_select %p163, %s162, 13
        %s165 = smul.addr %s164, 5
        %s166 = smul.addr %s165, 4
        %s167 = scalar_lea.vmem %s0, %s166
        %s168 = smul.u32 7, %s16
      $region28: #{dueling_dqn_forward.7} parent=23 // pred_fallthru
        _
    $region24: #{dueling_dqn_forward.7} parent=5 // pred_fallthru
      _
    %p169 = scmp.le.s32.totalorder 1, %s9
    %p170 = scmp.lt.s32.totalorder %s9, 3
    %p171 = pnand %p169, %p170
    %p172 = pneg %p171
    // Predicated region
    $region29: #{dueling_dqn_forward.7} parent=5 // pred_check
      _
    $region30: #{dueling_dqn_forward.7} parent=5 // pred_check_branch
      %174 = sbr.rel (%p171) target = $region32
    $region31: #{dueling_dqn_forward.7} parent=5 // pred_region
      %s175 = ssub.s32 %s9, 1
      %s176 = smul.u32 7, %s18
      %p177 = scmp.lt.s32.totalorder %s176, 13
      %s178 = scalar_select %p177, %s176, 13
      %s179 = smul.addr %s178, 5
      %s180 = smul.addr %s179, 4
      %s181 = scalar_lea.vmem %s0, %s180
      %p182 = pneg %p47
      %p183 = pneg %p44
      %p184 = scmp.lt.s32.totalorder %s19, 0
      %s185 = scalar_select %p184, %s19, 0
      %s186 = smul.addr %s185, 4
      %s187 = scalar_lea.vmem %s1, %s186
      %p188 = pneg %p73
      %p189 = pneg %p70
      %p190 = scmp.lt.s32.totalorder %s19, 0
      %s191 = scalar_select %p190, %s19, 0
      %s192 = scalar_lea.vmem %s2, %s191
      %p193 = pneg %p99
      %p194 = pneg %p96
      %p195 = pneg %p127
      %p196 = pneg %p124
      %s197 = smul.u32 7, %s18
      %p198 = scmp.lt.s32.totalorder %s197, 13
      %s199 = scalar_select %p198, %s197, 13
      %p200 = scmp.lt.s32.totalorder %s19, 0
      %s201 = scalar_select %p200, %s19, 0
      %s202 = sadd.s32 %s201, %s199
      %s203 = smul.addr %s202, 4
      %s204 = scalar_lea.vmem %s3, %s203
      %s205 = smul.u32 7, %s18
      %p206 = scmp.lt.s32.totalorder %s205, 13
      %s207 = scalar_select %p206, %s205, 13
      %s208 = smul.addr %s207, 5
      %s209 = smul.addr %s208, 4
      %s210 = scalar_lea.vmem %s0, %s209
      %s211 = smul.u32 7, %s18
      %p212 = scmp.lt.s32.totalorder %s19, 0
      %s213 = scalar_select %p212, %s19, 0
      %s214 = smul.addr %s213, 4
      %s215 = scalar_lea.vmem %s1, %s214
      %p216 = scmp.lt.s32.totalorder %s19, 0
      %s217 = scalar_select %p216, %s19, 0
      %s218 = scalar_lea.vmem %s2, %s217
      %s219 = smul.u32 7, %s18
      %p220 = scmp.lt.s32.totalorder %s219, 13
      %s221 = scalar_select %p220, %s219, 13
      %p222 = scmp.lt.s32.totalorder %s19, 0
      %s223 = scalar_select %p222, %s19, 0
      %s224 = sadd.s32 %s223, %s221
      %s225 = smul.addr %s224, 4
      %s226 = scalar_lea.vmem %s3, %s225
      %s227 = smul.u32 7, %s18
      %v229 = vld [vmem:[%s210] sm:$0xff]
      %v230 = vld [vmem:[%s210 + $0x8] sm:$0xff]
      %v231 = vld [vmem:[%s210 + $0x10] sm:$0xf]
      %v232 = vld [vmem:[%s210 + $0x14] sm:$0xff]
      %v233 = vld [vmem:[%s210 + $0x1c] sm:$0xff]
      %v234 = vld [vmem:[%s210 + $0x24] sm:$0xf]
      %v235 = vld [vmem:[%s210 + $0x28] sm:$0xff]
      %v236 = vld [vmem:[%s210 + $0x30] sm:$0xff]
      %v237 = vld [vmem:[%s210 + $0x38] sm:$0xf]
      %v238 = vld [vmem:[%s210 + $0x3c] sm:$0xff]
      %v239 = vld [vmem:[%s210 + $0x44] sm:$0xff]
      %v240 = vld [vmem:[%s210 + $0x4c] sm:$0xf]
      %v241 = vld [vmem:[%s210 + $0x50] sm:$0xff]
      %v242 = vld [vmem:[%s210 + $0x58] sm:$0xff]
      %v243 = vld [vmem:[%s210 + $0x60] sm:$0xf]
      %v244 = vld [vmem:[%s210 + $0x64] sm:$0xff]
      %v245 = vld [vmem:[%s210 + $0x6c] sm:$0xff]
      %v246 = vld [vmem:[%s210 + $0x74] sm:$0xf]
      %v247 = vld [vmem:[%s210 + $0x78] sm:$0xff]
      %v248 = vld [vmem:[%s210 + $0x80] sm:$0xff]
      %v249 = vld [vmem:[%s210 + $0x88] sm:$0xf]
      %v250 = vld [vmem:[%s215] sm:$0xf]
      %v251 = vld [vmem:[%s215 + $0x4] sm:$0xf]
      %v252 = vld [vmem:[%s215 + $0x8] sm:$0xf]
      %v253 = vld [vmem:[%s215 + $0xc] sm:$0xf]
      %v254 = vld [vmem:[%s215 + $0x10] sm:$0xf]
      %v255 = vld [vmem:[%s215 + $0x14] sm:$0xf]
      %v256 = vld [vmem:[%s215 + $0x18] sm:$0xf]
      %v257 = vld [vmem:[%s215 + $0x1c] sm:$0xf]
      %v258 = vld [vmem:[%s215 + $0x20] sm:$0xf]
      %v259 = vld [vmem:[%s215 + $0x24] sm:$0xf]
      %v260 = vld [vmem:[%s215 + $0x28] sm:$0xf]
      %v261 = vld [vmem:[%s215 + $0x2c] sm:$0xf]
      %v262 = vld [vmem:[%s215 + $0x30] sm:$0xf]
      %v263 = vld [vmem:[%s215 + $0x34] sm:$0xf]
      %v264 = vld [vmem:[%s215 + $0x38] sm:$0xf]
      %v265 = vld [vmem:[%s215 + $0x3c] sm:$0xf]
      %v266 = vld [vmem:[%s215 + $0x40] sm:$0xf]
      %v267 = vld [vmem:[%s215 + $0x44] sm:$0xf]
      %v268 = vld [vmem:[%s215 + $0x48] sm:$0xf]
      %v269 = vld [vmem:[%s215 + $0x4c] sm:$0xf]
      %v270 = vld [vmem:[%s215 + $0x50] sm:$0xf]
      %v271 = vld [vmem:[%s215 + $0x54] sm:$0xf]
      %v272 = vld [vmem:[%s215 + $0x58] sm:$0xf]
      %v273 = vld [vmem:[%s215 + $0x5c] sm:$0xf]
      %v274 = vld [vmem:[%s215 + $0x60] sm:$0xf]
      %v275 = vld [vmem:[%s215 + $0x64] sm:$0xf]
      %v276 = vld [vmem:[%s215 + $0x68] sm:$0xf]
      %v277 = vld [vmem:[%s215 + $0x6c] sm:$0xf]
      %v278 = vld [vmem:[%s215 + $0x70] sm:$0xf]
      %v279 = vld [vmem:[%s215 + $0x74] sm:$0xf]
      %v280 = vld [vmem:[%s215 + $0x78] sm:$0xf]
      %v281 = vld [vmem:[%s215 + $0x7c] sm:$0xf]
      %v282 = vld [vmem:[%s215 + $0x80] sm:$0xf]
      %v283 = vld [vmem:[%s215 + $0x84] sm:$0xf]
      %v284 = vld [vmem:[%s215 + $0x88] sm:$0xf]
      %v285 = vld [vmem:[%s215 + $0x8c] sm:$0xf]
      %v286 = vld [vmem:[%s215 + $0x90] sm:$0xf]
      %v287 = vld [vmem:[%s215 + $0x94] sm:$0xf]
      %v288 = vld [vmem:[%s215 + $0x98] sm:$0xf]
      %v289 = vld [vmem:[%s215 + $0x9c] sm:$0xf]
      %v290 = vld [vmem:[%s215 + $0xa0] sm:$0xf]
      %v291 = vld [vmem:[%s215 + $0xa4] sm:$0xf]
      %v292 = vld [vmem:[%s215 + $0xa8] sm:$0xf]
      %v293 = vld [vmem:[%s215 + $0xac] sm:$0xf]
      %v294 = vld [vmem:[%s215 + $0xb0] sm:$0xf]
      %v295 = vld [vmem:[%s215 + $0xb4] sm:$0xf]
      %v296 = vld [vmem:[%s215 + $0xb8] sm:$0xf]
      %v297 = vld [vmem:[%s215 + $0xbc] sm:$0xf]
      %v298 = vld [vmem:[%s215 + $0xc0] sm:$0xf]
      %v299 = vld [vmem:[%s215 + $0xc4] sm:$0xf]
      %v300 = vld [vmem:[%s215 + $0xc8] sm:$0xf]
      %v301 = vld [vmem:[%s215 + $0xcc] sm:$0xf]
      %v302 = vld [vmem:[%s215 + $0xd0] sm:$0xf]
      %v303 = vld [vmem:[%s215 + $0xd4] sm:$0xf]
      %v304 = vld [vmem:[%s215 + $0xd8] sm:$0xf]
      %v305 = vld [vmem:[%s215 + $0xdc] sm:$0xf]
      %v306 = vld [vmem:[%s215 + $0xe0] sm:$0xf]
      %v307 = vld [vmem:[%s215 + $0xe4] sm:$0xf]
      %v308 = vld [vmem:[%s215 + $0xe8] sm:$0xf]
      %v309 = vld [vmem:[%s215 + $0xec] sm:$0xf]
      %v310 = vld [vmem:[%s215 + $0xf0] sm:$0xf]
      %v311 = vld [vmem:[%s215 + $0xf4] sm:$0xf]
      %v312 = vld [vmem:[%s215 + $0xf8] sm:$0xf]
      %v313 = vld [vmem:[%s215 + $0xfc] sm:$0xf]
      %v314 = vld [vmem:[%s215 + $0x100] sm:$0xf]
      %v315 = vld [vmem:[%s215 + $0x104] sm:$0xf]
      %v316 = vld [vmem:[%s215 + $0x108] sm:$0xf]
      %v317 = vld [vmem:[%s215 + $0x10c] sm:$0xf]
      %v318 = vld [vmem:[%s215 + $0x110] sm:$0xf]
      %v319 = vld [vmem:[%s215 + $0x114] sm:$0xf]
      %v320 = vld [vmem:[%s215 + $0x118] sm:$0xf]
      %v321 = vld [vmem:[%s215 + $0x11c] sm:$0xf]
      %v322 = vld [vmem:[%s218] sm:$0x1]
      %v324 = vlaneseq
      %v325 = vshrl.u32 %v324, 7
      %v326 = vsub.s32 0, %v325
      %v327 = vrot.slane %v322, %v326
      %v350 = vunpack.c.l.b16 %v229
      %v351 = vunpack.c.h.b16 %v229
      %v352 = vunpack.c.l.b16 %v230
      %v353 = vunpack.c.h.b16 %v230
      %v354 = vunpack.c.l.b16 %v231
      %v355 = vunpack.c.l.b16 %v232
      %v356 = vunpack.c.h.b16 %v232
      %v357 = vunpack.c.l.b16 %v233
      %v358 = vunpack.c.h.b16 %v233
      %v359 = vunpack.c.l.b16 %v234
      %v360 = vunpack.c.l.b16 %v235
      %v361 = vunpack.c.h.b16 %v235
      %v362 = vunpack.c.l.b16 %v236
      %v363 = vunpack.c.h.b16 %v236
      %v364 = vunpack.c.l.b16 %v237
      %v365 = vunpack.c.l.b16 %v238
      %v366 = vunpack.c.h.b16 %v238
      %v367 = vunpack.c.l.b16 %v239
      %v368 = vunpack.c.h.b16 %v239
      %v369 = vunpack.c.l.b16 %v240
      %v370 = vunpack.c.l.b16 %v241
      %v371 = vunpack.c.h.b16 %v241
      %v372 = vunpack.c.l.b16 %v242
      %v373 = vunpack.c.h.b16 %v242
      %v374 = vunpack.c.l.b16 %v243
      %v375 = vunpack.c.l.b16 %v244
      %v376 = vunpack.c.h.b16 %v244
      %v377 = vunpack.c.l.b16 %v245
      %v378 = vunpack.c.h.b16 %v245
      %v379 = vunpack.c.l.b16 %v246
      %v380 = vunpack.c.l.b16 %v247
      %v381 = vunpack.c.h.b16 %v247
      %v382 = vunpack.c.l.b16 %v248
      %v383 = vunpack.c.h.b16 %v248
      %v384 = vunpack.c.l.b16 %v249
      %v385 = vpack.c.b16 %v355, %v350
      %v386 = vpack.c.b16 %v356, %v351
      %v387 = vpack.c.b16 %v357, %v352
      %v388 = vpack.c.b16 %v358, %v353
      %v389 = vpack.c.b16 %v359, %v354
      %v390 = vpack.c.b16 %v365, %v360
      %v391 = vpack.c.b16 %v366, %v361
      %v392 = vpack.c.b16 %v367, %v362
      %v393 = vpack.c.b16 %v368, %v363
      %v394 = vpack.c.b16 %v369, %v364
      %v395 = vpack.c.b16 %v375, %v370
      %v396 = vpack.c.b16 %v376, %v371
      %v397 = vpack.c.b16 %v377, %v372
      %v398 = vpack.c.b16 %v378, %v373
      %v399 = vpack.c.b16 %v379, %v374
      %v400 = vpack.c.b16 %v380, %v380
      %v401 = vpack.c.b16 %v381, %v381
      %v402 = vpack.c.b16 %v382, %v382
      %v403 = vpack.c.b16 %v383, %v383
      %v404 = vpack.c.b16 %v384, %v384
      %v493 = vunpack.c.l.b16 %v250
      %v494 = vunpack.c.l.b16 %v251
      %v495 = vunpack.c.l.b16 %v252
      %v496 = vunpack.c.l.b16 %v253
      %v497 = vunpack.c.l.b16 %v254
      %v498 = vunpack.c.l.b16 %v255
      %v499 = vunpack.c.l.b16 %v256
      %v500 = vunpack.c.l.b16 %v257
      %v501 = vunpack.c.l.b16 %v258
      %v502 = vunpack.c.l.b16 %v259
      %v503 = vunpack.c.l.b16 %v260
      %v504 = vunpack.c.l.b16 %v261
      %v505 = vunpack.c.l.b16 %v262
      %v506 = vunpack.c.l.b16 %v263
      %v507 = vunpack.c.l.b16 %v264
      %v508 = vunpack.c.l.b16 %v265
      %v509 = vunpack.c.l.b16 %v266
      %v510 = vunpack.c.l.b16 %v267
      %v511 = vunpack.c.l.b16 %v268
      %v512 = vunpack.c.l.b16 %v269
      %v513 = vunpack.c.l.b16 %v270
      %v514 = vunpack.c.l.b16 %v271
      %v515 = vunpack.c.l.b16 %v272
      %v516 = vunpack.c.l.b16 %v273
      %v517 = vunpack.c.l.b16 %v274
      %v518 = vunpack.c.l.b16 %v275
      %v519 = vunpack.c.l.b16 %v276
      %v520 = vunpack.c.l.b16 %v277
      %v521 = vunpack.c.l.b16 %v278
      %v522 = vunpack.c.l.b16 %v279
      %v523 = vunpack.c.l.b16 %v280
      %v524 = vunpack.c.l.b16 %v281
      %v525 = vunpack.c.l.b16 %v282
      %v526 = vunpack.c.l.b16 %v283
      %v527 = vunpack.c.l.b16 %v284
      %v528 = vunpack.c.l.b16 %v285
      %v529 = vunpack.c.l.b16 %v286
      %v530 = vunpack.c.l.b16 %v287
      %v531 = vunpack.c.l.b16 %v288
      %v532 = vunpack.c.l.b16 %v289
      %v533 = vunpack.c.l.b16 %v290
      %v534 = vunpack.c.l.b16 %v291
      %v535 = vunpack.c.l.b16 %v292
      %v536 = vunpack.c.l.b16 %v293
      %v537 = vunpack.c.l.b16 %v294
      %v538 = vunpack.c.l.b16 %v295
      %v539 = vunpack.c.l.b16 %v296
      %v540 = vunpack.c.l.b16 %v297
      %v541 = vunpack.c.l.b16 %v298
      %v542 = vunpack.c.l.b16 %v299
      %v543 = vunpack.c.l.b16 %v300
      %v544 = vunpack.c.l.b16 %v301
      %v545 = vunpack.c.l.b16 %v302
      %v546 = vunpack.c.l.b16 %v303
      %v547 = vunpack.c.l.b16 %v304
      %v548 = vunpack.c.l.b16 %v305
      %v549 = vunpack.c.l.b16 %v306
      %v550 = vunpack.c.l.b16 %v307
      %v551 = vunpack.c.l.b16 %v308
      %v552 = vunpack.c.l.b16 %v309
      %v553 = vunpack.c.l.b16 %v310
      %v554 = vunpack.c.l.b16 %v311
      %v555 = vunpack.c.l.b16 %v312
      %v556 = vunpack.c.l.b16 %v313
      %v557 = vunpack.c.l.b16 %v314
      %v558 = vunpack.c.l.b16 %v315
      %v559 = vunpack.c.l.b16 %v316
      %v560 = vunpack.c.l.b16 %v317
      %v561 = vunpack.c.l.b16 %v318
      %v562 = vunpack.c.l.b16 %v319
      %v563 = vunpack.c.l.b16 %v320
      %v564 = vunpack.c.l.b16 %v321
      %v565 = vpack.c.b16 %v494, %v493
      %v566 = vpack.c.b16 %v496, %v495
      %v567 = vpack.c.b16 %v498, %v497
      %v568 = vpack.c.b16 %v500, %v499
      %v569 = vpack.c.b16 %v502, %v501
      %v570 = vpack.c.b16 %v504, %v503
      %v571 = vpack.c.b16 %v506, %v505
      %v572 = vpack.c.b16 %v508, %v507
      %v573 = vpack.c.b16 %v510, %v509
      %v574 = vpack.c.b16 %v512, %v511
      %v575 = vpack.c.b16 %v514, %v513
      %v576 = vpack.c.b16 %v516, %v515
      %v577 = vpack.c.b16 %v518, %v517
      %v578 = vpack.c.b16 %v520, %v519
      %v579 = vpack.c.b16 %v522, %v521
      %v580 = vpack.c.b16 %v524, %v523
      %v581 = vpack.c.b16 %v526, %v525
      %v582 = vpack.c.b16 %v528, %v527
      %v583 = vpack.c.b16 %v530, %v529
      %v584 = vpack.c.b16 %v532, %v531
      %v585 = vpack.c.b16 %v534, %v533
      %v586 = vpack.c.b16 %v536, %v535
      %v587 = vpack.c.b16 %v538, %v537
      %v588 = vpack.c.b16 %v540, %v539
      %v589 = vpack.c.b16 %v542, %v541
      %v590 = vpack.c.b16 %v544, %v543
      %v591 = vpack.c.b16 %v546, %v545
      %v592 = vpack.c.b16 %v548, %v547
      %v593 = vpack.c.b16 %v550, %v549
      %v594 = vpack.c.b16 %v552, %v551
      %v595 = vpack.c.b16 %v554, %v553
      %v596 = vpack.c.b16 %v556, %v555
      %v597 = vpack.c.b16 %v558, %v557
      %v598 = vpack.c.b16 %v560, %v559
      %v599 = vpack.c.b16 %v562, %v561
      %v600 = vpack.c.b16 %v564, %v563
      %vm637 = vcmask 523264
      %v639 = vsel %vm637, %v389, 0
      %v642 = vsel %vm637, %v394, 0
      %v645 = vsel %vm637, %v399, 0
      %v648 = vsel %vm637, %v404, 0
      %650 = vmatprep.subr.bf16.mxu0 0
      %651 = vmatpush1.bf16.msra.mxu0 %v565
      %652 = vmatprep.subr.bf16.mxu0 0
      %653 = vmatpush1.bf16.msra.mxu0 %v566
      %654 = vmatprep.subr.bf16.mxu0 0
      %655 = vmatpush1.bf16.msra.mxu0 %v567
      %656 = vmatprep.subr.bf16.mxu0 0
      %657 = vmatpush1.bf16.msra.mxu0 %v568
      %658 = vmatprep.subr.bf16.mxu0 0
      %659 = vmatpush1.bf16.msra.mxu0 %v569
      %660 = vmatprep.subr.bf16.mxu0 0
      %661 = vmatpush1.bf16.msra.mxu0 %v570
      %662 = vmatprep.subr.bf16.mxu0 0
      %663 = vmatpush1.bf16.msra.mxu0 %v571
      %664 = vmatprep.subr.bf16.mxu0 0
      %665 = vmatpush1.bf16.msra.mxu0 %v572
      %666 = vmatprep.subr.bf16.mxu0 0
      %667 = vmatpush1.bf16.msra.mxu0 %v573
      %668 = vmatprep.subr.bf16.mxu0 0
      %669 = vmatpush1.bf16.msra.mxu0 %v574
      %670 = vmatprep.subr.bf16.mxu0 0
      %671 = vmatpush1.bf16.msra.mxu0 %v575
      %672 = vmatprep.subr.bf16.mxu0 0
      %673 = vmatpush1.bf16.msra.mxu0 %v576
      %674 = vmatprep.subr.bf16.mxu0 0
      %675 = vmatpush1.bf16.msra.mxu0 %v577
      %676 = vmatprep.subr.bf16.mxu0 0
      %677 = vmatpush1.bf16.msra.mxu0 %v578
      %678 = vmatprep.subr.bf16.mxu0 0
      %679 = vmatpush1.bf16.msra.mxu0 %v579
      %680 = vmatprep.subr.bf16.mxu0 0
      %681 = vmatpush1.bf16.msra.mxu0 %v580
      %682 = vmatprep.mubr.bf16.mxu0 %v386
      %683 = vmatmul.mubr.bf16.gmra.mrb[0].mxu0 %v385
      %v684 = vpop.f32.mrb[0].mxu0
      %v685 = vadd.f32 %v327, %v684
      %v686 = vpop.f32.mrb[0].mxu0
      %v687 = vpop.f32.mrb[0].mxu0
      %v688 = vadd.f32 %v327, %v687
      %v689 = vpop.f32.mrb[0].mxu0
      %690 = vmatprep.mubr.bf16.mxu0 %v391
      %691 = vmatmul.mubr.bf16.gmra.mrb[0].mxu0 %v390
      %v692 = vpop.f32.mrb[0].mxu0
      %v693 = vadd.f32 %v327, %v692
      %v694 = vpop.f32.mrb[0].mxu0
      %v695 = vpop.f32.mrb[0].mxu0
      %v696 = vadd.f32 %v327, %v695
      %v697 = vpop.f32.mrb[0].mxu0
      %698 = vmatprep.mubr.bf16.mxu0 %v396
      %699 = vmatmul.mubr.bf16.gmra.mrb[0].mxu0 %v395
      %v700 = vpop.f32.mrb[0].mxu0
      %v701 = vadd.f32 %v327, %v700
      %v702 = vpop.f32.mrb[0].mxu0
      %v703 = vpop.f32.mrb[0].mxu0
      %v704 = vadd.f32 %v327, %v703
      %v705 = vpop.f32.mrb[0].mxu0
      %706 = vmatprep.mubr.bf16.mxu0 %v401
      %707 = vmatmul.mubr.bf16.gmra.mrb[0].mxu0 %v400
      %v708 = vpop.f32.mrb[0].mxu0
      %v709 = vadd.f32 %v327, %v708
      %v710 = vpop.f32.mrb[0].mxu0
      %v711 = vpop.f32.mrb[0].mxu0
      %v712 = vpop.f32.mrb[0].mxu0
      %713 = vdwg.mxu0
      %714 = vmatprep.subr.bf16.mxu0 0
      %715 = vmatpush1.bf16.msra.mxu0 %v581
      %716 = vmatprep.subr.bf16.mxu0 0
      %717 = vmatpush1.bf16.msra.mxu0 %v582
      %718 = vmatprep.subr.bf16.mxu0 0
      %719 = vmatpush1.bf16.msra.mxu0 %v583
      %720 = vmatprep.subr.bf16.mxu0 0
      %721 = vmatpush1.bf16.msra.mxu0 %v584
      %722 = vmatprep.subr.bf16.mxu0 0
      %723 = vmatpush1.bf16.msra.mxu0 %v585
      %724 = vmatprep.subr.bf16.mxu0 0
      %725 = vmatpush1.bf16.msra.mxu0 %v586
      %726 = vmatprep.subr.bf16.mxu0 0
      %727 = vmatpush1.bf16.msra.mxu0 %v587
      %728 = vmatprep.subr.bf16.mxu0 0
      %729 = vmatpush1.bf16.msra.mxu0 %v588
      %730 = vmatprep.subr.bf16.mxu0 0
      %731 = vmatpush1.bf16.msra.mxu0 %v589
      %732 = vmatprep.subr.bf16.mxu0 0
      %733 = vmatpush1.bf16.msra.mxu0 %v590
      %734 = vmatprep.subr.bf16.mxu0 0
      %735 = vmatpush1.bf16.msra.mxu0 %v591
      %736 = vmatprep.subr.bf16.mxu0 0
      %737 = vmatpush1.bf16.msra.mxu0 %v592
      %738 = vmatprep.subr.bf16.mxu0 0
      %739 = vmatpush1.bf16.msra.mxu0 %v593
      %740 = vmatprep.subr.bf16.mxu0 0
      %741 = vmatpush1.bf16.msra.mxu0 %v594
      %742 = vmatprep.subr.bf16.mxu0 0
      %743 = vmatpush1.bf16.msra.mxu0 %v595
      %744 = vmatprep.subr.bf16.mxu0 0
      %745 = vmatpush1.bf16.msra.mxu0 %v596
      %746 = vmatprep.mubr.bf16.mxu0 %v388
      %747 = vmatmul.mubr.bf16.gmra.mrb[0].mxu0 %v387
      %v748 = vpop.f32.mrb[0].mxu0
      %v749 = vadd.f32 %v685, %v748
      %v750 = vpop.f32.mrb[0].mxu0
      %v751 = vpop.f32.mrb[0].mxu0
      %v752 = vadd.f32 %v688, %v751
      %v753 = vpop.f32.mrb[0].mxu0
      %754 = vmatprep.mubr.bf16.mxu0 %v393
      %755 = vmatmul.mubr.bf16.gmra.mrb[0].mxu0 %v392
      %v756 = vpop.f32.mrb[0].mxu0
      %v757 = vadd.f32 %v693, %v756
      %v758 = vpop.f32.mrb[0].mxu0
      %v759 = vpop.f32.mrb[0].mxu0
      %v760 = vadd.f32 %v696, %v759
      %v761 = vpop.f32.mrb[0].mxu0
      %762 = vmatprep.mubr.bf16.mxu0 %v398
      %763 = vmatmul.mubr.bf16.gmra.mrb[0].mxu0 %v397
      %v764 = vpop.f32.mrb[0].mxu0
      %v765 = vadd.f32 %v701, %v764
      %v766 = vpop.f32.mrb[0].mxu0
      %v767 = vpop.f32.mrb[0].mxu0
      %v768 = vadd.f32 %v704, %v767
      %v769 = vpop.f32.mrb[0].mxu0
      %770 = vmatprep.mubr.bf16.mxu0 %v403
      %771 = vmatmul.mubr.bf16.gmra.mrb[0].mxu0 %v402
      %v772 = vpop.f32.mrb[0].mxu0
      %v773 = vadd.f32 %v709, %v772
      %v774 = vpop.f32.mrb[0].mxu0
      %v775 = vpop.f32.mrb[0].mxu0
      %v776 = vpop.f32.mrb[0].mxu0
      %777 = vdwg.mxu0
      %778 = vmatprep.subr.bf16.mxu0 0
      %779 = vmatpush1.bf16.msra.mxu0 %v597
      %780 = vmatprep.subr.bf16.mxu0 0
      %781 = vmatpush1.bf16.msra.mxu0 %v598
      %782 = vmatprep.subr.bf16.mxu0 0
      %783 = vmatpush1.bf16.msra.mxu0 %v599
      %784 = vmatprep.subr.bf16.mxu0 0
      %785 = vmatpush1.bf16.msra.mxu0 %v600
      %786 = vmatprep.subr.bf16.mxu0 0
      %787 = vmatpush1.bf16.msra.mxu0 0
      %788 = vmatprep.subr.bf16.mxu0 0
      %789 = vmatpush1.bf16.msra.mxu0 0
      %790 = vmatprep.subr.bf16.mxu0 0
      %791 = vmatpush1.bf16.msra.mxu0 0
      %792 = vmatprep.subr.bf16.mxu0 0
      %793 = vmatpush1.bf16.msra.mxu0 0
      %794 = vmatprep.subr.bf16.mxu0 0
      %795 = vmatpush1.bf16.msra.mxu0 0
      %796 = vmatprep.subr.bf16.mxu0 0
      %797 = vmatpush1.bf16.msra.mxu0 0
      %798 = vmatprep.subr.bf16.mxu0 0
      %799 = vmatpush1.bf16.msra.mxu0 0
      %800 = vmatprep.subr.bf16.mxu0 0
      %801 = vmatpush1.bf16.msra.mxu0 0
      %802 = vmatprep.subr.bf16.mxu0 0
      %803 = vmatpush1.bf16.msra.mxu0 0
      %804 = vmatprep.subr.bf16.mxu0 0
      %805 = vmatpush1.bf16.msra.mxu0 0
      %806 = vmatprep.subr.bf16.mxu0 0
      %807 = vmatpush1.bf16.msra.mxu0 0
      %808 = vmatprep.subr.bf16.mxu0 0
      %809 = vmatpush1.bf16.msra.mxu0 0
      %810 = vmatprep.mubr.bf16.mxu0 0
      %811 = vmatmul.mubr.bf16.gmra.mrb[0].mxu0 %v639
      %v812 = vpop.f32.mrb[0].mxu0
      %v813 = vadd.f32 %v749, %v812
      %v814 = vpop.f32.mrb[0].mxu0
      %v815 = vpop.f32.mrb[0].mxu0
      %v816 = vadd.f32 %v752, %v815
      %v817 = vpop.f32.mrb[0].mxu0
      %818 = vmatprep.mubr.bf16.mxu0 0
      %819 = vmatmul.mubr.bf16.gmra.mrb[0].mxu0 %v642
      %v820 = vpop.f32.mrb[0].mxu0
      %v821 = vadd.f32 %v757, %v820
      %v822 = vpop.f32.mrb[0].mxu0
      %v823 = vpop.f32.mrb[0].mxu0
      %v824 = vadd.f32 %v760, %v823
      %v825 = vpop.f32.mrb[0].mxu0
      %826 = vmatprep.mubr.bf16.mxu0 0
      %827 = vmatmul.mubr.bf16.gmra.mrb[0].mxu0 %v645
      %v828 = vpop.f32.mrb[0].mxu0
      %v829 = vadd.f32 %v765, %v828
      %v830 = vpop.f32.mrb[0].mxu0
      %v831 = vpop.f32.mrb[0].mxu0
      %v832 = vadd.f32 %v768, %v831
      %v833 = vpop.f32.mrb[0].mxu0
      %834 = vmatprep.mubr.bf16.mxu0 0
      %835 = vmatmul.mubr.bf16.gmra.mrb[0].mxu0 %v648
      %v836 = vpop.f32.mrb[0].mxu0
      %v837 = vadd.f32 %v773, %v836
      %v838 = vpop.f32.mrb[0].mxu0
      %v839 = vpop.f32.mrb[0].mxu0
      %v840 = vpop.f32.mrb[0].mxu0
      %841 = vdwg.mxu0
      %v842 = vmax.f32 %v813, 0.0
      %v843 = vmax.f32 %v816, 0.0
      %v844 = vmax.f32 %v821, 0.0
      %v845 = vmax.f32 %v824, 0.0
      %v846 = vmax.f32 %v829, 0.0
      %v847 = vmax.f32 %v832, 0.0
      %v848 = vmax.f32 %v837, 0.0
      %v849 = vpack.c.bf16 %v843, %v842
      %v850 = vpack.c.bf16 %v845, %v844
      %v851 = vpack.c.bf16 %v847, %v846
      %v852 = vpack.c.bf16 %v848, %v848
      %v857 = vunpack.c.l.b16 %v849
      %v858 = vunpack.c.h.b16 %v849
      %v859 = vunpack.c.l.b16 %v850
      %v860 = vunpack.c.h.b16 %v850
      %v861 = vunpack.c.l.b16 %v851
      %v862 = vunpack.c.h.b16 %v851
      %v863 = vunpack.c.l.b16 %v852
      %v864 = vpack.c.b16 %v857, %v857
      %v865 = vpack.c.b16 %v858, %v858
      %v866 = vpack.c.b16 %v859, %v859
      %v867 = vpack.c.b16 %v860, %v860
      %v868 = vpack.c.b16 %v861, %v861
      %v869 = vpack.c.b16 %v862, %v862
      %v870 = vpack.c.b16 %v863, %v863
      %878 = vst [vmem:[%s226] sm:$0xf] %v864
      %879 = vst [vmem:[%s226 + $0x4] sm:$0xf] %v865
      %880 = vst [vmem:[%s226 + $0x8] sm:$0xf] %v866
      %881 = vst [vmem:[%s226 + $0xc] sm:$0xf] %v867
      %882 = vst [vmem:[%s226 + $0x10] sm:$0xf] %v868
      %883 = vst [vmem:[%s226 + $0x14] sm:$0xf] %v869
      %884 = vst [vmem:[%s226 + $0x18] sm:$0xf] %v870
      %s885 = smul.u32 7, %s18
      %p886 = scmp.lt.s32.totalorder %s885, 13
      %s887 = scalar_select %p886, %s885, 13
      %p888 = scmp.lt.s32.totalorder %s19, 0
      %s889 = scalar_select %p888, %s19, 0
      %s890 = sadd.s32 %s889, %s887
      %s891 = smul.addr %s890, 4
      %s892 = scalar_lea.vmem %s3, %s891
      // Predicated region
      $region33: #{dueling_dqn_forward.7} parent=31 // pred_check
        %p893 = pneg %p124
      $region34: #{dueling_dqn_forward.7} parent=31 // pred_check_branch
        %895 = sbr.rel (%p893) target = $region36
      $region35: #{dueling_dqn_forward.7} parent=31 // pred_region
        %s896 = smul.u32 7, %s18
      $region36: #{dueling_dqn_forward.7} parent=31 // pred_fallthru
        _
    $region32: #{dueling_dqn_forward.7} parent=5 // pred_fallthru
      _
    %p897 = scmp.le.s32.totalorder 2, %s9
    // Predicated region
    $region37: #{dueling_dqn_forward.7} parent=5 // pred_check
      %p898 = pneg %p897
    $region38: #{dueling_dqn_forward.7} parent=5 // pred_check_branch
      %900 = sbr.rel (%p898) target = $region40
    $region39: #{dueling_dqn_forward.7} parent=5 // pred_region
      %s901 = ssub.s32 %s9, 2
      // Predicated region
      $region41: #{dueling_dqn_forward.7} parent=39 // pred_check
        %p902 = pneg %p130
      $region42: #{dueling_dqn_forward.7} parent=39 // pred_check_branch
        %904 = sbr.rel (%p902) target = $region44
      $region43: #{dueling_dqn_forward.7} parent=39 // pred_region
        %s905 = smul.u32 7, %s20
        %p906 = scmp.lt.s32.totalorder %s905, 13
        %s907 = scalar_select %p906, %s905, 13
        %p908 = scmp.lt.s32.totalorder %s21, 0
        %s909 = scalar_select %p908, %s21, 0
        %s910 = sadd.s32 %s909, %s907
        %s911 = smul.addr %s910, 4
        %s912 = scalar_lea.vmem %s3, %s911
      $region44: #{dueling_dqn_forward.7} parent=39 // pred_fallthru
        _
    $region40: #{dueling_dqn_forward.7} parent=5 // pred_fallthru
      _
  $region6: #{dueling_dqn_forward.7} parent=0 // loop_footer
    %s13 = sadd.s32 1, %s9
  $region7: #{dueling_dqn_forward.7} parent=0 // loop_footer_branch
    %8 = sbr.rel target = $region3
  $region8: #{dueling_dqn_forward.7} parent=0 // loop_exit
    _

// kernel: dueling_dqn_forward.9
$region0: #{dueling_dqn_forward.9}
  #allocation0 [shape = 'u32[]', space=smem, size = 0x4, offset = 0x4, fixed_abs, tag = 'smem constant byte address 0x4 - core index']
  #allocation1 [shape = 'u32[144,128]{1,0:T(1,128)}', space=vmem, size = 0x12000, scoped, tag = 'internal scratch']
  %s0 = inlined_call_operand.vmem [shape: bf16[8,1024], index: 0, kind: input, shape index: {}]
  %s1 = inlined_call_operand.vmem [shape: bf16[1024,128], index: 1, kind: input, shape index: {}]
  %s2 = inlined_call_operand.vmem [shape: f32[1,128], index: 2, kind: input, shape index: {}]
  %s3 = inlined_call_operand.vmem [shape: f32[8,128], index: 3, kind: output, shape index: {}]
  %s4 = sld [smem:[#allocation0]]
  $region22: #{dueling_dqn_forward.9} parent=0
    _
  %s6 = ssub.s32 1, %s4
  %s7 = scalar_select 0, %s6, %s4
  // Predicated region
  $region2: #{dueling_dqn_forward.9} parent=0 // pred_check
    _
  $region3: #{dueling_dqn_forward.9} parent=0 // pred_check_branch
    %9 = sbr.rel (0) target = $region5
  $region4: #{dueling_dqn_forward.9} parent=0 // pred_region
    _
  $region5: #{dueling_dqn_forward.9} parent=0 // pred_fallthru
    _
  // Predicated region
  $region6: #{dueling_dqn_forward.9} parent=0 // pred_check
    _
  $region7: #{dueling_dqn_forward.9} parent=0 // pred_check_branch
    %11 = sbr.rel (0) target = $region9
  $region8: #{dueling_dqn_forward.9} parent=0 // pred_region
    _
  $region9: #{dueling_dqn_forward.9} parent=0 // pred_fallthru
    _
  // Predicated region
  $region10: #{dueling_dqn_forward.9} parent=0 // pred_check
    _
  $region11: #{dueling_dqn_forward.9} parent=0 // pred_check_branch
    %13 = sbr.rel (0) target = $region13
  $region12: #{dueling_dqn_forward.9} parent=0 // pred_region
    _
  $region13: #{dueling_dqn_forward.9} parent=0 // pred_fallthru
    _
  %v15 = vld [vmem:[%s0] sm:$0xff]
  %v16 = vld [vmem:[%s0 + $0x8] sm:$0xff]
  %v17 = vld [vmem:[%s0 + $0x10] sm:$0xff]
  %v18 = vld [vmem:[%s0 + $0x18] sm:$0xff]
  %v19 = vld [vmem:[%s1] sm:$0xf]
  %v20 = vld [vmem:[%s1 + $0x4] sm:$0xf]
  %v21 = vld [vmem:[%s1 + $0x8] sm:$0xf]
  %v22 = vld [vmem:[%s1 + $0xc] sm:$0xf]
  %v23 = vld [vmem:[%s1 + $0x10] sm:$0xf]
  %v24 = vld [vmem:[%s1 + $0x14] sm:$0xf]
  %v25 = vld [vmem:[%s1 + $0x18] sm:$0xf]
  %v26 = vld [vmem:[%s1 + $0x1c] sm:$0xf]
  %v27 = vld [vmem:[%s1 + $0x20] sm:$0xf]
  %v28 = vld [vmem:[%s1 + $0x24] sm:$0xf]
  %v29 = vld [vmem:[%s1 + $0x28] sm:$0xf]
  %v30 = vld [vmem:[%s1 + $0x2c] sm:$0xf]
  %v31 = vld [vmem:[%s1 + $0x30] sm:$0xf]
  %v32 = vld [vmem:[%s1 + $0x34] sm:$0xf]
  %v33 = vld [vmem:[%s1 + $0x38] sm:$0xf]
  %v34 = vld [vmem:[%s1 + $0x3c] sm:$0xf]
  %v35 = vld [vmem:[%s1 + $0x40] sm:$0xf]
  %v36 = vld [vmem:[%s1 + $0x44] sm:$0xf]
  %v37 = vld [vmem:[%s1 + $0x48] sm:$0xf]
  %v38 = vld [vmem:[%s1 + $0x4c] sm:$0xf]
  %v39 = vld [vmem:[%s1 + $0x50] sm:$0xf]
  %v40 = vld [vmem:[%s1 + $0x54] sm:$0xf]
  %v41 = vld [vmem:[%s1 + $0x58] sm:$0xf]
  %v42 = vld [vmem:[%s1 + $0x5c] sm:$0xf]
  %v43 = vld [vmem:[%s1 + $0x60] sm:$0xf]
  %v44 = vld [vmem:[%s1 + $0x64] sm:$0xf]
  %v45 = vld [vmem:[%s1 + $0x68] sm:$0xf]
  %v46 = vld [vmem:[%s1 + $0x6c] sm:$0xf]
  %v47 = vld [vmem:[%s1 + $0x70] sm:$0xf]
  %v48 = vld [vmem:[%s1 + $0x74] sm:$0xf]
  %v49 = vld [vmem:[%s1 + $0x78] sm:$0xf]
  %v50 = vld [vmem:[%s1 + $0x7c] sm:$0xf]
  %v51 = vld [vmem:[%s1 + $0x80] sm:$0xf]
  %v52 = vld [vmem:[%s1 + $0x84] sm:$0xf]
  %v53 = vld [vmem:[%s1 + $0x88] sm:$0xf]
  %v54 = vld [vmem:[%s1 + $0x8c] sm:$0xf]
  %v55 = vld [vmem:[%s1 + $0x90] sm:$0xf]
  %v56 = vld [vmem:[%s1 + $0x94] sm:$0xf]
  %v57 = vld [vmem:[%s1 + $0x98] sm:$0xf]
  %v58 = vld [vmem:[%s1 + $0x9c] sm:$0xf]
  %v59 = vld [vmem:[%s1 + $0xa0] sm:$0xf]
  %v60 = vld [vmem:[%s1 + $0xa4] sm:$0xf]
  %v61 = vld [vmem:[%s1 + $0xa8] sm:$0xf]
  %v62 = vld [vmem:[%s1 + $0xac] sm:$0xf]
  %v63 = vld [vmem:[%s1 + $0xb0] sm:$0xf]
  %v64 = vld [vmem:[%s1 + $0xb4] sm:$0xf]
  %v65 = vld [vmem:[%s1 + $0xb8] sm:$0xf]
  %v66 = vld [vmem:[%s1 + $0xbc] sm:$0xf]
  %v67 = vld [vmem:[%s1 + $0xc0] sm:$0xf]
  %v68 = vld [vmem:[%s1 + $0xc4] sm:$0xf]
  %v69 = vld [vmem:[%s1 + $0xc8] sm:$0xf]
  %v70 = vld [vmem:[%s1 + $0xcc] sm:$0xf]
  %v71 = vld [vmem:[%s1 + $0xd0] sm:$0xf]
  %v72 = vld [vmem:[%s1 + $0xd4] sm:$0xf]
  %v73 = vld [vmem:[%s1 + $0xd8] sm:$0xf]
  %v74 = vld [vmem:[%s1 + $0xdc] sm:$0xf]
  %v75 = vld [vmem:[%s1 + $0xe0] sm:$0xf]
  %v76 = vld [vmem:[%s1 + $0xe4] sm:$0xf]
  %v77 = vld [vmem:[%s1 + $0xe8] sm:$0xf]
  %v78 = vld [vmem:[%s1 + $0xec] sm:$0xf]
  %v79 = vld [vmem:[%s1 + $0xf0] sm:$0xf]
  %v80 = vld [vmem:[%s1 + $0xf4] sm:$0xf]
  %v81 = vld [vmem:[%s1 + $0xf8] sm:$0xf]
  %v82 = vld [vmem:[%s1 + $0xfc] sm:$0xf]
  %v83 = vld [vmem:[%s1 + $0x100] sm:$0xf]
  %v84 = vld [vmem:[%s1 + $0x104] sm:$0xf]
  %v85 = vld [vmem:[%s1 + $0x108] sm:$0xf]
  %v86 = vld [vmem:[%s1 + $0x10c] sm:$0xf]
  %v87 = vld [vmem:[%s1 + $0x110] sm:$0xf]
  %v88 = vld [vmem:[%s1 + $0x114] sm:$0xf]
  %v89 = vld [vmem:[%s1 + $0x118] sm:$0xf]
  %v90 = vld [vmem:[%s1 + $0x11c] sm:$0xf]
  %v91 = vld [vmem:[%s1 + $0x120] sm:$0xf]
  %v92 = vld [vmem:[%s1 + $0x124] sm:$0xf]
  %v93 = vld [vmem:[%s1 + $0x128] sm:$0xf]
  %v94 = vld [vmem:[%s1 + $0x12c] sm:$0xf]
  %v95 = vld [vmem:[%s1 + $0x130] sm:$0xf]
  %v96 = vld [vmem:[%s1 + $0x134] sm:$0xf]
  %v97 = vld [vmem:[%s1 + $0x138] sm:$0xf]
  %v98 = vld [vmem:[%s1 + $0x13c] sm:$0xf]
  %v99 = vld [vmem:[%s1 + $0x140] sm:$0xf]
  %v100 = vld [vmem:[%s1 + $0x144] sm:$0xf]
  %v101 = vld [vmem:[%s1 + $0x148] sm:$0xf]
  %v102 = vld [vmem:[%s1 + $0x14c] sm:$0xf]
  %v103 = vld [vmem:[%s1 + $0x150] sm:$0xf]
  %v104 = vld [vmem:[%s1 + $0x154] sm:$0xf]
  %v105 = vld [vmem:[%s1 + $0x158] sm:$0xf]
  %v106 = vld [vmem:[%s1 + $0x15c] sm:$0xf]
  %v107 = vld [vmem:[%s1 + $0x160] sm:$0xf]
  %v108 = vld [vmem:[%s1 + $0x164] sm:$0xf]
  %v109 = vld [vmem:[%s1 + $0x168] sm:$0xf]
  %v110 = vld [vmem:[%s1 + $0x16c] sm:$0xf]
  %v111 = vld [vmem:[%s1 + $0x170] sm:$0xf]
  %v112 = vld [vmem:[%s1 + $0x174] sm:$0xf]
  %v113 = vld [vmem:[%s1 + $0x178] sm:$0xf]
  %v114 = vld [vmem:[%s1 + $0x17c] sm:$0xf]
  %v115 = vld [vmem:[%s1 + $0x180] sm:$0xf]
  %v116 = vld [vmem:[%s1 + $0x184] sm:$0xf]
  %v117 = vld [vmem:[%s1 + $0x188] sm:$0xf]
  %v118 = vld [vmem:[%s1 + $0x18c] sm:$0xf]
  %v119 = vld [vmem:[%s1 + $0x190] sm:$0xf]
  %v120 = vld [vmem:[%s1 + $0x194] sm:$0xf]
  %v121 = vld [vmem:[%s1 + $0x198] sm:$0xf]
  %v122 = vld [vmem:[%s1 + $0x19c] sm:$0xf]
  %v123 = vld [vmem:[%s1 + $0x1a0] sm:$0xf]
  %v124 = vld [vmem:[%s1 + $0x1a4] sm:$0xf]
  %v125 = vld [vmem:[%s1 + $0x1a8] sm:$0xf]
  %v126 = vld [vmem:[%s1 + $0x1ac] sm:$0xf]
  %v127 = vld [vmem:[%s1 + $0x1b0] sm:$0xf]
  %v128 = vld [vmem:[%s1 + $0x1b4] sm:$0xf]
  %v129 = vld [vmem:[%s1 + $0x1b8] sm:$0xf]
  %v130 = vld [vmem:[%s1 + $0x1bc] sm:$0xf]
  %v131 = vld [vmem:[%s1 + $0x1c0] sm:$0xf]
  %v132 = vld [vmem:[%s1 + $0x1c4] sm:$0xf]
  %v133 = vld [vmem:[%s1 + $0x1c8] sm:$0xf]
  %v134 = vld [vmem:[%s1 + $0x1cc] sm:$0xf]
  %v135 = vld [vmem:[%s1 + $0x1d0] sm:$0xf]
  %v136 = vld [vmem:[%s1 + $0x1d4] sm:$0xf]
  %v137 = vld [vmem:[%s1 + $0x1d8] sm:$0xf]
  %v138 = vld [vmem:[%s1 + $0x1dc] sm:$0xf]
  %v139 = vld [vmem:[%s1 + $0x1e0] sm:$0xf]
  %v140 = vld [vmem:[%s1 + $0x1e4] sm:$0xf]
  %v141 = vld [vmem:[%s1 + $0x1e8] sm:$0xf]
  %v142 = vld [vmem:[%s1 + $0x1ec] sm:$0xf]
  %v143 = vld [vmem:[%s1 + $0x1f0] sm:$0xf]
  %v144 = vld [vmem:[%s1 + $0x1f4] sm:$0xf]
  %v145 = vld [vmem:[%s1 + $0x1f8] sm:$0xf]
  %v146 = vld [vmem:[%s1 + $0x1fc] sm:$0xf]
  %v147 = vld [vmem:[%s2] sm:$0x1]
  %v149 = vlaneseq
  %v150 = vshrl.u32 %v149, 7
  %v151 = vsub.s32 0, %v150
  %v152 = vrot.slane %v147, %v151
  %v158 = vunpack.c.l.b16 %v15
  %v159 = vunpack.c.h.b16 %v15
  %v160 = vunpack.c.l.b16 %v16
  %v161 = vunpack.c.h.b16 %v16
  %v162 = vunpack.c.l.b16 %v17
  %v163 = vunpack.c.h.b16 %v17
  %v164 = vunpack.c.l.b16 %v18
  %v165 = vunpack.c.h.b16 %v18
  %v166 = vpack.c.b16 %v158, %v158
  %v167 = vpack.c.b16 %v159, %v159
  %v168 = vpack.c.b16 %v160, %v160
  %v169 = vpack.c.b16 %v161, %v161
  %v170 = vpack.c.b16 %v162, %v162
  %v171 = vpack.c.b16 %v163, %v163
  %v172 = vpack.c.b16 %v164, %v164
  %v173 = vpack.c.b16 %v165, %v165
  %v310 = vunpack.c.l.b16 %v19
  %v311 = vunpack.c.l.b16 %v20
  %v312 = vunpack.c.l.b16 %v21
  %v313 = vunpack.c.l.b16 %v22
  %v314 = vunpack.c.l.b16 %v23
  %v315 = vunpack.c.l.b16 %v24
  %v316 = vunpack.c.l.b16 %v25
  %v317 = vunpack.c.l.b16 %v26
  %v318 = vunpack.c.l.b16 %v27
  %v319 = vunpack.c.l.b16 %v28
  %v320 = vunpack.c.l.b16 %v29
  %v321 = vunpack.c.l.b16 %v30
  %v322 = vunpack.c.l.b16 %v31
  %v323 = vunpack.c.l.b16 %v32
  %v324 = vunpack.c.l.b16 %v33
  %v325 = vunpack.c.l.b16 %v34
  %v326 = vunpack.c.l.b16 %v35
  %v327 = vunpack.c.l.b16 %v36
  %v328 = vunpack.c.l.b16 %v37
  %v329 = vunpack.c.l.b16 %v38
  %v330 = vunpack.c.l.b16 %v39
  %v331 = vunpack.c.l.b16 %v40
  %v332 = vunpack.c.l.b16 %v41
  %v333 = vunpack.c.l.b16 %v42
  %v334 = vunpack.c.l.b16 %v43
  %v335 = vunpack.c.l.b16 %v44
  %v336 = vunpack.c.l.b16 %v45
  %v337 = vunpack.c.l.b16 %v46
  %v338 = vunpack.c.l.b16 %v47
  %v339 = vunpack.c.l.b16 %v48
  %v340 = vunpack.c.l.b16 %v49
  %v341 = vunpack.c.l.b16 %v50
  %v342 = vunpack.c.l.b16 %v51
  %v343 = vunpack.c.l.b16 %v52
  %v344 = vunpack.c.l.b16 %v53
  %v345 = vunpack.c.l.b16 %v54
  %v346 = vunpack.c.l.b16 %v55
  %v347 = vunpack.c.l.b16 %v56
  %v348 = vunpack.c.l.b16 %v57
  %v349 = vunpack.c.l.b16 %v58
  %v350 = vunpack.c.l.b16 %v59
  %v351 = vunpack.c.l.b16 %v60
  %v352 = vunpack.c.l.b16 %v61
  %v353 = vunpack.c.l.b16 %v62
  %v354 = vunpack.c.l.b16 %v63
  %v355 = vunpack.c.l.b16 %v64
  %v356 = vunpack.c.l.b16 %v65
  %v357 = vunpack.c.l.b16 %v66
  %v358 = vunpack.c.l.b16 %v67
  %v359 = vunpack.c.l.b16 %v68
  %v360 = vunpack.c.l.b16 %v69
  %v361 = vunpack.c.l.b16 %v70
  %v362 = vunpack.c.l.b16 %v71
  %v363 = vunpack.c.l.b16 %v72
  %v364 = vunpack.c.l.b16 %v73
  %v365 = vunpack.c.l.b16 %v74
  %v366 = vunpack.c.l.b16 %v75
  %v367 = vunpack.c.l.b16 %v76
  %v368 = vunpack.c.l.b16 %v77
  %v369 = vunpack.c.l.b16 %v78
  %v370 = vunpack.c.l.b16 %v79
  %v371 = vunpack.c.l.b16 %v80
  %v372 = vunpack.c.l.b16 %v81
  %v373 = vunpack.c.l.b16 %v82
  %v374 = vunpack.c.l.b16 %v83
  %v375 = vunpack.c.l.b16 %v84
  %v376 = vunpack.c.l.b16 %v85
  %v377 = vunpack.c.l.b16 %v86
  %v378 = vunpack.c.l.b16 %v87
  %v379 = vunpack.c.l.b16 %v88
  %v380 = vunpack.c.l.b16 %v89
  %v381 = vunpack.c.l.b16 %v90
  %v382 = vunpack.c.l.b16 %v91
  %v383 = vunpack.c.l.b16 %v92
  %v384 = vunpack.c.l.b16 %v93
  %v385 = vunpack.c.l.b16 %v94
  %v386 = vunpack.c.l.b16 %v95
  %v387 = vunpack.c.l.b16 %v96
  %v388 = vunpack.c.l.b16 %v97
  %v389 = vunpack.c.l.b16 %v98
  %v390 = vunpack.c.l.b16 %v99
  %v391 = vunpack.c.l.b16 %v100
  %v392 = vunpack.c.l.b16 %v101
  %v393 = vunpack.c.l.b16 %v102
  %v394 = vunpack.c.l.b16 %v103
  %v395 = vunpack.c.l.b16 %v104
  %v396 = vunpack.c.l.b16 %v105
  %v397 = vunpack.c.l.b16 %v106
  %v398 = vunpack.c.l.b16 %v107
  %v399 = vunpack.c.l.b16 %v108
  %v400 = vunpack.c.l.b16 %v109
  %v401 = vunpack.c.l.b16 %v110
  %v402 = vunpack.c.l.b16 %v111
  %v403 = vunpack.c.l.b16 %v112
  %v404 = vunpack.c.l.b16 %v113
  %v405 = vunpack.c.l.b16 %v114
  %v406 = vunpack.c.l.b16 %v115
  %v407 = vunpack.c.l.b16 %v116
  %v408 = vunpack.c.l.b16 %v117
  %v409 = vunpack.c.l.b16 %v118
  %v410 = vunpack.c.l.b16 %v119
  %v411 = vunpack.c.l.b16 %v120
  %v412 = vunpack.c.l.b16 %v121
  %v413 = vunpack.c.l.b16 %v122
  %v414 = vunpack.c.l.b16 %v123
  %v415 = vunpack.c.l.b16 %v124
  %v416 = vunpack.c.l.b16 %v125
  %v417 = vunpack.c.l.b16 %v126
  %v418 = vunpack.c.l.b16 %v127
  %v419 = vunpack.c.l.b16 %v128
  %v420 = vunpack.c.l.b16 %v129
  %v421 = vunpack.c.l.b16 %v130
  %v422 = vunpack.c.l.b16 %v131
  %v423 = vunpack.c.l.b16 %v132
  %v424 = vunpack.c.l.b16 %v133
  %v425 = vunpack.c.l.b16 %v134
  %v426 = vunpack.c.l.b16 %v135
  %v427 = vunpack.c.l.b16 %v136
  %v428 = vunpack.c.l.b16 %v137
  %v429 = vunpack.c.l.b16 %v138
  %v430 = vunpack.c.l.b16 %v139
  %v431 = vunpack.c.l.b16 %v140
  %v432 = vunpack.c.l.b16 %v141
  %v433 = vunpack.c.l.b16 %v142
  %v434 = vunpack.c.l.b16 %v143
  %v435 = vunpack.c.l.b16 %v144
  %v436 = vunpack.c.l.b16 %v145
  %v437 = vunpack.c.l.b16 %v146
  %v438 = vpack.c.b16 %v311, %v310
  %v439 = vpack.c.b16 %v313, %v312
  %v440 = vpack.c.b16 %v315, %v314
  %v441 = vpack.c.b16 %v317, %v316
  %v442 = vpack.c.b16 %v319, %v318
  %v443 = vpack.c.b16 %v321, %v320
  %v444 = vpack.c.b16 %v323, %v322
  %v445 = vpack.c.b16 %v325, %v324
  %v446 = vpack.c.b16 %v327, %v326
  %v447 = vpack.c.b16 %v329, %v328
  %v448 = vpack.c.b16 %v331, %v330
  %v449 = vpack.c.b16 %v333, %v332
  %v450 = vpack.c.b16 %v335, %v334
  %v451 = vpack.c.b16 %v337, %v336
  %v452 = vpack.c.b16 %v339, %v338
  %v453 = vpack.c.b16 %v341, %v340
  %v454 = vpack.c.b16 %v343, %v342
  %v455 = vpack.c.b16 %v345, %v344
  %v456 = vpack.c.b16 %v347, %v346
  %v457 = vpack.c.b16 %v349, %v348
  %v458 = vpack.c.b16 %v351, %v350
  %v459 = vpack.c.b16 %v353, %v352
  %v460 = vpack.c.b16 %v355, %v354
  %v461 = vpack.c.b16 %v357, %v356
  %v462 = vpack.c.b16 %v359, %v358
  %v463 = vpack.c.b16 %v361, %v360
  %v464 = vpack.c.b16 %v363, %v362
  %v465 = vpack.c.b16 %v365, %v364
  %v466 = vpack.c.b16 %v367, %v366
  %v467 = vpack.c.b16 %v369, %v368
  %v468 = vpack.c.b16 %v371, %v370
  %v469 = vpack.c.b16 %v373, %v372
  %v470 = vpack.c.b16 %v375, %v374
  %v471 = vpack.c.b16 %v377, %v376
  %v472 = vpack.c.b16 %v379, %v378
  %v473 = vpack.c.b16 %v381, %v380
  %v474 = vpack.c.b16 %v383, %v382
  %v475 = vpack.c.b16 %v385, %v384
  %v476 = vpack.c.b16 %v387, %v386
  %v477 = vpack.c.b16 %v389, %v388
  %v478 = vpack.c.b16 %v391, %v390
  %v479 = vpack.c.b16 %v393, %v392
  %v480 = vpack.c.b16 %v395, %v394
  %v481 = vpack.c.b16 %v397, %v396
  %v482 = vpack.c.b16 %v399, %v398
  %v483 = vpack.c.b16 %v401, %v400
  %v484 = vpack.c.b16 %v403, %v402
  %v485 = vpack.c.b16 %v405, %v404
  %v486 = vpack.c.b16 %v407, %v406
  %v487 = vpack.c.b16 %v409, %v408
  %v488 = vpack.c.b16 %v411, %v410
  %v489 = vpack.c.b16 %v413, %v412
  %v490 = vpack.c.b16 %v415, %v414
  %v491 = vpack.c.b16 %v417, %v416
  %v492 = vpack.c.b16 %v419, %v418
  %v493 = vpack.c.b16 %v421, %v420
  %v494 = vpack.c.b16 %v423, %v422
  %v495 = vpack.c.b16 %v425, %v424
  %v496 = vpack.c.b16 %v427, %v426
  %v497 = vpack.c.b16 %v429, %v428
  %v498 = vpack.c.b16 %v431, %v430
  %v499 = vpack.c.b16 %v433, %v432
  %v500 = vpack.c.b16 %v435, %v434
  %v501 = vpack.c.b16 %v437, %v436
  %566 = vmatprep.subr.bf16.mxu0 0
  %567 = vmatpush1.bf16.msra.mxu0 %v438
  %568 = vmatprep.subr.bf16.mxu0 0
  %569 = vmatpush1.bf16.msra.mxu0 %v439
  %570 = vmatprep.subr.bf16.mxu0 0
  %571 = vmatpush1.bf16.msra.mxu0 %v440
  %572 = vmatprep.subr.bf16.mxu0 0
  %573 = vmatpush1.bf16.msra.mxu0 %v441
  %574 = vmatprep.subr.bf16.mxu0 0
  %575 = vmatpush1.bf16.msra.mxu0 %v442
  %576 = vmatprep.subr.bf16.mxu0 0
  %577 = vmatpush1.bf16.msra.mxu0 %v443
  %578 = vmatprep.subr.bf16.mxu0 0
  %579 = vmatpush1.bf16.msra.mxu0 %v444
  %580 = vmatprep.subr.bf16.mxu0 0
  %581 = vmatpush1.bf16.msra.mxu0 %v445
  %582 = vmatprep.subr.bf16.mxu0 0
  %583 = vmatpush1.bf16.msra.mxu0 %v446
  %584 = vmatprep.subr.bf16.mxu0 0
  %585 = vmatpush1.bf16.msra.mxu0 %v447
  %586 = vmatprep.subr.bf16.mxu0 0
  %587 = vmatpush1.bf16.msra.mxu0 %v448
  %588 = vmatprep.subr.bf16.mxu0 0
  %589 = vmatpush1.bf16.msra.mxu0 %v449
  %590 = vmatprep.subr.bf16.mxu0 0
  %591 = vmatpush1.bf16.msra.mxu0 %v450
  %592 = vmatprep.subr.bf16.mxu0 0
  %593 = vmatpush1.bf16.msra.mxu0 %v451
  %594 = vmatprep.subr.bf16.mxu0 0
  %595 = vmatpush1.bf16.msra.mxu0 %v452
  %596 = vmatprep.subr.bf16.mxu0 0
  %597 = vmatpush1.bf16.msra.mxu0 %v453
  %598 = vmatprep.mubr.bf16.mxu0 %v167
  %599 = vmatmul.mubr.bf16.gmra.mrb[0].mxu0 %v166
  %v600 = vpop.f32.mrb[0].mxu0
  %v601 = vadd.f32 %v152, %v600
  %v602 = vpop.f32.mrb[0].mxu0
  %v603 = vpop.f32.mrb[0].mxu0
  %v604 = vpop.f32.mrb[0].mxu0
  %605 = vdwg.mxu0
  %606 = vmatprep.subr.bf16.mxu0 0
  %607 = vmatpush1.bf16.msra.mxu0 %v454
  %608 = vmatprep.subr.bf16.mxu0 0
  %609 = vmatpush1.bf16.msra.mxu0 %v455
  %610 = vmatprep.subr.bf16.mxu0 0
  %611 = vmatpush1.bf16.msra.mxu0 %v456
  %612 = vmatprep.subr.bf16.mxu0 0
  %613 = vmatpush1.bf16.msra.mxu0 %v457
  %614 = vmatprep.subr.bf16.mxu0 0
  %615 = vmatpush1.bf16.msra.mxu0 %v458
  %616 = vmatprep.subr.bf16.mxu0 0
  %617 = vmatpush1.bf16.msra.mxu0 %v459
  %618 = vmatprep.subr.bf16.mxu0 0
  %619 = vmatpush1.bf16.msra.mxu0 %v460
  %620 = vmatprep.subr.bf16.mxu0 0
  %621 = vmatpush1.bf16.msra.mxu0 %v461
  %622 = vmatprep.subr.bf16.mxu0 0
  %623 = vmatpush1.bf16.msra.mxu0 %v462
  %624 = vmatprep.subr.bf16.mxu0 0
  %625 = vmatpush1.bf16.msra.mxu0 %v463
  %626 = vmatprep.subr.bf16.mxu0 0
  %627 = vmatpush1.bf16.msra.mxu0 %v464
  %628 = vmatprep.subr.bf16.mxu0 0
  %629 = vmatpush1.bf16.msra.mxu0 %v465
  %630 = vmatprep.subr.bf16.mxu0 0
  %631 = vmatpush1.bf16.msra.mxu0 %v466
  %632 = vmatprep.subr.bf16.mxu0 0
  %633 = vmatpush1.bf16.msra.mxu0 %v467
  %634 = vmatprep.subr.bf16.mxu0 0
  %635 = vmatpush1.bf16.msra.mxu0 %v468
  %636 = vmatprep.subr.bf16.mxu0 0
  %637 = vmatpush1.bf16.msra.mxu0 %v469
  %638 = vmatprep.mubr.bf16.mxu0 %v169
  %639 = vmatmul.mubr.bf16.gmra.mrb[0].mxu0 %v168
  %v640 = vpop.f32.mrb[0].mxu0
  %v641 = vadd.f32 %v601, %v640
  %v642 = vpop.f32.mrb[0].mxu0
  %v643 = vpop.f32.mrb[0].mxu0
  %v644 = vpop.f32.mrb[0].mxu0
  %645 = vdwg.mxu0
  %646 = vmatprep.subr.bf16.mxu0 0
  %647 = vmatpush1.bf16.msra.mxu0 %v470
  %648 = vmatprep.subr.bf16.mxu0 0
  %649 = vmatpush1.bf16.msra.mxu0 %v471
  %650 = vmatprep.subr.bf16.mxu0 0
  %651 = vmatpush1.bf16.msra.mxu0 %v472
  %652 = vmatprep.subr.bf16.mxu0 0
  %653 = vmatpush1.bf16.msra.mxu0 %v473
  %654 = vmatprep.subr.bf16.mxu0 0
  %655 = vmatpush1.bf16.msra.mxu0 %v474
  %656 = vmatprep.subr.bf16.mxu0 0
  %657 = vmatpush1.bf16.msra.mxu0 %v475
  %658 = vmatprep.subr.bf16.mxu0 0
  %659 = vmatpush1.bf16.msra.mxu0 %v476
  %660 = vmatprep.subr.bf16.mxu0 0
  %661 = vmatpush1.bf16.msra.mxu0 %v477
  %662 = vmatprep.subr.bf16.mxu0 0
  %663 = vmatpush1.bf16.msra.mxu0 %v478
  %664 = vmatprep.subr.bf16.mxu0 0
  %665 = vmatpush1.bf16.msra.mxu0 %v479
  %666 = vmatprep.subr.bf16.mxu0 0
  %667 = vmatpush1.bf16.msra.mxu0 %v480
  %668 = vmatprep.subr.bf16.mxu0 0
  %669 = vmatpush1.bf16.msra.mxu0 %v481
  %670 = vmatprep.subr.bf16.mxu0 0
  %671 = vmatpush1.bf16.msra.mxu0 %v482
  %672 = vmatprep.subr.bf16.mxu0 0
  %673 = vmatpush1.bf16.msra.mxu0 %v483
  %674 = vmatprep.subr.bf16.mxu0 0
  %675 = vmatpush1.bf16.msra.mxu0 %v484
  %676 = vmatprep.subr.bf16.mxu0 0
  %677 = vmatpush1.bf16.msra.mxu0 %v485
  %678 = vmatprep.mubr.bf16.mxu0 %v171
  %679 = vmatmul.mubr.bf16.gmra.mrb[0].mxu0 %v170
  %v680 = vpop.f32.mrb[0].mxu0
  %v681 = vadd.f32 %v641, %v680
  %v682 = vpop.f32.mrb[0].mxu0
  %v683 = vpop.f32.mrb[0].mxu0
  %v684 = vpop.f32.mrb[0].mxu0
  %685 = vdwg.mxu0
  %686 = vmatprep.subr.bf16.mxu0 0
  %687 = vmatpush1.bf16.msra.mxu0 %v486
  %688 = vmatprep.subr.bf16.mxu0 0
  %689 = vmatpush1.bf16.msra.mxu0 %v487
  %690 = vmatprep.subr.bf16.mxu0 0
  %691 = vmatpush1.bf16.msra.mxu0 %v488
  %692 = vmatprep.subr.bf16.mxu0 0
  %693 = vmatpush1.bf16.msra.mxu0 %v489
  %694 = vmatprep.subr.bf16.mxu0 0
  %695 = vmatpush1.bf16.msra.mxu0 %v490
  %696 = vmatprep.subr.bf16.mxu0 0
  %697 = vmatpush1.bf16.msra.mxu0 %v491
  %698 = vmatprep.subr.bf16.mxu0 0
  %699 = vmatpush1.bf16.msra.mxu0 %v492
  %700 = vmatprep.subr.bf16.mxu0 0
  %701 = vmatpush1.bf16.msra.mxu0 %v493
  %702 = vmatprep.subr.bf16.mxu0 0
  %703 = vmatpush1.bf16.msra.mxu0 %v494
  %704 = vmatprep.subr.bf16.mxu0 0
  %705 = vmatpush1.bf16.msra.mxu0 %v495
  %706 = vmatprep.subr.bf16.mxu0 0
  %707 = vmatpush1.bf16.msra.mxu0 %v496
  %708 = vmatprep.subr.bf16.mxu0 0
  %709 = vmatpush1.bf16.msra.mxu0 %v497
  %710 = vmatprep.subr.bf16.mxu0 0
  %711 = vmatpush1.bf16.msra.mxu0 %v498
  %712 = vmatprep.subr.bf16.mxu0 0
  %713 = vmatpush1.bf16.msra.mxu0 %v499
  %714 = vmatprep.subr.bf16.mxu0 0
  %715 = vmatpush1.bf16.msra.mxu0 %v500
  %716 = vmatprep.subr.bf16.mxu0 0
  %717 = vmatpush1.bf16.msra.mxu0 %v501
  %718 = vmatprep.mubr.bf16.mxu0 %v173
  %719 = vmatmul.mubr.bf16.gmra.mrb[0].mxu0 %v172
  %v720 = vpop.f32.mrb[0].mxu0
  %v721 = vadd.f32 %v681, %v720
  %v722 = vpop.f32.mrb[0].mxu0
  %v723 = vpop.f32.mrb[0].mxu0
  %v724 = vpop.f32.mrb[0].mxu0
  %725 = vdwg.mxu0
  %v726 = vmax.f32 %v721, 0.0
  %727 = vst [vmem:[%s3] sm:$0xff] %v726
  // Predicated region
  $region14: #{dueling_dqn_forward.9} parent=0 // pred_check
    _
  $region15: #{dueling_dqn_forward.9} parent=0 // pred_check_branch
    %729 = sbr.rel (0) target = $region17
  $region16: #{dueling_dqn_forward.9} parent=0 // pred_region
    _
  $region17: #{dueling_dqn_forward.9} parent=0 // pred_fallthru
    _
  // Predicated region
  $region18: #{dueling_dqn_forward.9} parent=0 // pred_check
    _
  $region19: #{dueling_dqn_forward.9} parent=0 // pred_check_branch
    %731 = sbr.rel (0) target = $region21
  $region20: #{dueling_dqn_forward.9} parent=0 // pred_region
    _
  $region21: #{dueling_dqn_forward.9} parent=0 // pred_fallthru
    _

// kernel: dueling_dqn_forward.8
$region0: #{dueling_dqn_forward.8}
  #allocation0 [shape = 'u32[]', space=smem, size = 0x4, offset = 0x4, fixed_abs, tag = 'smem constant byte address 0x4 - core index']
  #allocation1 [shape = 'u32[144,128]{1,0:T(1,128)}', space=vmem, size = 0x12000, scoped, tag = 'internal scratch']
  %s0 = inlined_call_operand.vmem [shape: bf16[8,3136], index: 0, kind: input, shape index: {}]
  %s1 = inlined_call_operand.vmem [shape: bf16[3136,1024], index: 1, kind: input, shape index: {}]
  %s2 = inlined_call_operand.vmem [shape: f32[1,1024], index: 2, kind: input, shape index: {}]
  %s3 = inlined_call_operand.vmem [shape: bf16[8,1024], index: 3, kind: output, shape index: {}]
  %s4 = sld [smem:[#allocation0]]
  $region83: #{dueling_dqn_forward.8} parent=0
    _
  %s6 = ssub.s32 1, %s4
  %s7 = scalar_select 0, %s6, %s4
  $region1: #{dueling_dqn_forward.8} parent=0
    #allocation2 [shape = 'u8[3211264]{0}', space=vmem, size = 0x310000, scoped, tag = 'input window, operand 1']
    loop: start=0, step=1, limit=6
    $region2: #{dueling_dqn_forward.8} parent=1 // loop_pre_header
      _
    $region3: #{dueling_dqn_forward.8} parent=1 // loop_header
      %s9 = sphi 0, %s13
      %p10 = scmp.ge.s32.totalorder %s9, 6
      %s16 = sphi 0, %s28
      %s17 = sphi 0, %s24
      %s18 = sphi 0, %s16
      %s19 = sphi 0, %s17
      %s20 = sphi 0, %s18
      %s21 = sphi 0, %s19
      %s31 = sphi 0, %s33
      %s34 = sphi 0, %s31
      %s35 = sphi 0, %s34
      %s51 = sphi 0, %s35
      %s57 = sphi 0, %s59
      %s60 = sphi 0, %s57
      %s61 = sphi 0, %s60
      %s77 = sphi 0, %s61
      %s83 = sphi 0, %s85
      %s86 = sphi 0, %s83
      %s87 = sphi 0, %s86
      %s103 = sphi 0, %s87
      %s111 = sphi 0, %s113
      %s114 = sphi 0, %s111
      %s115 = sphi 0, %s114
      %s131 = sphi 0, %s115
    $region4: #{dueling_dqn_forward.8} parent=1 // loop_header_branch
      %12 = sbr.rel (%p10) target = $region8
    $region5: #{dueling_dqn_forward.8} parent=1 // loop_body
      %s14 = ssub.s32 %s9, 1
      %s15 = ssub.s32 %s9, 2
      %s22 = sadd.s32 1, %s17
      %p23 = scmp.ge.s32.totalorder %s22, 4
      %s24 = scalar_select %p23, 0, %s22
      %s25 = sadd.s32 1, %s16
      %s26 = scalar_select %p23, %s25, %s16
      %p27 = scmp.ge.s32.totalorder %s26, 1
      %s28 = scalar_select %p27, 0, %s26
      %s29 = ssub.s32 %s16, %s28
      %p30 = scmp.eq.s32.totalorder %s29, 0
      %s32 = sadd.s32 %s31, 1
      %s33 = scalar_select %p30, %s31, %s32
      %p36 = pneg %p30
      %p37 = scmp.eq.s32.totalorder %s9, 3
      %p38 = por %p36, %p37
      %p39 = scmp.ne.s32.totalorder %s31, %s34
      %p40 = scmp.eq.s32.totalorder %s9, 0
      %p41 = por %p39, %p40
      %p42 = scmp.ne.s32.totalorder %s31, %s34
      %p43 = scmp.eq.s32.totalorder %s14, 3
      %p44 = por %p42, %p43
      %p45 = scmp.ne.s32.totalorder %s34, %s35
      %p46 = scmp.eq.s32.totalorder %s14, 0
      %p47 = por %p45, %p46
      %p48 = scmp.ne.s32.totalorder %s34, %s35
      %p49 = scmp.eq.s32.totalorder %s15, 3
      %p50 = por %p48, %p49
      %p52 = scmp.ne.s32.totalorder %s35, %s51
      %p53 = scmp.eq.s32.totalorder %s15, 0
      %p54 = por %p52, %p53
      %s55 = ssub.s32 %s17, %s24
      %p56 = scmp.eq.s32.totalorder %s55, 0
      %s58 = sadd.s32 %s57, 1
      %s59 = scalar_select %p56, %s57, %s58
      %p62 = pneg %p56
      %p63 = scmp.eq.s32.totalorder %s9, 3
      %p64 = por %p62, %p63
      %p65 = scmp.ne.s32.totalorder %s57, %s60
      %p66 = scmp.eq.s32.totalorder %s9, 0
      %p67 = por %p65, %p66
      %p68 = scmp.ne.s32.totalorder %s57, %s60
      %p69 = scmp.eq.s32.totalorder %s14, 3
      %p70 = por %p68, %p69
      %p71 = scmp.ne.s32.totalorder %s60, %s61
      %p72 = scmp.eq.s32.totalorder %s14, 0
      %p73 = por %p71, %p72
      %p74 = scmp.ne.s32.totalorder %s60, %s61
      %p75 = scmp.eq.s32.totalorder %s15, 3
      %p76 = por %p74, %p75
      %p78 = scmp.ne.s32.totalorder %s61, %s77
      %p79 = scmp.eq.s32.totalorder %s15, 0
      %p80 = por %p78, %p79
      %s81 = ssub.s32 %s17, %s24
      %p82 = scmp.eq.s32.totalorder %s81, 0
      %s84 = sadd.s32 %s83, 1
      %s85 = scalar_select %p82, %s83, %s84
      %p88 = pneg %p82
      %p89 = scmp.eq.s32.totalorder %s9, 3
      %p90 = por %p88, %p89
      %p91 = scmp.ne.s32.totalorder %s83, %s86
      %p92 = scmp.eq.s32.totalorder %s9, 0
      %p93 = por %p91, %p92
      %p94 = scmp.ne.s32.totalorder %s83, %s86
      %p95 = scmp.eq.s32.totalorder %s14, 3
      %p96 = por %p94, %p95
      %p97 = scmp.ne.s32.totalorder %s86, %s87
      %p98 = scmp.eq.s32.totalorder %s14, 0
      %p99 = por %p97, %p98
      %p100 = scmp.ne.s32.totalorder %s86, %s87
      %p101 = scmp.eq.s32.totalorder %s15, 3
      %p102 = por %p100, %p101
      %p104 = scmp.ne.s32.totalorder %s87, %s103
      %p105 = scmp.eq.s32.totalorder %s15, 0
      %p106 = por %p104, %p105
      %s107 = ssub.s32 %s16, %s28
      %s108 = ssub.s32 %s17, %s24
      %s109 = sor.u32 %s107, %s108
      %p110 = scmp.eq.s32.totalorder %s109, 0
      %s112 = sadd.s32 %s111, 1
      %s113 = scalar_select %p110, %s111, %s112
      %p116 = pneg %p110
      %p117 = scmp.eq.s32.totalorder %s9, 3
      %p118 = por %p116, %p117
      %p119 = scmp.ne.s32.totalorder %s111, %s114
      %p120 = scmp.eq.s32.totalorder %s9, 0
      %p121 = por %p119, %p120
      %p122 = scmp.ne.s32.totalorder %s111, %s114
      %p123 = scmp.eq.s32.totalorder %s14, 3
      %p124 = por %p122, %p123
      %p125 = scmp.ne.s32.totalorder %s114, %s115
      %p126 = scmp.eq.s32.totalorder %s14, 0
      %p127 = por %p125, %p126
      %p128 = scmp.ne.s32.totalorder %s114, %s115
      %p129 = scmp.eq.s32.totalorder %s15, 3
      %p130 = por %p128, %p129
      %p132 = scmp.ne.s32.totalorder %s115, %s131
      %p133 = scmp.eq.s32.totalorder %s15, 0
      %p134 = por %p132, %p133
      %p135 = scmp.le.s32.totalorder 1, %s9
      %p136 = scmp.lt.s32.totalorder %s9, 5
      %p137 = pnand %p135, %p136
      %p138 = pneg %p137
      // Predicated region
      $region9: #{dueling_dqn_forward.8} parent=5 // pred_check
        _
      $region10: #{dueling_dqn_forward.8} parent=5 // pred_check_branch
        %140 = sbr.rel (%p137) target = $region12
      $region11: #{dueling_dqn_forward.8} parent=5 // pred_region
        %s141 = ssub.s32 %s9, 1
        // Predicated region
        $region13: #{dueling_dqn_forward.8} parent=11 // pred_check
          %p142 = pneg %p47
        $region14: #{dueling_dqn_forward.8} parent=11 // pred_check_branch
          %144 = sbr.rel (%p142) target = $region16
        $region15: #{dueling_dqn_forward.8} parent=11 // pred_region
          %p145 = scmp.lt.s32.totalorder %s18, 0
          %s146 = scalar_select %p145, %s18, 0
          %s147 = smul.addr %s146, 25
          %s148 = smul.addr %s147, 4
          %s149 = scalar_lea.vmem %s0, %s148
        $region16: #{dueling_dqn_forward.8} parent=11 // pred_fallthru
          _
      $region12: #{dueling_dqn_forward.8} parent=5 // pred_fallthru
        _
      %p150 = scmp.lt.s32.totalorder %s9, 4
      // Predicated region
      $region17: #{dueling_dqn_forward.8} parent=5 // pred_check
        %p151 = pneg %p150
      $region18: #{dueling_dqn_forward.8} parent=5 // pred_check_branch
        %153 = sbr.rel (%p151) target = $region20
      $region19: #{dueling_dqn_forward.8} parent=5 // pred_region
        // Predicated region
        $region21: #{dueling_dqn_forward.8} parent=19 // pred_check
          %p154 = pneg %p67
        $region22: #{dueling_dqn_forward.8} parent=19 // pred_check_branch
          %156 = sbr.rel (%p154) target = $region24
        $region23: #{dueling_dqn_forward.8} parent=19 // pred_region
          %s157 = sand.u32 %s57, 1
          %s158 = sand.u32 %s57, 1
          %s159 = smul.addr %s158, 3136
          %s160 = scalar_lea.vmem [#allocation2], %s159
          %s161 = smul.u32 2, %s17
          %s162 = smul.addr %s161, 4
          %s163 = scalar_lea.vmem %s1, %s162
          // Predicated region
          $region25: #{dueling_dqn_forward.8} parent=23 // pred_check
            _
          $region26: #{dueling_dqn_forward.8} parent=23 // pred_check_branch
            %165 = sbr.rel (0) target = $region28
          $region27: #{dueling_dqn_forward.8} parent=23 // pred_region
            // Predicated region
            $region29: #{dueling_dqn_forward.8} parent=27 // pred_check
              _
            $region30: #{dueling_dqn_forward.8} parent=27 // pred_check_branch
              %167 = sbr.rel (0) target = $region32
            $region31: #{dueling_dqn_forward.8} parent=27 // pred_region
              // Predicated region
              $region44: #{dueling_dqn_forward.8} parent=31 // pred_check
                _
              $region45: #{dueling_dqn_forward.8} parent=31 // pred_check_branch
                %964 = sbr.rel (0) target = $region47
              $region46: #{dueling_dqn_forward.8} parent=31 // pred_region
                loop: start=0, step=1, limit=1
                $region48: #{dueling_dqn_forward.8} parent=46 // loop_pre_header
                  _
                $region49: #{dueling_dqn_forward.8} parent=46 // loop_header
                  %s966 = sphi 0, %s970
                  %p967 = scmp.ge.s32.totalorder %s966, 1
                  %s971 = sphi %s163, %s163
                  %s972 = sphi %s160, %s160
                $region50: #{dueling_dqn_forward.8} parent=46 // loop_header_branch
                  %969 = sbr.rel (%p967) target = $region54
                $region51: #{dueling_dqn_forward.8} parent=46 // loop_body
                  %v973 = vld [vmem:[%s971] sm:$0xff]
                  %974 = vst [vmem:[%s972] sm:$0xff] %v973
                  %v975 = vld [vmem:[%s971 + $0x20] sm:$0xff]
                  %976 = vst [vmem:[%s972 + $0x8] sm:$0xff] %v975
                  %v977 = vld [vmem:[%s971 + $0x40] sm:$0xff]
                  %978 = vst [vmem:[%s972 + $0x10] sm:$0xff] %v977
                  %v979 = vld [vmem:[%s971 + $0x60] sm:$0xff]
                  %980 = vst [vmem:[%s972 + $0x18] sm:$0xff] %v979
                  %v981 = vld [vmem:[%s971 + $0x80] sm:$0xff]
                  %982 = vst [vmem:[%s972 + $0x20] sm:$0xff] %v981
                  %v983 = vld [vmem:[%s971 + $0xa0] sm:$0xff]
                  %984 = vst [vmem:[%s972 + $0x28] sm:$0xff] %v983
                  %v985 = vld [vmem:[%s971 + $0xc0] sm:$0xff]
                  %986 = vst [vmem:[%s972 + $0x30] sm:$0xff] %v985
                  %v987 = vld [vmem:[%s971 + $0xe0] sm:$0xff]
                  %988 = vst [vmem:[%s972 + $0x38] sm:$0xff] %v987
                  %v989 = vld [vmem:[%s971 + $0x100] sm:$0xff]
                  %990 = vst [vmem:[%s972 + $0x40] sm:$0xff] %v989
                  %v991 = vld [vmem:[%s971 + $0x120] sm:$0xff]
                  %992 = vst [vmem:[%s972 + $0x48] sm:$0xff] %v991
                  %v993 = vld [vmem:[%s971 + $0x140] sm:$0xff]
                  %994 = vst [vmem:[%s972 + $0x50] sm:$0xff] %v993
                  %v995 = vld [vmem:[%s971 + $0x160] sm:$0xff]
                  %996 = vst [vmem:[%s972 + $0x58] sm:$0xff] %v995
                  %v997 = vld [vmem:[%s971 + $0x180] sm:$0xff]
                  %998 = vst [vmem:[%s972 + $0x60] sm:$0xff] %v997
                  %v999 = vld [vmem:[%s971 + $0x1a0] sm:$0xff]
                  %1000 = vst [vmem:[%s972 + $0x68] sm:$0xff] %v999
                  %v1001 = vld [vmem:[%s971 + $0x1c0] sm:$0xff]
                  %1002 = vst [vmem:[%s972 + $0x70] sm:$0xff] %v1001
                  %v1003 = vld [vmem:[%s971 + $0x1e0] sm:$0xff]
                  %1004 = vst [vmem:[%s972 + $0x78] sm:$0xff] %v1003
                  %v1005 = vld [vmem:[%s971 + $0x200] sm:$0xff]
                  %1006 = vst [vmem:[%s972 + $0x80] sm:$0xff] %v1005
                  %v1007 = vld [vmem:[%s971 + $0x220] sm:$0xff]
                  %1008 = vst [vmem:[%s972 + $0x88] sm:$0xff] %v1007
                  %v1009 = vld [vmem:[%s971 + $0x240] sm:$0xff]
                  %1010 = vst [vmem:[%s972 + $0x90] sm:$0xff] %v1009
                  %v1011 = vld [vmem:[%s971 + $0x260] sm:$0xff]
                  %1012 = vst [vmem:[%s972 + $0x98] sm:$0xff] %v1011
                  %v1013 = vld [vmem:[%s971 + $0x280] sm:$0xff]
                  %1014 = vst [vmem:[%s972 + $0xa0] sm:$0xff] %v1013
                  %v1015 = vld [vmem:[%s971 + $0x2a0] sm:$0xff]
                  %1016 = vst [vmem:[%s972 + $0xa8] sm:$0xff] %v1015
                  %v1017 = vld [vmem:[%s971 + $0x2c0] sm:$0xff]
                  %1018 = vst [vmem:[%s972 + $0xb0] sm:$0xff] %v1017
                  %v1019 = vld [vmem:[%s971 + $0x2e0] sm:$0xff]
                  %1020 = vst [vmem:[%s972 + $0xb8] sm:$0xff] %v1019
                  %v1021 = vld [vmem:[%s971 + $0x300] sm:$0xff]
                  %1022 = vst [vmem:[%s972 + $0xc0] sm:$0xff] %v1021
                  %v1023 = vld [vmem:[%s971 + $0x320] sm:$0xff]
                  %1024 = vst [vmem:[%s972 + $0xc8] sm:$0xff] %v1023
                  %v1025 = vld [vmem:[%s971 + $0x340] sm:$0xff]
                  %1026 = vst [vmem:[%s972 + $0xd0] sm:$0xff] %v1025
                  %v1027 = vld [vmem:[%s971 + $0x360] sm:$0xff]
                  %1028 = vst [vmem:[%s972 + $0xd8] sm:$0xff] %v1027
                  %v1029 = vld [vmem:[%s971 + $0x380] sm:$0xff]
                  %1030 = vst [vmem:[%s972 + $0xe0] sm:$0xff] %v1029
                  %v1031 = vld [vmem:[%s971 + $0x3a0] sm:$0xff]
                  %1032 = vst [vmem:[%s972 + $0xe8] sm:$0xff] %v1031
                  %v1033 = vld [vmem:[%s971 + $0x3c0] sm:$0xff]
                  %1034 = vst [vmem:[%s972 + $0xf0] sm:$0xff] %v1033
                  %v1035 = vld [vmem:[%s971 + $0x3e0] sm:$0xff]
                  %1036 = vst [vmem:[%s972 + $0xf8] sm:$0xff] %v1035
                  %v1037 = vld [vmem:[%s971 + $0x400] sm:$0xff]
                  %1038 = vst [vmem:[%s972 + $0x100] sm:$0xff] %v1037
                  %v1039 = vld [vmem:[%s971 + $0x420] sm:$0xff]
                  %1040 = vst [vmem:[%s972 + $0x108] sm:$0xff] %v1039
                  %v1041 = vld [vmem:[%s971 + $0x440] sm:$0xff]
                  %1042 = vst [vmem:[%s972 + $0x110] sm:$0xff] %v1041
                  %v1043 = vld [vmem:[%s971 + $0x460] sm:$0xff]
                  %1044 = vst [vmem:[%s972 + $0x118] sm:$0xff] %v1043
                  %v1045 = vld [vmem:[%s971 + $0x480] sm:$0xff]
                  %1046 = vst [vmem:[%s972 + $0x120] sm:$0xff] %v1045
                  %v1047 = vld [vmem:[%s971 + $0x4a0] sm:$0xff]
                  %1048 = vst [vmem:[%s972 + $0x128] sm:$0xff] %v1047
                  %v1049 = vld [vmem:[%s971 + $0x4c0] sm:$0xff]
                  %1050 = vst [vmem:[%s972 + $0x130] sm:$0xff] %v1049
                  %v1051 = vld [vmem:[%s971 + $0x4e0] sm:$0xff]
                  %1052 = vst [vmem:[%s972 + $0x138] sm:$0xff] %v1051
                  %v1053 = vld [vmem:[%s971 + $0x500] sm:$0xff]
                  %1054 = vst [vmem:[%s972 + $0x140] sm:$0xff] %v1053
                  %v1055 = vld [vmem:[%s971 + $0x520] sm:$0xff]
                  %1056 = vst [vmem:[%s972 + $0x148] sm:$0xff] %v1055
                  %v1057 = vld [vmem:[%s971 + $0x540] sm:$0xff]
                  %1058 = vst [vmem:[%s972 + $0x150] sm:$0xff] %v1057
                  %v1059 = vld [vmem:[%s971 + $0x560] sm:$0xff]
                  %1060 = vst [vmem:[%s972 + $0x158] sm:$0xff] %v1059
                  %v1061 = vld [vmem:[%s971 + $0x580] sm:$0xff]
                  %1062 = vst [vmem:[%s972 + $0x160] sm:$0xff] %v1061
                  %v1063 = vld [vmem:[%s971 + $0x5a0] sm:$0xff]
                  %1064 = vst [vmem:[%s972 + $0x168] sm:$0xff] %v1063
                  %v1065 = vld [vmem:[%s971 + $0x5c0] sm:$0xff]
                  %1066 = vst [vmem:[%s972 + $0x170] sm:$0xff] %v1065
                  %v1067 = vld [vmem:[%s971 + $0x5e0] sm:$0xff]
                  %1068 = vst [vmem:[%s972 + $0x178] sm:$0xff] %v1067
                  %v1069 = vld [vmem:[%s971 + $0x600] sm:$0xff]
                  %1070 = vst [vmem:[%s972 + $0x180] sm:$0xff] %v1069
                  %v1071 = vld [vmem:[%s971 + $0x620] sm:$0xff]
                  %1072 = vst [vmem:[%s972 + $0x188] sm:$0xff] %v1071
                  %v1073 = vld [vmem:[%s971 + $0x640] sm:$0xff]
                  %1074 = vst [vmem:[%s972 + $0x190] sm:$0xff] %v1073
                  %v1075 = vld [vmem:[%s971 + $0x660] sm:$0xff]
                  %1076 = vst [vmem:[%s972 + $0x198] sm:$0xff] %v1075
                  %v1077 = vld [vmem:[%s971 + $0x680] sm:$0xff]
                  %1078 = vst [vmem:[%s972 + $0x1a0] sm:$0xff] %v1077
                  %v1079 = vld [vmem:[%s971 + $0x6a0] sm:$0xff]
                  %1080 = vst [vmem:[%s972 + $0x1a8] sm:$0xff] %v1079
                  %v1081 = vld [vmem:[%s971 + $0x6c0] sm:$0xff]
                  %1082 = vst [vmem:[%s972 + $0x1b0] sm:$0xff] %v1081
                  %v1083 = vld [vmem:[%s971 + $0x6e0] sm:$0xff]
                  %1084 = vst [vmem:[%s972 + $0x1b8] sm:$0xff] %v1083
                  %v1085 = vld [vmem:[%s971 + $0x700] sm:$0xff]
                  %1086 = vst [vmem:[%s972 + $0x1c0] sm:$0xff] %v1085
                  %v1087 = vld [vmem:[%s971 + $0x720] sm:$0xff]
                  %1088 = vst [vmem:[%s972 + $0x1c8] sm:$0xff] %v1087
                  %v1089 = vld [vmem:[%s971 + $0x740] sm:$0xff]
                  %1090 = vst [vmem:[%s972 + $0x1d0] sm:$0xff] %v1089
                  %v1091 = vld [vmem:[%s971 + $0x760] sm:$0xff]
                  %1092 = vst [vmem:[%s972 + $0x1d8] sm:$0xff] %v1091
                  %v1093 = vld [vmem:[%s971 + $0x780] sm:$0xff]
                  %1094 = vst [vmem:[%s972 + $0x1e0] sm:$0xff] %v1093
                  %v1095 = vld [vmem:[%s971 + $0x7a0] sm:$0xff]
                  %1096 = vst [vmem:[%s972 + $0x1e8] sm:$0xff] %v1095
                  %v1097 = vld [vmem:[%s971 + $0x7c0] sm:$0xff]
                  %1098 = vst [vmem:[%s972 + $0x1f0] sm:$0xff] %v1097
                  %v1099 = vld [vmem:[%s971 + $0x7e0] sm:$0xff]
                  %1100 = vst [vmem:[%s972 + $0x1f8] sm:$0xff] %v1099
                  %v1101 = vld [vmem:[%s971 + $0x800] sm:$0xff]
                  %1102 = vst [vmem:[%s972 + $0x200] sm:$0xff] %v1101
                  %v1103 = vld [vmem:[%s971 + $0x820] sm:$0xff]
                  %1104 = vst [vmem:[%s972 + $0x208] sm:$0xff] %v1103
                  %v1105 = vld [vmem:[%s971 + $0x840] sm:$0xff]
                  %1106 = vst [vmem:[%s972 + $0x210] sm:$0xff] %v1105
                  %v1107 = vld [vmem:[%s971 + $0x860] sm:$0xff]
                  %1108 = vst [vmem:[%s972 + $0x218] sm:$0xff] %v1107
                  %v1109 = vld [vmem:[%s971 + $0x880] sm:$0xff]
                  %1110 = vst [vmem:[%s972 + $0x220] sm:$0xff] %v1109
                  %v1111 = vld [vmem:[%s971 + $0x8a0] sm:$0xff]
                  %1112 = vst [vmem:[%s972 + $0x228] sm:$0xff] %v1111
                  %v1113 = vld [vmem:[%s971 + $0x8c0] sm:$0xff]
                  %1114 = vst [vmem:[%s972 + $0x230] sm:$0xff] %v1113
                  %v1115 = vld [vmem:[%s971 + $0x8e0] sm:$0xff]
                  %1116 = vst [vmem:[%s972 + $0x238] sm:$0xff] %v1115
                  %v1117 = vld [vmem:[%s971 + $0x900] sm:$0xff]
                  %1118 = vst [vmem:[%s972 + $0x240] sm:$0xff] %v1117
                  %v1119 = vld [vmem:[%s971 + $0x920] sm:$0xff]
                  %1120 = vst [vmem:[%s972 + $0x248] sm:$0xff] %v1119
                  %v1121 = vld [vmem:[%s971 + $0x940] sm:$0xff]
                  %1122 = vst [vmem:[%s972 + $0x250] sm:$0xff] %v1121
                  %v1123 = vld [vmem:[%s971 + $0x960] sm:$0xff]
                  %1124 = vst [vmem:[%s972 + $0x258] sm:$0xff] %v1123
                  %v1125 = vld [vmem:[%s971 + $0x980] sm:$0xff]
                  %1126 = vst [vmem:[%s972 + $0x260] sm:$0xff] %v1125
                  %v1127 = vld [vmem:[%s971 + $0x9a0] sm:$0xff]
                  %1128 = vst [vmem:[%s972 + $0x268] sm:$0xff] %v1127
                  %v1129 = vld [vmem:[%s971 + $0x9c0] sm:$0xff]
                  %1130 = vst [vmem:[%s972 + $0x270] sm:$0xff] %v1129
                  %v1131 = vld [vmem:[%s971 + $0x9e0] sm:$0xff]
                  %1132 = vst [vmem:[%s972 + $0x278] sm:$0xff] %v1131
                  %v1133 = vld [vmem:[%s971 + $0xa00] sm:$0xff]
                  %1134 = vst [vmem:[%s972 + $0x280] sm:$0xff] %v1133
                  %v1135 = vld [vmem:[%s971 + $0xa20] sm:$0xff]
                  %1136 = vst [vmem:[%s972 + $0x288] sm:$0xff] %v1135
                  %v1137 = vld [vmem:[%s971 + $0xa40] sm:$0xff]
                  %1138 = vst [vmem:[%s972 + $0x290] sm:$0xff] %v1137
                  %v1139 = vld [vmem:[%s971 + $0xa60] sm:$0xff]
                  %1140 = vst [vmem:[%s972 + $0x298] sm:$0xff] %v1139
                  %v1141 = vld [vmem:[%s971 + $0xa80] sm:$0xff]
                  %1142 = vst [vmem:[%s972 + $0x2a0] sm:$0xff] %v1141
                  %v1143 = vld [vmem:[%s971 + $0xaa0] sm:$0xff]
                  %1144 = vst [vmem:[%s972 + $0x2a8] sm:$0xff] %v1143
                  %v1145 = vld [vmem:[%s971 + $0xac0] sm:$0xff]
                  %1146 = vst [vmem:[%s972 + $0x2b0] sm:$0xff] %v1145
                  %v1147 = vld [vmem:[%s971 + $0xae0] sm:$0xff]
                  %1148 = vst [vmem:[%s972 + $0x2b8] sm:$0xff] %v1147
                  %v1149 = vld [vmem:[%s971 + $0xb00] sm:$0xff]
                  %1150 = vst [vmem:[%s972 + $0x2c0] sm:$0xff] %v1149
                  %v1151 = vld [vmem:[%s971 + $0xb20] sm:$0xff]
                  %1152 = vst [vmem:[%s972 + $0x2c8] sm:$0xff] %v1151
                  %v1153 = vld [vmem:[%s971 + $0xb40] sm:$0xff]
                  %1154 = vst [vmem:[%s972 + $0x2d0] sm:$0xff] %v1153
                  %v1155 = vld [vmem:[%s971 + $0xb60] sm:$0xff]
                  %1156 = vst [vmem:[%s972 + $0x2d8] sm:$0xff] %v1155
                  %v1157 = vld [vmem:[%s971 + $0xb80] sm:$0xff]
                  %1158 = vst [vmem:[%s972 + $0x2e0] sm:$0xff] %v1157
                  %v1159 = vld [vmem:[%s971 + $0xba0] sm:$0xff]
                  %1160 = vst [vmem:[%s972 + $0x2e8] sm:$0xff] %v1159
                  %v1161 = vld [vmem:[%s971 + $0xbc0] sm:$0xff]
                  %1162 = vst [vmem:[%s972 + $0x2f0] sm:$0xff] %v1161
                  %v1163 = vld [vmem:[%s971 + $0xbe0] sm:$0xff]
                  %1164 = vst [vmem:[%s972 + $0x2f8] sm:$0xff] %v1163
                  %v1165 = vld [vmem:[%s971 + $0xc00] sm:$0xff]
                  %1166 = vst [vmem:[%s972 + $0x300] sm:$0xff] %v1165
                  %v1167 = vld [vmem:[%s971 + $0xc20] sm:$0xff]
                  %1168 = vst [vmem:[%s972 + $0x308] sm:$0xff] %v1167
                  %v1169 = vld [vmem:[%s971 + $0xc40] sm:$0xff]
                  %1170 = vst [vmem:[%s972 + $0x310] sm:$0xff] %v1169
                  %v1171 = vld [vmem:[%s971 + $0xc60] sm:$0xff]
                  %1172 = vst [vmem:[%s972 + $0x318] sm:$0xff] %v1171
                  %v1173 = vld [vmem:[%s971 + $0xc80] sm:$0xff]
                  %1174 = vst [vmem:[%s972 + $0x320] sm:$0xff] %v1173
                  %v1175 = vld [vmem:[%s971 + $0xca0] sm:$0xff]
                  %1176 = vst [vmem:[%s972 + $0x328] sm:$0xff] %v1175
                  %v1177 = vld [vmem:[%s971 + $0xcc0] sm:$0xff]
                  %1178 = vst [vmem:[%s972 + $0x330] sm:$0xff] %v1177
                  %v1179 = vld [vmem:[%s971 + $0xce0] sm:$0xff]
                  %1180 = vst [vmem:[%s972 + $0x338] sm:$0xff] %v1179
                  %v1181 = vld [vmem:[%s971 + $0xd00] sm:$0xff]
                  %1182 = vst [vmem:[%s972 + $0x340] sm:$0xff] %v1181
                  %v1183 = vld [vmem:[%s971 + $0xd20] sm:$0xff]
                  %1184 = vst [vmem:[%s972 + $0x348] sm:$0xff] %v1183
                  %v1185 = vld [vmem:[%s971 + $0xd40] sm:$0xff]
                  %1186 = vst [vmem:[%s972 + $0x350] sm:$0xff] %v1185
                  %v1187 = vld [vmem:[%s971 + $0xd60] sm:$0xff]
                  %1188 = vst [vmem:[%s972 + $0x358] sm:$0xff] %v1187
                  %v1189 = vld [vmem:[%s971 + $0xd80] sm:$0xff]
                  %1190 = vst [vmem:[%s972 + $0x360] sm:$0xff] %v1189
                  %v1191 = vld [vmem:[%s971 + $0xda0] sm:$0xff]
                  %1192 = vst [vmem:[%s972 + $0x368] sm:$0xff] %v1191
                  %v1193 = vld [vmem:[%s971 + $0xdc0] sm:$0xff]
                  %1194 = vst [vmem:[%s972 + $0x370] sm:$0xff] %v1193
                  %v1195 = vld [vmem:[%s971 + $0xde0] sm:$0xff]
                  %1196 = vst [vmem:[%s972 + $0x378] sm:$0xff] %v1195
                  %v1197 = vld [vmem:[%s971 + $0xe00] sm:$0xff]
                  %1198 = vst [vmem:[%s972 + $0x380] sm:$0xff] %v1197
                  %v1199 = vld [vmem:[%s971 + $0xe20] sm:$0xff]
                  %1200 = vst [vmem:[%s972 + $0x388] sm:$0xff] %v1199
                  %v1201 = vld [vmem:[%s971 + $0xe40] sm:$0xff]
                  %1202 = vst [vmem:[%s972 + $0x390] sm:$0xff] %v1201
                  %v1203 = vld [vmem:[%s971 + $0xe60] sm:$0xff]
                  %1204 = vst [vmem:[%s972 + $0x398] sm:$0xff] %v1203
                  %v1205 = vld [vmem:[%s971 + $0xe80] sm:$0xff]
                  %1206 = vst [vmem:[%s972 + $0x3a0] sm:$0xff] %v1205
                  %v1207 = vld [vmem:[%s971 + $0xea0] sm:$0xff]
                  %1208 = vst [vmem:[%s972 + $0x3a8] sm:$0xff] %v1207
                  %v1209 = vld [vmem:[%s971 + $0xec0] sm:$0xff]
                  %1210 = vst [vmem:[%s972 + $0x3b0] sm:$0xff] %v1209
                  %v1211 = vld [vmem:[%s971 + $0xee0] sm:$0xff]
                  %1212 = vst [vmem:[%s972 + $0x3b8] sm:$0xff] %v1211
                  %v1213 = vld [vmem:[%s971 + $0xf00] sm:$0xff]
                  %1214 = vst [vmem:[%s972 + $0x3c0] sm:$0xff] %v1213
                  %v1215 = vld [vmem:[%s971 + $0xf20] sm:$0xff]
                  %1216 = vst [vmem:[%s972 + $0x3c8] sm:$0xff] %v1215
                  %v1217 = vld [vmem:[%s971 + $0xf40] sm:$0xff]
                  %1218 = vst [vmem:[%s972 + $0x3d0] sm:$0xff] %v1217
                  %v1219 = vld [vmem:[%s971 + $0xf60] sm:$0xff]
                  %1220 = vst [vmem:[%s972 + $0x3d8] sm:$0xff] %v1219
                  %v1221 = vld [vmem:[%s971 + $0xf80] sm:$0xff]
                  %1222 = vst [vmem:[%s972 + $0x3e0] sm:$0xff] %v1221
                  %v1223 = vld [vmem:[%s971 + $0xfa0] sm:$0xff]
                  %1224 = vst [vmem:[%s972 + $0x3e8] sm:$0xff] %v1223
                  %v1225 = vld [vmem:[%s971 + $0xfc0] sm:$0xff]
                  %1226 = vst [vmem:[%s972 + $0x3f0] sm:$0xff] %v1225
                  %v1227 = vld [vmem:[%s971 + $0xfe0] sm:$0xff]
                  %1228 = vst [vmem:[%s972 + $0x3f8] sm:$0xff] %v1227
                  %v1229 = vld [vmem:[%s971 + $0x1000] sm:$0xff]
                  %1230 = vst [vmem:[%s972 + $0x400] sm:$0xff] %v1229
                  %v1231 = vld [vmem:[%s971 + $0x1020] sm:$0xff]
                  %1232 = vst [vmem:[%s972 + $0x408] sm:$0xff] %v1231
                  %v1233 = vld [vmem:[%s971 + $0x1040] sm:$0xff]
                  %1234 = vst [vmem:[%s972 + $0x410] sm:$0xff] %v1233
                  %v1235 = vld [vmem:[%s971 + $0x1060] sm:$0xff]
                  %1236 = vst [vmem:[%s972 + $0x418] sm:$0xff] %v1235
                  %v1237 = vld [vmem:[%s971 + $0x1080] sm:$0xff]
                  %1238 = vst [vmem:[%s972 + $0x420] sm:$0xff] %v1237
                  %v1239 = vld [vmem:[%s971 + $0x10a0] sm:$0xff]
                  %1240 = vst [vmem:[%s972 + $0x428] sm:$0xff] %v1239
                  %v1241 = vld [vmem:[%s971 + $0x10c0] sm:$0xff]
                  %1242 = vst [vmem:[%s972 + $0x430] sm:$0xff] %v1241
                  %v1243 = vld [vmem:[%s971 + $0x10e0] sm:$0xff]
                  %1244 = vst [vmem:[%s972 + $0x438] sm:$0xff] %v1243
                  %v1245 = vld [vmem:[%s971 + $0x1100] sm:$0xff]
                  %1246 = vst [vmem:[%s972 + $0x440] sm:$0xff] %v1245
                  %v1247 = vld [vmem:[%s971 + $0x1120] sm:$0xff]
                  %1248 = vst [vmem:[%s972 + $0x448] sm:$0xff] %v1247
                  %v1249 = vld [vmem:[%s971 + $0x1140] sm:$0xff]
                  %1250 = vst [vmem:[%s972 + $0x450] sm:$0xff] %v1249
                  %v1251 = vld [vmem:[%s971 + $0x1160] sm:$0xff]
                  %1252 = vst [vmem:[%s972 + $0x458] sm:$0xff] %v1251
                  %v1253 = vld [vmem:[%s971 + $0x1180] sm:$0xff]
                  %1254 = vst [vmem:[%s972 + $0x460] sm:$0xff] %v1253
                  %v1255 = vld [vmem:[%s971 + $0x11a0] sm:$0xff]
                  %1256 = vst [vmem:[%s972 + $0x468] sm:$0xff] %v1255
                  %v1257 = vld [vmem:[%s971 + $0x11c0] sm:$0xff]
                  %1258 = vst [vmem:[%s972 + $0x470] sm:$0xff] %v1257
                  %v1259 = vld [vmem:[%s971 + $0x11e0] sm:$0xff]
                  %1260 = vst [vmem:[%s972 + $0x478] sm:$0xff] %v1259
                  %v1261 = vld [vmem:[%s971 + $0x1200] sm:$0xff]
                  %1262 = vst [vmem:[%s972 + $0x480] sm:$0xff] %v1261
                  %v1263 = vld [vmem:[%s971 + $0x1220] sm:$0xff]
                  %1264 = vst [vmem:[%s972 + $0x488] sm:$0xff] %v1263
                  %v1265 = vld [vmem:[%s971 + $0x1240] sm:$0xff]
                  %1266 = vst [vmem:[%s972 + $0x490] sm:$0xff] %v1265
                  %v1267 = vld [vmem:[%s971 + $0x1260] sm:$0xff]
                  %1268 = vst [vmem:[%s972 + $0x498] sm:$0xff] %v1267
                  %v1269 = vld [vmem:[%s971 + $0x1280] sm:$0xff]
                  %1270 = vst [vmem:[%s972 + $0x4a0] sm:$0xff] %v1269
                  %v1271 = vld [vmem:[%s971 + $0x12a0] sm:$0xff]
                  %1272 = vst [vmem:[%s972 + $0x4a8] sm:$0xff] %v1271
                  %v1273 = vld [vmem:[%s971 + $0x12c0] sm:$0xff]
                  %1274 = vst [vmem:[%s972 + $0x4b0] sm:$0xff] %v1273
                  %v1275 = vld [vmem:[%s971 + $0x12e0] sm:$0xff]
                  %1276 = vst [vmem:[%s972 + $0x4b8] sm:$0xff] %v1275
                  %v1277 = vld [vmem:[%s971 + $0x1300] sm:$0xff]
                  %1278 = vst [vmem:[%s972 + $0x4c0] sm:$0xff] %v1277
                  %v1279 = vld [vmem:[%s971 + $0x1320] sm:$0xff]
                  %1280 = vst [vmem:[%s972 + $0x4c8] sm:$0xff] %v1279
                  %v1281 = vld [vmem:[%s971 + $0x1340] sm:$0xff]
                  %1282 = vst [vmem:[%s972 + $0x4d0] sm:$0xff] %v1281
                  %v1283 = vld [vmem:[%s971 + $0x1360] sm:$0xff]
                  %1284 = vst [vmem:[%s972 + $0x4d8] sm:$0xff] %v1283
                  %v1285 = vld [vmem:[%s971 + $0x1380] sm:$0xff]
                  %1286 = vst [vmem:[%s972 + $0x4e0] sm:$0xff] %v1285
                  %v1287 = vld [vmem:[%s971 + $0x13a0] sm:$0xff]
                  %1288 = vst [vmem:[%s972 + $0x4e8] sm:$0xff] %v1287
                  %v1289 = vld [vmem:[%s971 + $0x13c0] sm:$0xff]
                  %1290 = vst [vmem:[%s972 + $0x4f0] sm:$0xff] %v1289
                  %v1291 = vld [vmem:[%s971 + $0x13e0] sm:$0xff]
                  %1292 = vst [vmem:[%s972 + $0x4f8] sm:$0xff] %v1291
                  %v1293 = vld [vmem:[%s971 + $0x1400] sm:$0xff]
                  %1294 = vst [vmem:[%s972 + $0x500] sm:$0xff] %v1293
                  %v1295 = vld [vmem:[%s971 + $0x1420] sm:$0xff]
                  %1296 = vst [vmem:[%s972 + $0x508] sm:$0xff] %v1295
                  %v1297 = vld [vmem:[%s971 + $0x1440] sm:$0xff]
                  %1298 = vst [vmem:[%s972 + $0x510] sm:$0xff] %v1297
                  %v1299 = vld [vmem:[%s971 + $0x1460] sm:$0xff]
                  %1300 = vst [vmem:[%s972 + $0x518] sm:$0xff] %v1299
                  %v1301 = vld [vmem:[%s971 + $0x1480] sm:$0xff]
                  %1302 = vst [vmem:[%s972 + $0x520] sm:$0xff] %v1301
                  %v1303 = vld [vmem:[%s971 + $0x14a0] sm:$0xff]
                  %1304 = vst [vmem:[%s972 + $0x528] sm:$0xff] %v1303
                  %v1305 = vld [vmem:[%s971 + $0x14c0] sm:$0xff]
                  %1306 = vst [vmem:[%s972 + $0x530] sm:$0xff] %v1305
                  %v1307 = vld [vmem:[%s971 + $0x14e0] sm:$0xff]
                  %1308 = vst [vmem:[%s972 + $0x538] sm:$0xff] %v1307
                  %v1309 = vld [vmem:[%s971 + $0x1500] sm:$0xff]
                  %1310 = vst [vmem:[%s972 + $0x540] sm:$0xff] %v1309
                  %v1311 = vld [vmem:[%s971 + $0x1520] sm:$0xff]
                  %1312 = vst [vmem:[%s972 + $0x548] sm:$0xff] %v1311
                  %v1313 = vld [vmem:[%s971 + $0x1540] sm:$0xff]
                  %1314 = vst [vmem:[%s972 + $0x550] sm:$0xff] %v1313
                  %v1315 = vld [vmem:[%s971 + $0x1560] sm:$0xff]
                  %1316 = vst [vmem:[%s972 + $0x558] sm:$0xff] %v1315
                  %v1317 = vld [vmem:[%s971 + $0x1580] sm:$0xff]
                  %1318 = vst [vmem:[%s972 + $0x560] sm:$0xff] %v1317
                  %v1319 = vld [vmem:[%s971 + $0x15a0] sm:$0xff]
                  %1320 = vst [vmem:[%s972 + $0x568] sm:$0xff] %v1319
                  %v1321 = vld [vmem:[%s971 + $0x15c0] sm:$0xff]
                  %1322 = vst [vmem:[%s972 + $0x570] sm:$0xff] %v1321
                  %v1323 = vld [vmem:[%s971 + $0x15e0] sm:$0xff]
                  %1324 = vst [vmem:[%s972 + $0x578] sm:$0xff] %v1323
                  %v1325 = vld [vmem:[%s971 + $0x1600] sm:$0xff]
                  %1326 = vst [vmem:[%s972 + $0x580] sm:$0xff] %v1325
                  %v1327 = vld [vmem:[%s971 + $0x1620] sm:$0xff]
                  %1328 = vst [vmem:[%s972 + $0x588] sm:$0xff] %v1327
                  %v1329 = vld [vmem:[%s971 + $0x1640] sm:$0xff]
                  %1330 = vst [vmem:[%s972 + $0x590] sm:$0xff] %v1329
                  %v1331 = vld [vmem:[%s971 + $0x1660] sm:$0xff]
                  %1332 = vst [vmem:[%s972 + $0x598] sm:$0xff] %v1331
                  %v1333 = vld [vmem:[%s971 + $0x1680] sm:$0xff]
                  %1334 = vst [vmem:[%s972 + $0x5a0] sm:$0xff] %v1333
                  %v1335 = vld [vmem:[%s971 + $0x16a0] sm:$0xff]
                  %1336 = vst [vmem:[%s972 + $0x5a8] sm:$0xff] %v1335
                  %v1337 = vld [vmem:[%s971 + $0x16c0] sm:$0xff]
                  %1338 = vst [vmem:[%s972 + $0x5b0] sm:$0xff] %v1337
                  %v1339 = vld [vmem:[%s971 + $0x16e0] sm:$0xff]
                  %1340 = vst [vmem:[%s972 + $0x5b8] sm:$0xff] %v1339
                  %v1341 = vld [vmem:[%s971 + $0x1700] sm:$0xff]
                  %1342 = vst [vmem:[%s972 + $0x5c0] sm:$0xff] %v1341
                  %v1343 = vld [vmem:[%s971 + $0x1720] sm:$0xff]
                  %1344 = vst [vmem:[%s972 + $0x5c8] sm:$0xff] %v1343
                  %v1345 = vld [vmem:[%s971 + $0x1740] sm:$0xff]
                  %1346 = vst [vmem:[%s972 + $0x5d0] sm:$0xff] %v1345
                  %v1347 = vld [vmem:[%s971 + $0x1760] sm:$0xff]
                  %1348 = vst [vmem:[%s972 + $0x5d8] sm:$0xff] %v1347
                  %v1349 = vld [vmem:[%s971 + $0x1780] sm:$0xff]
                  %1350 = vst [vmem:[%s972 + $0x5e0] sm:$0xff] %v1349
                  %v1351 = vld [vmem:[%s971 + $0x17a0] sm:$0xff]
                  %1352 = vst [vmem:[%s972 + $0x5e8] sm:$0xff] %v1351
                  %v1353 = vld [vmem:[%s971 + $0x17c0] sm:$0xff]
                  %1354 = vst [vmem:[%s972 + $0x5f0] sm:$0xff] %v1353
                  %v1355 = vld [vmem:[%s971 + $0x17e0] sm:$0xff]
                  %1356 = vst [vmem:[%s972 + $0x5f8] sm:$0xff] %v1355
                  %v1357 = vld [vmem:[%s971 + $0x1800] sm:$0xff]
                  %1358 = vst [vmem:[%s972 + $0x600] sm:$0xff] %v1357
                  %v1359 = vld [vmem:[%s971 + $0x1820] sm:$0xff]
                  %1360 = vst [vmem:[%s972 + $0x608] sm:$0xff] %v1359
                  %v1361 = vld [vmem:[%s971 + $0x1840] sm:$0xff]
                  %1362 = vst [vmem:[%s972 + $0x610] sm:$0xff] %v1361
                  %v1363 = vld [vmem:[%s971 + $0x1860] sm:$0xff]
                  %1364 = vst [vmem:[%s972 + $0x618] sm:$0xff] %v1363
                  %v1365 = vld [vmem:[%s971 + $0x1880] sm:$0xff]
                  %1366 = vst [vmem:[%s972 + $0x620] sm:$0xff] %v1365
                  %v1367 = vld [vmem:[%s971 + $0x18a0] sm:$0xff]
                  %1368 = vst [vmem:[%s972 + $0x628] sm:$0xff] %v1367
                  %v1369 = vld [vmem:[%s971 + $0x18c0] sm:$0xff]
                  %1370 = vst [vmem:[%s972 + $0x630] sm:$0xff] %v1369
                  %v1371 = vld [vmem:[%s971 + $0x18e0] sm:$0xff]
                  %1372 = vst [vmem:[%s972 + $0x638] sm:$0xff] %v1371
                  %v1373 = vld [vmem:[%s971 + $0x1900] sm:$0xff]
                  %1374 = vst [vmem:[%s972 + $0x640] sm:$0xff] %v1373
                  %v1375 = vld [vmem:[%s971 + $0x1920] sm:$0xff]
                  %1376 = vst [vmem:[%s972 + $0x648] sm:$0xff] %v1375
                  %v1377 = vld [vmem:[%s971 + $0x1940] sm:$0xff]
                  %1378 = vst [vmem:[%s972 + $0x650] sm:$0xff] %v1377
                  %v1379 = vld [vmem:[%s971 + $0x1960] sm:$0xff]
                  %1380 = vst [vmem:[%s972 + $0x658] sm:$0xff] %v1379
                  %v1381 = vld [vmem:[%s971 + $0x1980] sm:$0xff]
                  %1382 = vst [vmem:[%s972 + $0x660] sm:$0xff] %v1381
                  %v1383 = vld [vmem:[%s971 + $0x19a0] sm:$0xff]
                  %1384 = vst [vmem:[%s972 + $0x668] sm:$0xff] %v1383
                  %v1385 = vld [vmem:[%s971 + $0x19c0] sm:$0xff]
                  %1386 = vst [vmem:[%s972 + $0x670] sm:$0xff] %v1385
                  %v1387 = vld [vmem:[%s971 + $0x19e0] sm:$0xff]
                  %1388 = vst [vmem:[%s972 + $0x678] sm:$0xff] %v1387
                  %v1389 = vld [vmem:[%s971 + $0x1a00] sm:$0xff]
                  %1390 = vst [vmem:[%s972 + $0x680] sm:$0xff] %v1389
                  %v1391 = vld [vmem:[%s971 + $0x1a20] sm:$0xff]
                  %1392 = vst [vmem:[%s972 + $0x688] sm:$0xff] %v1391
                  %v1393 = vld [vmem:[%s971 + $0x1a40] sm:$0xff]
                  %1394 = vst [vmem:[%s972 + $0x690] sm:$0xff] %v1393
                  %v1395 = vld [vmem:[%s971 + $0x1a60] sm:$0xff]
                  %1396 = vst [vmem:[%s972 + $0x698] sm:$0xff] %v1395
                  %v1397 = vld [vmem:[%s971 + $0x1a80] sm:$0xff]
                  %1398 = vst [vmem:[%s972 + $0x6a0] sm:$0xff] %v1397
                  %v1399 = vld [vmem:[%s971 + $0x1aa0] sm:$0xff]
                  %1400 = vst [vmem:[%s972 + $0x6a8] sm:$0xff] %v1399
                  %v1401 = vld [vmem:[%s971 + $0x1ac0] sm:$0xff]
                  %1402 = vst [vmem:[%s972 + $0x6b0] sm:$0xff] %v1401
                  %v1403 = vld [vmem:[%s971 + $0x1ae0] sm:$0xff]
                  %1404 = vst [vmem:[%s972 + $0x6b8] sm:$0xff] %v1403
                  %v1405 = vld [vmem:[%s971 + $0x1b00] sm:$0xff]
                  %1406 = vst [vmem:[%s972 + $0x6c0] sm:$0xff] %v1405
                  %v1407 = vld [vmem:[%s971 + $0x1b20] sm:$0xff]
                  %1408 = vst [vmem:[%s972 + $0x6c8] sm:$0xff] %v1407
                  %v1409 = vld [vmem:[%s971 + $0x1b40] sm:$0xff]
                  %1410 = vst [vmem:[%s972 + $0x6d0] sm:$0xff] %v1409
                  %v1411 = vld [vmem:[%s971 + $0x1b60] sm:$0xff]
                  %1412 = vst [vmem:[%s972 + $0x6d8] sm:$0xff] %v1411
                  %v1413 = vld [vmem:[%s971 + $0x1b80] sm:$0xff]
                  %1414 = vst [vmem:[%s972 + $0x6e0] sm:$0xff] %v1413
                  %v1415 = vld [vmem:[%s971 + $0x1ba0] sm:$0xff]
                  %1416 = vst [vmem:[%s972 + $0x6e8] sm:$0xff] %v1415
                  %v1417 = vld [vmem:[%s971 + $0x1bc0] sm:$0xff]
                  %1418 = vst [vmem:[%s972 + $0x6f0] sm:$0xff] %v1417
                  %v1419 = vld [vmem:[%s971 + $0x1be0] sm:$0xff]
                  %1420 = vst [vmem:[%s972 + $0x6f8] sm:$0xff] %v1419
                  %v1421 = vld [vmem:[%s971 + $0x1c00] sm:$0xff]
                  %1422 = vst [vmem:[%s972 + $0x700] sm:$0xff] %v1421
                  %v1423 = vld [vmem:[%s971 + $0x1c20] sm:$0xff]
                  %1424 = vst [vmem:[%s972 + $0x708] sm:$0xff] %v1423
                  %v1425 = vld [vmem:[%s971 + $0x1c40] sm:$0xff]
                  %1426 = vst [vmem:[%s972 + $0x710] sm:$0xff] %v1425
                  %v1427 = vld [vmem:[%s971 + $0x1c60] sm:$0xff]
                  %1428 = vst [vmem:[%s972 + $0x718] sm:$0xff] %v1427
                  %v1429 = vld [vmem:[%s971 + $0x1c80] sm:$0xff]
                  %1430 = vst [vmem:[%s972 + $0x720] sm:$0xff] %v1429
                  %v1431 = vld [vmem:[%s971 + $0x1ca0] sm:$0xff]
                  %1432 = vst [vmem:[%s972 + $0x728] sm:$0xff] %v1431
                  %v1433 = vld [vmem:[%s971 + $0x1cc0] sm:$0xff]
                  %1434 = vst [vmem:[%s972 + $0x730] sm:$0xff] %v1433
                  %v1435 = vld [vmem:[%s971 + $0x1ce0] sm:$0xff]
                  %1436 = vst [vmem:[%s972 + $0x738] sm:$0xff] %v1435
                  %v1437 = vld [vmem:[%s971 + $0x1d00] sm:$0xff]
                  %1438 = vst [vmem:[%s972 + $0x740] sm:$0xff] %v1437
                  %v1439 = vld [vmem:[%s971 + $0x1d20] sm:$0xff]
                  %1440 = vst [vmem:[%s972 + $0x748] sm:$0xff] %v1439
                  %v1441 = vld [vmem:[%s971 + $0x1d40] sm:$0xff]
                  %1442 = vst [vmem:[%s972 + $0x750] sm:$0xff] %v1441
                  %v1443 = vld [vmem:[%s971 + $0x1d60] sm:$0xff]
                  %1444 = vst [vmem:[%s972 + $0x758] sm:$0xff] %v1443
                  %v1445 = vld [vmem:[%s971 + $0x1d80] sm:$0xff]
                  %1446 = vst [vmem:[%s972 + $0x760] sm:$0xff] %v1445
                  %v1447 = vld [vmem:[%s971 + $0x1da0] sm:$0xff]
                  %1448 = vst [vmem:[%s972 + $0x768] sm:$0xff] %v1447
                  %v1449 = vld [vmem:[%s971 + $0x1dc0] sm:$0xff]
                  %1450 = vst [vmem:[%s972 + $0x770] sm:$0xff] %v1449
                  %v1451 = vld [vmem:[%s971 + $0x1de0] sm:$0xff]
                  %1452 = vst [vmem:[%s972 + $0x778] sm:$0xff] %v1451
                  %v1453 = vld [vmem:[%s971 + $0x1e00] sm:$0xff]
                  %1454 = vst [vmem:[%s972 + $0x780] sm:$0xff] %v1453
                  %v1455 = vld [vmem:[%s971 + $0x1e20] sm:$0xff]
                  %1456 = vst [vmem:[%s972 + $0x788] sm:$0xff] %v1455
                  %v1457 = vld [vmem:[%s971 + $0x1e40] sm:$0xff]
                  %1458 = vst [vmem:[%s972 + $0x790] sm:$0xff] %v1457
                  %v1459 = vld [vmem:[%s971 + $0x1e60] sm:$0xff]
                  %1460 = vst [vmem:[%s972 + $0x798] sm:$0xff] %v1459
                  %v1461 = vld [vmem:[%s971 + $0x1e80] sm:$0xff]
                  %1462 = vst [vmem:[%s972 + $0x7a0] sm:$0xff] %v1461
                  %v1463 = vld [vmem:[%s971 + $0x1ea0] sm:$0xff]
                  %1464 = vst [vmem:[%s972 + $0x7a8] sm:$0xff] %v1463
                  %v1465 = vld [vmem:[%s971 + $0x1ec0] sm:$0xff]
                  %1466 = vst [vmem:[%s972 + $0x7b0] sm:$0xff] %v1465
                  %v1467 = vld [vmem:[%s971 + $0x1ee0] sm:$0xff]
                  %1468 = vst [vmem:[%s972 + $0x7b8] sm:$0xff] %v1467
                  %v1469 = vld [vmem:[%s971 + $0x1f00] sm:$0xff]
                  %1470 = vst [vmem:[%s972 + $0x7c0] sm:$0xff] %v1469
                  %v1471 = vld [vmem:[%s971 + $0x1f20] sm:$0xff]
                  %1472 = vst [vmem:[%s972 + $0x7c8] sm:$0xff] %v1471
                  %v1473 = vld [vmem:[%s971 + $0x1f40] sm:$0xff]
                  %1474 = vst [vmem:[%s972 + $0x7d0] sm:$0xff] %v1473
                  %v1475 = vld [vmem:[%s971 + $0x1f60] sm:$0xff]
                  %1476 = vst [vmem:[%s972 + $0x7d8] sm:$0xff] %v1475
                  %v1477 = vld [vmem:[%s971 + $0x1f80] sm:$0xff]
                  %1478 = vst [vmem:[%s972 + $0x7e0] sm:$0xff] %v1477
                  %v1479 = vld [vmem:[%s971 + $0x1fa0] sm:$0xff]
                  %1480 = vst [vmem:[%s972 + $0x7e8] sm:$0xff] %v1479
                  %v1481 = vld [vmem:[%s971 + $0x1fc0] sm:$0xff]
                  %1482 = vst [vmem:[%s972 + $0x7f0] sm:$0xff] %v1481
                  %v1483 = vld [vmem:[%s971 + $0x1fe0] sm:$0xff]
                  %1484 = vst [vmem:[%s972 + $0x7f8] sm:$0xff] %v1483
                  %v1485 = vld [vmem:[%s971 + $0x2000] sm:$0xff]
                  %1486 = vst [vmem:[%s972 + $0x800] sm:$0xff] %v1485
                  %v1487 = vld [vmem:[%s971 + $0x2020] sm:$0xff]
                  %1488 = vst [vmem:[%s972 + $0x808] sm:$0xff] %v1487
                  %v1489 = vld [vmem:[%s971 + $0x2040] sm:$0xff]
                  %1490 = vst [vmem:[%s972 + $0x810] sm:$0xff] %v1489
                  %v1491 = vld [vmem:[%s971 + $0x2060] sm:$0xff]
                  %1492 = vst [vmem:[%s972 + $0x818] sm:$0xff] %v1491
                  %v1493 = vld [vmem:[%s971 + $0x2080] sm:$0xff]
                  %1494 = vst [vmem:[%s972 + $0x820] sm:$0xff] %v1493
                  %v1495 = vld [vmem:[%s971 + $0x20a0] sm:$0xff]
                  %1496 = vst [vmem:[%s972 + $0x828] sm:$0xff] %v1495
                  %v1497 = vld [vmem:[%s971 + $0x20c0] sm:$0xff]
                  %1498 = vst [vmem:[%s972 + $0x830] sm:$0xff] %v1497
                  %v1499 = vld [vmem:[%s971 + $0x20e0] sm:$0xff]
                  %1500 = vst [vmem:[%s972 + $0x838] sm:$0xff] %v1499
                  %v1501 = vld [vmem:[%s971 + $0x2100] sm:$0xff]
                  %1502 = vst [vmem:[%s972 + $0x840] sm:$0xff] %v1501
                  %v1503 = vld [vmem:[%s971 + $0x2120] sm:$0xff]
                  %1504 = vst [vmem:[%s972 + $0x848] sm:$0xff] %v1503
                  %v1505 = vld [vmem:[%s971 + $0x2140] sm:$0xff]
                  %1506 = vst [vmem:[%s972 + $0x850] sm:$0xff] %v1505
                  %v1507 = vld [vmem:[%s971 + $0x2160] sm:$0xff]
                  %1508 = vst [vmem:[%s972 + $0x858] sm:$0xff] %v1507
                  %v1509 = vld [vmem:[%s971 + $0x2180] sm:$0xff]
                  %1510 = vst [vmem:[%s972 + $0x860] sm:$0xff] %v1509
                  %v1511 = vld [vmem:[%s971 + $0x21a0] sm:$0xff]
                  %1512 = vst [vmem:[%s972 + $0x868] sm:$0xff] %v1511
                  %v1513 = vld [vmem:[%s971 + $0x21c0] sm:$0xff]
                  %1514 = vst [vmem:[%s972 + $0x870] sm:$0xff] %v1513
                  %v1515 = vld [vmem:[%s971 + $0x21e0] sm:$0xff]
                  %1516 = vst [vmem:[%s972 + $0x878] sm:$0xff] %v1515
                  %v1517 = vld [vmem:[%s971 + $0x2200] sm:$0xff]
                  %1518 = vst [vmem:[%s972 + $0x880] sm:$0xff] %v1517
                  %v1519 = vld [vmem:[%s971 + $0x2220] sm:$0xff]
                  %1520 = vst [vmem:[%s972 + $0x888] sm:$0xff] %v1519
                  %v1521 = vld [vmem:[%s971 + $0x2240] sm:$0xff]
                  %1522 = vst [vmem:[%s972 + $0x890] sm:$0xff] %v1521
                  %v1523 = vld [vmem:[%s971 + $0x2260] sm:$0xff]
                  %1524 = vst [vmem:[%s972 + $0x898] sm:$0xff] %v1523
                  %v1525 = vld [vmem:[%s971 + $0x2280] sm:$0xff]
                  %1526 = vst [vmem:[%s972 + $0x8a0] sm:$0xff] %v1525
                  %v1527 = vld [vmem:[%s971 + $0x22a0] sm:$0xff]
                  %1528 = vst [vmem:[%s972 + $0x8a8] sm:$0xff] %v1527
                  %v1529 = vld [vmem:[%s971 + $0x22c0] sm:$0xff]
                  %1530 = vst [vmem:[%s972 + $0x8b0] sm:$0xff] %v1529
                  %v1531 = vld [vmem:[%s971 + $0x22e0] sm:$0xff]
                  %1532 = vst [vmem:[%s972 + $0x8b8] sm:$0xff] %v1531
                  %v1533 = vld [vmem:[%s971 + $0x2300] sm:$0xff]
                  %1534 = vst [vmem:[%s972 + $0x8c0] sm:$0xff] %v1533
                  %v1535 = vld [vmem:[%s971 + $0x2320] sm:$0xff]
                  %1536 = vst [vmem:[%s972 + $0x8c8] sm:$0xff] %v1535
                  %v1537 = vld [vmem:[%s971 + $0x2340] sm:$0xff]
                  %1538 = vst [vmem:[%s972 + $0x8d0] sm:$0xff] %v1537
                  %v1539 = vld [vmem:[%s971 + $0x2360] sm:$0xff]
                  %1540 = vst [vmem:[%s972 + $0x8d8] sm:$0xff] %v1539
                  %v1541 = vld [vmem:[%s971 + $0x2380] sm:$0xff]
                  %1542 = vst [vmem:[%s972 + $0x8e0] sm:$0xff] %v1541
                  %v1543 = vld [vmem:[%s971 + $0x23a0] sm:$0xff]
                  %1544 = vst [vmem:[%s972 + $0x8e8] sm:$0xff] %v1543
                  %v1545 = vld [vmem:[%s971 + $0x23c0] sm:$0xff]
                  %1546 = vst [vmem:[%s972 + $0x8f0] sm:$0xff] %v1545
                  %v1547 = vld [vmem:[%s971 + $0x23e0] sm:$0xff]
                  %1548 = vst [vmem:[%s972 + $0x8f8] sm:$0xff] %v1547
                  %v1549 = vld [vmem:[%s971 + $0x2400] sm:$0xff]
                  %1550 = vst [vmem:[%s972 + $0x900] sm:$0xff] %v1549
                  %v1551 = vld [vmem:[%s971 + $0x2420] sm:$0xff]
                  %1552 = vst [vmem:[%s972 + $0x908] sm:$0xff] %v1551
                  %v1553 = vld [vmem:[%s971 + $0x2440] sm:$0xff]
                  %1554 = vst [vmem:[%s972 + $0x910] sm:$0xff] %v1553
                  %v1555 = vld [vmem:[%s971 + $0x2460] sm:$0xff]
                  %1556 = vst [vmem:[%s972 + $0x918] sm:$0xff] %v1555
                  %v1557 = vld [vmem:[%s971 + $0x2480] sm:$0xff]
                  %1558 = vst [vmem:[%s972 + $0x920] sm:$0xff] %v1557
                  %v1559 = vld [vmem:[%s971 + $0x24a0] sm:$0xff]
                  %1560 = vst [vmem:[%s972 + $0x928] sm:$0xff] %v1559
                  %v1561 = vld [vmem:[%s971 + $0x24c0] sm:$0xff]
                  %1562 = vst [vmem:[%s972 + $0x930] sm:$0xff] %v1561
                  %v1563 = vld [vmem:[%s971 + $0x24e0] sm:$0xff]
                  %1564 = vst [vmem:[%s972 + $0x938] sm:$0xff] %v1563
                  %v1565 = vld [vmem:[%s971 + $0x2500] sm:$0xff]
                  %1566 = vst [vmem:[%s972 + $0x940] sm:$0xff] %v1565
                  %v1567 = vld [vmem:[%s971 + $0x2520] sm:$0xff]
                  %1568 = vst [vmem:[%s972 + $0x948] sm:$0xff] %v1567
                  %v1569 = vld [vmem:[%s971 + $0x2540] sm:$0xff]
                  %1570 = vst [vmem:[%s972 + $0x950] sm:$0xff] %v1569
                  %v1571 = vld [vmem:[%s971 + $0x2560] sm:$0xff]
                  %1572 = vst [vmem:[%s972 + $0x958] sm:$0xff] %v1571
                  %v1573 = vld [vmem:[%s971 + $0x2580] sm:$0xff]
                  %1574 = vst [vmem:[%s972 + $0x960] sm:$0xff] %v1573
                  %v1575 = vld [vmem:[%s971 + $0x25a0] sm:$0xff]
                  %1576 = vst [vmem:[%s972 + $0x968] sm:$0xff] %v1575
                  %v1577 = vld [vmem:[%s971 + $0x25c0] sm:$0xff]
                  %1578 = vst [vmem:[%s972 + $0x970] sm:$0xff] %v1577
                  %v1579 = vld [vmem:[%s971 + $0x25e0] sm:$0xff]
                  %1580 = vst [vmem:[%s972 + $0x978] sm:$0xff] %v1579
                  %v1581 = vld [vmem:[%s971 + $0x2600] sm:$0xff]
                  %1582 = vst [vmem:[%s972 + $0x980] sm:$0xff] %v1581
                  %v1583 = vld [vmem:[%s971 + $0x2620] sm:$0xff]
                  %1584 = vst [vmem:[%s972 + $0x988] sm:$0xff] %v1583
                  %v1585 = vld [vmem:[%s971 + $0x2640] sm:$0xff]
                  %1586 = vst [vmem:[%s972 + $0x990] sm:$0xff] %v1585
                  %v1587 = vld [vmem:[%s971 + $0x2660] sm:$0xff]
                  %1588 = vst [vmem:[%s972 + $0x998] sm:$0xff] %v1587
                  %v1589 = vld [vmem:[%s971 + $0x2680] sm:$0xff]
                  %1590 = vst [vmem:[%s972 + $0x9a0] sm:$0xff] %v1589
                  %v1591 = vld [vmem:[%s971 + $0x26a0] sm:$0xff]
                  %1592 = vst [vmem:[%s972 + $0x9a8] sm:$0xff] %v1591
                  %v1593 = vld [vmem:[%s971 + $0x26c0] sm:$0xff]
                  %1594 = vst [vmem:[%s972 + $0x9b0] sm:$0xff] %v1593
                  %v1595 = vld [vmem:[%s971 + $0x26e0] sm:$0xff]
                  %1596 = vst [vmem:[%s972 + $0x9b8] sm:$0xff] %v1595
                  %v1597 = vld [vmem:[%s971 + $0x2700] sm:$0xff]
                  %1598 = vst [vmem:[%s972 + $0x9c0] sm:$0xff] %v1597
                  %v1599 = vld [vmem:[%s971 + $0x2720] sm:$0xff]
                  %1600 = vst [vmem:[%s972 + $0x9c8] sm:$0xff] %v1599
                  %v1601 = vld [vmem:[%s971 + $0x2740] sm:$0xff]
                  %1602 = vst [vmem:[%s972 + $0x9d0] sm:$0xff] %v1601
                  %v1603 = vld [vmem:[%s971 + $0x2760] sm:$0xff]
                  %1604 = vst [vmem:[%s972 + $0x9d8] sm:$0xff] %v1603
                  %v1605 = vld [vmem:[%s971 + $0x2780] sm:$0xff]
                  %1606 = vst [vmem:[%s972 + $0x9e0] sm:$0xff] %v1605
                  %v1607 = vld [vmem:[%s971 + $0x27a0] sm:$0xff]
                  %1608 = vst [vmem:[%s972 + $0x9e8] sm:$0xff] %v1607
                  %v1609 = vld [vmem:[%s971 + $0x27c0] sm:$0xff]
                  %1610 = vst [vmem:[%s972 + $0x9f0] sm:$0xff] %v1609
                  %v1611 = vld [vmem:[%s971 + $0x27e0] sm:$0xff]
                  %1612 = vst [vmem:[%s972 + $0x9f8] sm:$0xff] %v1611
                  %v1613 = vld [vmem:[%s971 + $0x2800] sm:$0xff]
                  %1614 = vst [vmem:[%s972 + $0xa00] sm:$0xff] %v1613
                  %v1615 = vld [vmem:[%s971 + $0x2820] sm:$0xff]
                  %1616 = vst [vmem:[%s972 + $0xa08] sm:$0xff] %v1615
                  %v1617 = vld [vmem:[%s971 + $0x2840] sm:$0xff]
                  %1618 = vst [vmem:[%s972 + $0xa10] sm:$0xff] %v1617
                  %v1619 = vld [vmem:[%s971 + $0x2860] sm:$0xff]
                  %1620 = vst [vmem:[%s972 + $0xa18] sm:$0xff] %v1619
                  %v1621 = vld [vmem:[%s971 + $0x2880] sm:$0xff]
                  %1622 = vst [vmem:[%s972 + $0xa20] sm:$0xff] %v1621
                  %v1623 = vld [vmem:[%s971 + $0x28a0] sm:$0xff]
                  %1624 = vst [vmem:[%s972 + $0xa28] sm:$0xff] %v1623
                  %v1625 = vld [vmem:[%s971 + $0x28c0] sm:$0xff]
                  %1626 = vst [vmem:[%s972 + $0xa30] sm:$0xff] %v1625
                  %v1627 = vld [vmem:[%s971 + $0x28e0] sm:$0xff]
                  %1628 = vst [vmem:[%s972 + $0xa38] sm:$0xff] %v1627
                  %v1629 = vld [vmem:[%s971 + $0x2900] sm:$0xff]
                  %1630 = vst [vmem:[%s972 + $0xa40] sm:$0xff] %v1629
                  %v1631 = vld [vmem:[%s971 + $0x2920] sm:$0xff]
                  %1632 = vst [vmem:[%s972 + $0xa48] sm:$0xff] %v1631
                  %v1633 = vld [vmem:[%s971 + $0x2940] sm:$0xff]
                  %1634 = vst [vmem:[%s972 + $0xa50] sm:$0xff] %v1633
                  %v1635 = vld [vmem:[%s971 + $0x2960] sm:$0xff]
                  %1636 = vst [vmem:[%s972 + $0xa58] sm:$0xff] %v1635
                  %v1637 = vld [vmem:[%s971 + $0x2980] sm:$0xff]
                  %1638 = vst [vmem:[%s972 + $0xa60] sm:$0xff] %v1637
                  %v1639 = vld [vmem:[%s971 + $0x29a0] sm:$0xff]
                  %1640 = vst [vmem:[%s972 + $0xa68] sm:$0xff] %v1639
                  %v1641 = vld [vmem:[%s971 + $0x29c0] sm:$0xff]
                  %1642 = vst [vmem:[%s972 + $0xa70] sm:$0xff] %v1641
                  %v1643 = vld [vmem:[%s971 + $0x29e0] sm:$0xff]
                  %1644 = vst [vmem:[%s972 + $0xa78] sm:$0xff] %v1643
                  %v1645 = vld [vmem:[%s971 + $0x2a00] sm:$0xff]
                  %1646 = vst [vmem:[%s972 + $0xa80] sm:$0xff] %v1645
                  %v1647 = vld [vmem:[%s971 + $0x2a20] sm:$0xff]
                  %1648 = vst [vmem:[%s972 + $0xa88] sm:$0xff] %v1647
                  %v1649 = vld [vmem:[%s971 + $0x2a40] sm:$0xff]
                  %1650 = vst [vmem:[%s972 + $0xa90] sm:$0xff] %v1649
                  %v1651 = vld [vmem:[%s971 + $0x2a60] sm:$0xff]
                  %1652 = vst [vmem:[%s972 + $0xa98] sm:$0xff] %v1651
                  %v1653 = vld [vmem:[%s971 + $0x2a80] sm:$0xff]
                  %1654 = vst [vmem:[%s972 + $0xaa0] sm:$0xff] %v1653
                  %v1655 = vld [vmem:[%s971 + $0x2aa0] sm:$0xff]
                  %1656 = vst [vmem:[%s972 + $0xaa8] sm:$0xff] %v1655
                  %v1657 = vld [vmem:[%s971 + $0x2ac0] sm:$0xff]
                  %1658 = vst [vmem:[%s972 + $0xab0] sm:$0xff] %v1657
                  %v1659 = vld [vmem:[%s971 + $0x2ae0] sm:$0xff]
                  %1660 = vst [vmem:[%s972 + $0xab8] sm:$0xff] %v1659
                  %v1661 = vld [vmem:[%s971 + $0x2b00] sm:$0xff]
                  %1662 = vst [vmem:[%s972 + $0xac0] sm:$0xff] %v1661
                  %v1663 = vld [vmem:[%s971 + $0x2b20] sm:$0xff]
                  %1664 = vst [vmem:[%s972 + $0xac8] sm:$0xff] %v1663
                  %v1665 = vld [vmem:[%s971 + $0x2b40] sm:$0xff]
                  %1666 = vst [vmem:[%s972 + $0xad0] sm:$0xff] %v1665
                  %v1667 = vld [vmem:[%s971 + $0x2b60] sm:$0xff]
                  %1668 = vst [vmem:[%s972 + $0xad8] sm:$0xff] %v1667
                  %v1669 = vld [vmem:[%s971 + $0x2b80] sm:$0xff]
                  %1670 = vst [vmem:[%s972 + $0xae0] sm:$0xff] %v1669
                  %v1671 = vld [vmem:[%s971 + $0x2ba0] sm:$0xff]
                  %1672 = vst [vmem:[%s972 + $0xae8] sm:$0xff] %v1671
                  %v1673 = vld [vmem:[%s971 + $0x2bc0] sm:$0xff]
                  %1674 = vst [vmem:[%s972 + $0xaf0] sm:$0xff] %v1673
                  %v1675 = vld [vmem:[%s971 + $0x2be0] sm:$0xff]
                  %1676 = vst [vmem:[%s972 + $0xaf8] sm:$0xff] %v1675
                  %v1677 = vld [vmem:[%s971 + $0x2c00] sm:$0xff]
                  %1678 = vst [vmem:[%s972 + $0xb00] sm:$0xff] %v1677
                  %v1679 = vld [vmem:[%s971 + $0x2c20] sm:$0xff]
                  %1680 = vst [vmem:[%s972 + $0xb08] sm:$0xff] %v1679
                  %v1681 = vld [vmem:[%s971 + $0x2c40] sm:$0xff]
                  %1682 = vst [vmem:[%s972 + $0xb10] sm:$0xff] %v1681
                  %v1683 = vld [vmem:[%s971 + $0x2c60] sm:$0xff]
                  %1684 = vst [vmem:[%s972 + $0xb18] sm:$0xff] %v1683
                  %v1685 = vld [vmem:[%s971 + $0x2c80] sm:$0xff]
                  %1686 = vst [vmem:[%s972 + $0xb20] sm:$0xff] %v1685
                  %v1687 = vld [vmem:[%s971 + $0x2ca0] sm:$0xff]
                  %1688 = vst [vmem:[%s972 + $0xb28] sm:$0xff] %v1687
                  %v1689 = vld [vmem:[%s971 + $0x2cc0] sm:$0xff]
                  %1690 = vst [vmem:[%s972 + $0xb30] sm:$0xff] %v1689
                  %v1691 = vld [vmem:[%s971 + $0x2ce0] sm:$0xff]
                  %1692 = vst [vmem:[%s972 + $0xb38] sm:$0xff] %v1691
                  %v1693 = vld [vmem:[%s971 + $0x2d00] sm:$0xff]
                  %1694 = vst [vmem:[%s972 + $0xb40] sm:$0xff] %v1693
                  %v1695 = vld [vmem:[%s971 + $0x2d20] sm:$0xff]
                  %1696 = vst [vmem:[%s972 + $0xb48] sm:$0xff] %v1695
                  %v1697 = vld [vmem:[%s971 + $0x2d40] sm:$0xff]
                  %1698 = vst [vmem:[%s972 + $0xb50] sm:$0xff] %v1697
                  %v1699 = vld [vmem:[%s971 + $0x2d60] sm:$0xff]
                  %1700 = vst [vmem:[%s972 + $0xb58] sm:$0xff] %v1699
                  %v1701 = vld [vmem:[%s971 + $0x2d80] sm:$0xff]
                  %1702 = vst [vmem:[%s972 + $0xb60] sm:$0xff] %v1701
                  %v1703 = vld [vmem:[%s971 + $0x2da0] sm:$0xff]
                  %1704 = vst [vmem:[%s972 + $0xb68] sm:$0xff] %v1703
                  %v1705 = vld [vmem:[%s971 + $0x2dc0] sm:$0xff]
                  %1706 = vst [vmem:[%s972 + $0xb70] sm:$0xff] %v1705
                  %v1707 = vld [vmem:[%s971 + $0x2de0] sm:$0xff]
                  %1708 = vst [vmem:[%s972 + $0xb78] sm:$0xff] %v1707
                  %v1709 = vld [vmem:[%s971 + $0x2e00] sm:$0xff]
                  %1710 = vst [vmem:[%s972 + $0xb80] sm:$0xff] %v1709
                  %v1711 = vld [vmem:[%s971 + $0x2e20] sm:$0xff]
                  %1712 = vst [vmem:[%s972 + $0xb88] sm:$0xff] %v1711
                  %v1713 = vld [vmem:[%s971 + $0x2e40] sm:$0xff]
                  %1714 = vst [vmem:[%s972 + $0xb90] sm:$0xff] %v1713
                  %v1715 = vld [vmem:[%s971 + $0x2e60] sm:$0xff]
                  %1716 = vst [vmem:[%s972 + $0xb98] sm:$0xff] %v1715
                  %v1717 = vld [vmem:[%s971 + $0x2e80] sm:$0xff]
                  %1718 = vst [vmem:[%s972 + $0xba0] sm:$0xff] %v1717
                  %v1719 = vld [vmem:[%s971 + $0x2ea0] sm:$0xff]
                  %1720 = vst [vmem:[%s972 + $0xba8] sm:$0xff] %v1719
                  %v1721 = vld [vmem:[%s971 + $0x2ec0] sm:$0xff]
                  %1722 = vst [vmem:[%s972 + $0xbb0] sm:$0xff] %v1721
                  %v1723 = vld [vmem:[%s971 + $0x2ee0] sm:$0xff]
                  %1724 = vst [vmem:[%s972 + $0xbb8] sm:$0xff] %v1723
                  %v1725 = vld [vmem:[%s971 + $0x2f00] sm:$0xff]
                  %1726 = vst [vmem:[%s972 + $0xbc0] sm:$0xff] %v1725
                  %v1727 = vld [vmem:[%s971 + $0x2f20] sm:$0xff]
                  %1728 = vst [vmem:[%s972 + $0xbc8] sm:$0xff] %v1727
                  %v1729 = vld [vmem:[%s971 + $0x2f40] sm:$0xff]
                  %1730 = vst [vmem:[%s972 + $0xbd0] sm:$0xff] %v1729
                  %v1731 = vld [vmem:[%s971 + $0x2f60] sm:$0xff]
                  %1732 = vst [vmem:[%s972 + $0xbd8] sm:$0xff] %v1731
                  %v1733 = vld [vmem:[%s971 + $0x2f80] sm:$0xff]
                  %1734 = vst [vmem:[%s972 + $0xbe0] sm:$0xff] %v1733
                  %v1735 = vld [vmem:[%s971 + $0x2fa0] sm:$0xff]
                  %1736 = vst [vmem:[%s972 + $0xbe8] sm:$0xff] %v1735
                  %v1737 = vld [vmem:[%s971 + $0x2fc0] sm:$0xff]
                  %1738 = vst [vmem:[%s972 + $0xbf0] sm:$0xff] %v1737
                  %v1739 = vld [vmem:[%s971 + $0x2fe0] sm:$0xff]
                  %1740 = vst [vmem:[%s972 + $0xbf8] sm:$0xff] %v1739
                  %v1741 = vld [vmem:[%s971 + $0x3000] sm:$0xff]
                  %1742 = vst [vmem:[%s972 + $0xc00] sm:$0xff] %v1741
                  %v1743 = vld [vmem:[%s971 + $0x3020] sm:$0xff]
                  %1744 = vst [vmem:[%s972 + $0xc08] sm:$0xff] %v1743
                  %v1745 = vld [vmem:[%s971 + $0x3040] sm:$0xff]
                  %1746 = vst [vmem:[%s972 + $0xc10] sm:$0xff] %v1745
                  %v1747 = vld [vmem:[%s971 + $0x3060] sm:$0xff]
                  %1748 = vst [vmem:[%s972 + $0xc18] sm:$0xff] %v1747
                  %v1749 = vld [vmem:[%s971 + $0x3080] sm:$0xff]
                  %1750 = vst [vmem:[%s972 + $0xc20] sm:$0xff] %v1749
                  %v1751 = vld [vmem:[%s971 + $0x30a0] sm:$0xff]
                  %1752 = vst [vmem:[%s972 + $0xc28] sm:$0xff] %v1751
                  %v1753 = vld [vmem:[%s971 + $0x30c0] sm:$0xff]
                  %1754 = vst [vmem:[%s972 + $0xc30] sm:$0xff] %v1753
                  %v1755 = vld [vmem:[%s971 + $0x30e0] sm:$0xff]
                  %1756 = vst [vmem:[%s972 + $0xc38] sm:$0xff] %v1755
                $region52: #{dueling_dqn_forward.8} parent=46 // loop_footer
                  %s970 = sadd.s32 1, %s966
                $region53: #{dueling_dqn_forward.8} parent=46 // loop_footer_branch
                  %965 = sbr.rel target = $region49
                $region54: #{dueling_dqn_forward.8} parent=46 // loop_exit
                  _
              $region47: #{dueling_dqn_forward.8} parent=31 // pred_fallthru
                _
              // Predicated region
              $region55: #{dueling_dqn_forward.8} parent=31 // pred_check
                _
              $region56: #{dueling_dqn_forward.8} parent=31 // pred_check_branch
                %1758 = sbr.rel target = $region58
              $region57: #{dueling_dqn_forward.8} parent=31 // pred_region
                _
              $region58: #{dueling_dqn_forward.8} parent=31 // pred_fallthru
                _
            $region32: #{dueling_dqn_forward.8} parent=27 // pred_fallthru
              _
            // Predicated region
            $region33: #{dueling_dqn_forward.8} parent=27 // pred_check
              _
            $region34: #{dueling_dqn_forward.8} parent=27 // pred_check_branch
              %169 = sbr.rel target = $region36
            $region35: #{dueling_dqn_forward.8} parent=27 // pred_region
              loop: start=0, step=1, limit=1
              $region37: #{dueling_dqn_forward.8} parent=35 // loop_pre_header
                _
              $region38: #{dueling_dqn_forward.8} parent=35 // loop_header
                %s172 = sphi 0, %s176
                %p173 = scmp.ge.s32.totalorder %s172, 1
                %s177 = sphi %s163, %s163
                %s178 = sphi %s160, %s160
              $region39: #{dueling_dqn_forward.8} parent=35 // loop_header_branch
                %175 = sbr.rel (%p173) target = $region43
              $region40: #{dueling_dqn_forward.8} parent=35 // loop_body
                %v179 = vld [vmem:[%s177] sm:$0xff]
                %180 = vst [vmem:[%s178] sm:$0xff] %v179
                %v181 = vld [vmem:[%s177 + $0x20] sm:$0xff]
                %182 = vst [vmem:[%s178 + $0x8] sm:$0xff] %v181
                %v183 = vld [vmem:[%s177 + $0x40] sm:$0xff]
                %184 = vst [vmem:[%s178 + $0x10] sm:$0xff] %v183
                %v185 = vld [vmem:[%s177 + $0x60] sm:$0xff]
                %186 = vst [vmem:[%s178 + $0x18] sm:$0xff] %v185
                %v187 = vld [vmem:[%s177 + $0x80] sm:$0xff]
                %188 = vst [vmem:[%s178 + $0x20] sm:$0xff] %v187
                %v189 = vld [vmem:[%s177 + $0xa0] sm:$0xff]
                %190 = vst [vmem:[%s178 + $0x28] sm:$0xff] %v189
                %v191 = vld [vmem:[%s177 + $0xc0] sm:$0xff]
                %192 = vst [vmem:[%s178 + $0x30] sm:$0xff] %v191
                %v193 = vld [vmem:[%s177 + $0xe0] sm:$0xff]
                %194 = vst [vmem:[%s178 + $0x38] sm:$0xff] %v193
                %v195 = vld [vmem:[%s177 + $0x100] sm:$0xff]
                %196 = vst [vmem:[%s178 + $0x40] sm:$0xff] %v195
                %v197 = vld [vmem:[%s177 + $0x120] sm:$0xff]
                %198 = vst [vmem:[%s178 + $0x48] sm:$0xff] %v197
                %v199 = vld [vmem:[%s177 + $0x140] sm:$0xff]
                %200 = vst [vmem:[%s178 + $0x50] sm:$0xff] %v199
                %v201 = vld [vmem:[%s177 + $0x160] sm:$0xff]
                %202 = vst [vmem:[%s178 + $0x58] sm:$0xff] %v201
                %v203 = vld [vmem:[%s177 + $0x180] sm:$0xff]
                %204 = vst [vmem:[%s178 + $0x60] sm:$0xff] %v203
                %v205 = vld [vmem:[%s177 + $0x1a0] sm:$0xff]
                %206 = vst [vmem:[%s178 + $0x68] sm:$0xff] %v205
                %v207 = vld [vmem:[%s177 + $0x1c0] sm:$0xff]
                %208 = vst [vmem:[%s178 + $0x70] sm:$0xff] %v207
                %v209 = vld [vmem:[%s177 + $0x1e0] sm:$0xff]
                %210 = vst [vmem:[%s178 + $0x78] sm:$0xff] %v209
                %v211 = vld [vmem:[%s177 + $0x200] sm:$0xff]
                %212 = vst [vmem:[%s178 + $0x80] sm:$0xff] %v211
                %v213 = vld [vmem:[%s177 + $0x220] sm:$0xff]
                %214 = vst [vmem:[%s178 + $0x88] sm:$0xff] %v213
                %v215 = vld [vmem:[%s177 + $0x240] sm:$0xff]
                %216 = vst [vmem:[%s178 + $0x90] sm:$0xff] %v215
                %v217 = vld [vmem:[%s177 + $0x260] sm:$0xff]
                %218 = vst [vmem:[%s178 + $0x98] sm:$0xff] %v217
                %v219 = vld [vmem:[%s177 + $0x280] sm:$0xff]
                %220 = vst [vmem:[%s178 + $0xa0] sm:$0xff] %v219
                %v221 = vld [vmem:[%s177 + $0x2a0] sm:$0xff]
                %222 = vst [vmem:[%s178 + $0xa8] sm:$0xff] %v221
                %v223 = vld [vmem:[%s177 + $0x2c0] sm:$0xff]
                %224 = vst [vmem:[%s178 + $0xb0] sm:$0xff] %v223
                %v225 = vld [vmem:[%s177 + $0x2e0] sm:$0xff]
                %226 = vst [vmem:[%s178 + $0xb8] sm:$0xff] %v225
                %v227 = vld [vmem:[%s177 + $0x300] sm:$0xff]
                %228 = vst [vmem:[%s178 + $0xc0] sm:$0xff] %v227
                %v229 = vld [vmem:[%s177 + $0x320] sm:$0xff]
                %230 = vst [vmem:[%s178 + $0xc8] sm:$0xff] %v229
                %v231 = vld [vmem:[%s177 + $0x340] sm:$0xff]
                %232 = vst [vmem:[%s178 + $0xd0] sm:$0xff] %v231
                %v233 = vld [vmem:[%s177 + $0x360] sm:$0xff]
                %234 = vst [vmem:[%s178 + $0xd8] sm:$0xff] %v233
                %v235 = vld [vmem:[%s177 + $0x380] sm:$0xff]
                %236 = vst [vmem:[%s178 + $0xe0] sm:$0xff] %v235
                %v237 = vld [vmem:[%s177 + $0x3a0] sm:$0xff]
                %238 = vst [vmem:[%s178 + $0xe8] sm:$0xff] %v237
                %v239 = vld [vmem:[%s177 + $0x3c0] sm:$0xff]
                %240 = vst [vmem:[%s178 + $0xf0] sm:$0xff] %v239
                %v241 = vld [vmem:[%s177 + $0x3e0] sm:$0xff]
                %242 = vst [vmem:[%s178 + $0xf8] sm:$0xff] %v241
                %v243 = vld [vmem:[%s177 + $0x400] sm:$0xff]
                %244 = vst [vmem:[%s178 + $0x100] sm:$0xff] %v243
                %v245 = vld [vmem:[%s177 + $0x420] sm:$0xff]
                %246 = vst [vmem:[%s178 + $0x108] sm:$0xff] %v245
                %v247 = vld [vmem:[%s177 + $0x440] sm:$0xff]
                %248 = vst [vmem:[%s178 + $0x110] sm:$0xff] %v247
                %v249 = vld [vmem:[%s177 + $0x460] sm:$0xff]
                %250 = vst [vmem:[%s178 + $0x118] sm:$0xff] %v249
                %v251 = vld [vmem:[%s177 + $0x480] sm:$0xff]
                %252 = vst [vmem:[%s178 + $0x120] sm:$0xff] %v251
                %v253 = vld [vmem:[%s177 + $0x4a0] sm:$0xff]
                %254 = vst [vmem:[%s178 + $0x128] sm:$0xff] %v253
                %v255 = vld [vmem:[%s177 + $0x4c0] sm:$0xff]
                %256 = vst [vmem:[%s178 + $0x130] sm:$0xff] %v255
                %v257 = vld [vmem:[%s177 + $0x4e0] sm:$0xff]
                %258 = vst [vmem:[%s178 + $0x138] sm:$0xff] %v257
                %v259 = vld [vmem:[%s177 + $0x500] sm:$0xff]
                %260 = vst [vmem:[%s178 + $0x140] sm:$0xff] %v259
                %v261 = vld [vmem:[%s177 + $0x520] sm:$0xff]
                %262 = vst [vmem:[%s178 + $0x148] sm:$0xff] %v261
                %v263 = vld [vmem:[%s177 + $0x540] sm:$0xff]
                %264 = vst [vmem:[%s178 + $0x150] sm:$0xff] %v263
                %v265 = vld [vmem:[%s177 + $0x560] sm:$0xff]
                %266 = vst [vmem:[%s178 + $0x158] sm:$0xff] %v265
                %v267 = vld [vmem:[%s177 + $0x580] sm:$0xff]
                %268 = vst [vmem:[%s178 + $0x160] sm:$0xff] %v267
                %v269 = vld [vmem:[%s177 + $0x5a0] sm:$0xff]
                %270 = vst [vmem:[%s178 + $0x168] sm:$0xff] %v269
                %v271 = vld [vmem:[%s177 + $0x5c0] sm:$0xff]
                %272 = vst [vmem:[%s178 + $0x170] sm:$0xff] %v271
                %v273 = vld [vmem:[%s177 + $0x5e0] sm:$0xff]
                %274 = vst [vmem:[%s178 + $0x178] sm:$0xff] %v273
                %v275 = vld [vmem:[%s177 + $0x600] sm:$0xff]
                %276 = vst [vmem:[%s178 + $0x180] sm:$0xff] %v275
                %v277 = vld [vmem:[%s177 + $0x620] sm:$0xff]
                %278 = vst [vmem:[%s178 + $0x188] sm:$0xff] %v277
                %v279 = vld [vmem:[%s177 + $0x640] sm:$0xff]
                %280 = vst [vmem:[%s178 + $0x190] sm:$0xff] %v279
                %v281 = vld [vmem:[%s177 + $0x660] sm:$0xff]
                %282 = vst [vmem:[%s178 + $0x198] sm:$0xff] %v281
                %v283 = vld [vmem:[%s177 + $0x680] sm:$0xff]
                %284 = vst [vmem:[%s178 + $0x1a0] sm:$0xff] %v283
                %v285 = vld [vmem:[%s177 + $0x6a0] sm:$0xff]
                %286 = vst [vmem:[%s178 + $0x1a8] sm:$0xff] %v285
                %v287 = vld [vmem:[%s177 + $0x6c0] sm:$0xff]
                %288 = vst [vmem:[%s178 + $0x1b0] sm:$0xff] %v287
                %v289 = vld [vmem:[%s177 + $0x6e0] sm:$0xff]
                %290 = vst [vmem:[%s178 + $0x1b8] sm:$0xff] %v289
                %v291 = vld [vmem:[%s177 + $0x700] sm:$0xff]
                %292 = vst [vmem:[%s178 + $0x1c0] sm:$0xff] %v291
                %v293 = vld [vmem:[%s177 + $0x720] sm:$0xff]
                %294 = vst [vmem:[%s178 + $0x1c8] sm:$0xff] %v293
                %v295 = vld [vmem:[%s177 + $0x740] sm:$0xff]
                %296 = vst [vmem:[%s178 + $0x1d0] sm:$0xff] %v295
                %v297 = vld [vmem:[%s177 + $0x760] sm:$0xff]
                %298 = vst [vmem:[%s178 + $0x1d8] sm:$0xff] %v297
                %v299 = vld [vmem:[%s177 + $0x780] sm:$0xff]
                %300 = vst [vmem:[%s178 + $0x1e0] sm:$0xff] %v299
                %v301 = vld [vmem:[%s177 + $0x7a0] sm:$0xff]
                %302 = vst [vmem:[%s178 + $0x1e8] sm:$0xff] %v301
                %v303 = vld [vmem:[%s177 + $0x7c0] sm:$0xff]
                %304 = vst [vmem:[%s178 + $0x1f0] sm:$0xff] %v303
                %v305 = vld [vmem:[%s177 + $0x7e0] sm:$0xff]
                %306 = vst [vmem:[%s178 + $0x1f8] sm:$0xff] %v305
                %v307 = vld [vmem:[%s177 + $0x800] sm:$0xff]
                %308 = vst [vmem:[%s178 + $0x200] sm:$0xff] %v307
                %v309 = vld [vmem:[%s177 + $0x820] sm:$0xff]
                %310 = vst [vmem:[%s178 + $0x208] sm:$0xff] %v309
                %v311 = vld [vmem:[%s177 + $0x840] sm:$0xff]
                %312 = vst [vmem:[%s178 + $0x210] sm:$0xff] %v311
                %v313 = vld [vmem:[%s177 + $0x860] sm:$0xff]
                %314 = vst [vmem:[%s178 + $0x218] sm:$0xff] %v313
                %v315 = vld [vmem:[%s177 + $0x880] sm:$0xff]
                %316 = vst [vmem:[%s178 + $0x220] sm:$0xff] %v315
                %v317 = vld [vmem:[%s177 + $0x8a0] sm:$0xff]
                %318 = vst [vmem:[%s178 + $0x228] sm:$0xff] %v317
                %v319 = vld [vmem:[%s177 + $0x8c0] sm:$0xff]
                %320 = vst [vmem:[%s178 + $0x230] sm:$0xff] %v319
                %v321 = vld [vmem:[%s177 + $0x8e0] sm:$0xff]
                %322 = vst [vmem:[%s178 + $0x238] sm:$0xff] %v321
                %v323 = vld [vmem:[%s177 + $0x900] sm:$0xff]
                %324 = vst [vmem:[%s178 + $0x240] sm:$0xff] %v323
                %v325 = vld [vmem:[%s177 + $0x920] sm:$0xff]
                %326 = vst [vmem:[%s178 + $0x248] sm:$0xff] %v325
                %v327 = vld [vmem:[%s177 + $0x940] sm:$0xff]
                %328 = vst [vmem:[%s178 + $0x250] sm:$0xff] %v327
                %v329 = vld [vmem:[%s177 + $0x960] sm:$0xff]
                %330 = vst [vmem:[%s178 + $0x258] sm:$0xff] %v329
                %v331 = vld [vmem:[%s177 + $0x980] sm:$0xff]
                %332 = vst [vmem:[%s178 + $0x260] sm:$0xff] %v331
                %v333 = vld [vmem:[%s177 + $0x9a0] sm:$0xff]
                %334 = vst [vmem:[%s178 + $0x268] sm:$0xff] %v333
                %v335 = vld [vmem:[%s177 + $0x9c0] sm:$0xff]
                %336 = vst [vmem:[%s178 + $0x270] sm:$0xff] %v335
                %v337 = vld [vmem:[%s177 + $0x9e0] sm:$0xff]
                %338 = vst [vmem:[%s178 + $0x278] sm:$0xff] %v337
                %v339 = vld [vmem:[%s177 + $0xa00] sm:$0xff]
                %340 = vst [vmem:[%s178 + $0x280] sm:$0xff] %v339
                %v341 = vld [vmem:[%s177 + $0xa20] sm:$0xff]
                %342 = vst [vmem:[%s178 + $0x288] sm:$0xff] %v341
                %v343 = vld [vmem:[%s177 + $0xa40] sm:$0xff]
                %344 = vst [vmem:[%s178 + $0x290] sm:$0xff] %v343
                %v345 = vld [vmem:[%s177 + $0xa60] sm:$0xff]
                %346 = vst [vmem:[%s178 + $0x298] sm:$0xff] %v345
                %v347 = vld [vmem:[%s177 + $0xa80] sm:$0xff]
                %348 = vst [vmem:[%s178 + $0x2a0] sm:$0xff] %v347
                %v349 = vld [vmem:[%s177 + $0xaa0] sm:$0xff]
                %350 = vst [vmem:[%s178 + $0x2a8] sm:$0xff] %v349
                %v351 = vld [vmem:[%s177 + $0xac0] sm:$0xff]
                %352 = vst [vmem:[%s178 + $0x2b0] sm:$0xff] %v351
                %v353 = vld [vmem:[%s177 + $0xae0] sm:$0xff]
                %354 = vst [vmem:[%s178 + $0x2b8] sm:$0xff] %v353
                %v355 = vld [vmem:[%s177 + $0xb00] sm:$0xff]
                %356 = vst [vmem:[%s178 + $0x2c0] sm:$0xff] %v355
                %v357 = vld [vmem:[%s177 + $0xb20] sm:$0xff]
                %358 = vst [vmem:[%s178 + $0x2c8] sm:$0xff] %v357
                %v359 = vld [vmem:[%s177 + $0xb40] sm:$0xff]
                %360 = vst [vmem:[%s178 + $0x2d0] sm:$0xff] %v359
                %v361 = vld [vmem:[%s177 + $0xb60] sm:$0xff]
                %362 = vst [vmem:[%s178 + $0x2d8] sm:$0xff] %v361
                %v363 = vld [vmem:[%s177 + $0xb80] sm:$0xff]
                %364 = vst [vmem:[%s178 + $0x2e0] sm:$0xff] %v363
                %v365 = vld [vmem:[%s177 + $0xba0] sm:$0xff]
                %366 = vst [vmem:[%s178 + $0x2e8] sm:$0xff] %v365
                %v367 = vld [vmem:[%s177 + $0xbc0] sm:$0xff]
                %368 = vst [vmem:[%s178 + $0x2f0] sm:$0xff] %v367
                %v369 = vld [vmem:[%s177 + $0xbe0] sm:$0xff]
                %370 = vst [vmem:[%s178 + $0x2f8] sm:$0xff] %v369
                %v371 = vld [vmem:[%s177 + $0xc00] sm:$0xff]
                %372 = vst [vmem:[%s178 + $0x300] sm:$0xff] %v371
                %v373 = vld [vmem:[%s177 + $0xc20] sm:$0xff]
                %374 = vst [vmem:[%s178 + $0x308] sm:$0xff] %v373
                %v375 = vld [vmem:[%s177 + $0xc40] sm:$0xff]
                %376 = vst [vmem:[%s178 + $0x310] sm:$0xff] %v375
                %v377 = vld [vmem:[%s177 + $0xc60] sm:$0xff]
                %378 = vst [vmem:[%s178 + $0x318] sm:$0xff] %v377
                %v379 = vld [vmem:[%s177 + $0xc80] sm:$0xff]
                %380 = vst [vmem:[%s178 + $0x320] sm:$0xff] %v379
                %v381 = vld [vmem:[%s177 + $0xca0] sm:$0xff]
                %382 = vst [vmem:[%s178 + $0x328] sm:$0xff] %v381
                %v383 = vld [vmem:[%s177 + $0xcc0] sm:$0xff]
                %384 = vst [vmem:[%s178 + $0x330] sm:$0xff] %v383
                %v385 = vld [vmem:[%s177 + $0xce0] sm:$0xff]
                %386 = vst [vmem:[%s178 + $0x338] sm:$0xff] %v385
                %v387 = vld [vmem:[%s177 + $0xd00] sm:$0xff]
                %388 = vst [vmem:[%s178 + $0x340] sm:$0xff] %v387
                %v389 = vld [vmem:[%s177 + $0xd20] sm:$0xff]
                %390 = vst [vmem:[%s178 + $0x348] sm:$0xff] %v389
                %v391 = vld [vmem:[%s177 + $0xd40] sm:$0xff]
                %392 = vst [vmem:[%s178 + $0x350] sm:$0xff] %v391
                %v393 = vld [vmem:[%s177 + $0xd60] sm:$0xff]
                %394 = vst [vmem:[%s178 + $0x358] sm:$0xff] %v393
                %v395 = vld [vmem:[%s177 + $0xd80] sm:$0xff]
                %396 = vst [vmem:[%s178 + $0x360] sm:$0xff] %v395
                %v397 = vld [vmem:[%s177 + $0xda0] sm:$0xff]
                %398 = vst [vmem:[%s178 + $0x368] sm:$0xff] %v397
                %v399 = vld [vmem:[%s177 + $0xdc0] sm:$0xff]
                %400 = vst [vmem:[%s178 + $0x370] sm:$0xff] %v399
                %v401 = vld [vmem:[%s177 + $0xde0] sm:$0xff]
                %402 = vst [vmem:[%s178 + $0x378] sm:$0xff] %v401
                %v403 = vld [vmem:[%s177 + $0xe00] sm:$0xff]
                %404 = vst [vmem:[%s178 + $0x380] sm:$0xff] %v403
                %v405 = vld [vmem:[%s177 + $0xe20] sm:$0xff]
                %406 = vst [vmem:[%s178 + $0x388] sm:$0xff] %v405
                %v407 = vld [vmem:[%s177 + $0xe40] sm:$0xff]
                %408 = vst [vmem:[%s178 + $0x390] sm:$0xff] %v407
                %v409 = vld [vmem:[%s177 + $0xe60] sm:$0xff]
                %410 = vst [vmem:[%s178 + $0x398] sm:$0xff] %v409
                %v411 = vld [vmem:[%s177 + $0xe80] sm:$0xff]
                %412 = vst [vmem:[%s178 + $0x3a0] sm:$0xff] %v411
                %v413 = vld [vmem:[%s177 + $0xea0] sm:$0xff]
                %414 = vst [vmem:[%s178 + $0x3a8] sm:$0xff] %v413
                %v415 = vld [vmem:[%s177 + $0xec0] sm:$0xff]
                %416 = vst [vmem:[%s178 + $0x3b0] sm:$0xff] %v415
                %v417 = vld [vmem:[%s177 + $0xee0] sm:$0xff]
                %418 = vst [vmem:[%s178 + $0x3b8] sm:$0xff] %v417
                %v419 = vld [vmem:[%s177 + $0xf00] sm:$0xff]
                %420 = vst [vmem:[%s178 + $0x3c0] sm:$0xff] %v419
                %v421 = vld [vmem:[%s177 + $0xf20] sm:$0xff]
                %422 = vst [vmem:[%s178 + $0x3c8] sm:$0xff] %v421
                %v423 = vld [vmem:[%s177 + $0xf40] sm:$0xff]
                %424 = vst [vmem:[%s178 + $0x3d0] sm:$0xff] %v423
                %v425 = vld [vmem:[%s177 + $0xf60] sm:$0xff]
                %426 = vst [vmem:[%s178 + $0x3d8] sm:$0xff] %v425
                %v427 = vld [vmem:[%s177 + $0xf80] sm:$0xff]
                %428 = vst [vmem:[%s178 + $0x3e0] sm:$0xff] %v427
                %v429 = vld [vmem:[%s177 + $0xfa0] sm:$0xff]
                %430 = vst [vmem:[%s178 + $0x3e8] sm:$0xff] %v429
                %v431 = vld [vmem:[%s177 + $0xfc0] sm:$0xff]
                %432 = vst [vmem:[%s178 + $0x3f0] sm:$0xff] %v431
                %v433 = vld [vmem:[%s177 + $0xfe0] sm:$0xff]
                %434 = vst [vmem:[%s178 + $0x3f8] sm:$0xff] %v433
                %v435 = vld [vmem:[%s177 + $0x1000] sm:$0xff]
                %436 = vst [vmem:[%s178 + $0x400] sm:$0xff] %v435
                %v437 = vld [vmem:[%s177 + $0x1020] sm:$0xff]
                %438 = vst [vmem:[%s178 + $0x408] sm:$0xff] %v437
                %v439 = vld [vmem:[%s177 + $0x1040] sm:$0xff]
                %440 = vst [vmem:[%s178 + $0x410] sm:$0xff] %v439
                %v441 = vld [vmem:[%s177 + $0x1060] sm:$0xff]
                %442 = vst [vmem:[%s178 + $0x418] sm:$0xff] %v441
                %v443 = vld [vmem:[%s177 + $0x1080] sm:$0xff]
                %444 = vst [vmem:[%s178 + $0x420] sm:$0xff] %v443
                %v445 = vld [vmem:[%s177 + $0x10a0] sm:$0xff]
                %446 = vst [vmem:[%s178 + $0x428] sm:$0xff] %v445
                %v447 = vld [vmem:[%s177 + $0x10c0] sm:$0xff]
                %448 = vst [vmem:[%s178 + $0x430] sm:$0xff] %v447
                %v449 = vld [vmem:[%s177 + $0x10e0] sm:$0xff]
                %450 = vst [vmem:[%s178 + $0x438] sm:$0xff] %v449
                %v451 = vld [vmem:[%s177 + $0x1100] sm:$0xff]
                %452 = vst [vmem:[%s178 + $0x440] sm:$0xff] %v451
                %v453 = vld [vmem:[%s177 + $0x1120] sm:$0xff]
                %454 = vst [vmem:[%s178 + $0x448] sm:$0xff] %v453
                %v455 = vld [vmem:[%s177 + $0x1140] sm:$0xff]
                %456 = vst [vmem:[%s178 + $0x450] sm:$0xff] %v455
                %v457 = vld [vmem:[%s177 + $0x1160] sm:$0xff]
                %458 = vst [vmem:[%s178 + $0x458] sm:$0xff] %v457
                %v459 = vld [vmem:[%s177 + $0x1180] sm:$0xff]
                %460 = vst [vmem:[%s178 + $0x460] sm:$0xff] %v459
                %v461 = vld [vmem:[%s177 + $0x11a0] sm:$0xff]
                %462 = vst [vmem:[%s178 + $0x468] sm:$0xff] %v461
                %v463 = vld [vmem:[%s177 + $0x11c0] sm:$0xff]
                %464 = vst [vmem:[%s178 + $0x470] sm:$0xff] %v463
                %v465 = vld [vmem:[%s177 + $0x11e0] sm:$0xff]
                %466 = vst [vmem:[%s178 + $0x478] sm:$0xff] %v465
                %v467 = vld [vmem:[%s177 + $0x1200] sm:$0xff]
                %468 = vst [vmem:[%s178 + $0x480] sm:$0xff] %v467
                %v469 = vld [vmem:[%s177 + $0x1220] sm:$0xff]
                %470 = vst [vmem:[%s178 + $0x488] sm:$0xff] %v469
                %v471 = vld [vmem:[%s177 + $0x1240] sm:$0xff]
                %472 = vst [vmem:[%s178 + $0x490] sm:$0xff] %v471
                %v473 = vld [vmem:[%s177 + $0x1260] sm:$0xff]
                %474 = vst [vmem:[%s178 + $0x498] sm:$0xff] %v473
                %v475 = vld [vmem:[%s177 + $0x1280] sm:$0xff]
                %476 = vst [vmem:[%s178 + $0x4a0] sm:$0xff] %v475
                %v477 = vld [vmem:[%s177 + $0x12a0] sm:$0xff]
                %478 = vst [vmem:[%s178 + $0x4a8] sm:$0xff] %v477
                %v479 = vld [vmem:[%s177 + $0x12c0] sm:$0xff]
                %480 = vst [vmem:[%s178 + $0x4b0] sm:$0xff] %v479
                %v481 = vld [vmem:[%s177 + $0x12e0] sm:$0xff]
                %482 = vst [vmem:[%s178 + $0x4b8] sm:$0xff] %v481
                %v483 = vld [vmem:[%s177 + $0x1300] sm:$0xff]
                %484 = vst [vmem:[%s178 + $0x4c0] sm:$0xff] %v483
                %v485 = vld [vmem:[%s177 + $0x1320] sm:$0xff]
                %486 = vst [vmem:[%s178 + $0x4c8] sm:$0xff] %v485
                %v487 = vld [vmem:[%s177 + $0x1340] sm:$0xff]
                %488 = vst [vmem:[%s178 + $0x4d0] sm:$0xff] %v487
                %v489 = vld [vmem:[%s177 + $0x1360] sm:$0xff]
                %490 = vst [vmem:[%s178 + $0x4d8] sm:$0xff] %v489
                %v491 = vld [vmem:[%s177 + $0x1380] sm:$0xff]
                %492 = vst [vmem:[%s178 + $0x4e0] sm:$0xff] %v491
                %v493 = vld [vmem:[%s177 + $0x13a0] sm:$0xff]
                %494 = vst [vmem:[%s178 + $0x4e8] sm:$0xff] %v493
                %v495 = vld [vmem:[%s177 + $0x13c0] sm:$0xff]
                %496 = vst [vmem:[%s178 + $0x4f0] sm:$0xff] %v495
                %v497 = vld [vmem:[%s177 + $0x13e0] sm:$0xff]
                %498 = vst [vmem:[%s178 + $0x4f8] sm:$0xff] %v497
                %v499 = vld [vmem:[%s177 + $0x1400] sm:$0xff]
                %500 = vst [vmem:[%s178 + $0x500] sm:$0xff] %v499
                %v501 = vld [vmem:[%s177 + $0x1420] sm:$0xff]
                %502 = vst [vmem:[%s178 + $0x508] sm:$0xff] %v501
                %v503 = vld [vmem:[%s177 + $0x1440] sm:$0xff]
                %504 = vst [vmem:[%s178 + $0x510] sm:$0xff] %v503
                %v505 = vld [vmem:[%s177 + $0x1460] sm:$0xff]
                %506 = vst [vmem:[%s178 + $0x518] sm:$0xff] %v505
                %v507 = vld [vmem:[%s177 + $0x1480] sm:$0xff]
                %508 = vst [vmem:[%s178 + $0x520] sm:$0xff] %v507
                %v509 = vld [vmem:[%s177 + $0x14a0] sm:$0xff]
                %510 = vst [vmem:[%s178 + $0x528] sm:$0xff] %v509
                %v511 = vld [vmem:[%s177 + $0x14c0] sm:$0xff]
                %512 = vst [vmem:[%s178 + $0x530] sm:$0xff] %v511
                %v513 = vld [vmem:[%s177 + $0x14e0] sm:$0xff]
                %514 = vst [vmem:[%s178 + $0x538] sm:$0xff] %v513
                %v515 = vld [vmem:[%s177 + $0x1500] sm:$0xff]
                %516 = vst [vmem:[%s178 + $0x540] sm:$0xff] %v515
                %v517 = vld [vmem:[%s177 + $0x1520] sm:$0xff]
                %518 = vst [vmem:[%s178 + $0x548] sm:$0xff] %v517
                %v519 = vld [vmem:[%s177 + $0x1540] sm:$0xff]
                %520 = vst [vmem:[%s178 + $0x550] sm:$0xff] %v519
                %v521 = vld [vmem:[%s177 + $0x1560] sm:$0xff]
                %522 = vst [vmem:[%s178 + $0x558] sm:$0xff] %v521
                %v523 = vld [vmem:[%s177 + $0x1580] sm:$0xff]
                %524 = vst [vmem:[%s178 + $0x560] sm:$0xff] %v523
                %v525 = vld [vmem:[%s177 + $0x15a0] sm:$0xff]
                %526 = vst [vmem:[%s178 + $0x568] sm:$0xff] %v525
                %v527 = vld [vmem:[%s177 + $0x15c0] sm:$0xff]
                %528 = vst [vmem:[%s178 + $0x570] sm:$0xff] %v527
                %v529 = vld [vmem:[%s177 + $0x15e0] sm:$0xff]
                %530 = vst [vmem:[%s178 + $0x578] sm:$0xff] %v529
                %v531 = vld [vmem:[%s177 + $0x1600] sm:$0xff]
                %532 = vst [vmem:[%s178 + $0x580] sm:$0xff] %v531
                %v533 = vld [vmem:[%s177 + $0x1620] sm:$0xff]
                %534 = vst [vmem:[%s178 + $0x588] sm:$0xff] %v533
                %v535 = vld [vmem:[%s177 + $0x1640] sm:$0xff]
                %536 = vst [vmem:[%s178 + $0x590] sm:$0xff] %v535
                %v537 = vld [vmem:[%s177 + $0x1660] sm:$0xff]
                %538 = vst [vmem:[%s178 + $0x598] sm:$0xff] %v537
                %v539 = vld [vmem:[%s177 + $0x1680] sm:$0xff]
                %540 = vst [vmem:[%s178 + $0x5a0] sm:$0xff] %v539
                %v541 = vld [vmem:[%s177 + $0x16a0] sm:$0xff]
                %542 = vst [vmem:[%s178 + $0x5a8] sm:$0xff] %v541
                %v543 = vld [vmem:[%s177 + $0x16c0] sm:$0xff]
                %544 = vst [vmem:[%s178 + $0x5b0] sm:$0xff] %v543
                %v545 = vld [vmem:[%s177 + $0x16e0] sm:$0xff]
                %546 = vst [vmem:[%s178 + $0x5b8] sm:$0xff] %v545
                %v547 = vld [vmem:[%s177 + $0x1700] sm:$0xff]
                %548 = vst [vmem:[%s178 + $0x5c0] sm:$0xff] %v547
                %v549 = vld [vmem:[%s177 + $0x1720] sm:$0xff]
                %550 = vst [vmem:[%s178 + $0x5c8] sm:$0xff] %v549
                %v551 = vld [vmem:[%s177 + $0x1740] sm:$0xff]
                %552 = vst [vmem:[%s178 + $0x5d0] sm:$0xff] %v551
                %v553 = vld [vmem:[%s177 + $0x1760] sm:$0xff]
                %554 = vst [vmem:[%s178 + $0x5d8] sm:$0xff] %v553
                %v555 = vld [vmem:[%s177 + $0x1780] sm:$0xff]
                %556 = vst [vmem:[%s178 + $0x5e0] sm:$0xff] %v555
                %v557 = vld [vmem:[%s177 + $0x17a0] sm:$0xff]
                %558 = vst [vmem:[%s178 + $0x5e8] sm:$0xff] %v557
                %v559 = vld [vmem:[%s177 + $0x17c0] sm:$0xff]
                %560 = vst [vmem:[%s178 + $0x5f0] sm:$0xff] %v559
                %v561 = vld [vmem:[%s177 + $0x17e0] sm:$0xff]
                %562 = vst [vmem:[%s178 + $0x5f8] sm:$0xff] %v561
                %v563 = vld [vmem:[%s177 + $0x1800] sm:$0xff]
                %564 = vst [vmem:[%s178 + $0x600] sm:$0xff] %v563
                %v565 = vld [vmem:[%s177 + $0x1820] sm:$0xff]
                %566 = vst [vmem:[%s178 + $0x608] sm:$0xff] %v565
                %v567 = vld [vmem:[%s177 + $0x1840] sm:$0xff]
                %568 = vst [vmem:[%s178 + $0x610] sm:$0xff] %v567
                %v569 = vld [vmem:[%s177 + $0x1860] sm:$0xff]
                %570 = vst [vmem:[%s178 + $0x618] sm:$0xff] %v569
                %v571 = vld [vmem:[%s177 + $0x1880] sm:$0xff]
                %572 = vst [vmem:[%s178 + $0x620] sm:$0xff] %v571
                %v573 = vld [vmem:[%s177 + $0x18a0] sm:$0xff]
                %574 = vst [vmem:[%s178 + $0x628] sm:$0xff] %v573
                %v575 = vld [vmem:[%s177 + $0x18c0] sm:$0xff]
                %576 = vst [vmem:[%s178 + $0x630] sm:$0xff] %v575
                %v577 = vld [vmem:[%s177 + $0x18e0] sm:$0xff]
                %578 = vst [vmem:[%s178 + $0x638] sm:$0xff] %v577
                %v579 = vld [vmem:[%s177 + $0x1900] sm:$0xff]
                %580 = vst [vmem:[%s178 + $0x640] sm:$0xff] %v579
                %v581 = vld [vmem:[%s177 + $0x1920] sm:$0xff]
                %582 = vst [vmem:[%s178 + $0x648] sm:$0xff] %v581
                %v583 = vld [vmem:[%s177 + $0x1940] sm:$0xff]
                %584 = vst [vmem:[%s178 + $0x650] sm:$0xff] %v583
                %v585 = vld [vmem:[%s177 + $0x1960] sm:$0xff]
                %586 = vst [vmem:[%s178 + $0x658] sm:$0xff] %v585
                %v587 = vld [vmem:[%s177 + $0x1980] sm:$0xff]
                %588 = vst [vmem:[%s178 + $0x660] sm:$0xff] %v587
                %v589 = vld [vmem:[%s177 + $0x19a0] sm:$0xff]
                %590 = vst [vmem:[%s178 + $0x668] sm:$0xff] %v589
                %v591 = vld [vmem:[%s177 + $0x19c0] sm:$0xff]
                %592 = vst [vmem:[%s178 + $0x670] sm:$0xff] %v591
                %v593 = vld [vmem:[%s177 + $0x19e0] sm:$0xff]
                %594 = vst [vmem:[%s178 + $0x678] sm:$0xff] %v593
                %v595 = vld [vmem:[%s177 + $0x1a00] sm:$0xff]
                %596 = vst [vmem:[%s178 + $0x680] sm:$0xff] %v595
                %v597 = vld [vmem:[%s177 + $0x1a20] sm:$0xff]
                %598 = vst [vmem:[%s178 + $0x688] sm:$0xff] %v597
                %v599 = vld [vmem:[%s177 + $0x1a40] sm:$0xff]
                %600 = vst [vmem:[%s178 + $0x690] sm:$0xff] %v599
                %v601 = vld [vmem:[%s177 + $0x1a60] sm:$0xff]
                %602 = vst [vmem:[%s178 + $0x698] sm:$0xff] %v601
                %v603 = vld [vmem:[%s177 + $0x1a80] sm:$0xff]
                %604 = vst [vmem:[%s178 + $0x6a0] sm:$0xff] %v603
                %v605 = vld [vmem:[%s177 + $0x1aa0] sm:$0xff]
                %606 = vst [vmem:[%s178 + $0x6a8] sm:$0xff] %v605
                %v607 = vld [vmem:[%s177 + $0x1ac0] sm:$0xff]
                %608 = vst [vmem:[%s178 + $0x6b0] sm:$0xff] %v607
                %v609 = vld [vmem:[%s177 + $0x1ae0] sm:$0xff]
                %610 = vst [vmem:[%s178 + $0x6b8] sm:$0xff] %v609
                %v611 = vld [vmem:[%s177 + $0x1b00] sm:$0xff]
                %612 = vst [vmem:[%s178 + $0x6c0] sm:$0xff] %v611
                %v613 = vld [vmem:[%s177 + $0x1b20] sm:$0xff]
                %614 = vst [vmem:[%s178 + $0x6c8] sm:$0xff] %v613
                %v615 = vld [vmem:[%s177 + $0x1b40] sm:$0xff]
                %616 = vst [vmem:[%s178 + $0x6d0] sm:$0xff] %v615
                %v617 = vld [vmem:[%s177 + $0x1b60] sm:$0xff]
                %618 = vst [vmem:[%s178 + $0x6d8] sm:$0xff] %v617
                %v619 = vld [vmem:[%s177 + $0x1b80] sm:$0xff]
                %620 = vst [vmem:[%s178 + $0x6e0] sm:$0xff] %v619
                %v621 = vld [vmem:[%s177 + $0x1ba0] sm:$0xff]
                %622 = vst [vmem:[%s178 + $0x6e8] sm:$0xff] %v621
                %v623 = vld [vmem:[%s177 + $0x1bc0] sm:$0xff]
                %624 = vst [vmem:[%s178 + $0x6f0] sm:$0xff] %v623
                %v625 = vld [vmem:[%s177 + $0x1be0] sm:$0xff]
                %626 = vst [vmem:[%s178 + $0x6f8] sm:$0xff] %v625
                %v627 = vld [vmem:[%s177 + $0x1c00] sm:$0xff]
                %628 = vst [vmem:[%s178 + $0x700] sm:$0xff] %v627
                %v629 = vld [vmem:[%s177 + $0x1c20] sm:$0xff]
                %630 = vst [vmem:[%s178 + $0x708] sm:$0xff] %v629
                %v631 = vld [vmem:[%s177 + $0x1c40] sm:$0xff]
                %632 = vst [vmem:[%s178 + $0x710] sm:$0xff] %v631
                %v633 = vld [vmem:[%s177 + $0x1c60] sm:$0xff]
                %634 = vst [vmem:[%s178 + $0x718] sm:$0xff] %v633
                %v635 = vld [vmem:[%s177 + $0x1c80] sm:$0xff]
                %636 = vst [vmem:[%s178 + $0x720] sm:$0xff] %v635
                %v637 = vld [vmem:[%s177 + $0x1ca0] sm:$0xff]
                %638 = vst [vmem:[%s178 + $0x728] sm:$0xff] %v637
                %v639 = vld [vmem:[%s177 + $0x1cc0] sm:$0xff]
                %640 = vst [vmem:[%s178 + $0x730] sm:$0xff] %v639
                %v641 = vld [vmem:[%s177 + $0x1ce0] sm:$0xff]
                %642 = vst [vmem:[%s178 + $0x738] sm:$0xff] %v641
                %v643 = vld [vmem:[%s177 + $0x1d00] sm:$0xff]
                %644 = vst [vmem:[%s178 + $0x740] sm:$0xff] %v643
                %v645 = vld [vmem:[%s177 + $0x1d20] sm:$0xff]
                %646 = vst [vmem:[%s178 + $0x748] sm:$0xff] %v645
                %v647 = vld [vmem:[%s177 + $0x1d40] sm:$0xff]
                %648 = vst [vmem:[%s178 + $0x750] sm:$0xff] %v647
                %v649 = vld [vmem:[%s177 + $0x1d60] sm:$0xff]
                %650 = vst [vmem:[%s178 + $0x758] sm:$0xff] %v649
                %v651 = vld [vmem:[%s177 + $0x1d80] sm:$0xff]
                %652 = vst [vmem:[%s178 + $0x760] sm:$0xff] %v651
                %v653 = vld [vmem:[%s177 + $0x1da0] sm:$0xff]
                %654 = vst [vmem:[%s178 + $0x768] sm:$0xff] %v653
                %v655 = vld [vmem:[%s177 + $0x1dc0] sm:$0xff]
                %656 = vst [vmem:[%s178 + $0x770] sm:$0xff] %v655
                %v657 = vld [vmem:[%s177 + $0x1de0] sm:$0xff]
                %658 = vst [vmem:[%s178 + $0x778] sm:$0xff] %v657
                %v659 = vld [vmem:[%s177 + $0x1e00] sm:$0xff]
                %660 = vst [vmem:[%s178 + $0x780] sm:$0xff] %v659
                %v661 = vld [vmem:[%s177 + $0x1e20] sm:$0xff]
                %662 = vst [vmem:[%s178 + $0x788] sm:$0xff] %v661
                %v663 = vld [vmem:[%s177 + $0x1e40] sm:$0xff]
                %664 = vst [vmem:[%s178 + $0x790] sm:$0xff] %v663
                %v665 = vld [vmem:[%s177 + $0x1e60] sm:$0xff]
                %666 = vst [vmem:[%s178 + $0x798] sm:$0xff] %v665
                %v667 = vld [vmem:[%s177 + $0x1e80] sm:$0xff]
                %668 = vst [vmem:[%s178 + $0x7a0] sm:$0xff] %v667
                %v669 = vld [vmem:[%s177 + $0x1ea0] sm:$0xff]
                %670 = vst [vmem:[%s178 + $0x7a8] sm:$0xff] %v669
                %v671 = vld [vmem:[%s177 + $0x1ec0] sm:$0xff]
                %672 = vst [vmem:[%s178 + $0x7b0] sm:$0xff] %v671
                %v673 = vld [vmem:[%s177 + $0x1ee0] sm:$0xff]
                %674 = vst [vmem:[%s178 + $0x7b8] sm:$0xff] %v673
                %v675 = vld [vmem:[%s177 + $0x1f00] sm:$0xff]
                %676 = vst [vmem:[%s178 + $0x7c0] sm:$0xff] %v675
                %v677 = vld [vmem:[%s177 + $0x1f20] sm:$0xff]
                %678 = vst [vmem:[%s178 + $0x7c8] sm:$0xff] %v677
                %v679 = vld [vmem:[%s177 + $0x1f40] sm:$0xff]
                %680 = vst [vmem:[%s178 + $0x7d0] sm:$0xff] %v679
                %v681 = vld [vmem:[%s177 + $0x1f60] sm:$0xff]
                %682 = vst [vmem:[%s178 + $0x7d8] sm:$0xff] %v681
                %v683 = vld [vmem:[%s177 + $0x1f80] sm:$0xff]
                %684 = vst [vmem:[%s178 + $0x7e0] sm:$0xff] %v683
                %v685 = vld [vmem:[%s177 + $0x1fa0] sm:$0xff]
                %686 = vst [vmem:[%s178 + $0x7e8] sm:$0xff] %v685
                %v687 = vld [vmem:[%s177 + $0x1fc0] sm:$0xff]
                %688 = vst [vmem:[%s178 + $0x7f0] sm:$0xff] %v687
                %v689 = vld [vmem:[%s177 + $0x1fe0] sm:$0xff]
                %690 = vst [vmem:[%s178 + $0x7f8] sm:$0xff] %v689
                %v691 = vld [vmem:[%s177 + $0x2000] sm:$0xff]
                %692 = vst [vmem:[%s178 + $0x800] sm:$0xff] %v691
                %v693 = vld [vmem:[%s177 + $0x2020] sm:$0xff]
                %694 = vst [vmem:[%s178 + $0x808] sm:$0xff] %v693
                %v695 = vld [vmem:[%s177 + $0x2040] sm:$0xff]
                %696 = vst [vmem:[%s178 + $0x810] sm:$0xff] %v695
                %v697 = vld [vmem:[%s177 + $0x2060] sm:$0xff]
                %698 = vst [vmem:[%s178 + $0x818] sm:$0xff] %v697
                %v699 = vld [vmem:[%s177 + $0x2080] sm:$0xff]
                %700 = vst [vmem:[%s178 + $0x820] sm:$0xff] %v699
                %v701 = vld [vmem:[%s177 + $0x20a0] sm:$0xff]
                %702 = vst [vmem:[%s178 + $0x828] sm:$0xff] %v701
                %v703 = vld [vmem:[%s177 + $0x20c0] sm:$0xff]
                %704 = vst [vmem:[%s178 + $0x830] sm:$0xff] %v703
                %v705 = vld [vmem:[%s177 + $0x20e0] sm:$0xff]
                %706 = vst [vmem:[%s178 + $0x838] sm:$0xff] %v705
                %v707 = vld [vmem:[%s177 + $0x2100] sm:$0xff]
                %708 = vst [vmem:[%s178 + $0x840] sm:$0xff] %v707
                %v709 = vld [vmem:[%s177 + $0x2120] sm:$0xff]
                %710 = vst [vmem:[%s178 + $0x848] sm:$0xff] %v709
                %v711 = vld [vmem:[%s177 + $0x2140] sm:$0xff]
                %712 = vst [vmem:[%s178 + $0x850] sm:$0xff] %v711
                %v713 = vld [vmem:[%s177 + $0x2160] sm:$0xff]
                %714 = vst [vmem:[%s178 + $0x858] sm:$0xff] %v713
                %v715 = vld [vmem:[%s177 + $0x2180] sm:$0xff]
                %716 = vst [vmem:[%s178 + $0x860] sm:$0xff] %v715
                %v717 = vld [vmem:[%s177 + $0x21a0] sm:$0xff]
                %718 = vst [vmem:[%s178 + $0x868] sm:$0xff] %v717
                %v719 = vld [vmem:[%s177 + $0x21c0] sm:$0xff]
                %720 = vst [vmem:[%s178 + $0x870] sm:$0xff] %v719
                %v721 = vld [vmem:[%s177 + $0x21e0] sm:$0xff]
                %722 = vst [vmem:[%s178 + $0x878] sm:$0xff] %v721
                %v723 = vld [vmem:[%s177 + $0x2200] sm:$0xff]
                %724 = vst [vmem:[%s178 + $0x880] sm:$0xff] %v723
                %v725 = vld [vmem:[%s177 + $0x2220] sm:$0xff]
                %726 = vst [vmem:[%s178 + $0x888] sm:$0xff] %v725
                %v727 = vld [vmem:[%s177 + $0x2240] sm:$0xff]
                %728 = vst [vmem:[%s178 + $0x890] sm:$0xff] %v727
                %v729 = vld [vmem:[%s177 + $0x2260] sm:$0xff]
                %730 = vst [vmem:[%s178 + $0x898] sm:$0xff] %v729
                %v731 = vld [vmem:[%s177 + $0x2280] sm:$0xff]
                %732 = vst [vmem:[%s178 + $0x8a0] sm:$0xff] %v731
                %v733 = vld [vmem:[%s177 + $0x22a0] sm:$0xff]
                %734 = vst [vmem:[%s178 + $0x8a8] sm:$0xff] %v733
                %v735 = vld [vmem:[%s177 + $0x22c0] sm:$0xff]
                %736 = vst [vmem:[%s178 + $0x8b0] sm:$0xff] %v735
                %v737 = vld [vmem:[%s177 + $0x22e0] sm:$0xff]
                %738 = vst [vmem:[%s178 + $0x8b8] sm:$0xff] %v737
                %v739 = vld [vmem:[%s177 + $0x2300] sm:$0xff]
                %740 = vst [vmem:[%s178 + $0x8c0] sm:$0xff] %v739
                %v741 = vld [vmem:[%s177 + $0x2320] sm:$0xff]
                %742 = vst [vmem:[%s178 + $0x8c8] sm:$0xff] %v741
                %v743 = vld [vmem:[%s177 + $0x2340] sm:$0xff]
                %744 = vst [vmem:[%s178 + $0x8d0] sm:$0xff] %v743
                %v745 = vld [vmem:[%s177 + $0x2360] sm:$0xff]
                %746 = vst [vmem:[%s178 + $0x8d8] sm:$0xff] %v745
                %v747 = vld [vmem:[%s177 + $0x2380] sm:$0xff]
                %748 = vst [vmem:[%s178 + $0x8e0] sm:$0xff] %v747
                %v749 = vld [vmem:[%s177 + $0x23a0] sm:$0xff]
                %750 = vst [vmem:[%s178 + $0x8e8] sm:$0xff] %v749
                %v751 = vld [vmem:[%s177 + $0x23c0] sm:$0xff]
                %752 = vst [vmem:[%s178 + $0x8f0] sm:$0xff] %v751
                %v753 = vld [vmem:[%s177 + $0x23e0] sm:$0xff]
                %754 = vst [vmem:[%s178 + $0x8f8] sm:$0xff] %v753
                %v755 = vld [vmem:[%s177 + $0x2400] sm:$0xff]
                %756 = vst [vmem:[%s178 + $0x900] sm:$0xff] %v755
                %v757 = vld [vmem:[%s177 + $0x2420] sm:$0xff]
                %758 = vst [vmem:[%s178 + $0x908] sm:$0xff] %v757
                %v759 = vld [vmem:[%s177 + $0x2440] sm:$0xff]
                %760 = vst [vmem:[%s178 + $0x910] sm:$0xff] %v759
                %v761 = vld [vmem:[%s177 + $0x2460] sm:$0xff]
                %762 = vst [vmem:[%s178 + $0x918] sm:$0xff] %v761
                %v763 = vld [vmem:[%s177 + $0x2480] sm:$0xff]
                %764 = vst [vmem:[%s178 + $0x920] sm:$0xff] %v763
                %v765 = vld [vmem:[%s177 + $0x24a0] sm:$0xff]
                %766 = vst [vmem:[%s178 + $0x928] sm:$0xff] %v765
                %v767 = vld [vmem:[%s177 + $0x24c0] sm:$0xff]
                %768 = vst [vmem:[%s178 + $0x930] sm:$0xff] %v767
                %v769 = vld [vmem:[%s177 + $0x24e0] sm:$0xff]
                %770 = vst [vmem:[%s178 + $0x938] sm:$0xff] %v769
                %v771 = vld [vmem:[%s177 + $0x2500] sm:$0xff]
                %772 = vst [vmem:[%s178 + $0x940] sm:$0xff] %v771
                %v773 = vld [vmem:[%s177 + $0x2520] sm:$0xff]
                %774 = vst [vmem:[%s178 + $0x948] sm:$0xff] %v773
                %v775 = vld [vmem:[%s177 + $0x2540] sm:$0xff]
                %776 = vst [vmem:[%s178 + $0x950] sm:$0xff] %v775
                %v777 = vld [vmem:[%s177 + $0x2560] sm:$0xff]
                %778 = vst [vmem:[%s178 + $0x958] sm:$0xff] %v777
                %v779 = vld [vmem:[%s177 + $0x2580] sm:$0xff]
                %780 = vst [vmem:[%s178 + $0x960] sm:$0xff] %v779
                %v781 = vld [vmem:[%s177 + $0x25a0] sm:$0xff]
                %782 = vst [vmem:[%s178 + $0x968] sm:$0xff] %v781
                %v783 = vld [vmem:[%s177 + $0x25c0] sm:$0xff]
                %784 = vst [vmem:[%s178 + $0x970] sm:$0xff] %v783
                %v785 = vld [vmem:[%s177 + $0x25e0] sm:$0xff]
                %786 = vst [vmem:[%s178 + $0x978] sm:$0xff] %v785
                %v787 = vld [vmem:[%s177 + $0x2600] sm:$0xff]
                %788 = vst [vmem:[%s178 + $0x980] sm:$0xff] %v787
                %v789 = vld [vmem:[%s177 + $0x2620] sm:$0xff]
                %790 = vst [vmem:[%s178 + $0x988] sm:$0xff] %v789
                %v791 = vld [vmem:[%s177 + $0x2640] sm:$0xff]
                %792 = vst [vmem:[%s178 + $0x990] sm:$0xff] %v791
                %v793 = vld [vmem:[%s177 + $0x2660] sm:$0xff]
                %794 = vst [vmem:[%s178 + $0x998] sm:$0xff] %v793
                %v795 = vld [vmem:[%s177 + $0x2680] sm:$0xff]
                %796 = vst [vmem:[%s178 + $0x9a0] sm:$0xff] %v795
                %v797 = vld [vmem:[%s177 + $0x26a0] sm:$0xff]
                %798 = vst [vmem:[%s178 + $0x9a8] sm:$0xff] %v797
                %v799 = vld [vmem:[%s177 + $0x26c0] sm:$0xff]
                %800 = vst [vmem:[%s178 + $0x9b0] sm:$0xff] %v799
                %v801 = vld [vmem:[%s177 + $0x26e0] sm:$0xff]
                %802 = vst [vmem:[%s178 + $0x9b8] sm:$0xff] %v801
                %v803 = vld [vmem:[%s177 + $0x2700] sm:$0xff]
                %804 = vst [vmem:[%s178 + $0x9c0] sm:$0xff] %v803
                %v805 = vld [vmem:[%s177 + $0x2720] sm:$0xff]
                %806 = vst [vmem:[%s178 + $0x9c8] sm:$0xff] %v805
                %v807 = vld [vmem:[%s177 + $0x2740] sm:$0xff]
                %808 = vst [vmem:[%s178 + $0x9d0] sm:$0xff] %v807
                %v809 = vld [vmem:[%s177 + $0x2760] sm:$0xff]
                %810 = vst [vmem:[%s178 + $0x9d8] sm:$0xff] %v809
                %v811 = vld [vmem:[%s177 + $0x2780] sm:$0xff]
                %812 = vst [vmem:[%s178 + $0x9e0] sm:$0xff] %v811
                %v813 = vld [vmem:[%s177 + $0x27a0] sm:$0xff]
                %814 = vst [vmem:[%s178 + $0x9e8] sm:$0xff] %v813
                %v815 = vld [vmem:[%s177 + $0x27c0] sm:$0xff]
                %816 = vst [vmem:[%s178 + $0x9f0] sm:$0xff] %v815
                %v817 = vld [vmem:[%s177 + $0x27e0] sm:$0xff]
                %818 = vst [vmem:[%s178 + $0x9f8] sm:$0xff] %v817
                %v819 = vld [vmem:[%s177 + $0x2800] sm:$0xff]
                %820 = vst [vmem:[%s178 + $0xa00] sm:$0xff] %v819
                %v821 = vld [vmem:[%s177 + $0x2820] sm:$0xff]
                %822 = vst [vmem:[%s178 + $0xa08] sm:$0xff] %v821
                %v823 = vld [vmem:[%s177 + $0x2840] sm:$0xff]
                %824 = vst [vmem:[%s178 + $0xa10] sm:$0xff] %v823
                %v825 = vld [vmem:[%s177 + $0x2860] sm:$0xff]
                %826 = vst [vmem:[%s178 + $0xa18] sm:$0xff] %v825
                %v827 = vld [vmem:[%s177 + $0x2880] sm:$0xff]
                %828 = vst [vmem:[%s178 + $0xa20] sm:$0xff] %v827
                %v829 = vld [vmem:[%s177 + $0x28a0] sm:$0xff]
                %830 = vst [vmem:[%s178 + $0xa28] sm:$0xff] %v829
                %v831 = vld [vmem:[%s177 + $0x28c0] sm:$0xff]
                %832 = vst [vmem:[%s178 + $0xa30] sm:$0xff] %v831
                %v833 = vld [vmem:[%s177 + $0x28e0] sm:$0xff]
                %834 = vst [vmem:[%s178 + $0xa38] sm:$0xff] %v833
                %v835 = vld [vmem:[%s177 + $0x2900] sm:$0xff]
                %836 = vst [vmem:[%s178 + $0xa40] sm:$0xff] %v835
                %v837 = vld [vmem:[%s177 + $0x2920] sm:$0xff]
                %838 = vst [vmem:[%s178 + $0xa48] sm:$0xff] %v837
                %v839 = vld [vmem:[%s177 + $0x2940] sm:$0xff]
                %840 = vst [vmem:[%s178 + $0xa50] sm:$0xff] %v839
                %v841 = vld [vmem:[%s177 + $0x2960] sm:$0xff]
                %842 = vst [vmem:[%s178 + $0xa58] sm:$0xff] %v841
                %v843 = vld [vmem:[%s177 + $0x2980] sm:$0xff]
                %844 = vst [vmem:[%s178 + $0xa60] sm:$0xff] %v843
                %v845 = vld [vmem:[%s177 + $0x29a0] sm:$0xff]
                %846 = vst [vmem:[%s178 + $0xa68] sm:$0xff] %v845
                %v847 = vld [vmem:[%s177 + $0x29c0] sm:$0xff]
                %848 = vst [vmem:[%s178 + $0xa70] sm:$0xff] %v847
                %v849 = vld [vmem:[%s177 + $0x29e0] sm:$0xff]
                %850 = vst [vmem:[%s178 + $0xa78] sm:$0xff] %v849
                %v851 = vld [vmem:[%s177 + $0x2a00] sm:$0xff]
                %852 = vst [vmem:[%s178 + $0xa80] sm:$0xff] %v851
                %v853 = vld [vmem:[%s177 + $0x2a20] sm:$0xff]
                %854 = vst [vmem:[%s178 + $0xa88] sm:$0xff] %v853
                %v855 = vld [vmem:[%s177 + $0x2a40] sm:$0xff]
                %856 = vst [vmem:[%s178 + $0xa90] sm:$0xff] %v855
                %v857 = vld [vmem:[%s177 + $0x2a60] sm:$0xff]
                %858 = vst [vmem:[%s178 + $0xa98] sm:$0xff] %v857
                %v859 = vld [vmem:[%s177 + $0x2a80] sm:$0xff]
                %860 = vst [vmem:[%s178 + $0xaa0] sm:$0xff] %v859
                %v861 = vld [vmem:[%s177 + $0x2aa0] sm:$0xff]
                %862 = vst [vmem:[%s178 + $0xaa8] sm:$0xff] %v861
                %v863 = vld [vmem:[%s177 + $0x2ac0] sm:$0xff]
                %864 = vst [vmem:[%s178 + $0xab0] sm:$0xff] %v863
                %v865 = vld [vmem:[%s177 + $0x2ae0] sm:$0xff]
                %866 = vst [vmem:[%s178 + $0xab8] sm:$0xff] %v865
                %v867 = vld [vmem:[%s177 + $0x2b00] sm:$0xff]
                %868 = vst [vmem:[%s178 + $0xac0] sm:$0xff] %v867
                %v869 = vld [vmem:[%s177 + $0x2b20] sm:$0xff]
                %870 = vst [vmem:[%s178 + $0xac8] sm:$0xff] %v869
                %v871 = vld [vmem:[%s177 + $0x2b40] sm:$0xff]
                %872 = vst [vmem:[%s178 + $0xad0] sm:$0xff] %v871
                %v873 = vld [vmem:[%s177 + $0x2b60] sm:$0xff]
                %874 = vst [vmem:[%s178 + $0xad8] sm:$0xff] %v873
                %v875 = vld [vmem:[%s177 + $0x2b80] sm:$0xff]
                %876 = vst [vmem:[%s178 + $0xae0] sm:$0xff] %v875
                %v877 = vld [vmem:[%s177 + $0x2ba0] sm:$0xff]
                %878 = vst [vmem:[%s178 + $0xae8] sm:$0xff] %v877
                %v879 = vld [vmem:[%s177 + $0x2bc0] sm:$0xff]
                %880 = vst [vmem:[%s178 + $0xaf0] sm:$0xff] %v879
                %v881 = vld [vmem:[%s177 + $0x2be0] sm:$0xff]
                %882 = vst [vmem:[%s178 + $0xaf8] sm:$0xff] %v881
                %v883 = vld [vmem:[%s177 + $0x2c00] sm:$0xff]
                %884 = vst [vmem:[%s178 + $0xb00] sm:$0xff] %v883
                %v885 = vld [vmem:[%s177 + $0x2c20] sm:$0xff]
                %886 = vst [vmem:[%s178 + $0xb08] sm:$0xff] %v885
                %v887 = vld [vmem:[%s177 + $0x2c40] sm:$0xff]
                %888 = vst [vmem:[%s178 + $0xb10] sm:$0xff] %v887
                %v889 = vld [vmem:[%s177 + $0x2c60] sm:$0xff]
                %890 = vst [vmem:[%s178 + $0xb18] sm:$0xff] %v889
                %v891 = vld [vmem:[%s177 + $0x2c80] sm:$0xff]
                %892 = vst [vmem:[%s178 + $0xb20] sm:$0xff] %v891
                %v893 = vld [vmem:[%s177 + $0x2ca0] sm:$0xff]
                %894 = vst [vmem:[%s178 + $0xb28] sm:$0xff] %v893
                %v895 = vld [vmem:[%s177 + $0x2cc0] sm:$0xff]
                %896 = vst [vmem:[%s178 + $0xb30] sm:$0xff] %v895
                %v897 = vld [vmem:[%s177 + $0x2ce0] sm:$0xff]
                %898 = vst [vmem:[%s178 + $0xb38] sm:$0xff] %v897
                %v899 = vld [vmem:[%s177 + $0x2d00] sm:$0xff]
                %900 = vst [vmem:[%s178 + $0xb40] sm:$0xff] %v899
                %v901 = vld [vmem:[%s177 + $0x2d20] sm:$0xff]
                %902 = vst [vmem:[%s178 + $0xb48] sm:$0xff] %v901
                %v903 = vld [vmem:[%s177 + $0x2d40] sm:$0xff]
                %904 = vst [vmem:[%s178 + $0xb50] sm:$0xff] %v903
                %v905 = vld [vmem:[%s177 + $0x2d60] sm:$0xff]
                %906 = vst [vmem:[%s178 + $0xb58] sm:$0xff] %v905
                %v907 = vld [vmem:[%s177 + $0x2d80] sm:$0xff]
                %908 = vst [vmem:[%s178 + $0xb60] sm:$0xff] %v907
                %v909 = vld [vmem:[%s177 + $0x2da0] sm:$0xff]
                %910 = vst [vmem:[%s178 + $0xb68] sm:$0xff] %v909
                %v911 = vld [vmem:[%s177 + $0x2dc0] sm:$0xff]
                %912 = vst [vmem:[%s178 + $0xb70] sm:$0xff] %v911
                %v913 = vld [vmem:[%s177 + $0x2de0] sm:$0xff]
                %914 = vst [vmem:[%s178 + $0xb78] sm:$0xff] %v913
                %v915 = vld [vmem:[%s177 + $0x2e00] sm:$0xff]
                %916 = vst [vmem:[%s178 + $0xb80] sm:$0xff] %v915
                %v917 = vld [vmem:[%s177 + $0x2e20] sm:$0xff]
                %918 = vst [vmem:[%s178 + $0xb88] sm:$0xff] %v917
                %v919 = vld [vmem:[%s177 + $0x2e40] sm:$0xff]
                %920 = vst [vmem:[%s178 + $0xb90] sm:$0xff] %v919
                %v921 = vld [vmem:[%s177 + $0x2e60] sm:$0xff]
                %922 = vst [vmem:[%s178 + $0xb98] sm:$0xff] %v921
                %v923 = vld [vmem:[%s177 + $0x2e80] sm:$0xff]
                %924 = vst [vmem:[%s178 + $0xba0] sm:$0xff] %v923
                %v925 = vld [vmem:[%s177 + $0x2ea0] sm:$0xff]
                %926 = vst [vmem:[%s178 + $0xba8] sm:$0xff] %v925
                %v927 = vld [vmem:[%s177 + $0x2ec0] sm:$0xff]
                %928 = vst [vmem:[%s178 + $0xbb0] sm:$0xff] %v927
                %v929 = vld [vmem:[%s177 + $0x2ee0] sm:$0xff]
                %930 = vst [vmem:[%s178 + $0xbb8] sm:$0xff] %v929
                %v931 = vld [vmem:[%s177 + $0x2f00] sm:$0xff]
                %932 = vst [vmem:[%s178 + $0xbc0] sm:$0xff] %v931
                %v933 = vld [vmem:[%s177 + $0x2f20] sm:$0xff]
                %934 = vst [vmem:[%s178 + $0xbc8] sm:$0xff] %v933
                %v935 = vld [vmem:[%s177 + $0x2f40] sm:$0xff]
                %936 = vst [vmem:[%s178 + $0xbd0] sm:$0xff] %v935
                %v937 = vld [vmem:[%s177 + $0x2f60] sm:$0xff]
                %938 = vst [vmem:[%s178 + $0xbd8] sm:$0xff] %v937
                %v939 = vld [vmem:[%s177 + $0x2f80] sm:$0xff]
                %940 = vst [vmem:[%s178 + $0xbe0] sm:$0xff] %v939
                %v941 = vld [vmem:[%s177 + $0x2fa0] sm:$0xff]
                %942 = vst [vmem:[%s178 + $0xbe8] sm:$0xff] %v941
                %v943 = vld [vmem:[%s177 + $0x2fc0] sm:$0xff]
                %944 = vst [vmem:[%s178 + $0xbf0] sm:$0xff] %v943
                %v945 = vld [vmem:[%s177 + $0x2fe0] sm:$0xff]
                %946 = vst [vmem:[%s178 + $0xbf8] sm:$0xff] %v945
                %v947 = vld [vmem:[%s177 + $0x3000] sm:$0xff]
                %948 = vst [vmem:[%s178 + $0xc00] sm:$0xff] %v947
                %v949 = vld [vmem:[%s177 + $0x3020] sm:$0xff]
                %950 = vst [vmem:[%s178 + $0xc08] sm:$0xff] %v949
                %v951 = vld [vmem:[%s177 + $0x3040] sm:$0xff]
                %952 = vst [vmem:[%s178 + $0xc10] sm:$0xff] %v951
                %v953 = vld [vmem:[%s177 + $0x3060] sm:$0xff]
                %954 = vst [vmem:[%s178 + $0xc18] sm:$0xff] %v953
                %v955 = vld [vmem:[%s177 + $0x3080] sm:$0xff]
                %956 = vst [vmem:[%s178 + $0xc20] sm:$0xff] %v955
                %v957 = vld [vmem:[%s177 + $0x30a0] sm:$0xff]
                %958 = vst [vmem:[%s178 + $0xc28] sm:$0xff] %v957
                %v959 = vld [vmem:[%s177 + $0x30c0] sm:$0xff]
                %960 = vst [vmem:[%s178 + $0xc30] sm:$0xff] %v959
                %v961 = vld [vmem:[%s177 + $0x30e0] sm:$0xff]
                %962 = vst [vmem:[%s178 + $0xc38] sm:$0xff] %v961
              $region41: #{dueling_dqn_forward.8} parent=35 // loop_footer
                %s176 = sadd.s32 1, %s172
              $region42: #{dueling_dqn_forward.8} parent=35 // loop_footer_branch
                %171 = sbr.rel target = $region38
              $region43: #{dueling_dqn_forward.8} parent=35 // loop_exit
                _
            $region36: #{dueling_dqn_forward.8} parent=27 // pred_fallthru
              _
          $region28: #{dueling_dqn_forward.8} parent=23 // pred_fallthru
            _
          %1759 = vnop
        $region24: #{dueling_dqn_forward.8} parent=19 // pred_fallthru
          _
        // Predicated region
        $region59: #{dueling_dqn_forward.8} parent=19 // pred_check
          %p1760 = pneg %p93
        $region60: #{dueling_dqn_forward.8} parent=19 // pred_check_branch
          %1762 = sbr.rel (%p1760) target = $region62
        $region61: #{dueling_dqn_forward.8} parent=19 // pred_region
          %s1763 = smul.u32 2, %s17
          %p1764 = scmp.lt.s32.totalorder %s1763, 7
          %s1765 = scalar_select %p1764, %s1763, 7
          %s1766 = scalar_lea.vmem %s2, %s1765
          %s1767 = smul.u32 2, %s17
        $region62: #{dueling_dqn_forward.8} parent=19 // pred_fallthru
          _
      $region20: #{dueling_dqn_forward.8} parent=5 // pred_fallthru
        _
      %p1768 = scmp.le.s32.totalorder 1, %s9
      %p1769 = scmp.lt.s32.totalorder %s9, 5
      %p1770 = pnand %p1768, %p1769
      %p1771 = pneg %p1770
      // Predicated region
      $region63: #{dueling_dqn_forward.8} parent=5 // pred_check
        _
      $region64: #{dueling_dqn_forward.8} parent=5 // pred_check_branch
        %1773 = sbr.rel (%p1770) target = $region66
      $region65: #{dueling_dqn_forward.8} parent=5 // pred_region
        %s1774 = ssub.s32 %s9, 1
        %s1775 = sand.u32 %s60, 1
        %s1776 = sand.u32 %s60, 1
        %s1777 = smul.addr %s1776, 3136
        %s1778 = scalar_lea.vmem [#allocation2], %s1777
        // Predicated region
        $region67: #{dueling_dqn_forward.8} parent=65 // pred_check
          %p1779 = pneg %p73
        $region68: #{dueling_dqn_forward.8} parent=65 // pred_check_branch
          %1781 = sbr.rel (%p1779) target = $region70
        $region69: #{dueling_dqn_forward.8} parent=65 // pred_region
          _
        $region70: #{dueling_dqn_forward.8} parent=65 // pred_fallthru
          _
        %p1782 = scmp.lt.s32.totalorder %s18, 0
        %s1783 = scalar_select %p1782, %s18, 0
        %s1784 = smul.addr %s1783, 25
        %s1785 = smul.addr %s1784, 4
        %s1786 = scalar_lea.vmem %s0, %s1785
        %p1787 = pneg %p47
        %p1788 = pneg %p44
        %s1789 = sand.u32 %s60, 1
        %s1790 = sand.u32 %s60, 1
        %s1791 = smul.addr %s1790, 3136
        %s1792 = scalar_lea.vmem [#allocation2], %s1791
        %p1793 = pneg %p73
        %p1794 = pneg %p70
        %s1795 = smul.u32 2, %s19
        %p1796 = scmp.lt.s32.totalorder %s1795, 7
        %s1797 = scalar_select %p1796, %s1795, 7
        %s1798 = scalar_lea.vmem %s2, %s1797
        %p1799 = pneg %p99
        %p1800 = pneg %p96
        %p1801 = pneg %p127
        %p1802 = pneg %p124
        %s1803 = smul.u32 2, %s19
        %p1804 = scmp.lt.s32.totalorder %s18, 0
        %s1805 = scalar_select %p1804, %s18, 0
        %p1806 = scmp.lt.s32.totalorder %s1803, 7
        %s1807 = scalar_select %p1806, %s1803, 7
        %s1808 = smul.addr %s1805, 8
        %s1809 = sadd.s32 %s1807, %s1808
        %s1810 = smul.addr %s1809, 4
        %s1811 = scalar_lea.vmem %s3, %s1810
        %p1812 = scmp.lt.s32.totalorder %s18, 0
        %s1813 = scalar_select %p1812, %s18, 0
        %s1814 = smul.addr %s1813, 25
        %s1815 = smul.addr %s1814, 4
        %s1816 = scalar_lea.vmem %s0, %s1815
        %s1817 = smul.u32 2, %s19
        %s1818 = smul.u32 2, %s19
        %p1819 = scmp.lt.s32.totalorder %s1818, 7
        %s1820 = scalar_select %p1819, %s1818, 7
        %s1821 = scalar_lea.vmem %s2, %s1820
        %s1822 = smul.u32 2, %s19
        %s1823 = smul.u32 2, %s19
        %p1824 = scmp.lt.s32.totalorder %s18, 0
        %s1825 = scalar_select %p1824, %s18, 0
        %p1826 = scmp.lt.s32.totalorder %s1823, 7
        %s1827 = scalar_select %p1826, %s1823, 7
        %s1828 = smul.addr %s1825, 8
        %s1829 = sadd.s32 %s1827, %s1828
        %s1830 = smul.addr %s1829, 4
        %s1831 = scalar_lea.vmem %s3, %s1830
        %s1832 = smul.u32 2, %s19
        %v1834 = vld [vmem:[%s1816] sm:$0xff]
        %v1835 = vld [vmem:[%s1816 + $0x8] sm:$0xff]
        %v1836 = vld [vmem:[%s1816 + $0x10] sm:$0xff]
        %v1837 = vld [vmem:[%s1816 + $0x18] sm:$0xff]
        %v1838 = vld [vmem:[%s1816 + $0x20] sm:$0xff]
        %v1839 = vld [vmem:[%s1816 + $0x28] sm:$0xff]
        %v1840 = vld [vmem:[%s1816 + $0x30] sm:$0xff]
        %v1841 = vld [vmem:[%s1816 + $0x38] sm:$0xff]
        %v1842 = vld [vmem:[%s1816 + $0x40] sm:$0xff]
        %v1843 = vld [vmem:[%s1816 + $0x48] sm:$0xff]
        %v1844 = vld [vmem:[%s1816 + $0x50] sm:$0xff]
        %v1845 = vld [vmem:[%s1816 + $0x58] sm:$0xff]
        %v1846 = vld [vmem:[%s1816 + $0x60] sm:$0xf]
        %v1847 = vld [vmem:[%s1778] sm:$0xff]
        %v1848 = vld [vmem:[%s1778 + $0x8] sm:$0xff]
        %v1849 = vld [vmem:[%s1778 + $0x10] sm:$0xff]
        %v1850 = vld [vmem:[%s1778 + $0x18] sm:$0xff]
        %v1851 = vld [vmem:[%s1778 + $0x20] sm:$0xff]
        %v1852 = vld [vmem:[%s1778 + $0x28] sm:$0xff]
        %v1853 = vld [vmem:[%s1778 + $0x30] sm:$0xff]
        %v1854 = vld [vmem:[%s1778 + $0x38] sm:$0xff]
        %v1855 = vld [vmem:[%s1778 + $0x40] sm:$0xff]
        %v1856 = vld [vmem:[%s1778 + $0x48] sm:$0xff]
        %v1857 = vld [vmem:[%s1778 + $0x50] sm:$0xff]
        %v1858 = vld [vmem:[%s1778 + $0x58] sm:$0xff]
        %v1859 = vld [vmem:[%s1778 + $0x60] sm:$0xff]
        %v1860 = vld [vmem:[%s1778 + $0x68] sm:$0xff]
        %v1861 = vld [vmem:[%s1778 + $0x70] sm:$0xff]
        %v1862 = vld [vmem:[%s1778 + $0x78] sm:$0xff]
        %v1863 = vld [vmem:[%s1778 + $0x80] sm:$0xff]
        %v1864 = vld [vmem:[%s1778 + $0x88] sm:$0xff]
        %v1865 = vld [vmem:[%s1778 + $0x90] sm:$0xff]
        %v1866 = vld [vmem:[%s1778 + $0x98] sm:$0xff]
        %v1867 = vld [vmem:[%s1778 + $0xa0] sm:$0xff]
        %v1868 = vld [vmem:[%s1778 + $0xa8] sm:$0xff]
        %v1869 = vld [vmem:[%s1778 + $0xb0] sm:$0xff]
        %v1870 = vld [vmem:[%s1778 + $0xb8] sm:$0xff]
        %v1871 = vld [vmem:[%s1778 + $0xc0] sm:$0xff]
        %v1872 = vld [vmem:[%s1778 + $0xc8] sm:$0xff]
        %v1873 = vld [vmem:[%s1778 + $0xd0] sm:$0xff]
        %v1874 = vld [vmem:[%s1778 + $0xd8] sm:$0xff]
        %v1875 = vld [vmem:[%s1778 + $0xe0] sm:$0xff]
        %v1876 = vld [vmem:[%s1778 + $0xe8] sm:$0xff]
        %v1877 = vld [vmem:[%s1778 + $0xf0] sm:$0xff]
        %v1878 = vld [vmem:[%s1778 + $0xf8] sm:$0xff]
        %v1879 = vld [vmem:[%s1778 + $0x100] sm:$0xff]
        %v1880 = vld [vmem:[%s1778 + $0x108] sm:$0xff]
        %v1881 = vld [vmem:[%s1778 + $0x110] sm:$0xff]
        %v1882 = vld [vmem:[%s1778 + $0x118] sm:$0xff]
        %v1883 = vld [vmem:[%s1778 + $0x120] sm:$0xff]
        %v1884 = vld [vmem:[%s1778 + $0x128] sm:$0xff]
        %v1885 = vld [vmem:[%s1778 + $0x130] sm:$0xff]
        %v1886 = vld [vmem:[%s1778 + $0x138] sm:$0xff]
        %v1887 = vld [vmem:[%s1778 + $0x140] sm:$0xff]
        %v1888 = vld [vmem:[%s1778 + $0x148] sm:$0xff]
        %v1889 = vld [vmem:[%s1778 + $0x150] sm:$0xff]
        %v1890 = vld [vmem:[%s1778 + $0x158] sm:$0xff]
        %v1891 = vld [vmem:[%s1778 + $0x160] sm:$0xff]
        %v1892 = vld [vmem:[%s1778 + $0x168] sm:$0xff]
        %v1893 = vld [vmem:[%s1778 + $0x170] sm:$0xff]
        %v1894 = vld [vmem:[%s1778 + $0x178] sm:$0xff]
        %v1895 = vld [vmem:[%s1778 + $0x180] sm:$0xff]
        %v1896 = vld [vmem:[%s1778 + $0x188] sm:$0xff]
        %v1897 = vld [vmem:[%s1778 + $0x190] sm:$0xff]
        %v1898 = vld [vmem:[%s1778 + $0x198] sm:$0xff]
        %v1899 = vld [vmem:[%s1778 + $0x1a0] sm:$0xff]
        %v1900 = vld [vmem:[%s1778 + $0x1a8] sm:$0xff]
        %v1901 = vld [vmem:[%s1778 + $0x1b0] sm:$0xff]
        %v1902 = vld [vmem:[%s1778 + $0x1b8] sm:$0xff]
        %v1903 = vld [vmem:[%s1778 + $0x1c0] sm:$0xff]
        %v1904 = vld [vmem:[%s1778 + $0x1c8] sm:$0xff]
        %v1905 = vld [vmem:[%s1778 + $0x1d0] sm:$0xff]
        %v1906 = vld [vmem:[%s1778 + $0x1d8] sm:$0xff]
        %v1907 = vld [vmem:[%s1778 + $0x1e0] sm:$0xff]
        %v1908 = vld [vmem:[%s1778 + $0x1e8] sm:$0xff]
        %v1909 = vld [vmem:[%s1778 + $0x1f0] sm:$0xff]
        %v1910 = vld [vmem:[%s1778 + $0x1f8] sm:$0xff]
        %v1911 = vld [vmem:[%s1778 + $0x200] sm:$0xff]
        %v1912 = vld [vmem:[%s1778 + $0x208] sm:$0xff]
        %v1913 = vld [vmem:[%s1778 + $0x210] sm:$0xff]
        %v1914 = vld [vmem:[%s1778 + $0x218] sm:$0xff]
        %v1915 = vld [vmem:[%s1778 + $0x220] sm:$0xff]
        %v1916 = vld [vmem:[%s1778 + $0x228] sm:$0xff]
        %v1917 = vld [vmem:[%s1778 + $0x230] sm:$0xff]
        %v1918 = vld [vmem:[%s1778 + $0x238] sm:$0xff]
        %v1919 = vld [vmem:[%s1778 + $0x240] sm:$0xff]
        %v1920 = vld [vmem:[%s1778 + $0x248] sm:$0xff]
        %v1921 = vld [vmem:[%s1778 + $0x250] sm:$0xff]
        %v1922 = vld [vmem:[%s1778 + $0x258] sm:$0xff]
        %v1923 = vld [vmem:[%s1778 + $0x260] sm:$0xff]
        %v1924 = vld [vmem:[%s1778 + $0x268] sm:$0xff]
        %v1925 = vld [vmem:[%s1778 + $0x270] sm:$0xff]
        %v1926 = vld [vmem:[%s1778 + $0x278] sm:$0xff]
        %v1927 = vld [vmem:[%s1778 + $0x280] sm:$0xff]
        %v1928 = vld [vmem:[%s1778 + $0x288] sm:$0xff]
        %v1929 = vld [vmem:[%s1778 + $0x290] sm:$0xff]
        %v1930 = vld [vmem:[%s1778 + $0x298] sm:$0xff]
        %v1931 = vld [vmem:[%s1778 + $0x2a0] sm:$0xff]
        %v1932 = vld [vmem:[%s1778 + $0x2a8] sm:$0xff]
        %v1933 = vld [vmem:[%s1778 + $0x2b0] sm:$0xff]
        %v1934 = vld [vmem:[%s1778 + $0x2b8] sm:$0xff]
        %v1935 = vld [vmem:[%s1778 + $0x2c0] sm:$0xff]
        %v1936 = vld [vmem:[%s1778 + $0x2c8] sm:$0xff]
        %v1937 = vld [vmem:[%s1778 + $0x2d0] sm:$0xff]
        %v1938 = vld [vmem:[%s1778 + $0x2d8] sm:$0xff]
        %v1939 = vld [vmem:[%s1778 + $0x2e0] sm:$0xff]
        %v1940 = vld [vmem:[%s1778 + $0x2e8] sm:$0xff]
        %v1941 = vld [vmem:[%s1778 + $0x2f0] sm:$0xff]
        %v1942 = vld [vmem:[%s1778 + $0x2f8] sm:$0xff]
        %v1943 = vld [vmem:[%s1778 + $0x300] sm:$0xff]
        %v1944 = vld [vmem:[%s1778 + $0x308] sm:$0xff]
        %v1945 = vld [vmem:[%s1778 + $0x310] sm:$0xff]
        %v1946 = vld [vmem:[%s1778 + $0x318] sm:$0xff]
        %v1947 = vld [vmem:[%s1778 + $0x320] sm:$0xff]
        %v1948 = vld [vmem:[%s1778 + $0x328] sm:$0xff]
        %v1949 = vld [vmem:[%s1778 + $0x330] sm:$0xff]
        %v1950 = vld [vmem:[%s1778 + $0x338] sm:$0xff]
        %v1951 = vld [vmem:[%s1778 + $0x340] sm:$0xff]
        %v1952 = vld [vmem:[%s1778 + $0x348] sm:$0xff]
        %v1953 = vld [vmem:[%s1778 + $0x350] sm:$0xff]
        %v1954 = vld [vmem:[%s1778 + $0x358] sm:$0xff]
        %v1955 = vld [vmem:[%s1778 + $0x360] sm:$0xff]
        %v1956 = vld [vmem:[%s1778 + $0x368] sm:$0xff]
        %v1957 = vld [vmem:[%s1778 + $0x370] sm:$0xff]
        %v1958 = vld [vmem:[%s1778 + $0x378] sm:$0xff]
        %v1959 = vld [vmem:[%s1778 + $0x380] sm:$0xff]
        %v1960 = vld [vmem:[%s1778 + $0x388] sm:$0xff]
        %v1961 = vld [vmem:[%s1778 + $0x390] sm:$0xff]
        %v1962 = vld [vmem:[%s1778 + $0x398] sm:$0xff]
        %v1963 = vld [vmem:[%s1778 + $0x3a0] sm:$0xff]
        %v1964 = vld [vmem:[%s1778 + $0x3a8] sm:$0xff]
        %v1965 = vld [vmem:[%s1778 + $0x3b0] sm:$0xff]
        %v1966 = vld [vmem:[%s1778 + $0x3b8] sm:$0xff]
        %v1967 = vld [vmem:[%s1778 + $0x3c0] sm:$0xff]
        %v1968 = vld [vmem:[%s1778 + $0x3c8] sm:$0xff]
        %v1969 = vld [vmem:[%s1778 + $0x3d0] sm:$0xff]
        %v1970 = vld [vmem:[%s1778 + $0x3d8] sm:$0xff]
        %v1971 = vld [vmem:[%s1778 + $0x3e0] sm:$0xff]
        %v1972 = vld [vmem:[%s1778 + $0x3e8] sm:$0xff]
        %v1973 = vld [vmem:[%s1778 + $0x3f0] sm:$0xff]
        %v1974 = vld [vmem:[%s1778 + $0x3f8] sm:$0xff]
        %v1975 = vld [vmem:[%s1778 + $0x400] sm:$0xff]
        %v1976 = vld [vmem:[%s1778 + $0x408] sm:$0xff]
        %v1977 = vld [vmem:[%s1778 + $0x410] sm:$0xff]
        %v1978 = vld [vmem:[%s1778 + $0x418] sm:$0xff]
        %v1979 = vld [vmem:[%s1778 + $0x420] sm:$0xff]
        %v1980 = vld [vmem:[%s1778 + $0x428] sm:$0xff]
        %v1981 = vld [vmem:[%s1778 + $0x430] sm:$0xff]
        %v1982 = vld [vmem:[%s1778 + $0x438] sm:$0xff]
        %v1983 = vld [vmem:[%s1778 + $0x440] sm:$0xff]
        %v1984 = vld [vmem:[%s1778 + $0x448] sm:$0xff]
        %v1985 = vld [vmem:[%s1778 + $0x450] sm:$0xff]
        %v1986 = vld [vmem:[%s1778 + $0x458] sm:$0xff]
        %v1987 = vld [vmem:[%s1778 + $0x460] sm:$0xff]
        %v1988 = vld [vmem:[%s1778 + $0x468] sm:$0xff]
        %v1989 = vld [vmem:[%s1778 + $0x470] sm:$0xff]
        %v1990 = vld [vmem:[%s1778 + $0x478] sm:$0xff]
        %v1991 = vld [vmem:[%s1778 + $0x480] sm:$0xff]
        %v1992 = vld [vmem:[%s1778 + $0x488] sm:$0xff]
        %v1993 = vld [vmem:[%s1778 + $0x490] sm:$0xff]
        %v1994 = vld [vmem:[%s1778 + $0x498] sm:$0xff]
        %v1995 = vld [vmem:[%s1778 + $0x4a0] sm:$0xff]
        %v1996 = vld [vmem:[%s1778 + $0x4a8] sm:$0xff]
        %v1997 = vld [vmem:[%s1778 + $0x4b0] sm:$0xff]
        %v1998 = vld [vmem:[%s1778 + $0x4b8] sm:$0xff]
        %v1999 = vld [vmem:[%s1778 + $0x4c0] sm:$0xff]
        %v2000 = vld [vmem:[%s1778 + $0x4c8] sm:$0xff]
        %v2001 = vld [vmem:[%s1778 + $0x4d0] sm:$0xff]
        %v2002 = vld [vmem:[%s1778 + $0x4d8] sm:$0xff]
        %v2003 = vld [vmem:[%s1778 + $0x4e0] sm:$0xff]
        %v2004 = vld [vmem:[%s1778 + $0x4e8] sm:$0xff]
        %v2005 = vld [vmem:[%s1778 + $0x4f0] sm:$0xff]
        %v2006 = vld [vmem:[%s1778 + $0x4f8] sm:$0xff]
        %v2007 = vld [vmem:[%s1778 + $0x500] sm:$0xff]
        %v2008 = vld [vmem:[%s1778 + $0x508] sm:$0xff]
        %v2009 = vld [vmem:[%s1778 + $0x510] sm:$0xff]
        %v2010 = vld [vmem:[%s1778 + $0x518] sm:$0xff]
        %v2011 = vld [vmem:[%s1778 + $0x520] sm:$0xff]
        %v2012 = vld [vmem:[%s1778 + $0x528] sm:$0xff]
        %v2013 = vld [vmem:[%s1778 + $0x530] sm:$0xff]
        %v2014 = vld [vmem:[%s1778 + $0x538] sm:$0xff]
        %v2015 = vld [vmem:[%s1778 + $0x540] sm:$0xff]
        %v2016 = vld [vmem:[%s1778 + $0x548] sm:$0xff]
        %v2017 = vld [vmem:[%s1778 + $0x550] sm:$0xff]
        %v2018 = vld [vmem:[%s1778 + $0x558] sm:$0xff]
        %v2019 = vld [vmem:[%s1778 + $0x560] sm:$0xff]
        %v2020 = vld [vmem:[%s1778 + $0x568] sm:$0xff]
        %v2021 = vld [vmem:[%s1778 + $0x570] sm:$0xff]
        %v2022 = vld [vmem:[%s1778 + $0x578] sm:$0xff]
        %v2023 = vld [vmem:[%s1778 + $0x580] sm:$0xff]
        %v2024 = vld [vmem:[%s1778 + $0x588] sm:$0xff]
        %v2025 = vld [vmem:[%s1778 + $0x590] sm:$0xff]
        %v2026 = vld [vmem:[%s1778 + $0x598] sm:$0xff]
        %v2027 = vld [vmem:[%s1778 + $0x5a0] sm:$0xff]
        %v2028 = vld [vmem:[%s1778 + $0x5a8] sm:$0xff]
        %v2029 = vld [vmem:[%s1778 + $0x5b0] sm:$0xff]
        %v2030 = vld [vmem:[%s1778 + $0x5b8] sm:$0xff]
        %v2031 = vld [vmem:[%s1778 + $0x5c0] sm:$0xff]
        %v2032 = vld [vmem:[%s1778 + $0x5c8] sm:$0xff]
        %v2033 = vld [vmem:[%s1778 + $0x5d0] sm:$0xff]
        %v2034 = vld [vmem:[%s1778 + $0x5d8] sm:$0xff]
        %v2035 = vld [vmem:[%s1778 + $0x5e0] sm:$0xff]
        %v2036 = vld [vmem:[%s1778 + $0x5e8] sm:$0xff]
        %v2037 = vld [vmem:[%s1778 + $0x5f0] sm:$0xff]
        %v2038 = vld [vmem:[%s1778 + $0x5f8] sm:$0xff]
        %v2039 = vld [vmem:[%s1778 + $0x600] sm:$0xff]
        %v2040 = vld [vmem:[%s1778 + $0x608] sm:$0xff]
        %v2041 = vld [vmem:[%s1778 + $0x610] sm:$0xff]
        %v2042 = vld [vmem:[%s1778 + $0x618] sm:$0xff]
        %v2043 = vld [vmem:[%s1778 + $0x620] sm:$0xff]
        %v2044 = vld [vmem:[%s1778 + $0x628] sm:$0xff]
        %v2045 = vld [vmem:[%s1778 + $0x630] sm:$0xff]
        %v2046 = vld [vmem:[%s1778 + $0x638] sm:$0xff]
        %v2047 = vld [vmem:[%s1778 + $0x640] sm:$0xff]
        %v2048 = vld [vmem:[%s1778 + $0x648] sm:$0xff]
        %v2049 = vld [vmem:[%s1778 + $0x650] sm:$0xff]
        %v2050 = vld [vmem:[%s1778 + $0x658] sm:$0xff]
        %v2051 = vld [vmem:[%s1778 + $0x660] sm:$0xff]
        %v2052 = vld [vmem:[%s1778 + $0x668] sm:$0xff]
        %v2053 = vld [vmem:[%s1778 + $0x670] sm:$0xff]
        %v2054 = vld [vmem:[%s1778 + $0x678] sm:$0xff]
        %v2055 = vld [vmem:[%s1778 + $0x680] sm:$0xff]
        %v2056 = vld [vmem:[%s1778 + $0x688] sm:$0xff]
        %v2057 = vld [vmem:[%s1778 + $0x690] sm:$0xff]
        %v2058 = vld [vmem:[%s1778 + $0x698] sm:$0xff]
        %v2059 = vld [vmem:[%s1778 + $0x6a0] sm:$0xff]
        %v2060 = vld [vmem:[%s1778 + $0x6a8] sm:$0xff]
        %v2061 = vld [vmem:[%s1778 + $0x6b0] sm:$0xff]
        %v2062 = vld [vmem:[%s1778 + $0x6b8] sm:$0xff]
        %v2063 = vld [vmem:[%s1778 + $0x6c0] sm:$0xff]
        %v2064 = vld [vmem:[%s1778 + $0x6c8] sm:$0xff]
        %v2065 = vld [vmem:[%s1778 + $0x6d0] sm:$0xff]
        %v2066 = vld [vmem:[%s1778 + $0x6d8] sm:$0xff]
        %v2067 = vld [vmem:[%s1778 + $0x6e0] sm:$0xff]
        %v2068 = vld [vmem:[%s1778 + $0x6e8] sm:$0xff]
        %v2069 = vld [vmem:[%s1778 + $0x6f0] sm:$0xff]
        %v2070 = vld [vmem:[%s1778 + $0x6f8] sm:$0xff]
        %v2071 = vld [vmem:[%s1778 + $0x700] sm:$0xff]
        %v2072 = vld [vmem:[%s1778 + $0x708] sm:$0xff]
        %v2073 = vld [vmem:[%s1778 + $0x710] sm:$0xff]
        %v2074 = vld [vmem:[%s1778 + $0x718] sm:$0xff]
        %v2075 = vld [vmem:[%s1778 + $0x720] sm:$0xff]
        %v2076 = vld [vmem:[%s1778 + $0x728] sm:$0xff]
        %v2077 = vld [vmem:[%s1778 + $0x730] sm:$0xff]
        %v2078 = vld [vmem:[%s1778 + $0x738] sm:$0xff]
        %v2079 = vld [vmem:[%s1778 + $0x740] sm:$0xff]
        %v2080 = vld [vmem:[%s1778 + $0x748] sm:$0xff]
        %v2081 = vld [vmem:[%s1778 + $0x750] sm:$0xff]
        %v2082 = vld [vmem:[%s1778 + $0x758] sm:$0xff]
        %v2083 = vld [vmem:[%s1778 + $0x760] sm:$0xff]
        %v2084 = vld [vmem:[%s1778 + $0x768] sm:$0xff]
        %v2085 = vld [vmem:[%s1778 + $0x770] sm:$0xff]
        %v2086 = vld [vmem:[%s1778 + $0x778] sm:$0xff]
        %v2087 = vld [vmem:[%s1778 + $0x780] sm:$0xff]
        %v2088 = vld [vmem:[%s1778 + $0x788] sm:$0xff]
        %v2089 = vld [vmem:[%s1778 + $0x790] sm:$0xff]
        %v2090 = vld [vmem:[%s1778 + $0x798] sm:$0xff]
        %v2091 = vld [vmem:[%s1778 + $0x7a0] sm:$0xff]
        %v2092 = vld [vmem:[%s1778 + $0x7a8] sm:$0xff]
        %v2093 = vld [vmem:[%s1778 + $0x7b0] sm:$0xff]
        %v2094 = vld [vmem:[%s1778 + $0x7b8] sm:$0xff]
        %v2095 = vld [vmem:[%s1778 + $0x7c0] sm:$0xff]
        %v2096 = vld [vmem:[%s1778 + $0x7c8] sm:$0xff]
        %v2097 = vld [vmem:[%s1778 + $0x7d0] sm:$0xff]
        %v2098 = vld [vmem:[%s1778 + $0x7d8] sm:$0xff]
        %v2099 = vld [vmem:[%s1778 + $0x7e0] sm:$0xff]
        %v2100 = vld [vmem:[%s1778 + $0x7e8] sm:$0xff]
        %v2101 = vld [vmem:[%s1778 + $0x7f0] sm:$0xff]
        %v2102 = vld [vmem:[%s1778 + $0x7f8] sm:$0xff]
        %v2103 = vld [vmem:[%s1778 + $0x800] sm:$0xff]
        %v2104 = vld [vmem:[%s1778 + $0x808] sm:$0xff]
        %v2105 = vld [vmem:[%s1778 + $0x810] sm:$0xff]
        %v2106 = vld [vmem:[%s1778 + $0x818] sm:$0xff]
        %v2107 = vld [vmem:[%s1778 + $0x820] sm:$0xff]
        %v2108 = vld [vmem:[%s1778 + $0x828] sm:$0xff]
        %v2109 = vld [vmem:[%s1778 + $0x830] sm:$0xff]
        %v2110 = vld [vmem:[%s1778 + $0x838] sm:$0xff]
        %v2111 = vld [vmem:[%s1778 + $0x840] sm:$0xff]
        %v2112 = vld [vmem:[%s1778 + $0x848] sm:$0xff]
        %v2113 = vld [vmem:[%s1778 + $0x850] sm:$0xff]
        %v2114 = vld [vmem:[%s1778 + $0x858] sm:$0xff]
        %v2115 = vld [vmem:[%s1778 + $0x860] sm:$0xff]
        %v2116 = vld [vmem:[%s1778 + $0x868] sm:$0xff]
        %v2117 = vld [vmem:[%s1778 + $0x870] sm:$0xff]
        %v2118 = vld [vmem:[%s1778 + $0x878] sm:$0xff]
        %v2119 = vld [vmem:[%s1778 + $0x880] sm:$0xff]
        %v2120 = vld [vmem:[%s1778 + $0x888] sm:$0xff]
        %v2121 = vld [vmem:[%s1778 + $0x890] sm:$0xff]
        %v2122 = vld [vmem:[%s1778 + $0x898] sm:$0xff]
        %v2123 = vld [vmem:[%s1778 + $0x8a0] sm:$0xff]
        %v2124 = vld [vmem:[%s1778 + $0x8a8] sm:$0xff]
        %v2125 = vld [vmem:[%s1778 + $0x8b0] sm:$0xff]
        %v2126 = vld [vmem:[%s1778 + $0x8b8] sm:$0xff]
        %v2127 = vld [vmem:[%s1778 + $0x8c0] sm:$0xff]
        %v2128 = vld [vmem:[%s1778 + $0x8c8] sm:$0xff]
        %v2129 = vld [vmem:[%s1778 + $0x8d0] sm:$0xff]
        %v2130 = vld [vmem:[%s1778 + $0x8d8] sm:$0xff]
        %v2131 = vld [vmem:[%s1778 + $0x8e0] sm:$0xff]
        %v2132 = vld [vmem:[%s1778 + $0x8e8] sm:$0xff]
        %v2133 = vld [vmem:[%s1778 + $0x8f0] sm:$0xff]
        %v2134 = vld [vmem:[%s1778 + $0x8f8] sm:$0xff]
        %v2135 = vld [vmem:[%s1778 + $0x900] sm:$0xff]
        %v2136 = vld [vmem:[%s1778 + $0x908] sm:$0xff]
        %v2137 = vld [vmem:[%s1778 + $0x910] sm:$0xff]
        %v2138 = vld [vmem:[%s1778 + $0x918] sm:$0xff]
        %v2139 = vld [vmem:[%s1778 + $0x920] sm:$0xff]
        %v2140 = vld [vmem:[%s1778 + $0x928] sm:$0xff]
        %v2141 = vld [vmem:[%s1778 + $0x930] sm:$0xff]
        %v2142 = vld [vmem:[%s1778 + $0x938] sm:$0xff]
        %v2143 = vld [vmem:[%s1778 + $0x940] sm:$0xff]
        %v2144 = vld [vmem:[%s1778 + $0x948] sm:$0xff]
        %v2145 = vld [vmem:[%s1778 + $0x950] sm:$0xff]
        %v2146 = vld [vmem:[%s1778 + $0x958] sm:$0xff]
        %v2147 = vld [vmem:[%s1778 + $0x960] sm:$0xff]
        %v2148 = vld [vmem:[%s1778 + $0x968] sm:$0xff]
        %v2149 = vld [vmem:[%s1778 + $0x970] sm:$0xff]
        %v2150 = vld [vmem:[%s1778 + $0x978] sm:$0xff]
        %v2151 = vld [vmem:[%s1778 + $0x980] sm:$0xff]
        %v2152 = vld [vmem:[%s1778 + $0x988] sm:$0xff]
        %v2153 = vld [vmem:[%s1778 + $0x990] sm:$0xff]
        %v2154 = vld [vmem:[%s1778 + $0x998] sm:$0xff]
        %v2155 = vld [vmem:[%s1778 + $0x9a0] sm:$0xff]
        %v2156 = vld [vmem:[%s1778 + $0x9a8] sm:$0xff]
        %v2157 = vld [vmem:[%s1778 + $0x9b0] sm:$0xff]
        %v2158 = vld [vmem:[%s1778 + $0x9b8] sm:$0xff]
        %v2159 = vld [vmem:[%s1778 + $0x9c0] sm:$0xff]
        %v2160 = vld [vmem:[%s1778 + $0x9c8] sm:$0xff]
        %v2161 = vld [vmem:[%s1778 + $0x9d0] sm:$0xff]
        %v2162 = vld [vmem:[%s1778 + $0x9d8] sm:$0xff]
        %v2163 = vld [vmem:[%s1778 + $0x9e0] sm:$0xff]
        %v2164 = vld [vmem:[%s1778 + $0x9e8] sm:$0xff]
        %v2165 = vld [vmem:[%s1778 + $0x9f0] sm:$0xff]
        %v2166 = vld [vmem:[%s1778 + $0x9f8] sm:$0xff]
        %v2167 = vld [vmem:[%s1778 + $0xa00] sm:$0xff]
        %v2168 = vld [vmem:[%s1778 + $0xa08] sm:$0xff]
        %v2169 = vld [vmem:[%s1778 + $0xa10] sm:$0xff]
        %v2170 = vld [vmem:[%s1778 + $0xa18] sm:$0xff]
        %v2171 = vld [vmem:[%s1778 + $0xa20] sm:$0xff]
        %v2172 = vld [vmem:[%s1778 + $0xa28] sm:$0xff]
        %v2173 = vld [vmem:[%s1778 + $0xa30] sm:$0xff]
        %v2174 = vld [vmem:[%s1778 + $0xa38] sm:$0xff]
        %v2175 = vld [vmem:[%s1778 + $0xa40] sm:$0xff]
        %v2176 = vld [vmem:[%s1778 + $0xa48] sm:$0xff]
        %v2177 = vld [vmem:[%s1778 + $0xa50] sm:$0xff]
        %v2178 = vld [vmem:[%s1778 + $0xa58] sm:$0xff]
        %v2179 = vld [vmem:[%s1778 + $0xa60] sm:$0xff]
        %v2180 = vld [vmem:[%s1778 + $0xa68] sm:$0xff]
        %v2181 = vld [vmem:[%s1778 + $0xa70] sm:$0xff]
        %v2182 = vld [vmem:[%s1778 + $0xa78] sm:$0xff]
        %v2183 = vld [vmem:[%s1778 + $0xa80] sm:$0xff]
        %v2184 = vld [vmem:[%s1778 + $0xa88] sm:$0xff]
        %v2185 = vld [vmem:[%s1778 + $0xa90] sm:$0xff]
        %v2186 = vld [vmem:[%s1778 + $0xa98] sm:$0xff]
        %v2187 = vld [vmem:[%s1778 + $0xaa0] sm:$0xff]
        %v2188 = vld [vmem:[%s1778 + $0xaa8] sm:$0xff]
        %v2189 = vld [vmem:[%s1778 + $0xab0] sm:$0xff]
        %v2190 = vld [vmem:[%s1778 + $0xab8] sm:$0xff]
        %v2191 = vld [vmem:[%s1778 + $0xac0] sm:$0xff]
        %v2192 = vld [vmem:[%s1778 + $0xac8] sm:$0xff]
        %v2193 = vld [vmem:[%s1778 + $0xad0] sm:$0xff]
        %v2194 = vld [vmem:[%s1778 + $0xad8] sm:$0xff]
        %v2195 = vld [vmem:[%s1778 + $0xae0] sm:$0xff]
        %v2196 = vld [vmem:[%s1778 + $0xae8] sm:$0xff]
        %v2197 = vld [vmem:[%s1778 + $0xaf0] sm:$0xff]
        %v2198 = vld [vmem:[%s1778 + $0xaf8] sm:$0xff]
        %v2199 = vld [vmem:[%s1778 + $0xb00] sm:$0xff]
        %v2200 = vld [vmem:[%s1778 + $0xb08] sm:$0xff]
        %v2201 = vld [vmem:[%s1778 + $0xb10] sm:$0xff]
        %v2202 = vld [vmem:[%s1778 + $0xb18] sm:$0xff]
        %v2203 = vld [vmem:[%s1778 + $0xb20] sm:$0xff]
        %v2204 = vld [vmem:[%s1778 + $0xb28] sm:$0xff]
        %v2205 = vld [vmem:[%s1778 + $0xb30] sm:$0xff]
        %v2206 = vld [vmem:[%s1778 + $0xb38] sm:$0xff]
        %v2207 = vld [vmem:[%s1778 + $0xb40] sm:$0xff]
        %v2208 = vld [vmem:[%s1778 + $0xb48] sm:$0xff]
        %v2209 = vld [vmem:[%s1778 + $0xb50] sm:$0xff]
        %v2210 = vld [vmem:[%s1778 + $0xb58] sm:$0xff]
        %v2211 = vld [vmem:[%s1778 + $0xb60] sm:$0xff]
        %v2212 = vld [vmem:[%s1778 + $0xb68] sm:$0xff]
        %v2213 = vld [vmem:[%s1778 + $0xb70] sm:$0xff]
        %v2214 = vld [vmem:[%s1778 + $0xb78] sm:$0xff]
        %v2215 = vld [vmem:[%s1778 + $0xb80] sm:$0xff]
        %v2216 = vld [vmem:[%s1778 + $0xb88] sm:$0xff]
        %v2217 = vld [vmem:[%s1778 + $0xb90] sm:$0xff]
        %v2218 = vld [vmem:[%s1778 + $0xb98] sm:$0xff]
        %v2219 = vld [vmem:[%s1778 + $0xba0] sm:$0xff]
        %v2220 = vld [vmem:[%s1778 + $0xba8] sm:$0xff]
        %v2221 = vld [vmem:[%s1778 + $0xbb0] sm:$0xff]
        %v2222 = vld [vmem:[%s1778 + $0xbb8] sm:$0xff]
        %v2223 = vld [vmem:[%s1778 + $0xbc0] sm:$0xff]
        %v2224 = vld [vmem:[%s1778 + $0xbc8] sm:$0xff]
        %v2225 = vld [vmem:[%s1778 + $0xbd0] sm:$0xff]
        %v2226 = vld [vmem:[%s1778 + $0xbd8] sm:$0xff]
        %v2227 = vld [vmem:[%s1778 + $0xbe0] sm:$0xff]
        %v2228 = vld [vmem:[%s1778 + $0xbe8] sm:$0xff]
        %v2229 = vld [vmem:[%s1778 + $0xbf0] sm:$0xff]
        %v2230 = vld [vmem:[%s1778 + $0xbf8] sm:$0xff]
        %v2231 = vld [vmem:[%s1778 + $0xc00] sm:$0xff]
        %v2232 = vld [vmem:[%s1778 + $0xc08] sm:$0xff]
        %v2233 = vld [vmem:[%s1778 + $0xc10] sm:$0xff]
        %v2234 = vld [vmem:[%s1778 + $0xc18] sm:$0xff]
        %v2235 = vld [vmem:[%s1778 + $0xc20] sm:$0xff]
        %v2236 = vld [vmem:[%s1778 + $0xc28] sm:$0xff]
        %v2237 = vld [vmem:[%s1778 + $0xc30] sm:$0xff]
        %v2238 = vld [vmem:[%s1778 + $0xc38] sm:$0xff]
        %v2239 = vld [vmem:[%s1821] sm:$0x3]
        %v2241 = vlaneseq
        %v2242 = vshrl.u32 %v2241, 7
        %v2243 = vsub.s32 0, %v2242
        %v2244 = vrot.slane %v2239, %v2243
        %v2245 = vlaneseq
        %v2246 = vshrl.u32 %v2245, 7
        %v2247 = vsub.s32 1, %v2246
        %v2248 = vrot.slane %v2239, %v2247
        %v2264 = vunpack.c.l.b16 %v1834
        %v2265 = vunpack.c.h.b16 %v1834
        %v2266 = vunpack.c.l.b16 %v1835
        %v2267 = vunpack.c.h.b16 %v1835
        %v2268 = vunpack.c.l.b16 %v1836
        %v2269 = vunpack.c.h.b16 %v1836
        %v2270 = vunpack.c.l.b16 %v1837
        %v2271 = vunpack.c.h.b16 %v1837
        %v2272 = vunpack.c.l.b16 %v1838
        %v2273 = vunpack.c.h.b16 %v1838
        %v2274 = vunpack.c.l.b16 %v1839
        %v2275 = vunpack.c.h.b16 %v1839
        %v2276 = vunpack.c.l.b16 %v1840
        %v2277 = vunpack.c.h.b16 %v1840
        %v2278 = vunpack.c.l.b16 %v1841
        %v2279 = vunpack.c.h.b16 %v1841
        %v2280 = vunpack.c.l.b16 %v1842
        %v2281 = vunpack.c.h.b16 %v1842
        %v2282 = vunpack.c.l.b16 %v1843
        %v2283 = vunpack.c.h.b16 %v1843
        %v2284 = vunpack.c.l.b16 %v1844
        %v2285 = vunpack.c.h.b16 %v1844
        %v2286 = vunpack.c.l.b16 %v1845
        %v2287 = vunpack.c.h.b16 %v1845
        %v2288 = vunpack.c.l.b16 %v1846
        %v2289 = vpack.c.b16 %v2264, %v2264
        %v2290 = vpack.c.b16 %v2265, %v2265
        %v2291 = vpack.c.b16 %v2266, %v2266
        %v2292 = vpack.c.b16 %v2267, %v2267
        %v2293 = vpack.c.b16 %v2268, %v2268
        %v2294 = vpack.c.b16 %v2269, %v2269
        %v2295 = vpack.c.b16 %v2270, %v2270
        %v2296 = vpack.c.b16 %v2271, %v2271
        %v2297 = vpack.c.b16 %v2272, %v2272
        %v2298 = vpack.c.b16 %v2273, %v2273
        %v2299 = vpack.c.b16 %v2274, %v2274
        %v2300 = vpack.c.b16 %v2275, %v2275
        %v2301 = vpack.c.b16 %v2276, %v2276
        %v2302 = vpack.c.b16 %v2277, %v2277
        %v2303 = vpack.c.b16 %v2278, %v2278
        %v2304 = vpack.c.b16 %v2279, %v2279
        %v2305 = vpack.c.b16 %v2280, %v2280
        %v2306 = vpack.c.b16 %v2281, %v2281
        %v2307 = vpack.c.b16 %v2282, %v2282
        %v2308 = vpack.c.b16 %v2283, %v2283
        %v2309 = vpack.c.b16 %v2284, %v2284
        %v2310 = vpack.c.b16 %v2285, %v2285
        %v2311 = vpack.c.b16 %v2286, %v2286
        %v2312 = vpack.c.b16 %v2287, %v2287
        %v2313 = vpack.c.b16 %v2288, %v2288
        %v2730 = vunpack.c.l.b16 %v1847
        %v2731 = vunpack.c.h.b16 %v1847
        %v2732 = vunpack.c.l.b16 %v1848
        %v2733 = vunpack.c.h.b16 %v1848
        %v2734 = vunpack.c.l.b16 %v1849
        %v2735 = vunpack.c.h.b16 %v1849
        %v2736 = vunpack.c.l.b16 %v1850
        %v2737 = vunpack.c.h.b16 %v1850
        %v2738 = vunpack.c.l.b16 %v1851
        %v2739 = vunpack.c.h.b16 %v1851
        %v2740 = vunpack.c.l.b16 %v1852
        %v2741 = vunpack.c.h.b16 %v1852
        %v2742 = vunpack.c.l.b16 %v1853
        %v2743 = vunpack.c.h.b16 %v1853
        %v2744 = vunpack.c.l.b16 %v1854
        %v2745 = vunpack.c.h.b16 %v1854
        %v2746 = vunpack.c.l.b16 %v1855
        %v2747 = vunpack.c.h.b16 %v1855
        %v2748 = vunpack.c.l.b16 %v1856
        %v2749 = vunpack.c.h.b16 %v1856
        %v2750 = vunpack.c.l.b16 %v1857
        %v2751 = vunpack.c.h.b16 %v1857
        %v2752 = vunpack.c.l.b16 %v1858
        %v2753 = vunpack.c.h.b16 %v1858
        %v2754 = vunpack.c.l.b16 %v1859
        %v2755 = vunpack.c.h.b16 %v1859
        %v2756 = vunpack.c.l.b16 %v1860
        %v2757 = vunpack.c.h.b16 %v1860
        %v2758 = vunpack.c.l.b16 %v1861
        %v2759 = vunpack.c.h.b16 %v1861
        %v2760 = vunpack.c.l.b16 %v1862
        %v2761 = vunpack.c.h.b16 %v1862
        %v2762 = vunpack.c.l.b16 %v1863
        %v2763 = vunpack.c.h.b16 %v1863
        %v2764 = vunpack.c.l.b16 %v1864
        %v2765 = vunpack.c.h.b16 %v1864
        %v2766 = vunpack.c.l.b16 %v1865
        %v2767 = vunpack.c.h.b16 %v1865
        %v2768 = vunpack.c.l.b16 %v1866
        %v2769 = vunpack.c.h.b16 %v1866
        %v2770 = vunpack.c.l.b16 %v1867
        %v2771 = vunpack.c.h.b16 %v1867
        %v2772 = vunpack.c.l.b16 %v1868
        %v2773 = vunpack.c.h.b16 %v1868
        %v2774 = vunpack.c.l.b16 %v1869
        %v2775 = vunpack.c.h.b16 %v1869
        %v2776 = vunpack.c.l.b16 %v1870
        %v2777 = vunpack.c.h.b16 %v1870
        %v2778 = vunpack.c.l.b16 %v1871
        %v2779 = vunpack.c.h.b16 %v1871
        %v2780 = vunpack.c.l.b16 %v1872
        %v2781 = vunpack.c.h.b16 %v1872
        %v2782 = vunpack.c.l.b16 %v1873
        %v2783 = vunpack.c.h.b16 %v1873
        %v2784 = vunpack.c.l.b16 %v1874
        %v2785 = vunpack.c.h.b16 %v1874
        %v2786 = vunpack.c.l.b16 %v1875
        %v2787 = vunpack.c.h.b16 %v1875
        %v2788 = vunpack.c.l.b16 %v1876
        %v2789 = vunpack.c.h.b16 %v1876
        %v2790 = vunpack.c.l.b16 %v1877
        %v2791 = vunpack.c.h.b16 %v1877
        %v2792 = vunpack.c.l.b16 %v1878
        %v2793 = vunpack.c.h.b16 %v1878
        %v2794 = vunpack.c.l.b16 %v1879
        %v2795 = vunpack.c.h.b16 %v1879
        %v2796 = vunpack.c.l.b16 %v1880
        %v2797 = vunpack.c.h.b16 %v1880
        %v2798 = vunpack.c.l.b16 %v1881
        %v2799 = vunpack.c.h.b16 %v1881
        %v2800 = vunpack.c.l.b16 %v1882
        %v2801 = vunpack.c.h.b16 %v1882
        %v2802 = vunpack.c.l.b16 %v1883
        %v2803 = vunpack.c.h.b16 %v1883
        %v2804 = vunpack.c.l.b16 %v1884
        %v2805 = vunpack.c.h.b16 %v1884
        %v2806 = vunpack.c.l.b16 %v1885
        %v2807 = vunpack.c.h.b16 %v1885
        %v2808 = vunpack.c.l.b16 %v1886
        %v2809 = vunpack.c.h.b16 %v1886
        %v2810 = vunpack.c.l.b16 %v1887
        %v2811 = vunpack.c.h.b16 %v1887
        %v2812 = vunpack.c.l.b16 %v1888
        %v2813 = vunpack.c.h.b16 %v1888
        %v2814 = vunpack.c.l.b16 %v1889
        %v2815 = vunpack.c.h.b16 %v1889
        %v2816 = vunpack.c.l.b16 %v1890
        %v2817 = vunpack.c.h.b16 %v1890
        %v2818 = vunpack.c.l.b16 %v1891
        %v2819 = vunpack.c.h.b16 %v1891
        %v2820 = vunpack.c.l.b16 %v1892
        %v2821 = vunpack.c.h.b16 %v1892
        %v2822 = vunpack.c.l.b16 %v1893
        %v2823 = vunpack.c.h.b16 %v1893
        %v2824 = vunpack.c.l.b16 %v1894
        %v2825 = vunpack.c.h.b16 %v1894
        %v2826 = vunpack.c.l.b16 %v1895
        %v2827 = vunpack.c.h.b16 %v1895
        %v2828 = vunpack.c.l.b16 %v1896
        %v2829 = vunpack.c.h.b16 %v1896
        %v2830 = vunpack.c.l.b16 %v1897
        %v2831 = vunpack.c.h.b16 %v1897
        %v2832 = vunpack.c.l.b16 %v1898
        %v2833 = vunpack.c.h.b16 %v1898
        %v2834 = vunpack.c.l.b16 %v1899
        %v2835 = vunpack.c.h.b16 %v1899
        %v2836 = vunpack.c.l.b16 %v1900
        %v2837 = vunpack.c.h.b16 %v1900
        %v2838 = vunpack.c.l.b16 %v1901
        %v2839 = vunpack.c.h.b16 %v1901
        %v2840 = vunpack.c.l.b16 %v1902
        %v2841 = vunpack.c.h.b16 %v1902
        %v2842 = vunpack.c.l.b16 %v1903
        %v2843 = vunpack.c.h.b16 %v1903
        %v2844 = vunpack.c.l.b16 %v1904
        %v2845 = vunpack.c.h.b16 %v1904
        %v2846 = vunpack.c.l.b16 %v1905
        %v2847 = vunpack.c.h.b16 %v1905
        %v2848 = vunpack.c.l.b16 %v1906
        %v2849 = vunpack.c.h.b16 %v1906
        %v2850 = vunpack.c.l.b16 %v1907
        %v2851 = vunpack.c.h.b16 %v1907
        %v2852 = vunpack.c.l.b16 %v1908
        %v2853 = vunpack.c.h.b16 %v1908
        %v2854 = vunpack.c.l.b16 %v1909
        %v2855 = vunpack.c.h.b16 %v1909
        %v2856 = vunpack.c.l.b16 %v1910
        %v2857 = vunpack.c.h.b16 %v1910
        %v2858 = vunpack.c.l.b16 %v1911
        %v2859 = vunpack.c.h.b16 %v1911
        %v2860 = vunpack.c.l.b16 %v1912
        %v2861 = vunpack.c.h.b16 %v1912
        %v2862 = vunpack.c.l.b16 %v1913
        %v2863 = vunpack.c.h.b16 %v1913
        %v2864 = vunpack.c.l.b16 %v1914
        %v2865 = vunpack.c.h.b16 %v1914
        %v2866 = vunpack.c.l.b16 %v1915
        %v2867 = vunpack.c.h.b16 %v1915
        %v2868 = vunpack.c.l.b16 %v1916
        %v2869 = vunpack.c.h.b16 %v1916
        %v2870 = vunpack.c.l.b16 %v1917
        %v2871 = vunpack.c.h.b16 %v1917
        %v2872 = vunpack.c.l.b16 %v1918
        %v2873 = vunpack.c.h.b16 %v1918
        %v2874 = vunpack.c.l.b16 %v1919
        %v2875 = vunpack.c.h.b16 %v1919
        %v2876 = vunpack.c.l.b16 %v1920
        %v2877 = vunpack.c.h.b16 %v1920
        %v2878 = vunpack.c.l.b16 %v1921
        %v2879 = vunpack.c.h.b16 %v1921
        %v2880 = vunpack.c.l.b16 %v1922
        %v2881 = vunpack.c.h.b16 %v1922
        %v2882 = vunpack.c.l.b16 %v1923
        %v2883 = vunpack.c.h.b16 %v1923
        %v2884 = vunpack.c.l.b16 %v1924
        %v2885 = vunpack.c.h.b16 %v1924
        %v2886 = vunpack.c.l.b16 %v1925
        %v2887 = vunpack.c.h.b16 %v1925
        %v2888 = vunpack.c.l.b16 %v1926
        %v2889 = vunpack.c.h.b16 %v1926
        %v2890 = vunpack.c.l.b16 %v1927
        %v2891 = vunpack.c.h.b16 %v1927
        %v2892 = vunpack.c.l.b16 %v1928
        %v2893 = vunpack.c.h.b16 %v1928
        %v2894 = vunpack.c.l.b16 %v1929
        %v2895 = vunpack.c.h.b16 %v1929
        %v2896 = vunpack.c.l.b16 %v1930
        %v2897 = vunpack.c.h.b16 %v1930
        %v2898 = vunpack.c.l.b16 %v1931
        %v2899 = vunpack.c.h.b16 %v1931
        %v2900 = vunpack.c.l.b16 %v1932
        %v2901 = vunpack.c.h.b16 %v1932
        %v2902 = vunpack.c.l.b16 %v1933
        %v2903 = vunpack.c.h.b16 %v1933
        %v2904 = vunpack.c.l.b16 %v1934
        %v2905 = vunpack.c.h.b16 %v1934
        %v2906 = vunpack.c.l.b16 %v1935
        %v2907 = vunpack.c.h.b16 %v1935
        %v2908 = vunpack.c.l.b16 %v1936
        %v2909 = vunpack.c.h.b16 %v1936
        %v2910 = vunpack.c.l.b16 %v1937
        %v2911 = vunpack.c.h.b16 %v1937
        %v2912 = vunpack.c.l.b16 %v1938
        %v2913 = vunpack.c.h.b16 %v1938
        %v2914 = vunpack.c.l.b16 %v1939
        %v2915 = vunpack.c.h.b16 %v1939
        %v2916 = vunpack.c.l.b16 %v1940
        %v2917 = vunpack.c.h.b16 %v1940
        %v2918 = vunpack.c.l.b16 %v1941
        %v2919 = vunpack.c.h.b16 %v1941
        %v2920 = vunpack.c.l.b16 %v1942
        %v2921 = vunpack.c.h.b16 %v1942
        %v2922 = vunpack.c.l.b16 %v1943
        %v2923 = vunpack.c.h.b16 %v1943
        %v2924 = vunpack.c.l.b16 %v1944
        %v2925 = vunpack.c.h.b16 %v1944
        %v2926 = vunpack.c.l.b16 %v1945
        %v2927 = vunpack.c.h.b16 %v1945
        %v2928 = vunpack.c.l.b16 %v1946
        %v2929 = vunpack.c.h.b16 %v1946
        %v2930 = vunpack.c.l.b16 %v1947
        %v2931 = vunpack.c.h.b16 %v1947
        %v2932 = vunpack.c.l.b16 %v1948
        %v2933 = vunpack.c.h.b16 %v1948
        %v2934 = vunpack.c.l.b16 %v1949
        %v2935 = vunpack.c.h.b16 %v1949
        %v2936 = vunpack.c.l.b16 %v1950
        %v2937 = vunpack.c.h.b16 %v1950
        %v2938 = vunpack.c.l.b16 %v1951
        %v2939 = vunpack.c.h.b16 %v1951
        %v2940 = vunpack.c.l.b16 %v1952
        %v2941 = vunpack.c.h.b16 %v1952
        %v2942 = vunpack.c.l.b16 %v1953
        %v2943 = vunpack.c.h.b16 %v1953
        %v2944 = vunpack.c.l.b16 %v1954
        %v2945 = vunpack.c.h.b16 %v1954
        %v2946 = vunpack.c.l.b16 %v1955
        %v2947 = vunpack.c.h.b16 %v1955
        %v2948 = vunpack.c.l.b16 %v1956
        %v2949 = vunpack.c.h.b16 %v1956
        %v2950 = vunpack.c.l.b16 %v1957
        %v2951 = vunpack.c.h.b16 %v1957
        %v2952 = vunpack.c.l.b16 %v1958
        %v2953 = vunpack.c.h.b16 %v1958
        %v2954 = vunpack.c.l.b16 %v1959
        %v2955 = vunpack.c.h.b16 %v1959
        %v2956 = vunpack.c.l.b16 %v1960
        %v2957 = vunpack.c.h.b16 %v1960
        %v2958 = vunpack.c.l.b16 %v1961
        %v2959 = vunpack.c.h.b16 %v1961
        %v2960 = vunpack.c.l.b16 %v1962
        %v2961 = vunpack.c.h.b16 %v1962
        %v2962 = vunpack.c.l.b16 %v1963
        %v2963 = vunpack.c.h.b16 %v1963
        %v2964 = vunpack.c.l.b16 %v1964
        %v2965 = vunpack.c.h.b16 %v1964
        %v2966 = vunpack.c.l.b16 %v1965
        %v2967 = vunpack.c.h.b16 %v1965
        %v2968 = vunpack.c.l.b16 %v1966
        %v2969 = vunpack.c.h.b16 %v1966
        %v2970 = vunpack.c.l.b16 %v1967
        %v2971 = vunpack.c.h.b16 %v1967
        %v2972 = vunpack.c.l.b16 %v1968
        %v2973 = vunpack.c.h.b16 %v1968
        %v2974 = vunpack.c.l.b16 %v1969
        %v2975 = vunpack.c.h.b16 %v1969
        %v2976 = vunpack.c.l.b16 %v1970
        %v2977 = vunpack.c.h.b16 %v1970
        %v2978 = vunpack.c.l.b16 %v1971
        %v2979 = vunpack.c.h.b16 %v1971
        %v2980 = vunpack.c.l.b16 %v1972
        %v2981 = vunpack.c.h.b16 %v1972
        %v2982 = vunpack.c.l.b16 %v1973
        %v2983 = vunpack.c.h.b16 %v1973
        %v2984 = vunpack.c.l.b16 %v1974
        %v2985 = vunpack.c.h.b16 %v1974
        %v2986 = vunpack.c.l.b16 %v1975
        %v2987 = vunpack.c.h.b16 %v1975
        %v2988 = vunpack.c.l.b16 %v1976
        %v2989 = vunpack.c.h.b16 %v1976
        %v2990 = vunpack.c.l.b16 %v1977
        %v2991 = vunpack.c.h.b16 %v1977
        %v2992 = vunpack.c.l.b16 %v1978
        %v2993 = vunpack.c.h.b16 %v1978
        %v2994 = vunpack.c.l.b16 %v1979
        %v2995 = vunpack.c.h.b16 %v1979
        %v2996 = vunpack.c.l.b16 %v1980
        %v2997 = vunpack.c.h.b16 %v1980
        %v2998 = vunpack.c.l.b16 %v1981
        %v2999 = vunpack.c.h.b16 %v1981
        %v3000 = vunpack.c.l.b16 %v1982
        %v3001 = vunpack.c.h.b16 %v1982
        %v3002 = vunpack.c.l.b16 %v1983
        %v3003 = vunpack.c.h.b16 %v1983
        %v3004 = vunpack.c.l.b16 %v1984
        %v3005 = vunpack.c.h.b16 %v1984
        %v3006 = vunpack.c.l.b16 %v1985
        %v3007 = vunpack.c.h.b16 %v1985
        %v3008 = vunpack.c.l.b16 %v1986
        %v3009 = vunpack.c.h.b16 %v1986
        %v3010 = vunpack.c.l.b16 %v1987
        %v3011 = vunpack.c.h.b16 %v1987
        %v3012 = vunpack.c.l.b16 %v1988
        %v3013 = vunpack.c.h.b16 %v1988
        %v3014 = vunpack.c.l.b16 %v1989
        %v3015 = vunpack.c.h.b16 %v1989
        %v3016 = vunpack.c.l.b16 %v1990
        %v3017 = vunpack.c.h.b16 %v1990
        %v3018 = vunpack.c.l.b16 %v1991
        %v3019 = vunpack.c.h.b16 %v1991
        %v3020 = vunpack.c.l.b16 %v1992
        %v3021 = vunpack.c.h.b16 %v1992
        %v3022 = vunpack.c.l.b16 %v1993
        %v3023 = vunpack.c.h.b16 %v1993
        %v3024 = vunpack.c.l.b16 %v1994
        %v3025 = vunpack.c.h.b16 %v1994
        %v3026 = vunpack.c.l.b16 %v1995
        %v3027 = vunpack.c.h.b16 %v1995
        %v3028 = vunpack.c.l.b16 %v1996
        %v3029 = vunpack.c.h.b16 %v1996
        %v3030 = vunpack.c.l.b16 %v1997
        %v3031 = vunpack.c.h.b16 %v1997
        %v3032 = vunpack.c.l.b16 %v1998
        %v3033 = vunpack.c.h.b16 %v1998
        %v3034 = vunpack.c.l.b16 %v1999
        %v3035 = vunpack.c.h.b16 %v1999
        %v3036 = vunpack.c.l.b16 %v2000
        %v3037 = vunpack.c.h.b16 %v2000
        %v3038 = vunpack.c.l.b16 %v2001
        %v3039 = vunpack.c.h.b16 %v2001
        %v3040 = vunpack.c.l.b16 %v2002
        %v3041 = vunpack.c.h.b16 %v2002
        %v3042 = vunpack.c.l.b16 %v2003
        %v3043 = vunpack.c.h.b16 %v2003
        %v3044 = vunpack.c.l.b16 %v2004
        %v3045 = vunpack.c.h.b16 %v2004
        %v3046 = vunpack.c.l.b16 %v2005
        %v3047 = vunpack.c.h.b16 %v2005
        %v3048 = vunpack.c.l.b16 %v2006
        %v3049 = vunpack.c.h.b16 %v2006
        %v3050 = vunpack.c.l.b16 %v2007
        %v3051 = vunpack.c.h.b16 %v2007
        %v3052 = vunpack.c.l.b16 %v2008
        %v3053 = vunpack.c.h.b16 %v2008
        %v3054 = vunpack.c.l.b16 %v2009
        %v3055 = vunpack.c.h.b16 %v2009
        %v3056 = vunpack.c.l.b16 %v2010
        %v3057 = vunpack.c.h.b16 %v2010
        %v3058 = vunpack.c.l.b16 %v2011
        %v3059 = vunpack.c.h.b16 %v2011
        %v3060 = vunpack.c.l.b16 %v2012
        %v3061 = vunpack.c.h.b16 %v2012
        %v3062 = vunpack.c.l.b16 %v2013
        %v3063 = vunpack.c.h.b16 %v2013
        %v3064 = vunpack.c.l.b16 %v2014
        %v3065 = vunpack.c.h.b16 %v2014
        %v3066 = vunpack.c.l.b16 %v2015
        %v3067 = vunpack.c.h.b16 %v2015
        %v3068 = vunpack.c.l.b16 %v2016
        %v3069 = vunpack.c.h.b16 %v2016
        %v3070 = vunpack.c.l.b16 %v2017
        %v3071 = vunpack.c.h.b16 %v2017
        %v3072 = vunpack.c.l.b16 %v2018
        %v3073 = vunpack.c.h.b16 %v2018
        %v3074 = vunpack.c.l.b16 %v2019
        %v3075 = vunpack.c.h.b16 %v2019
        %v3076 = vunpack.c.l.b16 %v2020
        %v3077 = vunpack.c.h.b16 %v2020
        %v3078 = vunpack.c.l.b16 %v2021
        %v3079 = vunpack.c.h.b16 %v2021
        %v3080 = vunpack.c.l.b16 %v2022
        %v3081 = vunpack.c.h.b16 %v2022
        %v3082 = vunpack.c.l.b16 %v2023
        %v3083 = vunpack.c.h.b16 %v2023
        %v3084 = vunpack.c.l.b16 %v2024
        %v3085 = vunpack.c.h.b16 %v2024
        %v3086 = vunpack.c.l.b16 %v2025
        %v3087 = vunpack.c.h.b16 %v2025
        %v3088 = vunpack.c.l.b16 %v2026
        %v3089 = vunpack.c.h.b16 %v2026
        %v3090 = vunpack.c.l.b16 %v2027
        %v3091 = vunpack.c.h.b16 %v2027
        %v3092 = vunpack.c.l.b16 %v2028
        %v3093 = vunpack.c.h.b16 %v2028
        %v3094 = vunpack.c.l.b16 %v2029
        %v3095 = vunpack.c.h.b16 %v2029
        %v3096 = vunpack.c.l.b16 %v2030
        %v3097 = vunpack.c.h.b16 %v2030
        %v3098 = vunpack.c.l.b16 %v2031
        %v3099 = vunpack.c.h.b16 %v2031
        %v3100 = vunpack.c.l.b16 %v2032
        %v3101 = vunpack.c.h.b16 %v2032
        %v3102 = vunpack.c.l.b16 %v2033
        %v3103 = vunpack.c.h.b16 %v2033
        %v3104 = vunpack.c.l.b16 %v2034
        %v3105 = vunpack.c.h.b16 %v2034
        %v3106 = vunpack.c.l.b16 %v2035
        %v3107 = vunpack.c.h.b16 %v2035
        %v3108 = vunpack.c.l.b16 %v2036
        %v3109 = vunpack.c.h.b16 %v2036
        %v3110 = vunpack.c.l.b16 %v2037
        %v3111 = vunpack.c.h.b16 %v2037
        %v3112 = vunpack.c.l.b16 %v2038
        %v3113 = vunpack.c.h.b16 %v2038
        %v3114 = vunpack.c.l.b16 %v2039
        %v3115 = vunpack.c.h.b16 %v2039
        %v3116 = vunpack.c.l.b16 %v2040
        %v3117 = vunpack.c.h.b16 %v2040
        %v3118 = vunpack.c.l.b16 %v2041
        %v3119 = vunpack.c.h.b16 %v2041
        %v3120 = vunpack.c.l.b16 %v2042
        %v3121 = vunpack.c.h.b16 %v2042
        %v3122 = vunpack.c.l.b16 %v2043
        %v3123 = vunpack.c.h.b16 %v2043
        %v3124 = vunpack.c.l.b16 %v2044
        %v3125 = vunpack.c.h.b16 %v2044
        %v3126 = vunpack.c.l.b16 %v2045
        %v3127 = vunpack.c.h.b16 %v2045
        %v3128 = vunpack.c.l.b16 %v2046
        %v3129 = vunpack.c.h.b16 %v2046
        %v3130 = vunpack.c.l.b16 %v2047
        %v3131 = vunpack.c.h.b16 %v2047
        %v3132 = vunpack.c.l.b16 %v2048
        %v3133 = vunpack.c.h.b16 %v2048
        %v3134 = vunpack.c.l.b16 %v2049
        %v3135 = vunpack.c.h.b16 %v2049
        %v3136 = vunpack.c.l.b16 %v2050
        %v3137 = vunpack.c.h.b16 %v2050
        %v3138 = vunpack.c.l.b16 %v2051
        %v3139 = vunpack.c.h.b16 %v2051
        %v3140 = vunpack.c.l.b16 %v2052
        %v3141 = vunpack.c.h.b16 %v2052
        %v3142 = vunpack.c.l.b16 %v2053
        %v3143 = vunpack.c.h.b16 %v2053
        %v3144 = vunpack.c.l.b16 %v2054
        %v3145 = vunpack.c.h.b16 %v2054
        %v3146 = vunpack.c.l.b16 %v2055
        %v3147 = vunpack.c.h.b16 %v2055
        %v3148 = vunpack.c.l.b16 %v2056
        %v3149 = vunpack.c.h.b16 %v2056
        %v3150 = vunpack.c.l.b16 %v2057
        %v3151 = vunpack.c.h.b16 %v2057
        %v3152 = vunpack.c.l.b16 %v2058
        %v3153 = vunpack.c.h.b16 %v2058
        %v3154 = vunpack.c.l.b16 %v2059
        %v3155 = vunpack.c.h.b16 %v2059
        %v3156 = vunpack.c.l.b16 %v2060
        %v3157 = vunpack.c.h.b16 %v2060
        %v3158 = vunpack.c.l.b16 %v2061
        %v3159 = vunpack.c.h.b16 %v2061
        %v3160 = vunpack.c.l.b16 %v2062
        %v3161 = vunpack.c.h.b16 %v2062
        %v3162 = vunpack.c.l.b16 %v2063
        %v3163 = vunpack.c.h.b16 %v2063
        %v3164 = vunpack.c.l.b16 %v2064
        %v3165 = vunpack.c.h.b16 %v2064
        %v3166 = vunpack.c.l.b16 %v2065
        %v3167 = vunpack.c.h.b16 %v2065
        %v3168 = vunpack.c.l.b16 %v2066
        %v3169 = vunpack.c.h.b16 %v2066
        %v3170 = vunpack.c.l.b16 %v2067
        %v3171 = vunpack.c.h.b16 %v2067
        %v3172 = vunpack.c.l.b16 %v2068
        %v3173 = vunpack.c.h.b16 %v2068
        %v3174 = vunpack.c.l.b16 %v2069
        %v3175 = vunpack.c.h.b16 %v2069
        %v3176 = vunpack.c.l.b16 %v2070
        %v3177 = vunpack.c.h.b16 %v2070
        %v3178 = vunpack.c.l.b16 %v2071
        %v3179 = vunpack.c.h.b16 %v2071
        %v3180 = vunpack.c.l.b16 %v2072
        %v3181 = vunpack.c.h.b16 %v2072
        %v3182 = vunpack.c.l.b16 %v2073
        %v3183 = vunpack.c.h.b16 %v2073
        %v3184 = vunpack.c.l.b16 %v2074
        %v3185 = vunpack.c.h.b16 %v2074
        %v3186 = vunpack.c.l.b16 %v2075
        %v3187 = vunpack.c.h.b16 %v2075
        %v3188 = vunpack.c.l.b16 %v2076
        %v3189 = vunpack.c.h.b16 %v2076
        %v3190 = vunpack.c.l.b16 %v2077
        %v3191 = vunpack.c.h.b16 %v2077
        %v3192 = vunpack.c.l.b16 %v2078
        %v3193 = vunpack.c.h.b16 %v2078
        %v3194 = vunpack.c.l.b16 %v2079
        %v3195 = vunpack.c.h.b16 %v2079
        %v3196 = vunpack.c.l.b16 %v2080
        %v3197 = vunpack.c.h.b16 %v2080
        %v3198 = vunpack.c.l.b16 %v2081
        %v3199 = vunpack.c.h.b16 %v2081
        %v3200 = vunpack.c.l.b16 %v2082
        %v3201 = vunpack.c.h.b16 %v2082
        %v3202 = vunpack.c.l.b16 %v2083
        %v3203 = vunpack.c.h.b16 %v2083
        %v3204 = vunpack.c.l.b16 %v2084
        %v3205 = vunpack.c.h.b16 %v2084
        %v3206 = vunpack.c.l.b16 %v2085
        %v3207 = vunpack.c.h.b16 %v2085
        %v3208 = vunpack.c.l.b16 %v2086
        %v3209 = vunpack.c.h.b16 %v2086
        %v3210 = vunpack.c.l.b16 %v2087
        %v3211 = vunpack.c.h.b16 %v2087
        %v3212 = vunpack.c.l.b16 %v2088
        %v3213 = vunpack.c.h.b16 %v2088
        %v3214 = vunpack.c.l.b16 %v2089
        %v3215 = vunpack.c.h.b16 %v2089
        %v3216 = vunpack.c.l.b16 %v2090
        %v3217 = vunpack.c.h.b16 %v2090
        %v3218 = vunpack.c.l.b16 %v2091
        %v3219 = vunpack.c.h.b16 %v2091
        %v3220 = vunpack.c.l.b16 %v2092
        %v3221 = vunpack.c.h.b16 %v2092
        %v3222 = vunpack.c.l.b16 %v2093
        %v3223 = vunpack.c.h.b16 %v2093
        %v3224 = vunpack.c.l.b16 %v2094
        %v3225 = vunpack.c.h.b16 %v2094
        %v3226 = vunpack.c.l.b16 %v2095
        %v3227 = vunpack.c.h.b16 %v2095
        %v3228 = vunpack.c.l.b16 %v2096
        %v3229 = vunpack.c.h.b16 %v2096
        %v3230 = vunpack.c.l.b16 %v2097
        %v3231 = vunpack.c.h.b16 %v2097
        %v3232 = vunpack.c.l.b16 %v2098
        %v3233 = vunpack.c.h.b16 %v2098
        %v3234 = vunpack.c.l.b16 %v2099
        %v3235 = vunpack.c.h.b16 %v2099
        %v3236 = vunpack.c.l.b16 %v2100
        %v3237 = vunpack.c.h.b16 %v2100
        %v3238 = vunpack.c.l.b16 %v2101
        %v3239 = vunpack.c.h.b16 %v2101
        %v3240 = vunpack.c.l.b16 %v2102
        %v3241 = vunpack.c.h.b16 %v2102
        %v3242 = vunpack.c.l.b16 %v2103
        %v3243 = vunpack.c.h.b16 %v2103
        %v3244 = vunpack.c.l.b16 %v2104
        %v3245 = vunpack.c.h.b16 %v2104
        %v3246 = vunpack.c.l.b16 %v2105
        %v3247 = vunpack.c.h.b16 %v2105
        %v3248 = vunpack.c.l.b16 %v2106
        %v3249 = vunpack.c.h.b16 %v2106
        %v3250 = vunpack.c.l.b16 %v2107
        %v3251 = vunpack.c.h.b16 %v2107
        %v3252 = vunpack.c.l.b16 %v2108
        %v3253 = vunpack.c.h.b16 %v2108
        %v3254 = vunpack.c.l.b16 %v2109
        %v3255 = vunpack.c.h.b16 %v2109
        %v3256 = vunpack.c.l.b16 %v2110
        %v3257 = vunpack.c.h.b16 %v2110
        %v3258 = vunpack.c.l.b16 %v2111
        %v3259 = vunpack.c.h.b16 %v2111
        %v3260 = vunpack.c.l.b16 %v2112
        %v3261 = vunpack.c.h.b16 %v2112
        %v3262 = vunpack.c.l.b16 %v2113
        %v3263 = vunpack.c.h.b16 %v2113
        %v3264 = vunpack.c.l.b16 %v2114
        %v3265 = vunpack.c.h.b16 %v2114
        %v3266 = vunpack.c.l.b16 %v2115
        %v3267 = vunpack.c.h.b16 %v2115
        %v3268 = vunpack.c.l.b16 %v2116
        %v3269 = vunpack.c.h.b16 %v2116
        %v3270 = vunpack.c.l.b16 %v2117
        %v3271 = vunpack.c.h.b16 %v2117
        %v3272 = vunpack.c.l.b16 %v2118
        %v3273 = vunpack.c.h.b16 %v2118
        %v3274 = vunpack.c.l.b16 %v2119
        %v3275 = vunpack.c.h.b16 %v2119
        %v3276 = vunpack.c.l.b16 %v2120
        %v3277 = vunpack.c.h.b16 %v2120
        %v3278 = vunpack.c.l.b16 %v2121
        %v3279 = vunpack.c.h.b16 %v2121
        %v3280 = vunpack.c.l.b16 %v2122
        %v3281 = vunpack.c.h.b16 %v2122
        %v3282 = vunpack.c.l.b16 %v2123
        %v3283 = vunpack.c.h.b16 %v2123
        %v3284 = vunpack.c.l.b16 %v2124
        %v3285 = vunpack.c.h.b16 %v2124
        %v3286 = vunpack.c.l.b16 %v2125
        %v3287 = vunpack.c.h.b16 %v2125
        %v3288 = vunpack.c.l.b16 %v2126
        %v3289 = vunpack.c.h.b16 %v2126
        %v3290 = vunpack.c.l.b16 %v2127
        %v3291 = vunpack.c.h.b16 %v2127
        %v3292 = vunpack.c.l.b16 %v2128
        %v3293 = vunpack.c.h.b16 %v2128
        %v3294 = vunpack.c.l.b16 %v2129
        %v3295 = vunpack.c.h.b16 %v2129
        %v3296 = vunpack.c.l.b16 %v2130
        %v3297 = vunpack.c.h.b16 %v2130
        %v3298 = vunpack.c.l.b16 %v2131
        %v3299 = vunpack.c.h.b16 %v2131
        %v3300 = vunpack.c.l.b16 %v2132
        %v3301 = vunpack.c.h.b16 %v2132
        %v3302 = vunpack.c.l.b16 %v2133
        %v3303 = vunpack.c.h.b16 %v2133
        %v3304 = vunpack.c.l.b16 %v2134
        %v3305 = vunpack.c.h.b16 %v2134
        %v3306 = vunpack.c.l.b16 %v2135
        %v3307 = vunpack.c.h.b16 %v2135
        %v3308 = vunpack.c.l.b16 %v2136
        %v3309 = vunpack.c.h.b16 %v2136
        %v3310 = vunpack.c.l.b16 %v2137
        %v3311 = vunpack.c.h.b16 %v2137
        %v3312 = vunpack.c.l.b16 %v2138
        %v3313 = vunpack.c.h.b16 %v2138
        %v3314 = vunpack.c.l.b16 %v2139
        %v3315 = vunpack.c.h.b16 %v2139
        %v3316 = vunpack.c.l.b16 %v2140
        %v3317 = vunpack.c.h.b16 %v2140
        %v3318 = vunpack.c.l.b16 %v2141
        %v3319 = vunpack.c.h.b16 %v2141
        %v3320 = vunpack.c.l.b16 %v2142
        %v3321 = vunpack.c.h.b16 %v2142
        %v3322 = vunpack.c.l.b16 %v2143
        %v3323 = vunpack.c.h.b16 %v2143
        %v3324 = vunpack.c.l.b16 %v2144
        %v3325 = vunpack.c.h.b16 %v2144
        %v3326 = vunpack.c.l.b16 %v2145
        %v3327 = vunpack.c.h.b16 %v2145
        %v3328 = vunpack.c.l.b16 %v2146
        %v3329 = vunpack.c.h.b16 %v2146
        %v3330 = vunpack.c.l.b16 %v2147
        %v3331 = vunpack.c.h.b16 %v2147
        %v3332 = vunpack.c.l.b16 %v2148
        %v3333 = vunpack.c.h.b16 %v2148
        %v3334 = vunpack.c.l.b16 %v2149
        %v3335 = vunpack.c.h.b16 %v2149
        %v3336 = vunpack.c.l.b16 %v2150
        %v3337 = vunpack.c.h.b16 %v2150
        %v3338 = vunpack.c.l.b16 %v2151
        %v3339 = vunpack.c.h.b16 %v2151
        %v3340 = vunpack.c.l.b16 %v2152
        %v3341 = vunpack.c.h.b16 %v2152
        %v3342 = vunpack.c.l.b16 %v2153
        %v3343 = vunpack.c.h.b16 %v2153
        %v3344 = vunpack.c.l.b16 %v2154
        %v3345 = vunpack.c.h.b16 %v2154
        %v3346 = vunpack.c.l.b16 %v2155
        %v3347 = vunpack.c.h.b16 %v2155
        %v3348 = vunpack.c.l.b16 %v2156
        %v3349 = vunpack.c.h.b16 %v2156
        %v3350 = vunpack.c.l.b16 %v2157
        %v3351 = vunpack.c.h.b16 %v2157
        %v3352 = vunpack.c.l.b16 %v2158
        %v3353 = vunpack.c.h.b16 %v2158
        %v3354 = vunpack.c.l.b16 %v2159
        %v3355 = vunpack.c.h.b16 %v2159
        %v3356 = vunpack.c.l.b16 %v2160
        %v3357 = vunpack.c.h.b16 %v2160
        %v3358 = vunpack.c.l.b16 %v2161
        %v3359 = vunpack.c.h.b16 %v2161
        %v3360 = vunpack.c.l.b16 %v2162
        %v3361 = vunpack.c.h.b16 %v2162
        %v3362 = vunpack.c.l.b16 %v2163
        %v3363 = vunpack.c.h.b16 %v2163
        %v3364 = vunpack.c.l.b16 %v2164
        %v3365 = vunpack.c.h.b16 %v2164
        %v3366 = vunpack.c.l.b16 %v2165
        %v3367 = vunpack.c.h.b16 %v2165
        %v3368 = vunpack.c.l.b16 %v2166
        %v3369 = vunpack.c.h.b16 %v2166
        %v3370 = vunpack.c.l.b16 %v2167
        %v3371 = vunpack.c.h.b16 %v2167
        %v3372 = vunpack.c.l.b16 %v2168
        %v3373 = vunpack.c.h.b16 %v2168
        %v3374 = vunpack.c.l.b16 %v2169
        %v3375 = vunpack.c.h.b16 %v2169
        %v3376 = vunpack.c.l.b16 %v2170
        %v3377 = vunpack.c.h.b16 %v2170
        %v3378 = vunpack.c.l.b16 %v2171
        %v3379 = vunpack.c.h.b16 %v2171
        %v3380 = vunpack.c.l.b16 %v2172
        %v3381 = vunpack.c.h.b16 %v2172
        %v3382 = vunpack.c.l.b16 %v2173
        %v3383 = vunpack.c.h.b16 %v2173
        %v3384 = vunpack.c.l.b16 %v2174
        %v3385 = vunpack.c.h.b16 %v2174
        %v3386 = vunpack.c.l.b16 %v2175
        %v3387 = vunpack.c.h.b16 %v2175
        %v3388 = vunpack.c.l.b16 %v2176
        %v3389 = vunpack.c.h.b16 %v2176
        %v3390 = vunpack.c.l.b16 %v2177
        %v3391 = vunpack.c.h.b16 %v2177
        %v3392 = vunpack.c.l.b16 %v2178
        %v3393 = vunpack.c.h.b16 %v2178
        %v3394 = vunpack.c.l.b16 %v2179
        %v3395 = vunpack.c.h.b16 %v2179
        %v3396 = vunpack.c.l.b16 %v2180
        %v3397 = vunpack.c.h.b16 %v2180
        %v3398 = vunpack.c.l.b16 %v2181
        %v3399 = vunpack.c.h.b16 %v2181
        %v3400 = vunpack.c.l.b16 %v2182
        %v3401 = vunpack.c.h.b16 %v2182
        %v3402 = vunpack.c.l.b16 %v2183
        %v3403 = vunpack.c.h.b16 %v2183
        %v3404 = vunpack.c.l.b16 %v2184
        %v3405 = vunpack.c.h.b16 %v2184
        %v3406 = vunpack.c.l.b16 %v2185
        %v3407 = vunpack.c.h.b16 %v2185
        %v3408 = vunpack.c.l.b16 %v2186
        %v3409 = vunpack.c.h.b16 %v2186
        %v3410 = vunpack.c.l.b16 %v2187
        %v3411 = vunpack.c.h.b16 %v2187
        %v3412 = vunpack.c.l.b16 %v2188
        %v3413 = vunpack.c.h.b16 %v2188
        %v3414 = vunpack.c.l.b16 %v2189
        %v3415 = vunpack.c.h.b16 %v2189
        %v3416 = vunpack.c.l.b16 %v2190
        %v3417 = vunpack.c.h.b16 %v2190
        %v3418 = vunpack.c.l.b16 %v2191
        %v3419 = vunpack.c.h.b16 %v2191
        %v3420 = vunpack.c.l.b16 %v2192
        %v3421 = vunpack.c.h.b16 %v2192
        %v3422 = vunpack.c.l.b16 %v2193
        %v3423 = vunpack.c.h.b16 %v2193
        %v3424 = vunpack.c.l.b16 %v2194
        %v3425 = vunpack.c.h.b16 %v2194
        %v3426 = vunpack.c.l.b16 %v2195
        %v3427 = vunpack.c.h.b16 %v2195
        %v3428 = vunpack.c.l.b16 %v2196
        %v3429 = vunpack.c.h.b16 %v2196
        %v3430 = vunpack.c.l.b16 %v2197
        %v3431 = vunpack.c.h.b16 %v2197
        %v3432 = vunpack.c.l.b16 %v2198
        %v3433 = vunpack.c.h.b16 %v2198
        %v3434 = vunpack.c.l.b16 %v2199
        %v3435 = vunpack.c.h.b16 %v2199
        %v3436 = vunpack.c.l.b16 %v2200
        %v3437 = vunpack.c.h.b16 %v2200
        %v3438 = vunpack.c.l.b16 %v2201
        %v3439 = vunpack.c.h.b16 %v2201
        %v3440 = vunpack.c.l.b16 %v2202
        %v3441 = vunpack.c.h.b16 %v2202
        %v3442 = vunpack.c.l.b16 %v2203
        %v3443 = vunpack.c.h.b16 %v2203
        %v3444 = vunpack.c.l.b16 %v2204
        %v3445 = vunpack.c.h.b16 %v2204
        %v3446 = vunpack.c.l.b16 %v2205
        %v3447 = vunpack.c.h.b16 %v2205
        %v3448 = vunpack.c.l.b16 %v2206
        %v3449 = vunpack.c.h.b16 %v2206
        %v3450 = vunpack.c.l.b16 %v2207
        %v3451 = vunpack.c.h.b16 %v2207
        %v3452 = vunpack.c.l.b16 %v2208
        %v3453 = vunpack.c.h.b16 %v2208
        %v3454 = vunpack.c.l.b16 %v2209
        %v3455 = vunpack.c.h.b16 %v2209
        %v3456 = vunpack.c.l.b16 %v2210
        %v3457 = vunpack.c.h.b16 %v2210
        %v3458 = vunpack.c.l.b16 %v2211
        %v3459 = vunpack.c.h.b16 %v2211
        %v3460 = vunpack.c.l.b16 %v2212
        %v3461 = vunpack.c.h.b16 %v2212
        %v3462 = vunpack.c.l.b16 %v2213
        %v3463 = vunpack.c.h.b16 %v2213
        %v3464 = vunpack.c.l.b16 %v2214
        %v3465 = vunpack.c.h.b16 %v2214
        %v3466 = vunpack.c.l.b16 %v2215
        %v3467 = vunpack.c.h.b16 %v2215
        %v3468 = vunpack.c.l.b16 %v2216
        %v3469 = vunpack.c.h.b16 %v2216
        %v3470 = vunpack.c.l.b16 %v2217
        %v3471 = vunpack.c.h.b16 %v2217
        %v3472 = vunpack.c.l.b16 %v2218
        %v3473 = vunpack.c.h.b16 %v2218
        %v3474 = vunpack.c.l.b16 %v2219
        %v3475 = vunpack.c.h.b16 %v2219
        %v3476 = vunpack.c.l.b16 %v2220
        %v3477 = vunpack.c.h.b16 %v2220
        %v3478 = vunpack.c.l.b16 %v2221
        %v3479 = vunpack.c.h.b16 %v2221
        %v3480 = vunpack.c.l.b16 %v2222
        %v3481 = vunpack.c.h.b16 %v2222
        %v3482 = vunpack.c.l.b16 %v2223
        %v3483 = vunpack.c.h.b16 %v2223
        %v3484 = vunpack.c.l.b16 %v2224
        %v3485 = vunpack.c.h.b16 %v2224
        %v3486 = vunpack.c.l.b16 %v2225
        %v3487 = vunpack.c.h.b16 %v2225
        %v3488 = vunpack.c.l.b16 %v2226
        %v3489 = vunpack.c.h.b16 %v2226
        %v3490 = vunpack.c.l.b16 %v2227
        %v3491 = vunpack.c.h.b16 %v2227
        %v3492 = vunpack.c.l.b16 %v2228
        %v3493 = vunpack.c.h.b16 %v2228
        %v3494 = vunpack.c.l.b16 %v2229
        %v3495 = vunpack.c.h.b16 %v2229
        %v3496 = vunpack.c.l.b16 %v2230
        %v3497 = vunpack.c.h.b16 %v2230
        %v3498 = vunpack.c.l.b16 %v2231
        %v3499 = vunpack.c.h.b16 %v2231
        %v3500 = vunpack.c.l.b16 %v2232
        %v3501 = vunpack.c.h.b16 %v2232
        %v3502 = vunpack.c.l.b16 %v2233
        %v3503 = vunpack.c.h.b16 %v2233
        %v3504 = vunpack.c.l.b16 %v2234
        %v3505 = vunpack.c.h.b16 %v2234
        %v3506 = vunpack.c.l.b16 %v2235
        %v3507 = vunpack.c.h.b16 %v2235
        %v3508 = vunpack.c.l.b16 %v2236
        %v3509 = vunpack.c.h.b16 %v2236
        %v3510 = vunpack.c.l.b16 %v2237
        %v3511 = vunpack.c.h.b16 %v2237
        %v3512 = vunpack.c.l.b16 %v2238
        %v3513 = vunpack.c.h.b16 %v2238
        %v3514 = vpack.c.b16 %v2732, %v2730
        %v3515 = vpack.c.b16 %v2733, %v2731
        %v3516 = vpack.c.b16 %v2736, %v2734
        %v3517 = vpack.c.b16 %v2737, %v2735
        %v3518 = vpack.c.b16 %v2740, %v2738
        %v3519 = vpack.c.b16 %v2741, %v2739
        %v3520 = vpack.c.b16 %v2744, %v2742
        %v3521 = vpack.c.b16 %v2745, %v2743
        %v3522 = vpack.c.b16 %v2748, %v2746
        %v3523 = vpack.c.b16 %v2749, %v2747
        %v3524 = vpack.c.b16 %v2752, %v2750
        %v3525 = vpack.c.b16 %v2753, %v2751
        %v3526 = vpack.c.b16 %v2756, %v2754
        %v3527 = vpack.c.b16 %v2757, %v2755
        %v3528 = vpack.c.b16 %v2760, %v2758
        %v3529 = vpack.c.b16 %v2761, %v2759
        %v3530 = vpack.c.b16 %v2764, %v2762
        %v3531 = vpack.c.b16 %v2765, %v2763
        %v3532 = vpack.c.b16 %v2768, %v2766
        %v3533 = vpack.c.b16 %v2769, %v2767
        %v3534 = vpack.c.b16 %v2772, %v2770
        %v3535 = vpack.c.b16 %v2773, %v2771
        %v3536 = vpack.c.b16 %v2776, %v2774
        %v3537 = vpack.c.b16 %v2777, %v2775
        %v3538 = vpack.c.b16 %v2780, %v2778
        %v3539 = vpack.c.b16 %v2781, %v2779
        %v3540 = vpack.c.b16 %v2784, %v2782
        %v3541 = vpack.c.b16 %v2785, %v2783
        %v3542 = vpack.c.b16 %v2788, %v2786
        %v3543 = vpack.c.b16 %v2789, %v2787
        %v3544 = vpack.c.b16 %v2792, %v2790
        %v3545 = vpack.c.b16 %v2793, %v2791
        %v3546 = vpack.c.b16 %v2796, %v2794
        %v3547 = vpack.c.b16 %v2797, %v2795
        %v3548 = vpack.c.b16 %v2800, %v2798
        %v3549 = vpack.c.b16 %v2801, %v2799
        %v3550 = vpack.c.b16 %v2804, %v2802
        %v3551 = vpack.c.b16 %v2805, %v2803
        %v3552 = vpack.c.b16 %v2808, %v2806
        %v3553 = vpack.c.b16 %v2809, %v2807
        %v3554 = vpack.c.b16 %v2812, %v2810
        %v3555 = vpack.c.b16 %v2813, %v2811
        %v3556 = vpack.c.b16 %v2816, %v2814
        %v3557 = vpack.c.b16 %v2817, %v2815
        %v3558 = vpack.c.b16 %v2820, %v2818
        %v3559 = vpack.c.b16 %v2821, %v2819
        %v3560 = vpack.c.b16 %v2824, %v2822
        %v3561 = vpack.c.b16 %v2825, %v2823
        %v3562 = vpack.c.b16 %v2828, %v2826
        %v3563 = vpack.c.b16 %v2829, %v2827
        %v3564 = vpack.c.b16 %v2832, %v2830
        %v3565 = vpack.c.b16 %v2833, %v2831
        %v3566 = vpack.c.b16 %v2836, %v2834
        %v3567 = vpack.c.b16 %v2837, %v2835
        %v3568 = vpack.c.b16 %v2840, %v2838
        %v3569 = vpack.c.b16 %v2841, %v2839
        %v3570 = vpack.c.b16 %v2844, %v2842
        %v3571 = vpack.c.b16 %v2845, %v2843
        %v3572 = vpack.c.b16 %v2848, %v2846
        %v3573 = vpack.c.b16 %v2849, %v2847
        %v3574 = vpack.c.b16 %v2852, %v2850
        %v3575 = vpack.c.b16 %v2853, %v2851
        %v3576 = vpack.c.b16 %v2856, %v2854
        %v3577 = vpack.c.b16 %v2857, %v2855
        %v3578 = vpack.c.b16 %v2860, %v2858
        %v3579 = vpack.c.b16 %v2861, %v2859
        %v3580 = vpack.c.b16 %v2864, %v2862
        %v3581 = vpack.c.b16 %v2865, %v2863
        %v3582 = vpack.c.b16 %v2868, %v2866
        %v3583 = vpack.c.b16 %v2869, %v2867
        %v3584 = vpack.c.b16 %v2872, %v2870
        %v3585 = vpack.c.b16 %v2873, %v2871
        %v3586 = vpack.c.b16 %v2876, %v2874
        %v3587 = vpack.c.b16 %v2877, %v2875
        %v3588 = vpack.c.b16 %v2880, %v2878
        %v3589 = vpack.c.b16 %v2881, %v2879
        %v3590 = vpack.c.b16 %v2884, %v2882
        %v3591 = vpack.c.b16 %v2885, %v2883
        %v3592 = vpack.c.b16 %v2888, %v2886
        %v3593 = vpack.c.b16 %v2889, %v2887
        %v3594 = vpack.c.b16 %v2892, %v2890
        %v3595 = vpack.c.b16 %v2893, %v2891
        %v3596 = vpack.c.b16 %v2896, %v2894
        %v3597 = vpack.c.b16 %v2897, %v2895
        %v3598 = vpack.c.b16 %v2900, %v2898
        %v3599 = vpack.c.b16 %v2901, %v2899
        %v3600 = vpack.c.b16 %v2904, %v2902
        %v3601 = vpack.c.b16 %v2905, %v2903
        %v3602 = vpack.c.b16 %v2908, %v2906
        %v3603 = vpack.c.b16 %v2909, %v2907
        %v3604 = vpack.c.b16 %v2912, %v2910
        %v3605 = vpack.c.b16 %v2913, %v2911
        %v3606 = vpack.c.b16 %v2916, %v2914
        %v3607 = vpack.c.b16 %v2917, %v2915
        %v3608 = vpack.c.b16 %v2920, %v2918
        %v3609 = vpack.c.b16 %v2921, %v2919
        %v3610 = vpack.c.b16 %v2924, %v2922
        %v3611 = vpack.c.b16 %v2925, %v2923
        %v3612 = vpack.c.b16 %v2928, %v2926
        %v3613 = vpack.c.b16 %v2929, %v2927
        %v3614 = vpack.c.b16 %v2932, %v2930
        %v3615 = vpack.c.b16 %v2933, %v2931
        %v3616 = vpack.c.b16 %v2936, %v2934
        %v3617 = vpack.c.b16 %v2937, %v2935
        %v3618 = vpack.c.b16 %v2940, %v2938
        %v3619 = vpack.c.b16 %v2941, %v2939
        %v3620 = vpack.c.b16 %v2944, %v2942
        %v3621 = vpack.c.b16 %v2945, %v2943
        %v3622 = vpack.c.b16 %v2948, %v2946
        %v3623 = vpack.c.b16 %v2949, %v2947
        %v3624 = vpack.c.b16 %v2952, %v2950
        %v3625 = vpack.c.b16 %v2953, %v2951
        %v3626 = vpack.c.b16 %v2956, %v2954
        %v3627 = vpack.c.b16 %v2957, %v2955
        %v3628 = vpack.c.b16 %v2960, %v2958
        %v3629 = vpack.c.b16 %v2961, %v2959
        %v3630 = vpack.c.b16 %v2964, %v2962
        %v3631 = vpack.c.b16 %v2965, %v2963
        %v3632 = vpack.c.b16 %v2968, %v2966
        %v3633 = vpack.c.b16 %v2969, %v2967
        %v3634 = vpack.c.b16 %v2972, %v2970
        %v3635 = vpack.c.b16 %v2973, %v2971
        %v3636 = vpack.c.b16 %v2976, %v2974
        %v3637 = vpack.c.b16 %v2977, %v2975
        %v3638 = vpack.c.b16 %v2980, %v2978
        %v3639 = vpack.c.b16 %v2981, %v2979
        %v3640 = vpack.c.b16 %v2984, %v2982
        %v3641 = vpack.c.b16 %v2985, %v2983
        %v3642 = vpack.c.b16 %v2988, %v2986
        %v3643 = vpack.c.b16 %v2989, %v2987
        %v3644 = vpack.c.b16 %v2992, %v2990
        %v3645 = vpack.c.b16 %v2993, %v2991
        %v3646 = vpack.c.b16 %v2996, %v2994
        %v3647 = vpack.c.b16 %v2997, %v2995
        %v3648 = vpack.c.b16 %v3000, %v2998
        %v3649 = vpack.c.b16 %v3001, %v2999
        %v3650 = vpack.c.b16 %v3004, %v3002
        %v3651 = vpack.c.b16 %v3005, %v3003
        %v3652 = vpack.c.b16 %v3008, %v3006
        %v3653 = vpack.c.b16 %v3009, %v3007
        %v3654 = vpack.c.b16 %v3012, %v3010
        %v3655 = vpack.c.b16 %v3013, %v3011
        %v3656 = vpack.c.b16 %v3016, %v3014
        %v3657 = vpack.c.b16 %v3017, %v3015
        %v3658 = vpack.c.b16 %v3020, %v3018
        %v3659 = vpack.c.b16 %v3021, %v3019
        %v3660 = vpack.c.b16 %v3024, %v3022
        %v3661 = vpack.c.b16 %v3025, %v3023
        %v3662 = vpack.c.b16 %v3028, %v3026
        %v3663 = vpack.c.b16 %v3029, %v3027
        %v3664 = vpack.c.b16 %v3032, %v3030
        %v3665 = vpack.c.b16 %v3033, %v3031
        %v3666 = vpack.c.b16 %v3036, %v3034
        %v3667 = vpack.c.b16 %v3037, %v3035
        %v3668 = vpack.c.b16 %v3040, %v3038
        %v3669 = vpack.c.b16 %v3041, %v3039
        %v3670 = vpack.c.b16 %v3044, %v3042
        %v3671 = vpack.c.b16 %v3045, %v3043
        %v3672 = vpack.c.b16 %v3048, %v3046
        %v3673 = vpack.c.b16 %v3049, %v3047
        %v3674 = vpack.c.b16 %v3052, %v3050
        %v3675 = vpack.c.b16 %v3053, %v3051
        %v3676 = vpack.c.b16 %v3056, %v3054
        %v3677 = vpack.c.b16 %v3057, %v3055
        %v3678 = vpack.c.b16 %v3060, %v3058
        %v3679 = vpack.c.b16 %v3061, %v3059
        %v3680 = vpack.c.b16 %v3064, %v3062
        %v3681 = vpack.c.b16 %v3065, %v3063
        %v3682 = vpack.c.b16 %v3068, %v3066
        %v3683 = vpack.c.b16 %v3069, %v3067
        %v3684 = vpack.c.b16 %v3072, %v3070
        %v3685 = vpack.c.b16 %v3073, %v3071
        %v3686 = vpack.c.b16 %v3076, %v3074
        %v3687 = vpack.c.b16 %v3077, %v3075
        %v3688 = vpack.c.b16 %v3080, %v3078
        %v3689 = vpack.c.b16 %v3081, %v3079
        %v3690 = vpack.c.b16 %v3084, %v3082
        %v3691 = vpack.c.b16 %v3085, %v3083
        %v3692 = vpack.c.b16 %v3088, %v3086
        %v3693 = vpack.c.b16 %v3089, %v3087
        %v3694 = vpack.c.b16 %v3092, %v3090
        %v3695 = vpack.c.b16 %v3093, %v3091
        %v3696 = vpack.c.b16 %v3096, %v3094
        %v3697 = vpack.c.b16 %v3097, %v3095
        %v3698 = vpack.c.b16 %v3100, %v3098
        %v3699 = vpack.c.b16 %v3101, %v3099
        %v3700 = vpack.c.b16 %v3104, %v3102
        %v3701 = vpack.c.b16 %v3105, %v3103
        %v3702 = vpack.c.b16 %v3108, %v3106
        %v3703 = vpack.c.b16 %v3109, %v3107
        %v3704 = vpack.c.b16 %v3112, %v3110
        %v3705 = vpack.c.b16 %v3113, %v3111
        %v3706 = vpack.c.b16 %v3116, %v3114
        %v3707 = vpack.c.b16 %v3117, %v3115
        %v3708 = vpack.c.b16 %v3120, %v3118
        %v3709 = vpack.c.b16 %v3121, %v3119
        %v3710 = vpack.c.b16 %v3124, %v3122
        %v3711 = vpack.c.b16 %v3125, %v3123
        %v3712 = vpack.c.b16 %v3128, %v3126
        %v3713 = vpack.c.b16 %v3129, %v3127
        %v3714 = vpack.c.b16 %v3132, %v3130
        %v3715 = vpack.c.b16 %v3133, %v3131
        %v3716 = vpack.c.b16 %v3136, %v3134
        %v3717 = vpack.c.b16 %v3137, %v3135
        %v3718 = vpack.c.b16 %v3140, %v3138
        %v3719 = vpack.c.b16 %v3141, %v3139
        %v3720 = vpack.c.b16 %v3144, %v3142
        %v3721 = vpack.c.b16 %v3145, %v3143
        %v3722 = vpack.c.b16 %v3148, %v3146
        %v3723 = vpack.c.b16 %v3149, %v3147
        %v3724 = vpack.c.b16 %v3152, %v3150
        %v3725 = vpack.c.b16 %v3153, %v3151
        %v3726 = vpack.c.b16 %v3156, %v3154
        %v3727 = vpack.c.b16 %v3157, %v3155
        %v3728 = vpack.c.b16 %v3160, %v3158
        %v3729 = vpack.c.b16 %v3161, %v3159
        %v3730 = vpack.c.b16 %v3164, %v3162
        %v3731 = vpack.c.b16 %v3165, %v3163
        %v3732 = vpack.c.b16 %v3168, %v3166
        %v3733 = vpack.c.b16 %v3169, %v3167
        %v3734 = vpack.c.b16 %v3172, %v3170
        %v3735 = vpack.c.b16 %v3173, %v3171
        %v3736 = vpack.c.b16 %v3176, %v3174
        %v3737 = vpack.c.b16 %v3177, %v3175
        %v3738 = vpack.c.b16 %v3180, %v3178
        %v3739 = vpack.c.b16 %v3181, %v3179
        %v3740 = vpack.c.b16 %v3184, %v3182
        %v3741 = vpack.c.b16 %v3185, %v3183
        %v3742 = vpack.c.b16 %v3188, %v3186
        %v3743 = vpack.c.b16 %v3189, %v3187
        %v3744 = vpack.c.b16 %v3192, %v3190
        %v3745 = vpack.c.b16 %v3193, %v3191
        %v3746 = vpack.c.b16 %v3196, %v3194
        %v3747 = vpack.c.b16 %v3197, %v3195
        %v3748 = vpack.c.b16 %v3200, %v3198
        %v3749 = vpack.c.b16 %v3201, %v3199
        %v3750 = vpack.c.b16 %v3204, %v3202
        %v3751 = vpack.c.b16 %v3205, %v3203
        %v3752 = vpack.c.b16 %v3208, %v3206
        %v3753 = vpack.c.b16 %v3209, %v3207
        %v3754 = vpack.c.b16 %v3212, %v3210
        %v3755 = vpack.c.b16 %v3213, %v3211
        %v3756 = vpack.c.b16 %v3216, %v3214
        %v3757 = vpack.c.b16 %v3217, %v3215
        %v3758 = vpack.c.b16 %v3220, %v3218
        %v3759 = vpack.c.b16 %v3221, %v3219
        %v3760 = vpack.c.b16 %v3224, %v3222
        %v3761 = vpack.c.b16 %v3225, %v3223
        %v3762 = vpack.c.b16 %v3228, %v3226
        %v3763 = vpack.c.b16 %v3229, %v3227
        %v3764 = vpack.c.b16 %v3232, %v3230
        %v3765 = vpack.c.b16 %v3233, %v3231
        %v3766 = vpack.c.b16 %v3236, %v3234
        %v3767 = vpack.c.b16 %v3237, %v3235
        %v3768 = vpack.c.b16 %v3240, %v3238
        %v3769 = vpack.c.b16 %v3241, %v3239
        %v3770 = vpack.c.b16 %v3244, %v3242
        %v3771 = vpack.c.b16 %v3245, %v3243
        %v3772 = vpack.c.b16 %v3248, %v3246
        %v3773 = vpack.c.b16 %v3249, %v3247
        %v3774 = vpack.c.b16 %v3252, %v3250
        %v3775 = vpack.c.b16 %v3253, %v3251
        %v3776 = vpack.c.b16 %v3256, %v3254
        %v3777 = vpack.c.b16 %v3257, %v3255
        %v3778 = vpack.c.b16 %v3260, %v3258
        %v3779 = vpack.c.b16 %v3261, %v3259
        %v3780 = vpack.c.b16 %v3264, %v3262
        %v3781 = vpack.c.b16 %v3265, %v3263
        %v3782 = vpack.c.b16 %v3268, %v3266
        %v3783 = vpack.c.b16 %v3269, %v3267
        %v3784 = vpack.c.b16 %v3272, %v3270
        %v3785 = vpack.c.b16 %v3273, %v3271
        %v3786 = vpack.c.b16 %v3276, %v3274
        %v3787 = vpack.c.b16 %v3277, %v3275
        %v3788 = vpack.c.b16 %v3280, %v3278
        %v3789 = vpack.c.b16 %v3281, %v3279
        %v3790 = vpack.c.b16 %v3284, %v3282
        %v3791 = vpack.c.b16 %v3285, %v3283
        %v3792 = vpack.c.b16 %v3288, %v3286
        %v3793 = vpack.c.b16 %v3289, %v3287
        %v3794 = vpack.c.b16 %v3292, %v3290
        %v3795 = vpack.c.b16 %v3293, %v3291
        %v3796 = vpack.c.b16 %v3296, %v3294
        %v3797 = vpack.c.b16 %v3297, %v3295
        %v3798 = vpack.c.b16 %v3300, %v3298
        %v3799 = vpack.c.b16 %v3301, %v3299
        %v3800 = vpack.c.b16 %v3304, %v3302
        %v3801 = vpack.c.b16 %v3305, %v3303
        %v3802 = vpack.c.b16 %v3308, %v3306
        %v3803 = vpack.c.b16 %v3309, %v3307
        %v3804 = vpack.c.b16 %v3312, %v3310
        %v3805 = vpack.c.b16 %v3313, %v3311
        %v3806 = vpack.c.b16 %v3316, %v3314
        %v3807 = vpack.c.b16 %v3317, %v3315
        %v3808 = vpack.c.b16 %v3320, %v3318
        %v3809 = vpack.c.b16 %v3321, %v3319
        %v3810 = vpack.c.b16 %v3324, %v3322
        %v3811 = vpack.c.b16 %v3325, %v3323
        %v3812 = vpack.c.b16 %v3328, %v3326
        %v3813 = vpack.c.b16 %v3329, %v3327
        %v3814 = vpack.c.b16 %v3332, %v3330
        %v3815 = vpack.c.b16 %v3333, %v3331
        %v3816 = vpack.c.b16 %v3336, %v3334
        %v3817 = vpack.c.b16 %v3337, %v3335
        %v3818 = vpack.c.b16 %v3340, %v3338
        %v3819 = vpack.c.b16 %v3341, %v3339
        %v3820 = vpack.c.b16 %v3344, %v3342
        %v3821 = vpack.c.b16 %v3345, %v3343
        %v3822 = vpack.c.b16 %v3348, %v3346
        %v3823 = vpack.c.b16 %v3349, %v3347
        %v3824 = vpack.c.b16 %v3352, %v3350
        %v3825 = vpack.c.b16 %v3353, %v3351
        %v3826 = vpack.c.b16 %v3356, %v3354
        %v3827 = vpack.c.b16 %v3357, %v3355
        %v3828 = vpack.c.b16 %v3360, %v3358
        %v3829 = vpack.c.b16 %v3361, %v3359
        %v3830 = vpack.c.b16 %v3364, %v3362
        %v3831 = vpack.c.b16 %v3365, %v3363
        %v3832 = vpack.c.b16 %v3368, %v3366
        %v3833 = vpack.c.b16 %v3369, %v3367
        %v3834 = vpack.c.b16 %v3372, %v3370
        %v3835 = vpack.c.b16 %v3373, %v3371
        %v3836 = vpack.c.b16 %v3376, %v3374
        %v3837 = vpack.c.b16 %v3377, %v3375
        %v3838 = vpack.c.b16 %v3380, %v3378
        %v3839 = vpack.c.b16 %v3381, %v3379
        %v3840 = vpack.c.b16 %v3384, %v3382
        %v3841 = vpack.c.b16 %v3385, %v3383
        %v3842 = vpack.c.b16 %v3388, %v3386
        %v3843 = vpack.c.b16 %v3389, %v3387
        %v3844 = vpack.c.b16 %v3392, %v3390
        %v3845 = vpack.c.b16 %v3393, %v3391
        %v3846 = vpack.c.b16 %v3396, %v3394
        %v3847 = vpack.c.b16 %v3397, %v3395
        %v3848 = vpack.c.b16 %v3400, %v3398
        %v3849 = vpack.c.b16 %v3401, %v3399
        %v3850 = vpack.c.b16 %v3404, %v3402
        %v3851 = vpack.c.b16 %v3405, %v3403
        %v3852 = vpack.c.b16 %v3408, %v3406
        %v3853 = vpack.c.b16 %v3409, %v3407
        %v3854 = vpack.c.b16 %v3412, %v3410
        %v3855 = vpack.c.b16 %v3413, %v3411
        %v3856 = vpack.c.b16 %v3416, %v3414
        %v3857 = vpack.c.b16 %v3417, %v3415
        %v3858 = vpack.c.b16 %v3420, %v3418
        %v3859 = vpack.c.b16 %v3421, %v3419
        %v3860 = vpack.c.b16 %v3424, %v3422
        %v3861 = vpack.c.b16 %v3425, %v3423
        %v3862 = vpack.c.b16 %v3428, %v3426
        %v3863 = vpack.c.b16 %v3429, %v3427
        %v3864 = vpack.c.b16 %v3432, %v3430
        %v3865 = vpack.c.b16 %v3433, %v3431
        %v3866 = vpack.c.b16 %v3436, %v3434
        %v3867 = vpack.c.b16 %v3437, %v3435
        %v3868 = vpack.c.b16 %v3440, %v3438
        %v3869 = vpack.c.b16 %v3441, %v3439
        %v3870 = vpack.c.b16 %v3444, %v3442
        %v3871 = vpack.c.b16 %v3445, %v3443
        %v3872 = vpack.c.b16 %v3448, %v3446
        %v3873 = vpack.c.b16 %v3449, %v3447
        %v3874 = vpack.c.b16 %v3452, %v3450
        %v3875 = vpack.c.b16 %v3453, %v3451
        %v3876 = vpack.c.b16 %v3456, %v3454
        %v3877 = vpack.c.b16 %v3457, %v3455
        %v3878 = vpack.c.b16 %v3460, %v3458
        %v3879 = vpack.c.b16 %v3461, %v3459
        %v3880 = vpack.c.b16 %v3464, %v3462
        %v3881 = vpack.c.b16 %v3465, %v3463
        %v3882 = vpack.c.b16 %v3468, %v3466
        %v3883 = vpack.c.b16 %v3469, %v3467
        %v3884 = vpack.c.b16 %v3472, %v3470
        %v3885 = vpack.c.b16 %v3473, %v3471
        %v3886 = vpack.c.b16 %v3476, %v3474
        %v3887 = vpack.c.b16 %v3477, %v3475
        %v3888 = vpack.c.b16 %v3480, %v3478
        %v3889 = vpack.c.b16 %v3481, %v3479
        %v3890 = vpack.c.b16 %v3484, %v3482
        %v3891 = vpack.c.b16 %v3485, %v3483
        %v3892 = vpack.c.b16 %v3488, %v3486
        %v3893 = vpack.c.b16 %v3489, %v3487
        %v3894 = vpack.c.b16 %v3492, %v3490
        %v3895 = vpack.c.b16 %v3493, %v3491
        %v3896 = vpack.c.b16 %v3496, %v3494
        %v3897 = vpack.c.b16 %v3497, %v3495
        %v3898 = vpack.c.b16 %v3500, %v3498
        %v3899 = vpack.c.b16 %v3501, %v3499
        %v3900 = vpack.c.b16 %v3504, %v3502
        %v3901 = vpack.c.b16 %v3505, %v3503
        %v3902 = vpack.c.b16 %v3508, %v3506
        %v3903 = vpack.c.b16 %v3509, %v3507
        %v3904 = vpack.c.b16 %v3512, %v3510
        %v3905 = vpack.c.b16 %v3513, %v3511
        %vm4298 = vcmask 523264
        %v4300 = vsel %vm4298, %v2313, 0
        %4302 = vmatprep.subr.bf16.mxu0 %v3515
        %4303 = vmatpush1.bf16.msra.mxu0 %v3514
        %4304 = vmatprep.subr.bf16.mxu0 %v3517
        %4305 = vmatpush1.bf16.msra.mxu0 %v3516
        %4306 = vmatprep.subr.bf16.mxu0 %v3519
        %4307 = vmatpush1.bf16.msra.mxu0 %v3518
        %4308 = vmatprep.subr.bf16.mxu0 %v3521
        %4309 = vmatpush1.bf16.msra.mxu0 %v3520
        %4310 = vmatprep.subr.bf16.mxu0 %v3523
        %4311 = vmatpush1.bf16.msra.mxu0 %v3522
        %4312 = vmatprep.subr.bf16.mxu0 %v3525
        %4313 = vmatpush1.bf16.msra.mxu0 %v3524
        %4314 = vmatprep.subr.bf16.mxu0 %v3527
        %4315 = vmatpush1.bf16.msra.mxu0 %v3526
        %4316 = vmatprep.subr.bf16.mxu0 %v3529
        %4317 = vmatpush1.bf16.msra.mxu0 %v3528
        %4318 = vmatprep.subr.bf16.mxu0 %v3531
        %4319 = vmatpush1.bf16.msra.mxu0 %v3530
        %4320 = vmatprep.subr.bf16.mxu0 %v3533
        %4321 = vmatpush1.bf16.msra.mxu0 %v3532
        %4322 = vmatprep.subr.bf16.mxu0 %v3535
        %4323 = vmatpush1.bf16.msra.mxu0 %v3534
        %4324 = vmatprep.subr.bf16.mxu0 %v3537
        %4325 = vmatpush1.bf16.msra.mxu0 %v3536
        %4326 = vmatprep.subr.bf16.mxu0 %v3539
        %4327 = vmatpush1.bf16.msra.mxu0 %v3538
        %4328 = vmatprep.subr.bf16.mxu0 %v3541
        %4329 = vmatpush1.bf16.msra.mxu0 %v3540
        %4330 = vmatprep.subr.bf16.mxu0 %v3543
        %4331 = vmatpush1.bf16.msra.mxu0 %v3542
        %4332 = vmatprep.subr.bf16.mxu0 %v3545
        %4333 = vmatpush1.bf16.msra.mxu0 %v3544
        %4334 = vmatprep.mubr.bf16.mxu0 %v2290
        %4335 = vmatmul.mubr.bf16.gmra.mrb[0].mxu0 %v2289
        %v4336 = vpop.f32.mrb[0].mxu0
        %v4337 = vadd.f32 %v2244, %v4336
        %v4338 = vpop.f32.mrb[0].mxu0
        %v4339 = vadd.f32 %v2248, %v4338
        %v4340 = vpop.f32.mrb[0].mxu0
        %v4341 = vpop.f32.mrb[0].mxu0
        %4342 = vdwg.mxu0
        %4343 = vmatprep.subr.bf16.mxu0 %v3547
        %4344 = vmatpush1.bf16.msra.mxu0 %v3546
        %4345 = vmatprep.subr.bf16.mxu0 %v3549
        %4346 = vmatpush1.bf16.msra.mxu0 %v3548
        %4347 = vmatprep.subr.bf16.mxu0 %v3551
        %4348 = vmatpush1.bf16.msra.mxu0 %v3550
        %4349 = vmatprep.subr.bf16.mxu0 %v3553
        %4350 = vmatpush1.bf16.msra.mxu0 %v3552
        %4351 = vmatprep.subr.bf16.mxu0 %v3555
        %4352 = vmatpush1.bf16.msra.mxu0 %v3554
        %4353 = vmatprep.subr.bf16.mxu0 %v3557
        %4354 = vmatpush1.bf16.msra.mxu0 %v3556
        %4355 = vmatprep.subr.bf16.mxu0 %v3559
        %4356 = vmatpush1.bf16.msra.mxu0 %v3558
        %4357 = vmatprep.subr.bf16.mxu0 %v3561
        %4358 = vmatpush1.bf16.msra.mxu0 %v3560
        %4359 = vmatprep.subr.bf16.mxu0 %v3563
        %4360 = vmatpush1.bf16.msra.mxu0 %v3562
        %4361 = vmatprep.subr.bf16.mxu0 %v3565
        %4362 = vmatpush1.bf16.msra.mxu0 %v3564
        %4363 = vmatprep.subr.bf16.mxu0 %v3567
        %4364 = vmatpush1.bf16.msra.mxu0 %v3566
        %4365 = vmatprep.subr.bf16.mxu0 %v3569
        %4366 = vmatpush1.bf16.msra.mxu0 %v3568
        %4367 = vmatprep.subr.bf16.mxu0 %v3571
        %4368 = vmatpush1.bf16.msra.mxu0 %v3570
        %4369 = vmatprep.subr.bf16.mxu0 %v3573
        %4370 = vmatpush1.bf16.msra.mxu0 %v3572
        %4371 = vmatprep.subr.bf16.mxu0 %v3575
        %4372 = vmatpush1.bf16.msra.mxu0 %v3574
        %4373 = vmatprep.subr.bf16.mxu0 %v3577
        %4374 = vmatpush1.bf16.msra.mxu0 %v3576
        %4375 = vmatprep.mubr.bf16.mxu0 %v2292
        %4376 = vmatmul.mubr.bf16.gmra.mrb[0].mxu0 %v2291
        %v4377 = vpop.f32.mrb[0].mxu0
        %v4378 = vadd.f32 %v4337, %v4377
        %v4379 = vpop.f32.mrb[0].mxu0
        %v4380 = vadd.f32 %v4339, %v4379
        %v4381 = vpop.f32.mrb[0].mxu0
        %v4382 = vpop.f32.mrb[0].mxu0
        %4383 = vdwg.mxu0
        %4384 = vmatprep.subr.bf16.mxu0 %v3579
        %4385 = vmatpush1.bf16.msra.mxu0 %v3578
        %4386 = vmatprep.subr.bf16.mxu0 %v3581
        %4387 = vmatpush1.bf16.msra.mxu0 %v3580
        %4388 = vmatprep.subr.bf16.mxu0 %v3583
        %4389 = vmatpush1.bf16.msra.mxu0 %v3582
        %4390 = vmatprep.subr.bf16.mxu0 %v3585
        %4391 = vmatpush1.bf16.msra.mxu0 %v3584
        %4392 = vmatprep.subr.bf16.mxu0 %v3587
        %4393 = vmatpush1.bf16.msra.mxu0 %v3586
        %4394 = vmatprep.subr.bf16.mxu0 %v3589
        %4395 = vmatpush1.bf16.msra.mxu0 %v3588
        %4396 = vmatprep.subr.bf16.mxu0 %v3591
        %4397 = vmatpush1.bf16.msra.mxu0 %v3590
        %4398 = vmatprep.subr.bf16.mxu0 %v3593
        %4399 = vmatpush1.bf16.msra.mxu0 %v3592
        %4400 = vmatprep.subr.bf16.mxu0 %v3595
        %4401 = vmatpush1.bf16.msra.mxu0 %v3594
        %4402 = vmatprep.subr.bf16.mxu0 %v3597
        %4403 = vmatpush1.bf16.msra.mxu0 %v3596
        %4404 = vmatprep.subr.bf16.mxu0 %v3599
        %4405 = vmatpush1.bf16.msra.mxu0 %v3598
        %4406 = vmatprep.subr.bf16.mxu0 %v3601
        %4407 = vmatpush1.bf16.msra.mxu0 %v3600
        %4408 = vmatprep.subr.bf16.mxu0 %v3603
        %4409 = vmatpush1.bf16.msra.mxu0 %v3602
        %4410 = vmatprep.subr.bf16.mxu0 %v3605
        %4411 = vmatpush1.bf16.msra.mxu0 %v3604
        %4412 = vmatprep.subr.bf16.mxu0 %v3607
        %4413 = vmatpush1.bf16.msra.mxu0 %v3606
        %4414 = vmatprep.subr.bf16.mxu0 %v3609
        %4415 = vmatpush1.bf16.msra.mxu0 %v3608
        %4416 = vmatprep.mubr.bf16.mxu0 %v2294
        %4417 = vmatmul.mubr.bf16.gmra.mrb[0].mxu0 %v2293
        %v4418 = vpop.f32.mrb[0].mxu0
        %v4419 = vadd.f32 %v4378, %v4418
        %v4420 = vpop.f32.mrb[0].mxu0
        %v4421 = vadd.f32 %v4380, %v4420
        %v4422 = vpop.f32.mrb[0].mxu0
        %v4423 = vpop.f32.mrb[0].mxu0
        %4424 = vdwg.mxu0
        %4425 = vmatprep.subr.bf16.mxu0 %v3611
        %4426 = vmatpush1.bf16.msra.mxu0 %v3610
        %4427 = vmatprep.subr.bf16.mxu0 %v3613
        %4428 = vmatpush1.bf16.msra.mxu0 %v3612
        %4429 = vmatprep.subr.bf16.mxu0 %v3615
        %4430 = vmatpush1.bf16.msra.mxu0 %v3614
        %4431 = vmatprep.subr.bf16.mxu0 %v3617
        %4432 = vmatpush1.bf16.msra.mxu0 %v3616
        %4433 = vmatprep.subr.bf16.mxu0 %v3619
        %4434 = vmatpush1.bf16.msra.mxu0 %v3618
        %4435 = vmatprep.subr.bf16.mxu0 %v3621
        %4436 = vmatpush1.bf16.msra.mxu0 %v3620
        %4437 = vmatprep.subr.bf16.mxu0 %v3623
        %4438 = vmatpush1.bf16.msra.mxu0 %v3622
        %4439 = vmatprep.subr.bf16.mxu0 %v3625
        %4440 = vmatpush1.bf16.msra.mxu0 %v3624
        %4441 = vmatprep.subr.bf16.mxu0 %v3627
        %4442 = vmatpush1.bf16.msra.mxu0 %v3626
        %4443 = vmatprep.subr.bf16.mxu0 %v3629
        %4444 = vmatpush1.bf16.msra.mxu0 %v3628
        %4445 = vmatprep.subr.bf16.mxu0 %v3631
        %4446 = vmatpush1.bf16.msra.mxu0 %v3630
        %4447 = vmatprep.subr.bf16.mxu0 %v3633
        %4448 = vmatpush1.bf16.msra.mxu0 %v3632
        %4449 = vmatprep.subr.bf16.mxu0 %v3635
        %4450 = vmatpush1.bf16.msra.mxu0 %v3634
        %4451 = vmatprep.subr.bf16.mxu0 %v3637
        %4452 = vmatpush1.bf16.msra.mxu0 %v3636
        %4453 = vmatprep.subr.bf16.mxu0 %v3639
        %4454 = vmatpush1.bf16.msra.mxu0 %v3638
        %4455 = vmatprep.subr.bf16.mxu0 %v3641
        %4456 = vmatpush1.bf16.msra.mxu0 %v3640
        %4457 = vmatprep.mubr.bf16.mxu0 %v2296
        %4458 = vmatmul.mubr.bf16.gmra.mrb[0].mxu0 %v2295
        %v4459 = vpop.f32.mrb[0].mxu0
        %v4460 = vadd.f32 %v4419, %v4459
        %v4461 = vpop.f32.mrb[0].mxu0
        %v4462 = vadd.f32 %v4421, %v4461
        %v4463 = vpop.f32.mrb[0].mxu0
        %v4464 = vpop.f32.mrb[0].mxu0
        %4465 = vdwg.mxu0
        %4466 = vmatprep.subr.bf16.mxu0 %v3643
        %4467 = vmatpush1.bf16.msra.mxu0 %v3642
        %4468 = vmatprep.subr.bf16.mxu0 %v3645
        %4469 = vmatpush1.bf16.msra.mxu0 %v3644
        %4470 = vmatprep.subr.bf16.mxu0 %v3647
        %4471 = vmatpush1.bf16.msra.mxu0 %v3646
        %4472 = vmatprep.subr.bf16.mxu0 %v3649
        %4473 = vmatpush1.bf16.msra.mxu0 %v3648
        %4474 = vmatprep.subr.bf16.mxu0 %v3651
        %4475 = vmatpush1.bf16.msra.mxu0 %v3650
        %4476 = vmatprep.subr.bf16.mxu0 %v3653
        %4477 = vmatpush1.bf16.msra.mxu0 %v3652
        %4478 = vmatprep.subr.bf16.mxu0 %v3655
        %4479 = vmatpush1.bf16.msra.mxu0 %v3654
        %4480 = vmatprep.subr.bf16.mxu0 %v3657
        %4481 = vmatpush1.bf16.msra.mxu0 %v3656
        %4482 = vmatprep.subr.bf16.mxu0 %v3659
        %4483 = vmatpush1.bf16.msra.mxu0 %v3658
        %4484 = vmatprep.subr.bf16.mxu0 %v3661
        %4485 = vmatpush1.bf16.msra.mxu0 %v3660
        %4486 = vmatprep.subr.bf16.mxu0 %v3663
        %4487 = vmatpush1.bf16.msra.mxu0 %v3662
        %4488 = vmatprep.subr.bf16.mxu0 %v3665
        %4489 = vmatpush1.bf16.msra.mxu0 %v3664
        %4490 = vmatprep.subr.bf16.mxu0 %v3667
        %4491 = vmatpush1.bf16.msra.mxu0 %v3666
        %4492 = vmatprep.subr.bf16.mxu0 %v3669
        %4493 = vmatpush1.bf16.msra.mxu0 %v3668
        %4494 = vmatprep.subr.bf16.mxu0 %v3671
        %4495 = vmatpush1.bf16.msra.mxu0 %v3670
        %4496 = vmatprep.subr.bf16.mxu0 %v3673
        %4497 = vmatpush1.bf16.msra.mxu0 %v3672
        %4498 = vmatprep.mubr.bf16.mxu0 %v2298
        %4499 = vmatmul.mubr.bf16.gmra.mrb[0].mxu0 %v2297
        %v4500 = vpop.f32.mrb[0].mxu0
        %v4501 = vadd.f32 %v4460, %v4500
        %v4502 = vpop.f32.mrb[0].mxu0
        %v4503 = vadd.f32 %v4462, %v4502
        %v4504 = vpop.f32.mrb[0].mxu0
        %v4505 = vpop.f32.mrb[0].mxu0
        %4506 = vdwg.mxu0
        %4507 = vmatprep.subr.bf16.mxu0 %v3675
        %4508 = vmatpush1.bf16.msra.mxu0 %v3674
        %4509 = vmatprep.subr.bf16.mxu0 %v3677
        %4510 = vmatpush1.bf16.msra.mxu0 %v3676
        %4511 = vmatprep.subr.bf16.mxu0 %v3679
        %4512 = vmatpush1.bf16.msra.mxu0 %v3678
        %4513 = vmatprep.subr.bf16.mxu0 %v3681
        %4514 = vmatpush1.bf16.msra.mxu0 %v3680
        %4515 = vmatprep.subr.bf16.mxu0 %v3683
        %4516 = vmatpush1.bf16.msra.mxu0 %v3682
        %4517 = vmatprep.subr.bf16.mxu0 %v3685
        %4518 = vmatpush1.bf16.msra.mxu0 %v3684
        %4519 = vmatprep.subr.bf16.mxu0 %v3687
        %4520 = vmatpush1.bf16.msra.mxu0 %v3686
        %4521 = vmatprep.subr.bf16.mxu0 %v3689
        %4522 = vmatpush1.bf16.msra.mxu0 %v3688
        %4523 = vmatprep.subr.bf16.mxu0 %v3691
        %4524 = vmatpush1.bf16.msra.mxu0 %v3690
        %4525 = vmatprep.subr.bf16.mxu0 %v3693
        %4526 = vmatpush1.bf16.msra.mxu0 %v3692
        %4527 = vmatprep.subr.bf16.mxu0 %v3695
        %4528 = vmatpush1.bf16.msra.mxu0 %v3694
        %4529 = vmatprep.subr.bf16.mxu0 %v3697
        %4530 = vmatpush1.bf16.msra.mxu0 %v3696
        %4531 = vmatprep.subr.bf16.mxu0 %v3699
        %4532 = vmatpush1.bf16.msra.mxu0 %v3698
        %4533 = vmatprep.subr.bf16.mxu0 %v3701
        %4534 = vmatpush1.bf16.msra.mxu0 %v3700
        %4535 = vmatprep.subr.bf16.mxu0 %v3703
        %4536 = vmatpush1.bf16.msra.mxu0 %v3702
        %4537 = vmatprep.subr.bf16.mxu0 %v3705
        %4538 = vmatpush1.bf16.msra.mxu0 %v3704
        %4539 = vmatprep.mubr.bf16.mxu0 %v2300
        %4540 = vmatmul.mubr.bf16.gmra.mrb[0].mxu0 %v2299
        %v4541 = vpop.f32.mrb[0].mxu0
        %v4542 = vadd.f32 %v4501, %v4541
        %v4543 = vpop.f32.mrb[0].mxu0
        %v4544 = vadd.f32 %v4503, %v4543
        %v4545 = vpop.f32.mrb[0].mxu0
        %v4546 = vpop.f32.mrb[0].mxu0
        %4547 = vdwg.mxu0
        %4548 = vmatprep.subr.bf16.mxu0 %v3707
        %4549 = vmatpush1.bf16.msra.mxu0 %v3706
        %4550 = vmatprep.subr.bf16.mxu0 %v3709
        %4551 = vmatpush1.bf16.msra.mxu0 %v3708
        %4552 = vmatprep.subr.bf16.mxu0 %v3711
        %4553 = vmatpush1.bf16.msra.mxu0 %v3710
        %4554 = vmatprep.subr.bf16.mxu0 %v3713
        %4555 = vmatpush1.bf16.msra.mxu0 %v3712
        %4556 = vmatprep.subr.bf16.mxu0 %v3715
        %4557 = vmatpush1.bf16.msra.mxu0 %v3714
        %4558 = vmatprep.subr.bf16.mxu0 %v3717
        %4559 = vmatpush1.bf16.msra.mxu0 %v3716
        %4560 = vmatprep.subr.bf16.mxu0 %v3719
        %4561 = vmatpush1.bf16.msra.mxu0 %v3718
        %4562 = vmatprep.subr.bf16.mxu0 %v3721
        %4563 = vmatpush1.bf16.msra.mxu0 %v3720
        %4564 = vmatprep.subr.bf16.mxu0 %v3723
        %4565 = vmatpush1.bf16.msra.mxu0 %v3722
        %4566 = vmatprep.subr.bf16.mxu0 %v3725
        %4567 = vmatpush1.bf16.msra.mxu0 %v3724
        %4568 = vmatprep.subr.bf16.mxu0 %v3727
        %4569 = vmatpush1.bf16.msra.mxu0 %v3726
        %4570 = vmatprep.subr.bf16.mxu0 %v3729
        %4571 = vmatpush1.bf16.msra.mxu0 %v3728
        %4572 = vmatprep.subr.bf16.mxu0 %v3731
        %4573 = vmatpush1.bf16.msra.mxu0 %v3730
        %4574 = vmatprep.subr.bf16.mxu0 %v3733
        %4575 = vmatpush1.bf16.msra.mxu0 %v3732
        %4576 = vmatprep.subr.bf16.mxu0 %v3735
        %4577 = vmatpush1.bf16.msra.mxu0 %v3734
        %4578 = vmatprep.subr.bf16.mxu0 %v3737
        %4579 = vmatpush1.bf16.msra.mxu0 %v3736
        %4580 = vmatprep.mubr.bf16.mxu0 %v2302
        %4581 = vmatmul.mubr.bf16.gmra.mrb[0].mxu0 %v2301
        %v4582 = vpop.f32.mrb[0].mxu0
        %v4583 = vadd.f32 %v4542, %v4582
        %v4584 = vpop.f32.mrb[0].mxu0
        %v4585 = vadd.f32 %v4544, %v4584
        %v4586 = vpop.f32.mrb[0].mxu0
        %v4587 = vpop.f32.mrb[0].mxu0
        %4588 = vdwg.mxu0
        %4589 = vmatprep.subr.bf16.mxu0 %v3739
        %4590 = vmatpush1.bf16.msra.mxu0 %v3738
        %4591 = vmatprep.subr.bf16.mxu0 %v3741
        %4592 = vmatpush1.bf16.msra.mxu0 %v3740
        %4593 = vmatprep.subr.bf16.mxu0 %v3743
        %4594 = vmatpush1.bf16.msra.mxu0 %v3742
        %4595 = vmatprep.subr.bf16.mxu0 %v3745
        %4596 = vmatpush1.bf16.msra.mxu0 %v3744
        %4597 = vmatprep.subr.bf16.mxu0 %v3747
        %4598 = vmatpush1.bf16.msra.mxu0 %v3746
        %4599 = vmatprep.subr.bf16.mxu0 %v3749
        %4600 = vmatpush1.bf16.msra.mxu0 %v3748
        %4601 = vmatprep.subr.bf16.mxu0 %v3751
        %4602 = vmatpush1.bf16.msra.mxu0 %v3750
        %4603 = vmatprep.subr.bf16.mxu0 %v3753
        %4604 = vmatpush1.bf16.msra.mxu0 %v3752
        %4605 = vmatprep.subr.bf16.mxu0 %v3755
        %4606 = vmatpush1.bf16.msra.mxu0 %v3754
        %4607 = vmatprep.subr.bf16.mxu0 %v3757
        %4608 = vmatpush1.bf16.msra.mxu0 %v3756
        %4609 = vmatprep.subr.bf16.mxu0 %v3759
        %4610 = vmatpush1.bf16.msra.mxu0 %v3758
        %4611 = vmatprep.subr.bf16.mxu0 %v3761
        %4612 = vmatpush1.bf16.msra.mxu0 %v3760
        %4613 = vmatprep.subr.bf16.mxu0 %v3763
        %4614 = vmatpush1.bf16.msra.mxu0 %v3762
        %4615 = vmatprep.subr.bf16.mxu0 %v3765
        %4616 = vmatpush1.bf16.msra.mxu0 %v3764
        %4617 = vmatprep.subr.bf16.mxu0 %v3767
        %4618 = vmatpush1.bf16.msra.mxu0 %v3766
        %4619 = vmatprep.subr.bf16.mxu0 %v3769
        %4620 = vmatpush1.bf16.msra.mxu0 %v3768
        %4621 = vmatprep.mubr.bf16.mxu0 %v2304
        %4622 = vmatmul.mubr.bf16.gmra.mrb[0].mxu0 %v2303
        %v4623 = vpop.f32.mrb[0].mxu0
        %v4624 = vadd.f32 %v4583, %v4623
        %v4625 = vpop.f32.mrb[0].mxu0
        %v4626 = vadd.f32 %v4585, %v4625
        %v4627 = vpop.f32.mrb[0].mxu0
        %v4628 = vpop.f32.mrb[0].mxu0
        %4629 = vdwg.mxu0
        %4630 = vmatprep.subr.bf16.mxu0 %v3771
        %4631 = vmatpush1.bf16.msra.mxu0 %v3770
        %4632 = vmatprep.subr.bf16.mxu0 %v3773
        %4633 = vmatpush1.bf16.msra.mxu0 %v3772
        %4634 = vmatprep.subr.bf16.mxu0 %v3775
        %4635 = vmatpush1.bf16.msra.mxu0 %v3774
        %4636 = vmatprep.subr.bf16.mxu0 %v3777
        %4637 = vmatpush1.bf16.msra.mxu0 %v3776
        %4638 = vmatprep.subr.bf16.mxu0 %v3779
        %4639 = vmatpush1.bf16.msra.mxu0 %v3778
        %4640 = vmatprep.subr.bf16.mxu0 %v3781
        %4641 = vmatpush1.bf16.msra.mxu0 %v3780
        %4642 = vmatprep.subr.bf16.mxu0 %v3783
        %4643 = vmatpush1.bf16.msra.mxu0 %v3782
        %4644 = vmatprep.subr.bf16.mxu0 %v3785
        %4645 = vmatpush1.bf16.msra.mxu0 %v3784
        %4646 = vmatprep.subr.bf16.mxu0 %v3787
        %4647 = vmatpush1.bf16.msra.mxu0 %v3786
        %4648 = vmatprep.subr.bf16.mxu0 %v3789
        %4649 = vmatpush1.bf16.msra.mxu0 %v3788
        %4650 = vmatprep.subr.bf16.mxu0 %v3791
        %4651 = vmatpush1.bf16.msra.mxu0 %v3790
        %4652 = vmatprep.subr.bf16.mxu0 %v3793
        %4653 = vmatpush1.bf16.msra.mxu0 %v3792
        %4654 = vmatprep.subr.bf16.mxu0 %v3795
        %4655 = vmatpush1.bf16.msra.mxu0 %v3794
        %4656 = vmatprep.subr.bf16.mxu0 %v3797
        %4657 = vmatpush1.bf16.msra.mxu0 %v3796
        %4658 = vmatprep.subr.bf16.mxu0 %v3799
        %4659 = vmatpush1.bf16.msra.mxu0 %v3798
        %4660 = vmatprep.subr.bf16.mxu0 %v3801
        %4661 = vmatpush1.bf16.msra.mxu0 %v3800
        %4662 = vmatprep.mubr.bf16.mxu0 %v2306
        %4663 = vmatmul.mubr.bf16.gmra.mrb[0].mxu0 %v2305
        %v4664 = vpop.f32.mrb[0].mxu0
        %v4665 = vadd.f32 %v4624, %v4664
        %v4666 = vpop.f32.mrb[0].mxu0
        %v4667 = vadd.f32 %v4626, %v4666
        %v4668 = vpop.f32.mrb[0].mxu0
        %v4669 = vpop.f32.mrb[0].mxu0
        %4670 = vdwg.mxu0
        %4671 = vmatprep.subr.bf16.mxu0 %v3803
        %4672 = vmatpush1.bf16.msra.mxu0 %v3802
        %4673 = vmatprep.subr.bf16.mxu0 %v3805
        %4674 = vmatpush1.bf16.msra.mxu0 %v3804
        %4675 = vmatprep.subr.bf16.mxu0 %v3807
        %4676 = vmatpush1.bf16.msra.mxu0 %v3806
        %4677 = vmatprep.subr.bf16.mxu0 %v3809
        %4678 = vmatpush1.bf16.msra.mxu0 %v3808
        %4679 = vmatprep.subr.bf16.mxu0 %v3811
        %4680 = vmatpush1.bf16.msra.mxu0 %v3810
        %4681 = vmatprep.subr.bf16.mxu0 %v3813
        %4682 = vmatpush1.bf16.msra.mxu0 %v3812
        %4683 = vmatprep.subr.bf16.mxu0 %v3815
        %4684 = vmatpush1.bf16.msra.mxu0 %v3814
        %4685 = vmatprep.subr.bf16.mxu0 %v3817
        %4686 = vmatpush1.bf16.msra.mxu0 %v3816
        %4687 = vmatprep.subr.bf16.mxu0 %v3819
        %4688 = vmatpush1.bf16.msra.mxu0 %v3818
        %4689 = vmatprep.subr.bf16.mxu0 %v3821
        %4690 = vmatpush1.bf16.msra.mxu0 %v3820
        %4691 = vmatprep.subr.bf16.mxu0 %v3823
        %4692 = vmatpush1.bf16.msra.mxu0 %v3822
        %4693 = vmatprep.subr.bf16.mxu0 %v3825
        %4694 = vmatpush1.bf16.msra.mxu0 %v3824
        %4695 = vmatprep.subr.bf16.mxu0 %v3827
        %4696 = vmatpush1.bf16.msra.mxu0 %v3826
        %4697 = vmatprep.subr.bf16.mxu0 %v3829
        %4698 = vmatpush1.bf16.msra.mxu0 %v3828
        %4699 = vmatprep.subr.bf16.mxu0 %v3831
        %4700 = vmatpush1.bf16.msra.mxu0 %v3830
        %4701 = vmatprep.subr.bf16.mxu0 %v3833
        %4702 = vmatpush1.bf16.msra.mxu0 %v3832
        %4703 = vmatprep.mubr.bf16.mxu0 %v2308
        %4704 = vmatmul.mubr.bf16.gmra.mrb[0].mxu0 %v2307
        %v4705 = vpop.f32.mrb[0].mxu0
        %v4706 = vadd.f32 %v4665, %v4705
        %v4707 = vpop.f32.mrb[0].mxu0
        %v4708 = vadd.f32 %v4667, %v4707
        %v4709 = vpop.f32.mrb[0].mxu0
        %v4710 = vpop.f32.mrb[0].mxu0
        %4711 = vdwg.mxu0
        %4712 = vmatprep.subr.bf16.mxu0 %v3835
        %4713 = vmatpush1.bf16.msra.mxu0 %v3834
        %4714 = vmatprep.subr.bf16.mxu0 %v3837
        %4715 = vmatpush1.bf16.msra.mxu0 %v3836
        %4716 = vmatprep.subr.bf16.mxu0 %v3839
        %4717 = vmatpush1.bf16.msra.mxu0 %v3838
        %4718 = vmatprep.subr.bf16.mxu0 %v3841
        %4719 = vmatpush1.bf16.msra.mxu0 %v3840
        %4720 = vmatprep.subr.bf16.mxu0 %v3843
        %4721 = vmatpush1.bf16.msra.mxu0 %v3842
        %4722 = vmatprep.subr.bf16.mxu0 %v3845
        %4723 = vmatpush1.bf16.msra.mxu0 %v3844
        %4724 = vmatprep.subr.bf16.mxu0 %v3847
        %4725 = vmatpush1.bf16.msra.mxu0 %v3846
        %4726 = vmatprep.subr.bf16.mxu0 %v3849
        %4727 = vmatpush1.bf16.msra.mxu0 %v3848
        %4728 = vmatprep.subr.bf16.mxu0 %v3851
        %4729 = vmatpush1.bf16.msra.mxu0 %v3850
        %4730 = vmatprep.subr.bf16.mxu0 %v3853
        %4731 = vmatpush1.bf16.msra.mxu0 %v3852
        %4732 = vmatprep.subr.bf16.mxu0 %v3855
        %4733 = vmatpush1.bf16.msra.mxu0 %v3854
        %4734 = vmatprep.subr.bf16.mxu0 %v3857
        %4735 = vmatpush1.bf16.msra.mxu0 %v3856
        %4736 = vmatprep.subr.bf16.mxu0 %v3859
        %4737 = vmatpush1.bf16.msra.mxu0 %v3858
        %4738 = vmatprep.subr.bf16.mxu0 %v3861
        %4739 = vmatpush1.bf16.msra.mxu0 %v3860
        %4740 = vmatprep.subr.bf16.mxu0 %v3863
        %4741 = vmatpush1.bf16.msra.mxu0 %v3862
        %4742 = vmatprep.subr.bf16.mxu0 %v3865
        %4743 = vmatpush1.bf16.msra.mxu0 %v3864
        %4744 = vmatprep.mubr.bf16.mxu0 %v2310
        %4745 = vmatmul.mubr.bf16.gmra.mrb[0].mxu0 %v2309
        %v4746 = vpop.f32.mrb[0].mxu0
        %v4747 = vadd.f32 %v4706, %v4746
        %v4748 = vpop.f32.mrb[0].mxu0
        %v4749 = vadd.f32 %v4708, %v4748
        %v4750 = vpop.f32.mrb[0].mxu0
        %v4751 = vpop.f32.mrb[0].mxu0
        %4752 = vdwg.mxu0
        %4753 = vmatprep.subr.bf16.mxu0 %v3867
        %4754 = vmatpush1.bf16.msra.mxu0 %v3866
        %4755 = vmatprep.subr.bf16.mxu0 %v3869
        %4756 = vmatpush1.bf16.msra.mxu0 %v3868
        %4757 = vmatprep.subr.bf16.mxu0 %v3871
        %4758 = vmatpush1.bf16.msra.mxu0 %v3870
        %4759 = vmatprep.subr.bf16.mxu0 %v3873
        %4760 = vmatpush1.bf16.msra.mxu0 %v3872
        %4761 = vmatprep.subr.bf16.mxu0 %v3875
        %4762 = vmatpush1.bf16.msra.mxu0 %v3874
        %4763 = vmatprep.subr.bf16.mxu0 %v3877
        %4764 = vmatpush1.bf16.msra.mxu0 %v3876
        %4765 = vmatprep.subr.bf16.mxu0 %v3879
        %4766 = vmatpush1.bf16.msra.mxu0 %v3878
        %4767 = vmatprep.subr.bf16.mxu0 %v3881
        %4768 = vmatpush1.bf16.msra.mxu0 %v3880
        %4769 = vmatprep.subr.bf16.mxu0 %v3883
        %4770 = vmatpush1.bf16.msra.mxu0 %v3882
        %4771 = vmatprep.subr.bf16.mxu0 %v3885
        %4772 = vmatpush1.bf16.msra.mxu0 %v3884
        %4773 = vmatprep.subr.bf16.mxu0 %v3887
        %4774 = vmatpush1.bf16.msra.mxu0 %v3886
        %4775 = vmatprep.subr.bf16.mxu0 %v3889
        %4776 = vmatpush1.bf16.msra.mxu0 %v3888
        %4777 = vmatprep.subr.bf16.mxu0 %v3891
        %4778 = vmatpush1.bf16.msra.mxu0 %v3890
        %4779 = vmatprep.subr.bf16.mxu0 %v3893
        %4780 = vmatpush1.bf16.msra.mxu0 %v3892
        %4781 = vmatprep.subr.bf16.mxu0 %v3895
        %4782 = vmatpush1.bf16.msra.mxu0 %v3894
        %4783 = vmatprep.subr.bf16.mxu0 %v3897
        %4784 = vmatpush1.bf16.msra.mxu0 %v3896
        %4785 = vmatprep.mubr.bf16.mxu0 %v2312
        %4786 = vmatmul.mubr.bf16.gmra.mrb[0].mxu0 %v2311
        %v4787 = vpop.f32.mrb[0].mxu0
        %v4788 = vadd.f32 %v4747, %v4787
        %v4789 = vpop.f32.mrb[0].mxu0
        %v4790 = vadd.f32 %v4749, %v4789
        %v4791 = vpop.f32.mrb[0].mxu0
        %v4792 = vpop.f32.mrb[0].mxu0
        %4793 = vdwg.mxu0
        %4794 = vmatprep.subr.bf16.mxu0 %v3899
        %4795 = vmatpush1.bf16.msra.mxu0 %v3898
        %4796 = vmatprep.subr.bf16.mxu0 %v3901
        %4797 = vmatpush1.bf16.msra.mxu0 %v3900
        %4798 = vmatprep.subr.bf16.mxu0 %v3903
        %4799 = vmatpush1.bf16.msra.mxu0 %v3902
        %4800 = vmatprep.subr.bf16.mxu0 %v3905
        %4801 = vmatpush1.bf16.msra.mxu0 %v3904
        %4802 = vmatprep.subr.bf16.mxu0 0
        %4803 = vmatpush1.bf16.msra.mxu0 0
        %4804 = vmatprep.subr.bf16.mxu0 0
        %4805 = vmatpush1.bf16.msra.mxu0 0
        %4806 = vmatprep.subr.bf16.mxu0 0
        %4807 = vmatpush1.bf16.msra.mxu0 0
        %4808 = vmatprep.subr.bf16.mxu0 0
        %4809 = vmatpush1.bf16.msra.mxu0 0
        %4810 = vmatprep.subr.bf16.mxu0 0
        %4811 = vmatpush1.bf16.msra.mxu0 0
        %4812 = vmatprep.subr.bf16.mxu0 0
        %4813 = vmatpush1.bf16.msra.mxu0 0
        %4814 = vmatprep.subr.bf16.mxu0 0
        %4815 = vmatpush1.bf16.msra.mxu0 0
        %4816 = vmatprep.subr.bf16.mxu0 0
        %4817 = vmatpush1.bf16.msra.mxu0 0
        %4818 = vmatprep.subr.bf16.mxu0 0
        %4819 = vmatpush1.bf16.msra.mxu0 0
        %4820 = vmatprep.subr.bf16.mxu0 0
        %4821 = vmatpush1.bf16.msra.mxu0 0
        %4822 = vmatprep.subr.bf16.mxu0 0
        %4823 = vmatpush1.bf16.msra.mxu0 0
        %4824 = vmatprep.subr.bf16.mxu0 0
        %4825 = vmatpush1.bf16.msra.mxu0 0
        %4826 = vmatprep.mubr.bf16.mxu0 0
        %4827 = vmatmul.mubr.bf16.gmra.mrb[0].mxu0 %v4300
        %v4828 = vpop.f32.mrb[0].mxu0
        %v4829 = vadd.f32 %v4788, %v4828
        %v4830 = vpop.f32.mrb[0].mxu0
        %v4831 = vadd.f32 %v4790, %v4830
        %v4832 = vpop.f32.mrb[0].mxu0
        %v4833 = vpop.f32.mrb[0].mxu0
        %4834 = vdwg.mxu0
        %v4835 = vmax.f32 %v4829, 0.0
        %v4836 = vmax.f32 %v4831, 0.0
        %v4837 = vpack.c.bf16 %v4835, %v4835
        %v4838 = vpack.c.bf16 %v4836, %v4836
        %v4841 = vunpack.c.l.b16 %v4837
        %v4842 = vunpack.c.l.b16 %v4838
        %v4843 = vpack.c.b16 %v4842, %v4841
        %4845 = vst [vmem:[%s1831] sm:$0xff] %v4843
        %s4846 = smul.u32 2, %s19
        %p4847 = scmp.lt.s32.totalorder %s18, 0
        %s4848 = scalar_select %p4847, %s18, 0
        %p4849 = scmp.lt.s32.totalorder %s4846, 7
        %s4850 = scalar_select %p4849, %s4846, 7
        %s4851 = smul.addr %s4848, 8
        %s4852 = sadd.s32 %s4850, %s4851
        %s4853 = smul.addr %s4852, 4
        %s4854 = scalar_lea.vmem %s3, %s4853
        // Predicated region
        $region71: #{dueling_dqn_forward.8} parent=65 // pred_check
          %p4855 = pneg %p124
        $region72: #{dueling_dqn_forward.8} parent=65 // pred_check_branch
          %4857 = sbr.rel (%p4855) target = $region74
        $region73: #{dueling_dqn_forward.8} parent=65 // pred_region
          %s4858 = smul.u32 2, %s19
        $region74: #{dueling_dqn_forward.8} parent=65 // pred_fallthru
          _
      $region66: #{dueling_dqn_forward.8} parent=5 // pred_fallthru
        _
      %p4859 = scmp.le.s32.totalorder 2, %s9
      // Predicated region
      $region75: #{dueling_dqn_forward.8} parent=5 // pred_check
        %p4860 = pneg %p4859
      $region76: #{dueling_dqn_forward.8} parent=5 // pred_check_branch
        %4862 = sbr.rel (%p4860) target = $region78
      $region77: #{dueling_dqn_forward.8} parent=5 // pred_region
        %s4863 = ssub.s32 %s9, 2
        // Predicated region
        $region79: #{dueling_dqn_forward.8} parent=77 // pred_check
          %p4864 = pneg %p130
        $region80: #{dueling_dqn_forward.8} parent=77 // pred_check_branch
          %4866 = sbr.rel (%p4864) target = $region82
        $region81: #{dueling_dqn_forward.8} parent=77 // pred_region
          %s4867 = smul.u32 2, %s21
          %p4868 = scmp.lt.s32.totalorder %s20, 0
          %s4869 = scalar_select %p4868, %s20, 0
          %p4870 = scmp.lt.s32.totalorder %s4867, 7
          %s4871 = scalar_select %p4870, %s4867, 7
          %s4872 = smul.addr %s4869, 8
          %s4873 = sadd.s32 %s4871, %s4872
          %s4874 = smul.addr %s4873, 4
          %s4875 = scalar_lea.vmem %s3, %s4874
        $region82: #{dueling_dqn_forward.8} parent=77 // pred_fallthru
          _
      $region78: #{dueling_dqn_forward.8} parent=5 // pred_fallthru
        _
    $region6: #{dueling_dqn_forward.8} parent=1 // loop_footer
      %s13 = sadd.s32 1, %s9
    $region7: #{dueling_dqn_forward.8} parent=1 // loop_footer_branch
      %8 = sbr.rel target = $region3
    $region8: #{dueling_dqn_forward.8} parent=1 // loop_exit
      _

</llo_original>
